<compile_context>
chip_gen: v7x
topology: tpu7x:2x2x1
jax: 0.10.0
libtpu: 0.0.40
codegen_flags: <defaults>
</compile_context>

<pallas_src>
import math

import numpy as np

import jax
import jax.numpy as jnp
from jax.experimental import pallas as pl
from jax.experimental.pallas import tpu as pltpu

# ----- module hyper-parameters (mirroring the module's __init__) -------------
IN_DIM = 2
OUT_DIM = 3
NUM_LAYERS = 3
HIDDEN_DIM = 64
LC0_DIM = 20            # n_hidden_fl
N_KERNEL = 64
CMIN, CMAX = -1.0, 1.0
LC_INIT = 0.3           # lc_init[0]
LCB_INIT = 0.01         # lcb_init[0]


def _round_up(v, m):
    return (v + m - 1) // m * m


def _tpu_generation():
    """Best-effort TPU generation detection (4/5/6/7); None if unknown."""
    try:
        kind = jax.devices()[0].device_kind.lower()
    except Exception:
        return None
    if "v7" in kind or "7x" in kind:
        return 7
    if "v6" in kind:
        return 6
    if "v5" in kind:
        return 5
    if "v4" in kind:
        return 4
    return None


# ----- Pallas kernel: RBF + fused-lc0 ReLU MLP, (features, points) layout ----
def _make_rbf_mlp_kernel(apply_ks, compute_dtype):
    """apply_ks: multiply |x - kc| by the per-kernel ks (K,1) inside the kernel.
    compute_dtype: dtype of the heavy (K, tile_p) elementwise passes."""

    def kernel(xT_ref, kc_ref, ks_ref,
               w0_ref, b0_ref, w1_ref, b1_ref, w2_ref, b2_ref,
               o_ref):
        in_dim = xT_ref.shape[0]

        ks = ks_ref[...].astype(compute_dtype) if apply_ks else None     # (K, 1)

        # 'nlin_s' RBF: rbf[k, p] = prod_d relu(1 - ks[k] * |x[p,d] - kc[k,d]|)
        # (K,1) and (1,TP) operands splat per-vreg inside the fused elementwise
        # expression -- no materialized (K, tile_p) broadcast buffers.
        rbf = None
        for d in range(in_dim):                                   # tiny static loop
            xd = xT_ref[d:d + 1, :].astype(compute_dtype)         # (1, TP)
            kcd = kc_ref[:, d:d + 1].astype(compute_dtype)        # (K, 1)
            diff = jnp.abs(kcd - xd)                              # (K, TP)
            if apply_ks:
                diff = ks * diff
            term = jnp.maximum(1.0 - diff, 0.0)
            rbf = term if rbf is None else rbf * term

        rbf = rbf.astype(jnp.bfloat16)          # no-op when compute_dtype == bf16

        # layer 0 with lc0 fused in: h = relu(W0' @ rbf + b0'); relu+cast fused.
        h = jnp.dot(w0_ref[...], rbf, preferred_element_type=jnp.float32)
        h = jnp.maximum(h + b0_ref[...], 0.0).astype(jnp.bfloat16)
        h = jnp.dot(w1_ref[...], h, preferred_element_type=jnp.float32)
        h = jnp.maximum(h + b1_ref[...], 0.0).astype(jnp.bfloat16)
        y = jnp.dot(w2_ref[...], h, preferred_element_type=jnp.float32) + b2_ref[...]

        o_ref[...] = y.astype(o_ref.dtype)      # (OUT_PAD, TP) lane-dense store

    return kernel


def _choose_tile_p(num_points, gen, ew_bf16, requested=None):
    """Generation-aware point-tile size (multiple of 128)."""
    p128 = _round_up(max(int(num_points), 1), 128)
    if requested is not None:
        cap = max(128, _round_up(int(requested), 128))
    elif gen == 7:
        cap = 16384 if ew_bf16 else 8192     # v7x: 64 MiB/TC VMEM budget
    else:
        cap = 8192                           # v5e/v6e: single TC, big tiles
    tile = min(cap, p128)
    if gen == 7 and p128 >= 256:
        # Two TensorCores: keep the grid-step count even (and >= 2).
        steps = -(-p128 // tile)
        if steps % 2 == 1:
            steps += 1
        tile = _round_up(-(-p128 // steps), 128)
    return tile


def rbf_forward_pallas(x_g, params, *, tile_p=None):
    P, D = x_g.shape
    kc = params["kc"].astype(jnp.float32)
    ks = params["ks"].astype(jnp.float32)
    lc0w, lcb0 = params["lc0w"], params["lcb0"]
    w0, b0 = params["w0"], params["b0"]
    w1, b1 = params["w1"], params["b1"]
    w2, b2 = params["w2"], params["b2"]
    out_dim = w2.shape[1]

    gen = _tpu_generation()
    ew_bf16 = gen in (6, 7)                 # bf16 VALU on v6e/v7x; f32 on v5e
    compute_dtype = jnp.bfloat16 if ew_bf16 else jnp.float32

    # Exact fusion of lc0 into layer 0 (lc_act == 'none'): no nonlinearity
    # between lc0 and W0, so (rbf@lc0w + lcb0)@W0 + b0 == rbf@(lc0w@W0) + (lcb0@W0 + b0)
    w0f = jnp.dot(lc0w, w0)                                   # (K, H)
    b0f = jnp.dot(lcb0, w0) + b0                              # (H,)

    # Uniform-ks pre-scaling (exact only when ks is identical across kernels,
    # true for the default 'nlin_s' init): xs = ks*x, kcs = ks*kc, then the
    # per-element ks multiply disappears from the kernel.
    ks_np = np.asarray(jax.device_get(ks)).reshape(-1)
    uniform_ks = bool(np.all(ks_np == ks_np[0]))
    if uniform_ks:
        scale = float(ks_np[0])
        x_in = x_g.astype(jnp.float32) * scale                # note: x / cmax == x here
        kc_in = kc * scale
        apply_ks = False
    else:
        x_in = x_g.astype(jnp.float32)
        kc_in = kc
        apply_ks = True

    # Pad the last layer to >= 8 output rows: full-sublane output stores.
    out_pad = max(8, _round_up(out_dim, 8))
    w2p = jnp.pad(w2, ((0, 0), (0, out_pad - out_dim)))
    b2p = jnp.pad(b2, (0, out_pad - out_dim))

    # Feature-major (transposed) weights; bf16 MXU operands, f32 biases.
    w0t = w0f.T.astype(jnp.bfloat16)                          # (H, K)
    w1t = w1.T.astype(jnp.bfloat16)                           # (H, H)
    w2t = w2p.T.astype(jnp.bfloat16)                          # (OUT_PAD, H)
    b0c = b0f.reshape(-1, 1).astype(jnp.float32)              # (H, 1)
    b1c = b1.reshape(-1, 1).astype(jnp.float32)               # (H, 1)
    b2c = b2p.reshape(-1, 1).astype(jnp.float32)              # (OUT_PAD, 1)
    ks_col = ks.reshape(-1, 1)                                # (K, 1)

    tile = _choose_tile_p(P, gen, ew_bf16, tile_p)
    P_pad = _round_up(P, tile)
    grid = (P_pad // tile,)

    # Points on the lane axis -> dense input DMA and dense output stores.
    xT = jnp.pad(x_in.T, ((0, 0), (0, P_pad - P)))            # (D, P_pad)

    def rep_spec(a):                      # whole-array block, grid-invariant
        zeros = (0,) * a.ndim
        return pl.BlockSpec(a.shape, lambda i: zeros)

    kernel = _make_rbf_mlp_kernel(apply_ks, compute_dtype)

    yT = pl.pallas_call(
        kernel,
        out_shape=jax.ShapeDtypeStruct((out_pad, P_pad), jnp.float32),
        grid=grid,
        in_specs=[
            pl.BlockSpec((D, tile), lambda i: (0, i)),        # x tile (lane-dense)
            rep_spec(kc_in), rep_spec(ks_col),
            rep_spec(w0t), rep_spec(b0c),
            rep_spec(w1t), rep_spec(b1c),
            rep_spec(w2t), rep_spec(b2c),
        ],
        out_specs=pl.BlockSpec((out_pad, tile), lambda i: (0, i)),
        compiler_params=pltpu.CompilerParams(
            dimension_semantics=("parallel",),
            vmem_limit_bytes=32 * 1024 * 1024,
        ),
    )(xT, kc_in, ks_col, w0t, b0c, w1t, b1c, w2t, b2c)

    return yT[:out_dim, :P].T                                 # (P, out_dim)


# ----- pure-JAX reference (unfused f32 math, validates fusion + bf16) --------
def rbf_forward_ref(x_g, params):
    kc, ks, lc0w, lcb0 = params["kc"], params["ks"], params["lc0w"], params["lcb0"]
    diff = jnp.abs(x_g[:, None, :] - kc[None, :, :])               # (P, K, D)
    rbf = jnp.prod(jnp.maximum(1.0 - diff * ks[None, :, :], 0.0), axis=-1)
    out = rbf @ lc0w + lcb0[None]
    h = jax.nn.relu(out @ params["w0"] + params["b0"])
    h = jax.nn.relu(h @ params["w1"] + params["b1"])
    return h @ params["w2"] + params["b2"]


# ----- deterministic parameter construction (mirrors __init__ shapes) --------
def make_params(key):
    # kc0: regular grid over [cmin, cmax], align_corners=True
    n_per_dim = int(math.ceil(N_KERNEL ** (1.0 / IN_DIM)))         # 8
    axes = [jnp.linspace(CMIN, CMAX, n_per_dim, dtype=jnp.float32)
            for _ in range(IN_DIM)]
    mesh = jnp.meshgrid(*axes, indexing="ij")
    points = jnp.stack([m.reshape(-1) for m in mesh], axis=-1)     # (n^D, D)
    kc = points[:N_KERNEL]                                         # (K, D)

    # ks0 for 'nlin_s': scalar per kernel, 1 / mean(side_interval) * ks_alpha
    side_interval = (CMAX - CMIN) / (n_per_dim - 1)
    ks = jnp.full((N_KERNEL, 1), 1.0 / side_interval, dtype=jnp.float32)

    keys = jax.random.split(key, 8)
    lc0w = jax.random.uniform(keys[0], (N_KERNEL, LC0_DIM),
                              minval=-LC_INIT, maxval=LC_INIT, dtype=jnp.float32)
    lcb0 = jax.random.uniform(keys[1], (LC0_DIM,),
                              minval=-LCB_INIT, maxval=LCB_INIT, dtype=jnp.float32)

    # backbone Linear layers (stored transposed: (in, out)), uniform +-1/sqrt(in)
    dims = [(LC0_DIM, HIDDEN_DIM), (HIDDEN_DIM, HIDDEN_DIM), (HIDDEN_DIM, OUT_DIM)]
    ws, bs = [], []
    for li, (din, dout) in enumerate(dims):
        bound = 1.0 / math.sqrt(din)
        ws.append(jax.random.uniform(keys[2 + 2 * li], (din, dout),
                                     minval=-bound, maxval=bound, dtype=jnp.float32))
        bs.append(jax.random.uniform(keys[3 + 2 * li], (dout,),
                                     minval=-bound, maxval=bound, dtype=jnp.float32))

    return dict(kc=kc, ks=ks, lc0w=lc0w, lcb0=lcb0,
                w0=ws[0], b0=bs[0], w1=ws[1], b1=bs[1], w2=ws[2], b2=bs[2])


if __name__ == "__main__":
    key = jax.random.PRNGKey(0)
    k_x, k_p = jax.random.split(key)

    P = 4000                        # not a multiple of 128: exercises padding
    x_g = jax.random.uniform(k_x, (P, IN_DIM), minval=CMIN, maxval=CMAX,
                             dtype=jnp.float32)
    params = make_params(k_p)

    y = rbf_forward_pallas(x_g, params)
    y = jax.block_until_ready(y)

    y_ref = rbf_forward_ref(x_g, params)
    assert y.shape == (P, OUT_DIM)
    err = float(jnp.max(jnp.abs(y - y_ref)))
    # bf16 MXU operands everywhere; bf16 elementwise RBF path on v6e/v7x gets a
    # slightly looser tolerance than the f32-elementwise (v5e) path.
    tol = 3e-2 if _tpu_generation() in (6, 7) else 2e-2
    assert jnp.allclose(y, y_ref, rtol=tol, atol=tol), f"max abs err = {err}"

    print("KERNEL_OK")
</pallas_src>

<mosaic_0001>
module attributes {stable_mosaic.version = 11 : i64} {
  func.func @kernel(%arg0: i32, %arg1: memref<2x4096xf32, #tpu.memory_space<vmem>>, %arg2: memref<64x2xf32, #tpu.memory_space<vmem>>, %arg3: memref<64x1xf32, #tpu.memory_space<vmem>>, %arg4: memref<64x64xbf16, #tpu.memory_space<vmem>>, %arg5: memref<64x1xf32, #tpu.memory_space<vmem>>, %arg6: memref<64x64xbf16, #tpu.memory_space<vmem>>, %arg7: memref<64x1xf32, #tpu.memory_space<vmem>>, %arg8: memref<8x64xbf16, #tpu.memory_space<vmem>>, %arg9: memref<8x1xf32, #tpu.memory_space<vmem>>, %arg10: memref<8x4096xf32, #tpu.memory_space<vmem>>) attributes {dimension_semantics = [#tpu.dimension_semantics<parallel>], iteration_bounds = array<i64: 1>, scalar_prefetch = 0 : i64, scratch_operands = 0 : i64, tpu.core_type = #tpu.core_type<tc>, window_params = [{transform_indices = @transform_0, window_bounds = array<i64: 2, 4096>}, {pipeline_mode = #tpu.pipeline_mode<synchronous>, transform_indices = @transform_1, window_bounds = array<i64: 64, 2>}, {pipeline_mode = #tpu.pipeline_mode<synchronous>, transform_indices = @transform_2, window_bounds = array<i64: 64, 1>}, {pipeline_mode = #tpu.pipeline_mode<synchronous>, transform_indices = @transform_3, window_bounds = array<i64: 64, 64>}, {pipeline_mode = #tpu.pipeline_mode<synchronous>, transform_indices = @transform_4, window_bounds = array<i64: 64, 1>}, {pipeline_mode = #tpu.pipeline_mode<synchronous>, transform_indices = @transform_5, window_bounds = array<i64: 64, 64>}, {pipeline_mode = #tpu.pipeline_mode<synchronous>, transform_indices = @transform_6, window_bounds = array<i64: 64, 1>}, {pipeline_mode = #tpu.pipeline_mode<synchronous>, transform_indices = @transform_7, window_bounds = array<i64: 8, 64>}, {pipeline_mode = #tpu.pipeline_mode<synchronous>, transform_indices = @transform_8, window_bounds = array<i64: 8, 1>}, {transform_indices = @transform_9, window_bounds = array<i64: 8, 4096>}]} {
    %c0 = arith.constant 0 : index
    %c0_0 = arith.constant 0 : index
    %0 = vector.load %arg1[%c0, %c0_0] : memref<2x4096xf32, #tpu.memory_space<vmem>>, vector<1x4096xf32>
    %c0_1 = arith.constant 0 : index
    %c0_2 = arith.constant 0 : index
    %1 = vector.load %arg2[%c0_1, %c0_2] : memref<64x2xf32, #tpu.memory_space<vmem>>, vector<64x1xf32>
    %2 = vector.broadcast %1 : vector<64x1xf32> to vector<64x4096xf32>
    %3 = vector.broadcast %0 : vector<1x4096xf32> to vector<64x4096xf32>
    %4 = arith.subf %2, %3 : vector<64x4096xf32>
    %5 = math.absf %4 : vector<64x4096xf32>
    %cst = arith.constant 1.000000e+00 : f32
    %6 = vector.broadcast %cst : f32 to vector<64x4096xf32>
    %7 = arith.subf %6, %5 : vector<64x4096xf32>
    %cst_3 = arith.constant 0.000000e+00 : f32
    %8 = vector.broadcast %cst_3 : f32 to vector<64x4096xf32>
    %9 = arith.maximumf %7, %8 : vector<64x4096xf32>
    %c1 = arith.constant 1 : index
    %c0_4 = arith.constant 0 : index
    %10 = vector.load %arg1[%c1, %c0_4] : memref<2x4096xf32, #tpu.memory_space<vmem>>, vector<1x4096xf32>
    %c0_5 = arith.constant 0 : index
    %c1_6 = arith.constant 1 : index
    %11 = vector.load %arg2[%c0_5, %c1_6] : memref<64x2xf32, #tpu.memory_space<vmem>>, vector<64x1xf32>
    %12 = vector.broadcast %11 : vector<64x1xf32> to vector<64x4096xf32>
    %13 = vector.broadcast %10 : vector<1x4096xf32> to vector<64x4096xf32>
    %14 = arith.subf %12, %13 : vector<64x4096xf32>
    %15 = math.absf %14 : vector<64x4096xf32>
    %cst_7 = arith.constant 1.000000e+00 : f32
    %16 = vector.broadcast %cst_7 : f32 to vector<64x4096xf32>
    %17 = arith.subf %16, %15 : vector<64x4096xf32>
    %cst_8 = arith.constant 0.000000e+00 : f32
    %18 = vector.broadcast %cst_8 : f32 to vector<64x4096xf32>
    %19 = arith.maximumf %17, %18 : vector<64x4096xf32>
    %20 = arith.mulf %9, %19 : vector<64x4096xf32>
    %21 = arith.truncf %20 : vector<64x4096xf32> to vector<64x4096xbf16>
    %c0_9 = arith.constant 0 : index
    %c0_10 = arith.constant 0 : index
    %22 = vector.load %arg4[%c0_9, %c0_10] : memref<64x64xbf16, #tpu.memory_space<vmem>>, vector<64x64xbf16>
    %cst_11 = arith.constant dense<0.000000e+00> : vector<64x4096xf32>
    %23 = tpu.matmul %22, %21, %cst_11 {dimension_numbers = #tpu.dot_dimension_numbers<[1], [0], [0], [1], [0, 0, 1, 1], [], []>} : vector<64x64xbf16>, vector<64x4096xbf16>, vector<64x4096xf32> -> vector<64x4096xf32>
    %c0_12 = arith.constant 0 : index
    %c0_13 = arith.constant 0 : index
    %24 = vector.load %arg5[%c0_12, %c0_13] : memref<64x1xf32, #tpu.memory_space<vmem>>, vector<64x1xf32>
    %25 = vector.broadcast %24 : vector<64x1xf32> to vector<64x4096xf32>
    %26 = arith.addf %23, %25 : vector<64x4096xf32>
    %cst_14 = arith.constant 0.000000e+00 : f32
    %27 = vector.broadcast %cst_14 : f32 to vector<64x4096xf32>
    %28 = arith.maximumf %26, %27 : vector<64x4096xf32>
    %29 = arith.truncf %28 : vector<64x4096xf32> to vector<64x4096xbf16>
    %c0_15 = arith.constant 0 : index
    %c0_16 = arith.constant 0 : index
    %30 = vector.load %arg6[%c0_15, %c0_16] : memref<64x64xbf16, #tpu.memory_space<vmem>>, vector<64x64xbf16>
    %cst_17 = arith.constant dense<0.000000e+00> : vector<64x4096xf32>
    %31 = tpu.matmul %30, %29, %cst_17 {dimension_numbers = #tpu.dot_dimension_numbers<[1], [0], [0], [1], [0, 0, 1, 1], [], []>} : vector<64x64xbf16>, vector<64x4096xbf16>, vector<64x4096xf32> -> vector<64x4096xf32>
    %c0_18 = arith.constant 0 : index
    %c0_19 = arith.constant 0 : index
    %32 = vector.load %arg7[%c0_18, %c0_19] : memref<64x1xf32, #tpu.memory_space<vmem>>, vector<64x1xf32>
    %33 = vector.broadcast %32 : vector<64x1xf32> to vector<64x4096xf32>
    %34 = arith.addf %31, %33 : vector<64x4096xf32>
    %cst_20 = arith.constant 0.000000e+00 : f32
    %35 = vector.broadcast %cst_20 : f32 to vector<64x4096xf32>
    %36 = arith.maximumf %34, %35 : vector<64x4096xf32>
    %37 = arith.truncf %36 : vector<64x4096xf32> to vector<64x4096xbf16>
    %c0_21 = arith.constant 0 : index
    %c0_22 = arith.constant 0 : index
    %38 = vector.load %arg8[%c0_21, %c0_22] : memref<8x64xbf16, #tpu.memory_space<vmem>>, vector<8x64xbf16>
    %cst_23 = arith.constant dense<0.000000e+00> : vector<8x4096xf32>
    %39 = tpu.matmul %38, %37, %cst_23 {dimension_numbers = #tpu.dot_dimension_numbers<[1], [0], [0], [1], [0, 0, 1, 1], [], []>} : vector<8x64xbf16>, vector<64x4096xbf16>, vector<8x4096xf32> -> vector<8x4096xf32>
    %c0_24 = arith.constant 0 : index
    %c0_25 = arith.constant 0 : index
    %40 = vector.load %arg9[%c0_24, %c0_25] : memref<8x1xf32, #tpu.memory_space<vmem>>, vector<8x1xf32>
    %41 = vector.broadcast %40 : vector<8x1xf32> to vector<8x4096xf32>
    %42 = arith.addf %39, %41 : vector<8x4096xf32>
    %c0_26 = arith.constant 0 : index
    %c0_27 = arith.constant 0 : index
    %43 = vector.load %arg10[%c0_26, %c0_27] : memref<8x4096xf32, #tpu.memory_space<vmem>>, vector<8x4096xf32>
    tpu.vector_store %arg10[%c0_26, %c0_27], %42 {strides = array<i32>} : memref<8x4096xf32, #tpu.memory_space<vmem>>, vector<8x4096xf32>,
    return
  }
  func.func @transform_0(%arg0: i32) -> (i32, i32) {
    %c0_i32 = arith.constant 0 : i32
    %c0_i32_0 = arith.constant 0 : i32
    return %c0_i32, %arg0 : i32, i32
  }
  func.func @transform_1(%arg0: i32) -> (i32, i32) {
    %c0_i32 = arith.constant 0 : i32
    %c0_i32_0 = arith.constant 0 : i32
    %c0_i32_1 = arith.constant 0 : i32
    return %c0_i32, %c0_i32_0 : i32, i32
  }
  func.func @transform_2(%arg0: i32) -> (i32, i32) {
    %c0_i32 = arith.constant 0 : i32
    %c0_i32_0 = arith.constant 0 : i32
    %c0_i32_1 = arith.constant 0 : i32
    return %c0_i32, %c0_i32_0 : i32, i32
  }
  func.func @transform_3(%arg0: i32) -> (i32, i32) {
    %c0_i32 = arith.constant 0 : i32
    %c0_i32_0 = arith.constant 0 : i32
    %c0_i32_1 = arith.constant 0 : i32
    return %c0_i32, %c0_i32_0 : i32, i32
  }
  func.func @transform_4(%arg0: i32) -> (i32, i32) {
    %c0_i32 = arith.constant 0 : i32
    %c0_i32_0 = arith.constant 0 : i32
    %c0_i32_1 = arith.constant 0 : i32
    return %c0_i32, %c0_i32_0 : i32, i32
  }
  func.func @transform_5(%arg0: i32) -> (i32, i32) {
    %c0_i32 = arith.constant 0 : i32
    %c0_i32_0 = arith.constant 0 : i32
    %c0_i32_1 = arith.constant 0 : i32
    return %c0_i32, %c0_i32_0 : i32, i32
  }
  func.func @transform_6(%arg0: i32) -> (i32, i32) {
    %c0_i32 = arith.constant 0 : i32
    %c0_i32_0 = arith.constant 0 : i32
    %c0_i32_1 = arith.constant 0 : i32
    return %c0_i32, %c0_i32_0 : i32, i32
  }
  func.func @transform_7(%arg0: i32) -> (i32, i32) {
    %c0_i32 = arith.constant 0 : i32
    %c0_i32_0 = arith.constant 0 : i32
    %c0_i32_1 = arith.constant 0 : i32
    return %c0_i32, %c0_i32_0 : i32, i32
  }
  func.func @transform_8(%arg0: i32) -> (i32, i32) {
    %c0_i32 = arith.constant 0 : i32
    %c0_i32_0 = arith.constant 0 : i32
    %c0_i32_1 = arith.constant 0 : i32
    return %c0_i32, %c0_i32_0 : i32, i32
  }
  func.func @transform_9(%arg0: i32) -> (i32, i32) {
    %c0_i32 = arith.constant 0 : i32
    %c0_i32_0 = arith.constant 0 : i32
    return %c0_i32, %arg0 : i32, i32
  }
}

</mosaic_0001>

<llo_original>
// kernel: tpu_custom_call.1
$region0: #{tpu_custom_call.1}
  #allocation0 [shape = 'u32[]', space=smem, size = 0x4, offset = 0x4, fixed_abs, tag = 'smem constant byte address 0x4 - core index']
  #allocation1 [shape = 'u32[144,128]{1,0:T(1,128)}', space=vmem, size = 0x12000, scoped, tag = 'internal scratch']
  %s0 = inlined_call_operand.vmem [shape: f32[2,4096], index: 0, kind: input, shape index: {}]
  %s1 = inlined_call_operand.vmem [shape: f32[64,2], index: 1, kind: input, shape index: {}]
  %s2 = inlined_call_operand.vmem [shape: f32[64,1], index: 2, kind: input, shape index: {}]
  %s3 = inlined_call_operand.vmem [shape: bf16[64,64], index: 3, kind: input, shape index: {}]
  %s4 = inlined_call_operand.vmem [shape: f32[64,1], index: 4, kind: input, shape index: {}]
  %s5 = inlined_call_operand.vmem [shape: bf16[64,64], index: 5, kind: input, shape index: {}]
  %s6 = inlined_call_operand.vmem [shape: f32[64,1], index: 6, kind: input, shape index: {}]
  %s7 = inlined_call_operand.vmem [shape: bf16[8,64], index: 7, kind: input, shape index: {}]
  %s8 = inlined_call_operand.vmem [shape: f32[8,1], index: 8, kind: input, shape index: {}]
  %s9 = inlined_call_operand.hbm [shape: f32[8,4096], index: 9, kind: output, shape index: {}]
  %s10 = sld [smem:[#allocation0]]
  $region46: #{tpu_custom_call.1} parent=0
    _
  %s12 = ssub.s32 1, %s10
  %s13 = scalar_select 0, %s12, %s10
  $region1: #{tpu_custom_call.1} parent=0
    #allocation2 [shape = 'u8[131072]{0}', space=vmem, size = 0x20000, scoped, tag = 'output window, operand 0, single buffered']
    #allocation3 [shape = 's32[1]{0}', space=sflag, size = 0x4, scoped, tag = 'scoped memory for tpu_custom_call.1']
    %14 = vsyncpa [#allocation3], 0
    // Predicated region
    $region2: #{tpu_custom_call.1} parent=1 // pred_check
      _
    $region3: #{tpu_custom_call.1} parent=1 // pred_check_branch
      %16 = sbr.rel (0) target = $region5
    $region4: #{tpu_custom_call.1} parent=1 // pred_region
      _
    $region5: #{tpu_custom_call.1} parent=1 // pred_fallthru
      _
    // Predicated region
    $region6: #{tpu_custom_call.1} parent=1 // pred_check
      _
    $region7: #{tpu_custom_call.1} parent=1 // pred_check_branch
      %18 = sbr.rel (0) target = $region9
    $region8: #{tpu_custom_call.1} parent=1 // pred_region
      _
    $region9: #{tpu_custom_call.1} parent=1 // pred_fallthru
      _
    // Predicated region
    $region10: #{tpu_custom_call.1} parent=1 // pred_check
      _
    $region11: #{tpu_custom_call.1} parent=1 // pred_check_branch
      %20 = sbr.rel (0) target = $region13
    $region12: #{tpu_custom_call.1} parent=1 // pred_region
      _
    $region13: #{tpu_custom_call.1} parent=1 // pred_fallthru
      _
    // Predicated region
    $region14: #{tpu_custom_call.1} parent=1 // pred_check
      _
    $region15: #{tpu_custom_call.1} parent=1 // pred_check_branch
      %22 = sbr.rel (0) target = $region17
    $region16: #{tpu_custom_call.1} parent=1 // pred_region
      _
    $region17: #{tpu_custom_call.1} parent=1 // pred_fallthru
      _
    // Predicated region
    $region18: #{tpu_custom_call.1} parent=1 // pred_check
      _
    $region19: #{tpu_custom_call.1} parent=1 // pred_check_branch
      %24 = sbr.rel (0) target = $region21
    $region20: #{tpu_custom_call.1} parent=1 // pred_region
      _
    $region21: #{tpu_custom_call.1} parent=1 // pred_fallthru
      _
    // Predicated region
    $region22: #{tpu_custom_call.1} parent=1 // pred_check
      _
    $region23: #{tpu_custom_call.1} parent=1 // pred_check_branch
      %26 = sbr.rel (0) target = $region25
    $region24: #{tpu_custom_call.1} parent=1 // pred_region
      _
    $region25: #{tpu_custom_call.1} parent=1 // pred_fallthru
      _
    // Predicated region
    $region26: #{tpu_custom_call.1} parent=1 // pred_check
      _
    $region27: #{tpu_custom_call.1} parent=1 // pred_check_branch
      %28 = sbr.rel (0) target = $region29
    $region28: #{tpu_custom_call.1} parent=1 // pred_region
      _
    $region29: #{tpu_custom_call.1} parent=1 // pred_fallthru
      _
    // Predicated region
    $region30: #{tpu_custom_call.1} parent=1 // pred_check
      _
    $region31: #{tpu_custom_call.1} parent=1 // pred_check_branch
      %30 = sbr.rel (0) target = $region33
    $region32: #{tpu_custom_call.1} parent=1 // pred_region
      _
    $region33: #{tpu_custom_call.1} parent=1 // pred_fallthru
      _
    // Predicated region
    $region34: #{tpu_custom_call.1} parent=1 // pred_check
      _
    $region35: #{tpu_custom_call.1} parent=1 // pred_check_branch
      %32 = sbr.rel (0) target = $region37
    $region36: #{tpu_custom_call.1} parent=1 // pred_region
      _
    $region37: #{tpu_custom_call.1} parent=1 // pred_fallthru
      _
    %v34 = vld [vmem:[%s0] ss:$2 sm:$0xff]
    %s35 = scalar_lea.vmem %s0, 16
    %v36 = vld [vmem:[%s35] ss:$2 sm:$0xff]
    %s37 = scalar_lea.vmem %s0, 32
    %v38 = vld [vmem:[%s37] ss:$2 sm:$0xff]
    %s39 = scalar_lea.vmem %s0, 48
    %v40 = vld [vmem:[%s39] ss:$2 sm:$0xff]
    %v41 = vld [vmem:[%s1] sm:$0xff]
    %v42 = vld [vmem:[%s1 + $0x8] sm:$0xff]
    %v43 = vld [vmem:[%s1 + $0x10] sm:$0xff]
    %v44 = vld [vmem:[%s1 + $0x18] sm:$0xff]
    %v45 = vld [vmem:[%s1 + $0x20] sm:$0xff]
    %v46 = vld [vmem:[%s1 + $0x28] sm:$0xff]
    %v47 = vld [vmem:[%s1 + $0x30] sm:$0xff]
    %v48 = vld [vmem:[%s1 + $0x38] sm:$0xff]
    %50 = vset.pattern.permute.xlu0 0
    %51 = vperm.xlu0 %50, %v41
    %v52 = vpop.permute.xlu0 %51
    %55 = vset.pattern.permute.xlu0 0
    %56 = vperm.xlu0 %55, %v42
    %v57 = vpop.permute.xlu0 %56
    %60 = vset.pattern.permute.xlu0 0
    %61 = vperm.xlu0 %60, %v43
    %v62 = vpop.permute.xlu0 %61
    %65 = vset.pattern.permute.xlu0 0
    %66 = vperm.xlu0 %65, %v44
    %v67 = vpop.permute.xlu0 %66
    %70 = vset.pattern.permute.xlu0 0
    %71 = vperm.xlu0 %70, %v45
    %v72 = vpop.permute.xlu0 %71
    %75 = vset.pattern.permute.xlu0 0
    %76 = vperm.xlu0 %75, %v46
    %v77 = vpop.permute.xlu0 %76
    %80 = vset.pattern.permute.xlu0 0
    %81 = vperm.xlu0 %80, %v47
    %v82 = vpop.permute.xlu0 %81
    %85 = vset.pattern.permute.xlu0 0
    %86 = vperm.xlu0 %85, %v48
    %v87 = vpop.permute.xlu0 %86
    %v93 = vlaneseq
    %v94 = vshrl.u32 %v93, 7
    %v95 = vsub.s32 0, %v94
    %v96 = vrot.slane %v34, %v95
    %v97 = vlaneseq
    %v98 = vshrl.u32 %v97, 7
    %v99 = vsub.s32 1, %v98
    %v100 = vrot.slane %v34, %v99
    %v101 = vlaneseq
    %v102 = vshrl.u32 %v101, 7
    %v103 = vsub.s32 2, %v102
    %v104 = vrot.slane %v34, %v103
    %v105 = vlaneseq
    %v106 = vshrl.u32 %v105, 7
    %v107 = vsub.s32 3, %v106
    %v108 = vrot.slane %v34, %v107
    %v109 = vlaneseq
    %v110 = vshrl.u32 %v109, 7
    %v111 = vsub.s32 4, %v110
    %v112 = vrot.slane %v34, %v111
    %v113 = vlaneseq
    %v114 = vshrl.u32 %v113, 7
    %v115 = vsub.s32 5, %v114
    %v116 = vrot.slane %v34, %v115
    %v117 = vlaneseq
    %v118 = vshrl.u32 %v117, 7
    %v119 = vsub.s32 6, %v118
    %v120 = vrot.slane %v34, %v119
    %v121 = vlaneseq
    %v122 = vshrl.u32 %v121, 7
    %v123 = vsub.s32 7, %v122
    %v124 = vrot.slane %v34, %v123
    %v125 = vlaneseq
    %v126 = vshrl.u32 %v125, 7
    %v127 = vsub.s32 0, %v126
    %v128 = vrot.slane %v36, %v127
    %v129 = vlaneseq
    %v130 = vshrl.u32 %v129, 7
    %v131 = vsub.s32 1, %v130
    %v132 = vrot.slane %v36, %v131
    %v133 = vlaneseq
    %v134 = vshrl.u32 %v133, 7
    %v135 = vsub.s32 2, %v134
    %v136 = vrot.slane %v36, %v135
    %v137 = vlaneseq
    %v138 = vshrl.u32 %v137, 7
    %v139 = vsub.s32 3, %v138
    %v140 = vrot.slane %v36, %v139
    %v141 = vlaneseq
    %v142 = vshrl.u32 %v141, 7
    %v143 = vsub.s32 4, %v142
    %v144 = vrot.slane %v36, %v143
    %v145 = vlaneseq
    %v146 = vshrl.u32 %v145, 7
    %v147 = vsub.s32 5, %v146
    %v148 = vrot.slane %v36, %v147
    %v149 = vlaneseq
    %v150 = vshrl.u32 %v149, 7
    %v151 = vsub.s32 6, %v150
    %v152 = vrot.slane %v36, %v151
    %v153 = vlaneseq
    %v154 = vshrl.u32 %v153, 7
    %v155 = vsub.s32 7, %v154
    %v156 = vrot.slane %v36, %v155
    %v157 = vlaneseq
    %v158 = vshrl.u32 %v157, 7
    %v159 = vsub.s32 0, %v158
    %v160 = vrot.slane %v38, %v159
    %v161 = vlaneseq
    %v162 = vshrl.u32 %v161, 7
    %v163 = vsub.s32 1, %v162
    %v164 = vrot.slane %v38, %v163
    %v165 = vlaneseq
    %v166 = vshrl.u32 %v165, 7
    %v167 = vsub.s32 2, %v166
    %v168 = vrot.slane %v38, %v167
    %v169 = vlaneseq
    %v170 = vshrl.u32 %v169, 7
    %v171 = vsub.s32 3, %v170
    %v172 = vrot.slane %v38, %v171
    %v173 = vlaneseq
    %v174 = vshrl.u32 %v173, 7
    %v175 = vsub.s32 4, %v174
    %v176 = vrot.slane %v38, %v175
    %v177 = vlaneseq
    %v178 = vshrl.u32 %v177, 7
    %v179 = vsub.s32 5, %v178
    %v180 = vrot.slane %v38, %v179
    %v181 = vlaneseq
    %v182 = vshrl.u32 %v181, 7
    %v183 = vsub.s32 6, %v182
    %v184 = vrot.slane %v38, %v183
    %v185 = vlaneseq
    %v186 = vshrl.u32 %v185, 7
    %v187 = vsub.s32 7, %v186
    %v188 = vrot.slane %v38, %v187
    %v189 = vlaneseq
    %v190 = vshrl.u32 %v189, 7
    %v191 = vsub.s32 0, %v190
    %v192 = vrot.slane %v40, %v191
    %v193 = vlaneseq
    %v194 = vshrl.u32 %v193, 7
    %v195 = vsub.s32 1, %v194
    %v196 = vrot.slane %v40, %v195
    %v197 = vlaneseq
    %v198 = vshrl.u32 %v197, 7
    %v199 = vsub.s32 2, %v198
    %v200 = vrot.slane %v40, %v199
    %v201 = vlaneseq
    %v202 = vshrl.u32 %v201, 7
    %v203 = vsub.s32 3, %v202
    %v204 = vrot.slane %v40, %v203
    %v205 = vlaneseq
    %v206 = vshrl.u32 %v205, 7
    %v207 = vsub.s32 4, %v206
    %v208 = vrot.slane %v40, %v207
    %v209 = vlaneseq
    %v210 = vshrl.u32 %v209, 7
    %v211 = vsub.s32 5, %v210
    %v212 = vrot.slane %v40, %v211
    %v213 = vlaneseq
    %v214 = vshrl.u32 %v213, 7
    %v215 = vsub.s32 6, %v214
    %v216 = vrot.slane %v40, %v215
    %v217 = vlaneseq
    %v218 = vshrl.u32 %v217, 7
    %v219 = vsub.s32 7, %v218
    %v220 = vrot.slane %v40, %v219
    %v253 = vsub.f32 %v52, %v96
    %v254 = vsub.f32 %v52, %v100
    %v255 = vsub.f32 %v52, %v104
    %v256 = vsub.f32 %v52, %v108
    %v257 = vsub.f32 %v52, %v112
    %v258 = vsub.f32 %v52, %v116
    %v259 = vsub.f32 %v52, %v120
    %v260 = vsub.f32 %v52, %v124
    %v261 = vsub.f32 %v52, %v128
    %v262 = vsub.f32 %v52, %v132
    %v263 = vsub.f32 %v52, %v136
    %v264 = vsub.f32 %v52, %v140
    %v265 = vsub.f32 %v52, %v144
    %v266 = vsub.f32 %v52, %v148
    %v267 = vsub.f32 %v52, %v152
    %v268 = vsub.f32 %v52, %v156
    %v269 = vsub.f32 %v52, %v160
    %v270 = vsub.f32 %v52, %v164
    %v271 = vsub.f32 %v52, %v168
    %v272 = vsub.f32 %v52, %v172
    %v273 = vsub.f32 %v52, %v176
    %v274 = vsub.f32 %v52, %v180
    %v275 = vsub.f32 %v52, %v184
    %v276 = vsub.f32 %v52, %v188
    %v277 = vsub.f32 %v52, %v192
    %v278 = vsub.f32 %v52, %v196
    %v279 = vsub.f32 %v52, %v200
    %v280 = vsub.f32 %v52, %v204
    %v281 = vsub.f32 %v52, %v208
    %v282 = vsub.f32 %v52, %v212
    %v283 = vsub.f32 %v52, %v216
    %v284 = vsub.f32 %v52, %v220
    %v285 = vsub.f32 %v57, %v96
    %v286 = vsub.f32 %v57, %v100
    %v287 = vsub.f32 %v57, %v104
    %v288 = vsub.f32 %v57, %v108
    %v289 = vsub.f32 %v57, %v112
    %v290 = vsub.f32 %v57, %v116
    %v291 = vsub.f32 %v57, %v120
    %v292 = vsub.f32 %v57, %v124
    %v293 = vsub.f32 %v57, %v128
    %v294 = vsub.f32 %v57, %v132
    %v295 = vsub.f32 %v57, %v136
    %v296 = vsub.f32 %v57, %v140
    %v297 = vsub.f32 %v57, %v144
    %v298 = vsub.f32 %v57, %v148
    %v299 = vsub.f32 %v57, %v152
    %v300 = vsub.f32 %v57, %v156
    %v301 = vsub.f32 %v57, %v160
    %v302 = vsub.f32 %v57, %v164
    %v303 = vsub.f32 %v57, %v168
    %v304 = vsub.f32 %v57, %v172
    %v305 = vsub.f32 %v57, %v176
    %v306 = vsub.f32 %v57, %v180
    %v307 = vsub.f32 %v57, %v184
    %v308 = vsub.f32 %v57, %v188
    %v309 = vsub.f32 %v57, %v192
    %v310 = vsub.f32 %v57, %v196
    %v311 = vsub.f32 %v57, %v200
    %v312 = vsub.f32 %v57, %v204
    %v313 = vsub.f32 %v57, %v208
    %v314 = vsub.f32 %v57, %v212
    %v315 = vsub.f32 %v57, %v216
    %v316 = vsub.f32 %v57, %v220
    %v317 = vsub.f32 %v62, %v96
    %v318 = vsub.f32 %v62, %v100
    %v319 = vsub.f32 %v62, %v104
    %v320 = vsub.f32 %v62, %v108
    %v321 = vsub.f32 %v62, %v112
    %v322 = vsub.f32 %v62, %v116
    %v323 = vsub.f32 %v62, %v120
    %v324 = vsub.f32 %v62, %v124
    %v325 = vsub.f32 %v62, %v128
    %v326 = vsub.f32 %v62, %v132
    %v327 = vsub.f32 %v62, %v136
    %v328 = vsub.f32 %v62, %v140
    %v329 = vsub.f32 %v62, %v144
    %v330 = vsub.f32 %v62, %v148
    %v331 = vsub.f32 %v62, %v152
    %v332 = vsub.f32 %v62, %v156
    %v333 = vsub.f32 %v62, %v160
    %v334 = vsub.f32 %v62, %v164
    %v335 = vsub.f32 %v62, %v168
    %v336 = vsub.f32 %v62, %v172
    %v337 = vsub.f32 %v62, %v176
    %v338 = vsub.f32 %v62, %v180
    %v339 = vsub.f32 %v62, %v184
    %v340 = vsub.f32 %v62, %v188
    %v341 = vsub.f32 %v62, %v192
    %v342 = vsub.f32 %v62, %v196
    %v343 = vsub.f32 %v62, %v200
    %v344 = vsub.f32 %v62, %v204
    %v345 = vsub.f32 %v62, %v208
    %v346 = vsub.f32 %v62, %v212
    %v347 = vsub.f32 %v62, %v216
    %v348 = vsub.f32 %v62, %v220
    %v349 = vsub.f32 %v67, %v96
    %v350 = vsub.f32 %v67, %v100
    %v351 = vsub.f32 %v67, %v104
    %v352 = vsub.f32 %v67, %v108
    %v353 = vsub.f32 %v67, %v112
    %v354 = vsub.f32 %v67, %v116
    %v355 = vsub.f32 %v67, %v120
    %v356 = vsub.f32 %v67, %v124
    %v357 = vsub.f32 %v67, %v128
    %v358 = vsub.f32 %v67, %v132
    %v359 = vsub.f32 %v67, %v136
    %v360 = vsub.f32 %v67, %v140
    %v361 = vsub.f32 %v67, %v144
    %v362 = vsub.f32 %v67, %v148
    %v363 = vsub.f32 %v67, %v152
    %v364 = vsub.f32 %v67, %v156
    %v365 = vsub.f32 %v67, %v160
    %v366 = vsub.f32 %v67, %v164
    %v367 = vsub.f32 %v67, %v168
    %v368 = vsub.f32 %v67, %v172
    %v369 = vsub.f32 %v67, %v176
    %v370 = vsub.f32 %v67, %v180
    %v371 = vsub.f32 %v67, %v184
    %v372 = vsub.f32 %v67, %v188
    %v373 = vsub.f32 %v67, %v192
    %v374 = vsub.f32 %v67, %v196
    %v375 = vsub.f32 %v67, %v200
    %v376 = vsub.f32 %v67, %v204
    %v377 = vsub.f32 %v67, %v208
    %v378 = vsub.f32 %v67, %v212
    %v379 = vsub.f32 %v67, %v216
    %v380 = vsub.f32 %v67, %v220
    %v381 = vsub.f32 %v72, %v96
    %v382 = vsub.f32 %v72, %v100
    %v383 = vsub.f32 %v72, %v104
    %v384 = vsub.f32 %v72, %v108
    %v385 = vsub.f32 %v72, %v112
    %v386 = vsub.f32 %v72, %v116
    %v387 = vsub.f32 %v72, %v120
    %v388 = vsub.f32 %v72, %v124
    %v389 = vsub.f32 %v72, %v128
    %v390 = vsub.f32 %v72, %v132
    %v391 = vsub.f32 %v72, %v136
    %v392 = vsub.f32 %v72, %v140
    %v393 = vsub.f32 %v72, %v144
    %v394 = vsub.f32 %v72, %v148
    %v395 = vsub.f32 %v72, %v152
    %v396 = vsub.f32 %v72, %v156
    %v397 = vsub.f32 %v72, %v160
    %v398 = vsub.f32 %v72, %v164
    %v399 = vsub.f32 %v72, %v168
    %v400 = vsub.f32 %v72, %v172
    %v401 = vsub.f32 %v72, %v176
    %v402 = vsub.f32 %v72, %v180
    %v403 = vsub.f32 %v72, %v184
    %v404 = vsub.f32 %v72, %v188
    %v405 = vsub.f32 %v72, %v192
    %v406 = vsub.f32 %v72, %v196
    %v407 = vsub.f32 %v72, %v200
    %v408 = vsub.f32 %v72, %v204
    %v409 = vsub.f32 %v72, %v208
    %v410 = vsub.f32 %v72, %v212
    %v411 = vsub.f32 %v72, %v216
    %v412 = vsub.f32 %v72, %v220
    %v413 = vsub.f32 %v77, %v96
    %v414 = vsub.f32 %v77, %v100
    %v415 = vsub.f32 %v77, %v104
    %v416 = vsub.f32 %v77, %v108
    %v417 = vsub.f32 %v77, %v112
    %v418 = vsub.f32 %v77, %v116
    %v419 = vsub.f32 %v77, %v120
    %v420 = vsub.f32 %v77, %v124
    %v421 = vsub.f32 %v77, %v128
    %v422 = vsub.f32 %v77, %v132
    %v423 = vsub.f32 %v77, %v136
    %v424 = vsub.f32 %v77, %v140
    %v425 = vsub.f32 %v77, %v144
    %v426 = vsub.f32 %v77, %v148
    %v427 = vsub.f32 %v77, %v152
    %v428 = vsub.f32 %v77, %v156
    %v429 = vsub.f32 %v77, %v160
    %v430 = vsub.f32 %v77, %v164
    %v431 = vsub.f32 %v77, %v168
    %v432 = vsub.f32 %v77, %v172
    %v433 = vsub.f32 %v77, %v176
    %v434 = vsub.f32 %v77, %v180
    %v435 = vsub.f32 %v77, %v184
    %v436 = vsub.f32 %v77, %v188
    %v437 = vsub.f32 %v77, %v192
    %v438 = vsub.f32 %v77, %v196
    %v439 = vsub.f32 %v77, %v200
    %v440 = vsub.f32 %v77, %v204
    %v441 = vsub.f32 %v77, %v208
    %v442 = vsub.f32 %v77, %v212
    %v443 = vsub.f32 %v77, %v216
    %v444 = vsub.f32 %v77, %v220
    %v445 = vsub.f32 %v82, %v96
    %v446 = vsub.f32 %v82, %v100
    %v447 = vsub.f32 %v82, %v104
    %v448 = vsub.f32 %v82, %v108
    %v449 = vsub.f32 %v82, %v112
    %v450 = vsub.f32 %v82, %v116
    %v451 = vsub.f32 %v82, %v120
    %v452 = vsub.f32 %v82, %v124
    %v453 = vsub.f32 %v82, %v128
    %v454 = vsub.f32 %v82, %v132
    %v455 = vsub.f32 %v82, %v136
    %v456 = vsub.f32 %v82, %v140
    %v457 = vsub.f32 %v82, %v144
    %v458 = vsub.f32 %v82, %v148
    %v459 = vsub.f32 %v82, %v152
    %v460 = vsub.f32 %v82, %v156
    %v461 = vsub.f32 %v82, %v160
    %v462 = vsub.f32 %v82, %v164
    %v463 = vsub.f32 %v82, %v168
    %v464 = vsub.f32 %v82, %v172
    %v465 = vsub.f32 %v82, %v176
    %v466 = vsub.f32 %v82, %v180
    %v467 = vsub.f32 %v82, %v184
    %v468 = vsub.f32 %v82, %v188
    %v469 = vsub.f32 %v82, %v192
    %v470 = vsub.f32 %v82, %v196
    %v471 = vsub.f32 %v82, %v200
    %v472 = vsub.f32 %v82, %v204
    %v473 = vsub.f32 %v82, %v208
    %v474 = vsub.f32 %v82, %v212
    %v475 = vsub.f32 %v82, %v216
    %v476 = vsub.f32 %v82, %v220
    %v477 = vsub.f32 %v87, %v96
    %v478 = vsub.f32 %v87, %v100
    %v479 = vsub.f32 %v87, %v104
    %v480 = vsub.f32 %v87, %v108
    %v481 = vsub.f32 %v87, %v112
    %v482 = vsub.f32 %v87, %v116
    %v483 = vsub.f32 %v87, %v120
    %v484 = vsub.f32 %v87, %v124
    %v485 = vsub.f32 %v87, %v128
    %v486 = vsub.f32 %v87, %v132
    %v487 = vsub.f32 %v87, %v136
    %v488 = vsub.f32 %v87, %v140
    %v489 = vsub.f32 %v87, %v144
    %v490 = vsub.f32 %v87, %v148
    %v491 = vsub.f32 %v87, %v152
    %v492 = vsub.f32 %v87, %v156
    %v493 = vsub.f32 %v87, %v160
    %v494 = vsub.f32 %v87, %v164
    %v495 = vsub.f32 %v87, %v168
    %v496 = vsub.f32 %v87, %v172
    %v497 = vsub.f32 %v87, %v176
    %v498 = vsub.f32 %v87, %v180
    %v499 = vsub.f32 %v87, %v184
    %v500 = vsub.f32 %v87, %v188
    %v501 = vsub.f32 %v87, %v192
    %v502 = vsub.f32 %v87, %v196
    %v503 = vsub.f32 %v87, %v200
    %v504 = vsub.f32 %v87, %v204
    %v505 = vsub.f32 %v87, %v208
    %v506 = vsub.f32 %v87, %v212
    %v507 = vsub.f32 %v87, %v216
    %v508 = vsub.f32 %v87, %v220
    %v509 = vand.u32 2147483647, %v253
    %v510 = vand.u32 2147483647, %v254
    %v511 = vand.u32 2147483647, %v255
    %v512 = vand.u32 2147483647, %v256
    %v513 = vand.u32 2147483647, %v257
    %v514 = vand.u32 2147483647, %v258
    %v515 = vand.u32 2147483647, %v259
    %v516 = vand.u32 2147483647, %v260
    %v517 = vand.u32 2147483647, %v261
    %v518 = vand.u32 2147483647, %v262
    %v519 = vand.u32 2147483647, %v263
    %v520 = vand.u32 2147483647, %v264
    %v521 = vand.u32 2147483647, %v265
    %v522 = vand.u32 2147483647, %v266
    %v523 = vand.u32 2147483647, %v267
    %v524 = vand.u32 2147483647, %v268
    %v525 = vand.u32 2147483647, %v269
    %v526 = vand.u32 2147483647, %v270
    %v527 = vand.u32 2147483647, %v271
    %v528 = vand.u32 2147483647, %v272
    %v529 = vand.u32 2147483647, %v273
    %v530 = vand.u32 2147483647, %v274
    %v531 = vand.u32 2147483647, %v275
    %v532 = vand.u32 2147483647, %v276
    %v533 = vand.u32 2147483647, %v277
    %v534 = vand.u32 2147483647, %v278
    %v535 = vand.u32 2147483647, %v279
    %v536 = vand.u32 2147483647, %v280
    %v537 = vand.u32 2147483647, %v281
    %v538 = vand.u32 2147483647, %v282
    %v539 = vand.u32 2147483647, %v283
    %v540 = vand.u32 2147483647, %v284
    %v541 = vand.u32 2147483647, %v285
    %v542 = vand.u32 2147483647, %v286
    %v543 = vand.u32 2147483647, %v287
    %v544 = vand.u32 2147483647, %v288
    %v545 = vand.u32 2147483647, %v289
    %v546 = vand.u32 2147483647, %v290
    %v547 = vand.u32 2147483647, %v291
    %v548 = vand.u32 2147483647, %v292
    %v549 = vand.u32 2147483647, %v293
    %v550 = vand.u32 2147483647, %v294
    %v551 = vand.u32 2147483647, %v295
    %v552 = vand.u32 2147483647, %v296
    %v553 = vand.u32 2147483647, %v297
    %v554 = vand.u32 2147483647, %v298
    %v555 = vand.u32 2147483647, %v299
    %v556 = vand.u32 2147483647, %v300
    %v557 = vand.u32 2147483647, %v301
    %v558 = vand.u32 2147483647, %v302
    %v559 = vand.u32 2147483647, %v303
    %v560 = vand.u32 2147483647, %v304
    %v561 = vand.u32 2147483647, %v305
    %v562 = vand.u32 2147483647, %v306
    %v563 = vand.u32 2147483647, %v307
    %v564 = vand.u32 2147483647, %v308
    %v565 = vand.u32 2147483647, %v309
    %v566 = vand.u32 2147483647, %v310
    %v567 = vand.u32 2147483647, %v311
    %v568 = vand.u32 2147483647, %v312
    %v569 = vand.u32 2147483647, %v313
    %v570 = vand.u32 2147483647, %v314
    %v571 = vand.u32 2147483647, %v315
    %v572 = vand.u32 2147483647, %v316
    %v573 = vand.u32 2147483647, %v317
    %v574 = vand.u32 2147483647, %v318
    %v575 = vand.u32 2147483647, %v319
    %v576 = vand.u32 2147483647, %v320
    %v577 = vand.u32 2147483647, %v321
    %v578 = vand.u32 2147483647, %v322
    %v579 = vand.u32 2147483647, %v323
    %v580 = vand.u32 2147483647, %v324
    %v581 = vand.u32 2147483647, %v325
    %v582 = vand.u32 2147483647, %v326
    %v583 = vand.u32 2147483647, %v327
    %v584 = vand.u32 2147483647, %v328
    %v585 = vand.u32 2147483647, %v329
    %v586 = vand.u32 2147483647, %v330
    %v587 = vand.u32 2147483647, %v331
    %v588 = vand.u32 2147483647, %v332
    %v589 = vand.u32 2147483647, %v333
    %v590 = vand.u32 2147483647, %v334
    %v591 = vand.u32 2147483647, %v335
    %v592 = vand.u32 2147483647, %v336
    %v593 = vand.u32 2147483647, %v337
    %v594 = vand.u32 2147483647, %v338
    %v595 = vand.u32 2147483647, %v339
    %v596 = vand.u32 2147483647, %v340
    %v597 = vand.u32 2147483647, %v341
    %v598 = vand.u32 2147483647, %v342
    %v599 = vand.u32 2147483647, %v343
    %v600 = vand.u32 2147483647, %v344
    %v601 = vand.u32 2147483647, %v345
    %v602 = vand.u32 2147483647, %v346
    %v603 = vand.u32 2147483647, %v347
    %v604 = vand.u32 2147483647, %v348
    %v605 = vand.u32 2147483647, %v349
    %v606 = vand.u32 2147483647, %v350
    %v607 = vand.u32 2147483647, %v351
    %v608 = vand.u32 2147483647, %v352
    %v609 = vand.u32 2147483647, %v353
    %v610 = vand.u32 2147483647, %v354
    %v611 = vand.u32 2147483647, %v355
    %v612 = vand.u32 2147483647, %v356
    %v613 = vand.u32 2147483647, %v357
    %v614 = vand.u32 2147483647, %v358
    %v615 = vand.u32 2147483647, %v359
    %v616 = vand.u32 2147483647, %v360
    %v617 = vand.u32 2147483647, %v361
    %v618 = vand.u32 2147483647, %v362
    %v619 = vand.u32 2147483647, %v363
    %v620 = vand.u32 2147483647, %v364
    %v621 = vand.u32 2147483647, %v365
    %v622 = vand.u32 2147483647, %v366
    %v623 = vand.u32 2147483647, %v367
    %v624 = vand.u32 2147483647, %v368
    %v625 = vand.u32 2147483647, %v369
    %v626 = vand.u32 2147483647, %v370
    %v627 = vand.u32 2147483647, %v371
    %v628 = vand.u32 2147483647, %v372
    %v629 = vand.u32 2147483647, %v373
    %v630 = vand.u32 2147483647, %v374
    %v631 = vand.u32 2147483647, %v375
    %v632 = vand.u32 2147483647, %v376
    %v633 = vand.u32 2147483647, %v377
    %v634 = vand.u32 2147483647, %v378
    %v635 = vand.u32 2147483647, %v379
    %v636 = vand.u32 2147483647, %v380
    %v637 = vand.u32 2147483647, %v381
    %v638 = vand.u32 2147483647, %v382
    %v639 = vand.u32 2147483647, %v383
    %v640 = vand.u32 2147483647, %v384
    %v641 = vand.u32 2147483647, %v385
    %v642 = vand.u32 2147483647, %v386
    %v643 = vand.u32 2147483647, %v387
    %v644 = vand.u32 2147483647, %v388
    %v645 = vand.u32 2147483647, %v389
    %v646 = vand.u32 2147483647, %v390
    %v647 = vand.u32 2147483647, %v391
    %v648 = vand.u32 2147483647, %v392
    %v649 = vand.u32 2147483647, %v393
    %v650 = vand.u32 2147483647, %v394
    %v651 = vand.u32 2147483647, %v395
    %v652 = vand.u32 2147483647, %v396
    %v653 = vand.u32 2147483647, %v397
    %v654 = vand.u32 2147483647, %v398
    %v655 = vand.u32 2147483647, %v399
    %v656 = vand.u32 2147483647, %v400
    %v657 = vand.u32 2147483647, %v401
    %v658 = vand.u32 2147483647, %v402
    %v659 = vand.u32 2147483647, %v403
    %v660 = vand.u32 2147483647, %v404
    %v661 = vand.u32 2147483647, %v405
    %v662 = vand.u32 2147483647, %v406
    %v663 = vand.u32 2147483647, %v407
    %v664 = vand.u32 2147483647, %v408
    %v665 = vand.u32 2147483647, %v409
    %v666 = vand.u32 2147483647, %v410
    %v667 = vand.u32 2147483647, %v411
    %v668 = vand.u32 2147483647, %v412
    %v669 = vand.u32 2147483647, %v413
    %v670 = vand.u32 2147483647, %v414
    %v671 = vand.u32 2147483647, %v415
    %v672 = vand.u32 2147483647, %v416
    %v673 = vand.u32 2147483647, %v417
    %v674 = vand.u32 2147483647, %v418
    %v675 = vand.u32 2147483647, %v419
    %v676 = vand.u32 2147483647, %v420
    %v677 = vand.u32 2147483647, %v421
    %v678 = vand.u32 2147483647, %v422
    %v679 = vand.u32 2147483647, %v423
    %v680 = vand.u32 2147483647, %v424
    %v681 = vand.u32 2147483647, %v425
    %v682 = vand.u32 2147483647, %v426
    %v683 = vand.u32 2147483647, %v427
    %v684 = vand.u32 2147483647, %v428
    %v685 = vand.u32 2147483647, %v429
    %v686 = vand.u32 2147483647, %v430
    %v687 = vand.u32 2147483647, %v431
    %v688 = vand.u32 2147483647, %v432
    %v689 = vand.u32 2147483647, %v433
    %v690 = vand.u32 2147483647, %v434
    %v691 = vand.u32 2147483647, %v435
    %v692 = vand.u32 2147483647, %v436
    %v693 = vand.u32 2147483647, %v437
    %v694 = vand.u32 2147483647, %v438
    %v695 = vand.u32 2147483647, %v439
    %v696 = vand.u32 2147483647, %v440
    %v697 = vand.u32 2147483647, %v441
    %v698 = vand.u32 2147483647, %v442
    %v699 = vand.u32 2147483647, %v443
    %v700 = vand.u32 2147483647, %v444
    %v701 = vand.u32 2147483647, %v445
    %v702 = vand.u32 2147483647, %v446
    %v703 = vand.u32 2147483647, %v447
    %v704 = vand.u32 2147483647, %v448
    %v705 = vand.u32 2147483647, %v449
    %v706 = vand.u32 2147483647, %v450
    %v707 = vand.u32 2147483647, %v451
    %v708 = vand.u32 2147483647, %v452
    %v709 = vand.u32 2147483647, %v453
    %v710 = vand.u32 2147483647, %v454
    %v711 = vand.u32 2147483647, %v455
    %v712 = vand.u32 2147483647, %v456
    %v713 = vand.u32 2147483647, %v457
    %v714 = vand.u32 2147483647, %v458
    %v715 = vand.u32 2147483647, %v459
    %v716 = vand.u32 2147483647, %v460
    %v717 = vand.u32 2147483647, %v461
    %v718 = vand.u32 2147483647, %v462
    %v719 = vand.u32 2147483647, %v463
    %v720 = vand.u32 2147483647, %v464
    %v721 = vand.u32 2147483647, %v465
    %v722 = vand.u32 2147483647, %v466
    %v723 = vand.u32 2147483647, %v467
    %v724 = vand.u32 2147483647, %v468
    %v725 = vand.u32 2147483647, %v469
    %v726 = vand.u32 2147483647, %v470
    %v727 = vand.u32 2147483647, %v471
    %v728 = vand.u32 2147483647, %v472
    %v729 = vand.u32 2147483647, %v473
    %v730 = vand.u32 2147483647, %v474
    %v731 = vand.u32 2147483647, %v475
    %v732 = vand.u32 2147483647, %v476
    %v733 = vand.u32 2147483647, %v477
    %v734 = vand.u32 2147483647, %v478
    %v735 = vand.u32 2147483647, %v479
    %v736 = vand.u32 2147483647, %v480
    %v737 = vand.u32 2147483647, %v481
    %v738 = vand.u32 2147483647, %v482
    %v739 = vand.u32 2147483647, %v483
    %v740 = vand.u32 2147483647, %v484
    %v741 = vand.u32 2147483647, %v485
    %v742 = vand.u32 2147483647, %v486
    %v743 = vand.u32 2147483647, %v487
    %v744 = vand.u32 2147483647, %v488
    %v745 = vand.u32 2147483647, %v489
    %v746 = vand.u32 2147483647, %v490
    %v747 = vand.u32 2147483647, %v491
    %v748 = vand.u32 2147483647, %v492
    %v749 = vand.u32 2147483647, %v493
    %v750 = vand.u32 2147483647, %v494
    %v751 = vand.u32 2147483647, %v495
    %v752 = vand.u32 2147483647, %v496
    %v753 = vand.u32 2147483647, %v497
    %v754 = vand.u32 2147483647, %v498
    %v755 = vand.u32 2147483647, %v499
    %v756 = vand.u32 2147483647, %v500
    %v757 = vand.u32 2147483647, %v501
    %v758 = vand.u32 2147483647, %v502
    %v759 = vand.u32 2147483647, %v503
    %v760 = vand.u32 2147483647, %v504
    %v761 = vand.u32 2147483647, %v505
    %v762 = vand.u32 2147483647, %v506
    %v763 = vand.u32 2147483647, %v507
    %v764 = vand.u32 2147483647, %v508
    %v765 = vsub.f32 1.0, %v509
    %v766 = vsub.f32 1.0, %v510
    %v767 = vsub.f32 1.0, %v511
    %v768 = vsub.f32 1.0, %v512
    %v769 = vsub.f32 1.0, %v513
    %v770 = vsub.f32 1.0, %v514
    %v771 = vsub.f32 1.0, %v515
    %v772 = vsub.f32 1.0, %v516
    %v773 = vsub.f32 1.0, %v517
    %v774 = vsub.f32 1.0, %v518
    %v775 = vsub.f32 1.0, %v519
    %v776 = vsub.f32 1.0, %v520
    %v777 = vsub.f32 1.0, %v521
    %v778 = vsub.f32 1.0, %v522
    %v779 = vsub.f32 1.0, %v523
    %v780 = vsub.f32 1.0, %v524
    %v781 = vsub.f32 1.0, %v525
    %v782 = vsub.f32 1.0, %v526
    %v783 = vsub.f32 1.0, %v527
    %v784 = vsub.f32 1.0, %v528
    %v785 = vsub.f32 1.0, %v529
    %v786 = vsub.f32 1.0, %v530
    %v787 = vsub.f32 1.0, %v531
    %v788 = vsub.f32 1.0, %v532
    %v789 = vsub.f32 1.0, %v533
    %v790 = vsub.f32 1.0, %v534
    %v791 = vsub.f32 1.0, %v535
    %v792 = vsub.f32 1.0, %v536
    %v793 = vsub.f32 1.0, %v537
    %v794 = vsub.f32 1.0, %v538
    %v795 = vsub.f32 1.0, %v539
    %v796 = vsub.f32 1.0, %v540
    %v797 = vsub.f32 1.0, %v541
    %v798 = vsub.f32 1.0, %v542
    %v799 = vsub.f32 1.0, %v543
    %v800 = vsub.f32 1.0, %v544
    %v801 = vsub.f32 1.0, %v545
    %v802 = vsub.f32 1.0, %v546
    %v803 = vsub.f32 1.0, %v547
    %v804 = vsub.f32 1.0, %v548
    %v805 = vsub.f32 1.0, %v549
    %v806 = vsub.f32 1.0, %v550
    %v807 = vsub.f32 1.0, %v551
    %v808 = vsub.f32 1.0, %v552
    %v809 = vsub.f32 1.0, %v553
    %v810 = vsub.f32 1.0, %v554
    %v811 = vsub.f32 1.0, %v555
    %v812 = vsub.f32 1.0, %v556
    %v813 = vsub.f32 1.0, %v557
    %v814 = vsub.f32 1.0, %v558
    %v815 = vsub.f32 1.0, %v559
    %v816 = vsub.f32 1.0, %v560
    %v817 = vsub.f32 1.0, %v561
    %v818 = vsub.f32 1.0, %v562
    %v819 = vsub.f32 1.0, %v563
    %v820 = vsub.f32 1.0, %v564
    %v821 = vsub.f32 1.0, %v565
    %v822 = vsub.f32 1.0, %v566
    %v823 = vsub.f32 1.0, %v567
    %v824 = vsub.f32 1.0, %v568
    %v825 = vsub.f32 1.0, %v569
    %v826 = vsub.f32 1.0, %v570
    %v827 = vsub.f32 1.0, %v571
    %v828 = vsub.f32 1.0, %v572
    %v829 = vsub.f32 1.0, %v573
    %v830 = vsub.f32 1.0, %v574
    %v831 = vsub.f32 1.0, %v575
    %v832 = vsub.f32 1.0, %v576
    %v833 = vsub.f32 1.0, %v577
    %v834 = vsub.f32 1.0, %v578
    %v835 = vsub.f32 1.0, %v579
    %v836 = vsub.f32 1.0, %v580
    %v837 = vsub.f32 1.0, %v581
    %v838 = vsub.f32 1.0, %v582
    %v839 = vsub.f32 1.0, %v583
    %v840 = vsub.f32 1.0, %v584
    %v841 = vsub.f32 1.0, %v585
    %v842 = vsub.f32 1.0, %v586
    %v843 = vsub.f32 1.0, %v587
    %v844 = vsub.f32 1.0, %v588
    %v845 = vsub.f32 1.0, %v589
    %v846 = vsub.f32 1.0, %v590
    %v847 = vsub.f32 1.0, %v591
    %v848 = vsub.f32 1.0, %v592
    %v849 = vsub.f32 1.0, %v593
    %v850 = vsub.f32 1.0, %v594
    %v851 = vsub.f32 1.0, %v595
    %v852 = vsub.f32 1.0, %v596
    %v853 = vsub.f32 1.0, %v597
    %v854 = vsub.f32 1.0, %v598
    %v855 = vsub.f32 1.0, %v599
    %v856 = vsub.f32 1.0, %v600
    %v857 = vsub.f32 1.0, %v601
    %v858 = vsub.f32 1.0, %v602
    %v859 = vsub.f32 1.0, %v603
    %v860 = vsub.f32 1.0, %v604
    %v861 = vsub.f32 1.0, %v605
    %v862 = vsub.f32 1.0, %v606
    %v863 = vsub.f32 1.0, %v607
    %v864 = vsub.f32 1.0, %v608
    %v865 = vsub.f32 1.0, %v609
    %v866 = vsub.f32 1.0, %v610
    %v867 = vsub.f32 1.0, %v611
    %v868 = vsub.f32 1.0, %v612
    %v869 = vsub.f32 1.0, %v613
    %v870 = vsub.f32 1.0, %v614
    %v871 = vsub.f32 1.0, %v615
    %v872 = vsub.f32 1.0, %v616
    %v873 = vsub.f32 1.0, %v617
    %v874 = vsub.f32 1.0, %v618
    %v875 = vsub.f32 1.0, %v619
    %v876 = vsub.f32 1.0, %v620
    %v877 = vsub.f32 1.0, %v621
    %v878 = vsub.f32 1.0, %v622
    %v879 = vsub.f32 1.0, %v623
    %v880 = vsub.f32 1.0, %v624
    %v881 = vsub.f32 1.0, %v625
    %v882 = vsub.f32 1.0, %v626
    %v883 = vsub.f32 1.0, %v627
    %v884 = vsub.f32 1.0, %v628
    %v885 = vsub.f32 1.0, %v629
    %v886 = vsub.f32 1.0, %v630
    %v887 = vsub.f32 1.0, %v631
    %v888 = vsub.f32 1.0, %v632
    %v889 = vsub.f32 1.0, %v633
    %v890 = vsub.f32 1.0, %v634
    %v891 = vsub.f32 1.0, %v635
    %v892 = vsub.f32 1.0, %v636
    %v893 = vsub.f32 1.0, %v637
    %v894 = vsub.f32 1.0, %v638
    %v895 = vsub.f32 1.0, %v639
    %v896 = vsub.f32 1.0, %v640
    %v897 = vsub.f32 1.0, %v641
    %v898 = vsub.f32 1.0, %v642
    %v899 = vsub.f32 1.0, %v643
    %v900 = vsub.f32 1.0, %v644
    %v901 = vsub.f32 1.0, %v645
    %v902 = vsub.f32 1.0, %v646
    %v903 = vsub.f32 1.0, %v647
    %v904 = vsub.f32 1.0, %v648
    %v905 = vsub.f32 1.0, %v649
    %v906 = vsub.f32 1.0, %v650
    %v907 = vsub.f32 1.0, %v651
    %v908 = vsub.f32 1.0, %v652
    %v909 = vsub.f32 1.0, %v653
    %v910 = vsub.f32 1.0, %v654
    %v911 = vsub.f32 1.0, %v655
    %v912 = vsub.f32 1.0, %v656
    %v913 = vsub.f32 1.0, %v657
    %v914 = vsub.f32 1.0, %v658
    %v915 = vsub.f32 1.0, %v659
    %v916 = vsub.f32 1.0, %v660
    %v917 = vsub.f32 1.0, %v661
    %v918 = vsub.f32 1.0, %v662
    %v919 = vsub.f32 1.0, %v663
    %v920 = vsub.f32 1.0, %v664
    %v921 = vsub.f32 1.0, %v665
    %v922 = vsub.f32 1.0, %v666
    %v923 = vsub.f32 1.0, %v667
    %v924 = vsub.f32 1.0, %v668
    %v925 = vsub.f32 1.0, %v669
    %v926 = vsub.f32 1.0, %v670
    %v927 = vsub.f32 1.0, %v671
    %v928 = vsub.f32 1.0, %v672
    %v929 = vsub.f32 1.0, %v673
    %v930 = vsub.f32 1.0, %v674
    %v931 = vsub.f32 1.0, %v675
    %v932 = vsub.f32 1.0, %v676
    %v933 = vsub.f32 1.0, %v677
    %v934 = vsub.f32 1.0, %v678
    %v935 = vsub.f32 1.0, %v679
    %v936 = vsub.f32 1.0, %v680
    %v937 = vsub.f32 1.0, %v681
    %v938 = vsub.f32 1.0, %v682
    %v939 = vsub.f32 1.0, %v683
    %v940 = vsub.f32 1.0, %v684
    %v941 = vsub.f32 1.0, %v685
    %v942 = vsub.f32 1.0, %v686
    %v943 = vsub.f32 1.0, %v687
    %v944 = vsub.f32 1.0, %v688
    %v945 = vsub.f32 1.0, %v689
    %v946 = vsub.f32 1.0, %v690
    %v947 = vsub.f32 1.0, %v691
    %v948 = vsub.f32 1.0, %v692
    %v949 = vsub.f32 1.0, %v693
    %v950 = vsub.f32 1.0, %v694
    %v951 = vsub.f32 1.0, %v695
    %v952 = vsub.f32 1.0, %v696
    %v953 = vsub.f32 1.0, %v697
    %v954 = vsub.f32 1.0, %v698
    %v955 = vsub.f32 1.0, %v699
    %v956 = vsub.f32 1.0, %v700
    %v957 = vsub.f32 1.0, %v701
    %v958 = vsub.f32 1.0, %v702
    %v959 = vsub.f32 1.0, %v703
    %v960 = vsub.f32 1.0, %v704
    %v961 = vsub.f32 1.0, %v705
    %v962 = vsub.f32 1.0, %v706
    %v963 = vsub.f32 1.0, %v707
    %v964 = vsub.f32 1.0, %v708
    %v965 = vsub.f32 1.0, %v709
    %v966 = vsub.f32 1.0, %v710
    %v967 = vsub.f32 1.0, %v711
    %v968 = vsub.f32 1.0, %v712
    %v969 = vsub.f32 1.0, %v713
    %v970 = vsub.f32 1.0, %v714
    %v971 = vsub.f32 1.0, %v715
    %v972 = vsub.f32 1.0, %v716
    %v973 = vsub.f32 1.0, %v717
    %v974 = vsub.f32 1.0, %v718
    %v975 = vsub.f32 1.0, %v719
    %v976 = vsub.f32 1.0, %v720
    %v977 = vsub.f32 1.0, %v721
    %v978 = vsub.f32 1.0, %v722
    %v979 = vsub.f32 1.0, %v723
    %v980 = vsub.f32 1.0, %v724
    %v981 = vsub.f32 1.0, %v725
    %v982 = vsub.f32 1.0, %v726
    %v983 = vsub.f32 1.0, %v727
    %v984 = vsub.f32 1.0, %v728
    %v985 = vsub.f32 1.0, %v729
    %v986 = vsub.f32 1.0, %v730
    %v987 = vsub.f32 1.0, %v731
    %v988 = vsub.f32 1.0, %v732
    %v989 = vsub.f32 1.0, %v733
    %v990 = vsub.f32 1.0, %v734
    %v991 = vsub.f32 1.0, %v735
    %v992 = vsub.f32 1.0, %v736
    %v993 = vsub.f32 1.0, %v737
    %v994 = vsub.f32 1.0, %v738
    %v995 = vsub.f32 1.0, %v739
    %v996 = vsub.f32 1.0, %v740
    %v997 = vsub.f32 1.0, %v741
    %v998 = vsub.f32 1.0, %v742
    %v999 = vsub.f32 1.0, %v743
    %v1000 = vsub.f32 1.0, %v744
    %v1001 = vsub.f32 1.0, %v745
    %v1002 = vsub.f32 1.0, %v746
    %v1003 = vsub.f32 1.0, %v747
    %v1004 = vsub.f32 1.0, %v748
    %v1005 = vsub.f32 1.0, %v749
    %v1006 = vsub.f32 1.0, %v750
    %v1007 = vsub.f32 1.0, %v751
    %v1008 = vsub.f32 1.0, %v752
    %v1009 = vsub.f32 1.0, %v753
    %v1010 = vsub.f32 1.0, %v754
    %v1011 = vsub.f32 1.0, %v755
    %v1012 = vsub.f32 1.0, %v756
    %v1013 = vsub.f32 1.0, %v757
    %v1014 = vsub.f32 1.0, %v758
    %v1015 = vsub.f32 1.0, %v759
    %v1016 = vsub.f32 1.0, %v760
    %v1017 = vsub.f32 1.0, %v761
    %v1018 = vsub.f32 1.0, %v762
    %v1019 = vsub.f32 1.0, %v763
    %v1020 = vsub.f32 1.0, %v764
    %v1021 = vmax.f32 %v765, 0.0
    %v1022 = vmax.f32 %v766, 0.0
    %v1023 = vmax.f32 %v767, 0.0
    %v1024 = vmax.f32 %v768, 0.0
    %v1025 = vmax.f32 %v769, 0.0
    %v1026 = vmax.f32 %v770, 0.0
    %v1027 = vmax.f32 %v771, 0.0
    %v1028 = vmax.f32 %v772, 0.0
    %v1029 = vmax.f32 %v773, 0.0
    %v1030 = vmax.f32 %v774, 0.0
    %v1031 = vmax.f32 %v775, 0.0
    %v1032 = vmax.f32 %v776, 0.0
    %v1033 = vmax.f32 %v777, 0.0
    %v1034 = vmax.f32 %v778, 0.0
    %v1035 = vmax.f32 %v779, 0.0
    %v1036 = vmax.f32 %v780, 0.0
    %v1037 = vmax.f32 %v781, 0.0
    %v1038 = vmax.f32 %v782, 0.0
    %v1039 = vmax.f32 %v783, 0.0
    %v1040 = vmax.f32 %v784, 0.0
    %v1041 = vmax.f32 %v785, 0.0
    %v1042 = vmax.f32 %v786, 0.0
    %v1043 = vmax.f32 %v787, 0.0
    %v1044 = vmax.f32 %v788, 0.0
    %v1045 = vmax.f32 %v789, 0.0
    %v1046 = vmax.f32 %v790, 0.0
    %v1047 = vmax.f32 %v791, 0.0
    %v1048 = vmax.f32 %v792, 0.0
    %v1049 = vmax.f32 %v793, 0.0
    %v1050 = vmax.f32 %v794, 0.0
    %v1051 = vmax.f32 %v795, 0.0
    %v1052 = vmax.f32 %v796, 0.0
    %v1053 = vmax.f32 %v797, 0.0
    %v1054 = vmax.f32 %v798, 0.0
    %v1055 = vmax.f32 %v799, 0.0
    %v1056 = vmax.f32 %v800, 0.0
    %v1057 = vmax.f32 %v801, 0.0
    %v1058 = vmax.f32 %v802, 0.0
    %v1059 = vmax.f32 %v803, 0.0
    %v1060 = vmax.f32 %v804, 0.0
    %v1061 = vmax.f32 %v805, 0.0
    %v1062 = vmax.f32 %v806, 0.0
    %v1063 = vmax.f32 %v807, 0.0
    %v1064 = vmax.f32 %v808, 0.0
    %v1065 = vmax.f32 %v809, 0.0
    %v1066 = vmax.f32 %v810, 0.0
    %v1067 = vmax.f32 %v811, 0.0
    %v1068 = vmax.f32 %v812, 0.0
    %v1069 = vmax.f32 %v813, 0.0
    %v1070 = vmax.f32 %v814, 0.0
    %v1071 = vmax.f32 %v815, 0.0
    %v1072 = vmax.f32 %v816, 0.0
    %v1073 = vmax.f32 %v817, 0.0
    %v1074 = vmax.f32 %v818, 0.0
    %v1075 = vmax.f32 %v819, 0.0
    %v1076 = vmax.f32 %v820, 0.0
    %v1077 = vmax.f32 %v821, 0.0
    %v1078 = vmax.f32 %v822, 0.0
    %v1079 = vmax.f32 %v823, 0.0
    %v1080 = vmax.f32 %v824, 0.0
    %v1081 = vmax.f32 %v825, 0.0
    %v1082 = vmax.f32 %v826, 0.0
    %v1083 = vmax.f32 %v827, 0.0
    %v1084 = vmax.f32 %v828, 0.0
    %v1085 = vmax.f32 %v829, 0.0
    %v1086 = vmax.f32 %v830, 0.0
    %v1087 = vmax.f32 %v831, 0.0
    %v1088 = vmax.f32 %v832, 0.0
    %v1089 = vmax.f32 %v833, 0.0
    %v1090 = vmax.f32 %v834, 0.0
    %v1091 = vmax.f32 %v835, 0.0
    %v1092 = vmax.f32 %v836, 0.0
    %v1093 = vmax.f32 %v837, 0.0
    %v1094 = vmax.f32 %v838, 0.0
    %v1095 = vmax.f32 %v839, 0.0
    %v1096 = vmax.f32 %v840, 0.0
    %v1097 = vmax.f32 %v841, 0.0
    %v1098 = vmax.f32 %v842, 0.0
    %v1099 = vmax.f32 %v843, 0.0
    %v1100 = vmax.f32 %v844, 0.0
    %v1101 = vmax.f32 %v845, 0.0
    %v1102 = vmax.f32 %v846, 0.0
    %v1103 = vmax.f32 %v847, 0.0
    %v1104 = vmax.f32 %v848, 0.0
    %v1105 = vmax.f32 %v849, 0.0
    %v1106 = vmax.f32 %v850, 0.0
    %v1107 = vmax.f32 %v851, 0.0
    %v1108 = vmax.f32 %v852, 0.0
    %v1109 = vmax.f32 %v853, 0.0
    %v1110 = vmax.f32 %v854, 0.0
    %v1111 = vmax.f32 %v855, 0.0
    %v1112 = vmax.f32 %v856, 0.0
    %v1113 = vmax.f32 %v857, 0.0
    %v1114 = vmax.f32 %v858, 0.0
    %v1115 = vmax.f32 %v859, 0.0
    %v1116 = vmax.f32 %v860, 0.0
    %v1117 = vmax.f32 %v861, 0.0
    %v1118 = vmax.f32 %v862, 0.0
    %v1119 = vmax.f32 %v863, 0.0
    %v1120 = vmax.f32 %v864, 0.0
    %v1121 = vmax.f32 %v865, 0.0
    %v1122 = vmax.f32 %v866, 0.0
    %v1123 = vmax.f32 %v867, 0.0
    %v1124 = vmax.f32 %v868, 0.0
    %v1125 = vmax.f32 %v869, 0.0
    %v1126 = vmax.f32 %v870, 0.0
    %v1127 = vmax.f32 %v871, 0.0
    %v1128 = vmax.f32 %v872, 0.0
    %v1129 = vmax.f32 %v873, 0.0
    %v1130 = vmax.f32 %v874, 0.0
    %v1131 = vmax.f32 %v875, 0.0
    %v1132 = vmax.f32 %v876, 0.0
    %v1133 = vmax.f32 %v877, 0.0
    %v1134 = vmax.f32 %v878, 0.0
    %v1135 = vmax.f32 %v879, 0.0
    %v1136 = vmax.f32 %v880, 0.0
    %v1137 = vmax.f32 %v881, 0.0
    %v1138 = vmax.f32 %v882, 0.0
    %v1139 = vmax.f32 %v883, 0.0
    %v1140 = vmax.f32 %v884, 0.0
    %v1141 = vmax.f32 %v885, 0.0
    %v1142 = vmax.f32 %v886, 0.0
    %v1143 = vmax.f32 %v887, 0.0
    %v1144 = vmax.f32 %v888, 0.0
    %v1145 = vmax.f32 %v889, 0.0
    %v1146 = vmax.f32 %v890, 0.0
    %v1147 = vmax.f32 %v891, 0.0
    %v1148 = vmax.f32 %v892, 0.0
    %v1149 = vmax.f32 %v893, 0.0
    %v1150 = vmax.f32 %v894, 0.0
    %v1151 = vmax.f32 %v895, 0.0
    %v1152 = vmax.f32 %v896, 0.0
    %v1153 = vmax.f32 %v897, 0.0
    %v1154 = vmax.f32 %v898, 0.0
    %v1155 = vmax.f32 %v899, 0.0
    %v1156 = vmax.f32 %v900, 0.0
    %v1157 = vmax.f32 %v901, 0.0
    %v1158 = vmax.f32 %v902, 0.0
    %v1159 = vmax.f32 %v903, 0.0
    %v1160 = vmax.f32 %v904, 0.0
    %v1161 = vmax.f32 %v905, 0.0
    %v1162 = vmax.f32 %v906, 0.0
    %v1163 = vmax.f32 %v907, 0.0
    %v1164 = vmax.f32 %v908, 0.0
    %v1165 = vmax.f32 %v909, 0.0
    %v1166 = vmax.f32 %v910, 0.0
    %v1167 = vmax.f32 %v911, 0.0
    %v1168 = vmax.f32 %v912, 0.0
    %v1169 = vmax.f32 %v913, 0.0
    %v1170 = vmax.f32 %v914, 0.0
    %v1171 = vmax.f32 %v915, 0.0
    %v1172 = vmax.f32 %v916, 0.0
    %v1173 = vmax.f32 %v917, 0.0
    %v1174 = vmax.f32 %v918, 0.0
    %v1175 = vmax.f32 %v919, 0.0
    %v1176 = vmax.f32 %v920, 0.0
    %v1177 = vmax.f32 %v921, 0.0
    %v1178 = vmax.f32 %v922, 0.0
    %v1179 = vmax.f32 %v923, 0.0
    %v1180 = vmax.f32 %v924, 0.0
    %v1181 = vmax.f32 %v925, 0.0
    %v1182 = vmax.f32 %v926, 0.0
    %v1183 = vmax.f32 %v927, 0.0
    %v1184 = vmax.f32 %v928, 0.0
    %v1185 = vmax.f32 %v929, 0.0
    %v1186 = vmax.f32 %v930, 0.0
    %v1187 = vmax.f32 %v931, 0.0
    %v1188 = vmax.f32 %v932, 0.0
    %v1189 = vmax.f32 %v933, 0.0
    %v1190 = vmax.f32 %v934, 0.0
    %v1191 = vmax.f32 %v935, 0.0
    %v1192 = vmax.f32 %v936, 0.0
    %v1193 = vmax.f32 %v937, 0.0
    %v1194 = vmax.f32 %v938, 0.0
    %v1195 = vmax.f32 %v939, 0.0
    %v1196 = vmax.f32 %v940, 0.0
    %v1197 = vmax.f32 %v941, 0.0
    %v1198 = vmax.f32 %v942, 0.0
    %v1199 = vmax.f32 %v943, 0.0
    %v1200 = vmax.f32 %v944, 0.0
    %v1201 = vmax.f32 %v945, 0.0
    %v1202 = vmax.f32 %v946, 0.0
    %v1203 = vmax.f32 %v947, 0.0
    %v1204 = vmax.f32 %v948, 0.0
    %v1205 = vmax.f32 %v949, 0.0
    %v1206 = vmax.f32 %v950, 0.0
    %v1207 = vmax.f32 %v951, 0.0
    %v1208 = vmax.f32 %v952, 0.0
    %v1209 = vmax.f32 %v953, 0.0
    %v1210 = vmax.f32 %v954, 0.0
    %v1211 = vmax.f32 %v955, 0.0
    %v1212 = vmax.f32 %v956, 0.0
    %v1213 = vmax.f32 %v957, 0.0
    %v1214 = vmax.f32 %v958, 0.0
    %v1215 = vmax.f32 %v959, 0.0
    %v1216 = vmax.f32 %v960, 0.0
    %v1217 = vmax.f32 %v961, 0.0
    %v1218 = vmax.f32 %v962, 0.0
    %v1219 = vmax.f32 %v963, 0.0
    %v1220 = vmax.f32 %v964, 0.0
    %v1221 = vmax.f32 %v965, 0.0
    %v1222 = vmax.f32 %v966, 0.0
    %v1223 = vmax.f32 %v967, 0.0
    %v1224 = vmax.f32 %v968, 0.0
    %v1225 = vmax.f32 %v969, 0.0
    %v1226 = vmax.f32 %v970, 0.0
    %v1227 = vmax.f32 %v971, 0.0
    %v1228 = vmax.f32 %v972, 0.0
    %v1229 = vmax.f32 %v973, 0.0
    %v1230 = vmax.f32 %v974, 0.0
    %v1231 = vmax.f32 %v975, 0.0
    %v1232 = vmax.f32 %v976, 0.0
    %v1233 = vmax.f32 %v977, 0.0
    %v1234 = vmax.f32 %v978, 0.0
    %v1235 = vmax.f32 %v979, 0.0
    %v1236 = vmax.f32 %v980, 0.0
    %v1237 = vmax.f32 %v981, 0.0
    %v1238 = vmax.f32 %v982, 0.0
    %v1239 = vmax.f32 %v983, 0.0
    %v1240 = vmax.f32 %v984, 0.0
    %v1241 = vmax.f32 %v985, 0.0
    %v1242 = vmax.f32 %v986, 0.0
    %v1243 = vmax.f32 %v987, 0.0
    %v1244 = vmax.f32 %v988, 0.0
    %v1245 = vmax.f32 %v989, 0.0
    %v1246 = vmax.f32 %v990, 0.0
    %v1247 = vmax.f32 %v991, 0.0
    %v1248 = vmax.f32 %v992, 0.0
    %v1249 = vmax.f32 %v993, 0.0
    %v1250 = vmax.f32 %v994, 0.0
    %v1251 = vmax.f32 %v995, 0.0
    %v1252 = vmax.f32 %v996, 0.0
    %v1253 = vmax.f32 %v997, 0.0
    %v1254 = vmax.f32 %v998, 0.0
    %v1255 = vmax.f32 %v999, 0.0
    %v1256 = vmax.f32 %v1000, 0.0
    %v1257 = vmax.f32 %v1001, 0.0
    %v1258 = vmax.f32 %v1002, 0.0
    %v1259 = vmax.f32 %v1003, 0.0
    %v1260 = vmax.f32 %v1004, 0.0
    %v1261 = vmax.f32 %v1005, 0.0
    %v1262 = vmax.f32 %v1006, 0.0
    %v1263 = vmax.f32 %v1007, 0.0
    %v1264 = vmax.f32 %v1008, 0.0
    %v1265 = vmax.f32 %v1009, 0.0
    %v1266 = vmax.f32 %v1010, 0.0
    %v1267 = vmax.f32 %v1011, 0.0
    %v1268 = vmax.f32 %v1012, 0.0
    %v1269 = vmax.f32 %v1013, 0.0
    %v1270 = vmax.f32 %v1014, 0.0
    %v1271 = vmax.f32 %v1015, 0.0
    %v1272 = vmax.f32 %v1016, 0.0
    %v1273 = vmax.f32 %v1017, 0.0
    %v1274 = vmax.f32 %v1018, 0.0
    %v1275 = vmax.f32 %v1019, 0.0
    %v1276 = vmax.f32 %v1020, 0.0
    %s1277 = scalar_lea.vmem %s0, 1
    %v1278 = vld [vmem:[%s1277] ss:$2 sm:$0xff]
    %s1279 = scalar_lea.vmem %s0, 17
    %v1280 = vld [vmem:[%s1279] ss:$2 sm:$0xff]
    %s1281 = scalar_lea.vmem %s0, 33
    %v1282 = vld [vmem:[%s1281] ss:$2 sm:$0xff]
    %s1283 = scalar_lea.vmem %s0, 49
    %v1284 = vld [vmem:[%s1283] ss:$2 sm:$0xff]
    %1285 = vset.pattern.permute.xlu0 1
    %1286 = vperm.xlu0 %1285, %v41
    %v1287 = vpop.permute.xlu0 %1286
    %1289 = vset.pattern.permute.xlu0 1
    %1290 = vperm.xlu0 %1289, %v42
    %v1291 = vpop.permute.xlu0 %1290
    %1293 = vset.pattern.permute.xlu0 1
    %1294 = vperm.xlu0 %1293, %v43
    %v1295 = vpop.permute.xlu0 %1294
    %1297 = vset.pattern.permute.xlu0 1
    %1298 = vperm.xlu0 %1297, %v44
    %v1299 = vpop.permute.xlu0 %1298
    %1301 = vset.pattern.permute.xlu0 1
    %1302 = vperm.xlu0 %1301, %v45
    %v1303 = vpop.permute.xlu0 %1302
    %1305 = vset.pattern.permute.xlu0 1
    %1306 = vperm.xlu0 %1305, %v46
    %v1307 = vpop.permute.xlu0 %1306
    %1309 = vset.pattern.permute.xlu0 1
    %1310 = vperm.xlu0 %1309, %v47
    %v1311 = vpop.permute.xlu0 %1310
    %1313 = vset.pattern.permute.xlu0 1
    %1314 = vperm.xlu0 %1313, %v48
    %v1315 = vpop.permute.xlu0 %1314
    %v1321 = vlaneseq
    %v1322 = vshrl.u32 %v1321, 7
    %v1323 = vsub.s32 0, %v1322
    %v1324 = vrot.slane %v1278, %v1323
    %v1325 = vlaneseq
    %v1326 = vshrl.u32 %v1325, 7
    %v1327 = vsub.s32 1, %v1326
    %v1328 = vrot.slane %v1278, %v1327
    %v1329 = vlaneseq
    %v1330 = vshrl.u32 %v1329, 7
    %v1331 = vsub.s32 2, %v1330
    %v1332 = vrot.slane %v1278, %v1331
    %v1333 = vlaneseq
    %v1334 = vshrl.u32 %v1333, 7
    %v1335 = vsub.s32 3, %v1334
    %v1336 = vrot.slane %v1278, %v1335
    %v1337 = vlaneseq
    %v1338 = vshrl.u32 %v1337, 7
    %v1339 = vsub.s32 4, %v1338
    %v1340 = vrot.slane %v1278, %v1339
    %v1341 = vlaneseq
    %v1342 = vshrl.u32 %v1341, 7
    %v1343 = vsub.s32 5, %v1342
    %v1344 = vrot.slane %v1278, %v1343
    %v1345 = vlaneseq
    %v1346 = vshrl.u32 %v1345, 7
    %v1347 = vsub.s32 6, %v1346
    %v1348 = vrot.slane %v1278, %v1347
    %v1349 = vlaneseq
    %v1350 = vshrl.u32 %v1349, 7
    %v1351 = vsub.s32 7, %v1350
    %v1352 = vrot.slane %v1278, %v1351
    %v1353 = vlaneseq
    %v1354 = vshrl.u32 %v1353, 7
    %v1355 = vsub.s32 0, %v1354
    %v1356 = vrot.slane %v1280, %v1355
    %v1357 = vlaneseq
    %v1358 = vshrl.u32 %v1357, 7
    %v1359 = vsub.s32 1, %v1358
    %v1360 = vrot.slane %v1280, %v1359
    %v1361 = vlaneseq
    %v1362 = vshrl.u32 %v1361, 7
    %v1363 = vsub.s32 2, %v1362
    %v1364 = vrot.slane %v1280, %v1363
    %v1365 = vlaneseq
    %v1366 = vshrl.u32 %v1365, 7
    %v1367 = vsub.s32 3, %v1366
    %v1368 = vrot.slane %v1280, %v1367
    %v1369 = vlaneseq
    %v1370 = vshrl.u32 %v1369, 7
    %v1371 = vsub.s32 4, %v1370
    %v1372 = vrot.slane %v1280, %v1371
    %v1373 = vlaneseq
    %v1374 = vshrl.u32 %v1373, 7
    %v1375 = vsub.s32 5, %v1374
    %v1376 = vrot.slane %v1280, %v1375
    %v1377 = vlaneseq
    %v1378 = vshrl.u32 %v1377, 7
    %v1379 = vsub.s32 6, %v1378
    %v1380 = vrot.slane %v1280, %v1379
    %v1381 = vlaneseq
    %v1382 = vshrl.u32 %v1381, 7
    %v1383 = vsub.s32 7, %v1382
    %v1384 = vrot.slane %v1280, %v1383
    %v1385 = vlaneseq
    %v1386 = vshrl.u32 %v1385, 7
    %v1387 = vsub.s32 0, %v1386
    %v1388 = vrot.slane %v1282, %v1387
    %v1389 = vlaneseq
    %v1390 = vshrl.u32 %v1389, 7
    %v1391 = vsub.s32 1, %v1390
    %v1392 = vrot.slane %v1282, %v1391
    %v1393 = vlaneseq
    %v1394 = vshrl.u32 %v1393, 7
    %v1395 = vsub.s32 2, %v1394
    %v1396 = vrot.slane %v1282, %v1395
    %v1397 = vlaneseq
    %v1398 = vshrl.u32 %v1397, 7
    %v1399 = vsub.s32 3, %v1398
    %v1400 = vrot.slane %v1282, %v1399
    %v1401 = vlaneseq
    %v1402 = vshrl.u32 %v1401, 7
    %v1403 = vsub.s32 4, %v1402
    %v1404 = vrot.slane %v1282, %v1403
    %v1405 = vlaneseq
    %v1406 = vshrl.u32 %v1405, 7
    %v1407 = vsub.s32 5, %v1406
    %v1408 = vrot.slane %v1282, %v1407
    %v1409 = vlaneseq
    %v1410 = vshrl.u32 %v1409, 7
    %v1411 = vsub.s32 6, %v1410
    %v1412 = vrot.slane %v1282, %v1411
    %v1413 = vlaneseq
    %v1414 = vshrl.u32 %v1413, 7
    %v1415 = vsub.s32 7, %v1414
    %v1416 = vrot.slane %v1282, %v1415
    %v1417 = vlaneseq
    %v1418 = vshrl.u32 %v1417, 7
    %v1419 = vsub.s32 0, %v1418
    %v1420 = vrot.slane %v1284, %v1419
    %v1421 = vlaneseq
    %v1422 = vshrl.u32 %v1421, 7
    %v1423 = vsub.s32 1, %v1422
    %v1424 = vrot.slane %v1284, %v1423
    %v1425 = vlaneseq
    %v1426 = vshrl.u32 %v1425, 7
    %v1427 = vsub.s32 2, %v1426
    %v1428 = vrot.slane %v1284, %v1427
    %v1429 = vlaneseq
    %v1430 = vshrl.u32 %v1429, 7
    %v1431 = vsub.s32 3, %v1430
    %v1432 = vrot.slane %v1284, %v1431
    %v1433 = vlaneseq
    %v1434 = vshrl.u32 %v1433, 7
    %v1435 = vsub.s32 4, %v1434
    %v1436 = vrot.slane %v1284, %v1435
    %v1437 = vlaneseq
    %v1438 = vshrl.u32 %v1437, 7
    %v1439 = vsub.s32 5, %v1438
    %v1440 = vrot.slane %v1284, %v1439
    %v1441 = vlaneseq
    %v1442 = vshrl.u32 %v1441, 7
    %v1443 = vsub.s32 6, %v1442
    %v1444 = vrot.slane %v1284, %v1443
    %v1445 = vlaneseq
    %v1446 = vshrl.u32 %v1445, 7
    %v1447 = vsub.s32 7, %v1446
    %v1448 = vrot.slane %v1284, %v1447
    %v1481 = vsub.f32 %v1287, %v1324
    %v1482 = vsub.f32 %v1287, %v1328
    %v1483 = vsub.f32 %v1287, %v1332
    %v1484 = vsub.f32 %v1287, %v1336
    %v1485 = vsub.f32 %v1287, %v1340
    %v1486 = vsub.f32 %v1287, %v1344
    %v1487 = vsub.f32 %v1287, %v1348
    %v1488 = vsub.f32 %v1287, %v1352
    %v1489 = vsub.f32 %v1287, %v1356
    %v1490 = vsub.f32 %v1287, %v1360
    %v1491 = vsub.f32 %v1287, %v1364
    %v1492 = vsub.f32 %v1287, %v1368
    %v1493 = vsub.f32 %v1287, %v1372
    %v1494 = vsub.f32 %v1287, %v1376
    %v1495 = vsub.f32 %v1287, %v1380
    %v1496 = vsub.f32 %v1287, %v1384
    %v1497 = vsub.f32 %v1287, %v1388
    %v1498 = vsub.f32 %v1287, %v1392
    %v1499 = vsub.f32 %v1287, %v1396
    %v1500 = vsub.f32 %v1287, %v1400
    %v1501 = vsub.f32 %v1287, %v1404
    %v1502 = vsub.f32 %v1287, %v1408
    %v1503 = vsub.f32 %v1287, %v1412
    %v1504 = vsub.f32 %v1287, %v1416
    %v1505 = vsub.f32 %v1287, %v1420
    %v1506 = vsub.f32 %v1287, %v1424
    %v1507 = vsub.f32 %v1287, %v1428
    %v1508 = vsub.f32 %v1287, %v1432
    %v1509 = vsub.f32 %v1287, %v1436
    %v1510 = vsub.f32 %v1287, %v1440
    %v1511 = vsub.f32 %v1287, %v1444
    %v1512 = vsub.f32 %v1287, %v1448
    %v1513 = vsub.f32 %v1291, %v1324
    %v1514 = vsub.f32 %v1291, %v1328
    %v1515 = vsub.f32 %v1291, %v1332
    %v1516 = vsub.f32 %v1291, %v1336
    %v1517 = vsub.f32 %v1291, %v1340
    %v1518 = vsub.f32 %v1291, %v1344
    %v1519 = vsub.f32 %v1291, %v1348
    %v1520 = vsub.f32 %v1291, %v1352
    %v1521 = vsub.f32 %v1291, %v1356
    %v1522 = vsub.f32 %v1291, %v1360
    %v1523 = vsub.f32 %v1291, %v1364
    %v1524 = vsub.f32 %v1291, %v1368
    %v1525 = vsub.f32 %v1291, %v1372
    %v1526 = vsub.f32 %v1291, %v1376
    %v1527 = vsub.f32 %v1291, %v1380
    %v1528 = vsub.f32 %v1291, %v1384
    %v1529 = vsub.f32 %v1291, %v1388
    %v1530 = vsub.f32 %v1291, %v1392
    %v1531 = vsub.f32 %v1291, %v1396
    %v1532 = vsub.f32 %v1291, %v1400
    %v1533 = vsub.f32 %v1291, %v1404
    %v1534 = vsub.f32 %v1291, %v1408
    %v1535 = vsub.f32 %v1291, %v1412
    %v1536 = vsub.f32 %v1291, %v1416
    %v1537 = vsub.f32 %v1291, %v1420
    %v1538 = vsub.f32 %v1291, %v1424
    %v1539 = vsub.f32 %v1291, %v1428
    %v1540 = vsub.f32 %v1291, %v1432
    %v1541 = vsub.f32 %v1291, %v1436
    %v1542 = vsub.f32 %v1291, %v1440
    %v1543 = vsub.f32 %v1291, %v1444
    %v1544 = vsub.f32 %v1291, %v1448
    %v1545 = vsub.f32 %v1295, %v1324
    %v1546 = vsub.f32 %v1295, %v1328
    %v1547 = vsub.f32 %v1295, %v1332
    %v1548 = vsub.f32 %v1295, %v1336
    %v1549 = vsub.f32 %v1295, %v1340
    %v1550 = vsub.f32 %v1295, %v1344
    %v1551 = vsub.f32 %v1295, %v1348
    %v1552 = vsub.f32 %v1295, %v1352
    %v1553 = vsub.f32 %v1295, %v1356
    %v1554 = vsub.f32 %v1295, %v1360
    %v1555 = vsub.f32 %v1295, %v1364
    %v1556 = vsub.f32 %v1295, %v1368
    %v1557 = vsub.f32 %v1295, %v1372
    %v1558 = vsub.f32 %v1295, %v1376
    %v1559 = vsub.f32 %v1295, %v1380
    %v1560 = vsub.f32 %v1295, %v1384
    %v1561 = vsub.f32 %v1295, %v1388
    %v1562 = vsub.f32 %v1295, %v1392
    %v1563 = vsub.f32 %v1295, %v1396
    %v1564 = vsub.f32 %v1295, %v1400
    %v1565 = vsub.f32 %v1295, %v1404
    %v1566 = vsub.f32 %v1295, %v1408
    %v1567 = vsub.f32 %v1295, %v1412
    %v1568 = vsub.f32 %v1295, %v1416
    %v1569 = vsub.f32 %v1295, %v1420
    %v1570 = vsub.f32 %v1295, %v1424
    %v1571 = vsub.f32 %v1295, %v1428
    %v1572 = vsub.f32 %v1295, %v1432
    %v1573 = vsub.f32 %v1295, %v1436
    %v1574 = vsub.f32 %v1295, %v1440
    %v1575 = vsub.f32 %v1295, %v1444
    %v1576 = vsub.f32 %v1295, %v1448
    %v1577 = vsub.f32 %v1299, %v1324
    %v1578 = vsub.f32 %v1299, %v1328
    %v1579 = vsub.f32 %v1299, %v1332
    %v1580 = vsub.f32 %v1299, %v1336
    %v1581 = vsub.f32 %v1299, %v1340
    %v1582 = vsub.f32 %v1299, %v1344
    %v1583 = vsub.f32 %v1299, %v1348
    %v1584 = vsub.f32 %v1299, %v1352
    %v1585 = vsub.f32 %v1299, %v1356
    %v1586 = vsub.f32 %v1299, %v1360
    %v1587 = vsub.f32 %v1299, %v1364
    %v1588 = vsub.f32 %v1299, %v1368
    %v1589 = vsub.f32 %v1299, %v1372
    %v1590 = vsub.f32 %v1299, %v1376
    %v1591 = vsub.f32 %v1299, %v1380
    %v1592 = vsub.f32 %v1299, %v1384
    %v1593 = vsub.f32 %v1299, %v1388
    %v1594 = vsub.f32 %v1299, %v1392
    %v1595 = vsub.f32 %v1299, %v1396
    %v1596 = vsub.f32 %v1299, %v1400
    %v1597 = vsub.f32 %v1299, %v1404
    %v1598 = vsub.f32 %v1299, %v1408
    %v1599 = vsub.f32 %v1299, %v1412
    %v1600 = vsub.f32 %v1299, %v1416
    %v1601 = vsub.f32 %v1299, %v1420
    %v1602 = vsub.f32 %v1299, %v1424
    %v1603 = vsub.f32 %v1299, %v1428
    %v1604 = vsub.f32 %v1299, %v1432
    %v1605 = vsub.f32 %v1299, %v1436
    %v1606 = vsub.f32 %v1299, %v1440
    %v1607 = vsub.f32 %v1299, %v1444
    %v1608 = vsub.f32 %v1299, %v1448
    %v1609 = vsub.f32 %v1303, %v1324
    %v1610 = vsub.f32 %v1303, %v1328
    %v1611 = vsub.f32 %v1303, %v1332
    %v1612 = vsub.f32 %v1303, %v1336
    %v1613 = vsub.f32 %v1303, %v1340
    %v1614 = vsub.f32 %v1303, %v1344
    %v1615 = vsub.f32 %v1303, %v1348
    %v1616 = vsub.f32 %v1303, %v1352
    %v1617 = vsub.f32 %v1303, %v1356
    %v1618 = vsub.f32 %v1303, %v1360
    %v1619 = vsub.f32 %v1303, %v1364
    %v1620 = vsub.f32 %v1303, %v1368
    %v1621 = vsub.f32 %v1303, %v1372
    %v1622 = vsub.f32 %v1303, %v1376
    %v1623 = vsub.f32 %v1303, %v1380
    %v1624 = vsub.f32 %v1303, %v1384
    %v1625 = vsub.f32 %v1303, %v1388
    %v1626 = vsub.f32 %v1303, %v1392
    %v1627 = vsub.f32 %v1303, %v1396
    %v1628 = vsub.f32 %v1303, %v1400
    %v1629 = vsub.f32 %v1303, %v1404
    %v1630 = vsub.f32 %v1303, %v1408
    %v1631 = vsub.f32 %v1303, %v1412
    %v1632 = vsub.f32 %v1303, %v1416
    %v1633 = vsub.f32 %v1303, %v1420
    %v1634 = vsub.f32 %v1303, %v1424
    %v1635 = vsub.f32 %v1303, %v1428
    %v1636 = vsub.f32 %v1303, %v1432
    %v1637 = vsub.f32 %v1303, %v1436
    %v1638 = vsub.f32 %v1303, %v1440
    %v1639 = vsub.f32 %v1303, %v1444
    %v1640 = vsub.f32 %v1303, %v1448
    %v1641 = vsub.f32 %v1307, %v1324
    %v1642 = vsub.f32 %v1307, %v1328
    %v1643 = vsub.f32 %v1307, %v1332
    %v1644 = vsub.f32 %v1307, %v1336
    %v1645 = vsub.f32 %v1307, %v1340
    %v1646 = vsub.f32 %v1307, %v1344
    %v1647 = vsub.f32 %v1307, %v1348
    %v1648 = vsub.f32 %v1307, %v1352
    %v1649 = vsub.f32 %v1307, %v1356
    %v1650 = vsub.f32 %v1307, %v1360
    %v1651 = vsub.f32 %v1307, %v1364
    %v1652 = vsub.f32 %v1307, %v1368
    %v1653 = vsub.f32 %v1307, %v1372
    %v1654 = vsub.f32 %v1307, %v1376
    %v1655 = vsub.f32 %v1307, %v1380
    %v1656 = vsub.f32 %v1307, %v1384
    %v1657 = vsub.f32 %v1307, %v1388
    %v1658 = vsub.f32 %v1307, %v1392
    %v1659 = vsub.f32 %v1307, %v1396
    %v1660 = vsub.f32 %v1307, %v1400
    %v1661 = vsub.f32 %v1307, %v1404
    %v1662 = vsub.f32 %v1307, %v1408
    %v1663 = vsub.f32 %v1307, %v1412
    %v1664 = vsub.f32 %v1307, %v1416
    %v1665 = vsub.f32 %v1307, %v1420
    %v1666 = vsub.f32 %v1307, %v1424
    %v1667 = vsub.f32 %v1307, %v1428
    %v1668 = vsub.f32 %v1307, %v1432
    %v1669 = vsub.f32 %v1307, %v1436
    %v1670 = vsub.f32 %v1307, %v1440
    %v1671 = vsub.f32 %v1307, %v1444
    %v1672 = vsub.f32 %v1307, %v1448
    %v1673 = vsub.f32 %v1311, %v1324
    %v1674 = vsub.f32 %v1311, %v1328
    %v1675 = vsub.f32 %v1311, %v1332
    %v1676 = vsub.f32 %v1311, %v1336
    %v1677 = vsub.f32 %v1311, %v1340
    %v1678 = vsub.f32 %v1311, %v1344
    %v1679 = vsub.f32 %v1311, %v1348
    %v1680 = vsub.f32 %v1311, %v1352
    %v1681 = vsub.f32 %v1311, %v1356
    %v1682 = vsub.f32 %v1311, %v1360
    %v1683 = vsub.f32 %v1311, %v1364
    %v1684 = vsub.f32 %v1311, %v1368
    %v1685 = vsub.f32 %v1311, %v1372
    %v1686 = vsub.f32 %v1311, %v1376
    %v1687 = vsub.f32 %v1311, %v1380
    %v1688 = vsub.f32 %v1311, %v1384
    %v1689 = vsub.f32 %v1311, %v1388
    %v1690 = vsub.f32 %v1311, %v1392
    %v1691 = vsub.f32 %v1311, %v1396
    %v1692 = vsub.f32 %v1311, %v1400
    %v1693 = vsub.f32 %v1311, %v1404
    %v1694 = vsub.f32 %v1311, %v1408
    %v1695 = vsub.f32 %v1311, %v1412
    %v1696 = vsub.f32 %v1311, %v1416
    %v1697 = vsub.f32 %v1311, %v1420
    %v1698 = vsub.f32 %v1311, %v1424
    %v1699 = vsub.f32 %v1311, %v1428
    %v1700 = vsub.f32 %v1311, %v1432
    %v1701 = vsub.f32 %v1311, %v1436
    %v1702 = vsub.f32 %v1311, %v1440
    %v1703 = vsub.f32 %v1311, %v1444
    %v1704 = vsub.f32 %v1311, %v1448
    %v1705 = vsub.f32 %v1315, %v1324
    %v1706 = vsub.f32 %v1315, %v1328
    %v1707 = vsub.f32 %v1315, %v1332
    %v1708 = vsub.f32 %v1315, %v1336
    %v1709 = vsub.f32 %v1315, %v1340
    %v1710 = vsub.f32 %v1315, %v1344
    %v1711 = vsub.f32 %v1315, %v1348
    %v1712 = vsub.f32 %v1315, %v1352
    %v1713 = vsub.f32 %v1315, %v1356
    %v1714 = vsub.f32 %v1315, %v1360
    %v1715 = vsub.f32 %v1315, %v1364
    %v1716 = vsub.f32 %v1315, %v1368
    %v1717 = vsub.f32 %v1315, %v1372
    %v1718 = vsub.f32 %v1315, %v1376
    %v1719 = vsub.f32 %v1315, %v1380
    %v1720 = vsub.f32 %v1315, %v1384
    %v1721 = vsub.f32 %v1315, %v1388
    %v1722 = vsub.f32 %v1315, %v1392
    %v1723 = vsub.f32 %v1315, %v1396
    %v1724 = vsub.f32 %v1315, %v1400
    %v1725 = vsub.f32 %v1315, %v1404
    %v1726 = vsub.f32 %v1315, %v1408
    %v1727 = vsub.f32 %v1315, %v1412
    %v1728 = vsub.f32 %v1315, %v1416
    %v1729 = vsub.f32 %v1315, %v1420
    %v1730 = vsub.f32 %v1315, %v1424
    %v1731 = vsub.f32 %v1315, %v1428
    %v1732 = vsub.f32 %v1315, %v1432
    %v1733 = vsub.f32 %v1315, %v1436
    %v1734 = vsub.f32 %v1315, %v1440
    %v1735 = vsub.f32 %v1315, %v1444
    %v1736 = vsub.f32 %v1315, %v1448
    %v1737 = vand.u32 2147483647, %v1481
    %v1738 = vand.u32 2147483647, %v1482
    %v1739 = vand.u32 2147483647, %v1483
    %v1740 = vand.u32 2147483647, %v1484
    %v1741 = vand.u32 2147483647, %v1485
    %v1742 = vand.u32 2147483647, %v1486
    %v1743 = vand.u32 2147483647, %v1487
    %v1744 = vand.u32 2147483647, %v1488
    %v1745 = vand.u32 2147483647, %v1489
    %v1746 = vand.u32 2147483647, %v1490
    %v1747 = vand.u32 2147483647, %v1491
    %v1748 = vand.u32 2147483647, %v1492
    %v1749 = vand.u32 2147483647, %v1493
    %v1750 = vand.u32 2147483647, %v1494
    %v1751 = vand.u32 2147483647, %v1495
    %v1752 = vand.u32 2147483647, %v1496
    %v1753 = vand.u32 2147483647, %v1497
    %v1754 = vand.u32 2147483647, %v1498
    %v1755 = vand.u32 2147483647, %v1499
    %v1756 = vand.u32 2147483647, %v1500
    %v1757 = vand.u32 2147483647, %v1501
    %v1758 = vand.u32 2147483647, %v1502
    %v1759 = vand.u32 2147483647, %v1503
    %v1760 = vand.u32 2147483647, %v1504
    %v1761 = vand.u32 2147483647, %v1505
    %v1762 = vand.u32 2147483647, %v1506
    %v1763 = vand.u32 2147483647, %v1507
    %v1764 = vand.u32 2147483647, %v1508
    %v1765 = vand.u32 2147483647, %v1509
    %v1766 = vand.u32 2147483647, %v1510
    %v1767 = vand.u32 2147483647, %v1511
    %v1768 = vand.u32 2147483647, %v1512
    %v1769 = vand.u32 2147483647, %v1513
    %v1770 = vand.u32 2147483647, %v1514
    %v1771 = vand.u32 2147483647, %v1515
    %v1772 = vand.u32 2147483647, %v1516
    %v1773 = vand.u32 2147483647, %v1517
    %v1774 = vand.u32 2147483647, %v1518
    %v1775 = vand.u32 2147483647, %v1519
    %v1776 = vand.u32 2147483647, %v1520
    %v1777 = vand.u32 2147483647, %v1521
    %v1778 = vand.u32 2147483647, %v1522
    %v1779 = vand.u32 2147483647, %v1523
    %v1780 = vand.u32 2147483647, %v1524
    %v1781 = vand.u32 2147483647, %v1525
    %v1782 = vand.u32 2147483647, %v1526
    %v1783 = vand.u32 2147483647, %v1527
    %v1784 = vand.u32 2147483647, %v1528
    %v1785 = vand.u32 2147483647, %v1529
    %v1786 = vand.u32 2147483647, %v1530
    %v1787 = vand.u32 2147483647, %v1531
    %v1788 = vand.u32 2147483647, %v1532
    %v1789 = vand.u32 2147483647, %v1533
    %v1790 = vand.u32 2147483647, %v1534
    %v1791 = vand.u32 2147483647, %v1535
    %v1792 = vand.u32 2147483647, %v1536
    %v1793 = vand.u32 2147483647, %v1537
    %v1794 = vand.u32 2147483647, %v1538
    %v1795 = vand.u32 2147483647, %v1539
    %v1796 = vand.u32 2147483647, %v1540
    %v1797 = vand.u32 2147483647, %v1541
    %v1798 = vand.u32 2147483647, %v1542
    %v1799 = vand.u32 2147483647, %v1543
    %v1800 = vand.u32 2147483647, %v1544
    %v1801 = vand.u32 2147483647, %v1545
    %v1802 = vand.u32 2147483647, %v1546
    %v1803 = vand.u32 2147483647, %v1547
    %v1804 = vand.u32 2147483647, %v1548
    %v1805 = vand.u32 2147483647, %v1549
    %v1806 = vand.u32 2147483647, %v1550
    %v1807 = vand.u32 2147483647, %v1551
    %v1808 = vand.u32 2147483647, %v1552
    %v1809 = vand.u32 2147483647, %v1553
    %v1810 = vand.u32 2147483647, %v1554
    %v1811 = vand.u32 2147483647, %v1555
    %v1812 = vand.u32 2147483647, %v1556
    %v1813 = vand.u32 2147483647, %v1557
    %v1814 = vand.u32 2147483647, %v1558
    %v1815 = vand.u32 2147483647, %v1559
    %v1816 = vand.u32 2147483647, %v1560
    %v1817 = vand.u32 2147483647, %v1561
    %v1818 = vand.u32 2147483647, %v1562
    %v1819 = vand.u32 2147483647, %v1563
    %v1820 = vand.u32 2147483647, %v1564
    %v1821 = vand.u32 2147483647, %v1565
    %v1822 = vand.u32 2147483647, %v1566
    %v1823 = vand.u32 2147483647, %v1567
    %v1824 = vand.u32 2147483647, %v1568
    %v1825 = vand.u32 2147483647, %v1569
    %v1826 = vand.u32 2147483647, %v1570
    %v1827 = vand.u32 2147483647, %v1571
    %v1828 = vand.u32 2147483647, %v1572
    %v1829 = vand.u32 2147483647, %v1573
    %v1830 = vand.u32 2147483647, %v1574
    %v1831 = vand.u32 2147483647, %v1575
    %v1832 = vand.u32 2147483647, %v1576
    %v1833 = vand.u32 2147483647, %v1577
    %v1834 = vand.u32 2147483647, %v1578
    %v1835 = vand.u32 2147483647, %v1579
    %v1836 = vand.u32 2147483647, %v1580
    %v1837 = vand.u32 2147483647, %v1581
    %v1838 = vand.u32 2147483647, %v1582
    %v1839 = vand.u32 2147483647, %v1583
    %v1840 = vand.u32 2147483647, %v1584
    %v1841 = vand.u32 2147483647, %v1585
    %v1842 = vand.u32 2147483647, %v1586
    %v1843 = vand.u32 2147483647, %v1587
    %v1844 = vand.u32 2147483647, %v1588
    %v1845 = vand.u32 2147483647, %v1589
    %v1846 = vand.u32 2147483647, %v1590
    %v1847 = vand.u32 2147483647, %v1591
    %v1848 = vand.u32 2147483647, %v1592
    %v1849 = vand.u32 2147483647, %v1593
    %v1850 = vand.u32 2147483647, %v1594
    %v1851 = vand.u32 2147483647, %v1595
    %v1852 = vand.u32 2147483647, %v1596
    %v1853 = vand.u32 2147483647, %v1597
    %v1854 = vand.u32 2147483647, %v1598
    %v1855 = vand.u32 2147483647, %v1599
    %v1856 = vand.u32 2147483647, %v1600
    %v1857 = vand.u32 2147483647, %v1601
    %v1858 = vand.u32 2147483647, %v1602
    %v1859 = vand.u32 2147483647, %v1603
    %v1860 = vand.u32 2147483647, %v1604
    %v1861 = vand.u32 2147483647, %v1605
    %v1862 = vand.u32 2147483647, %v1606
    %v1863 = vand.u32 2147483647, %v1607
    %v1864 = vand.u32 2147483647, %v1608
    %v1865 = vand.u32 2147483647, %v1609
    %v1866 = vand.u32 2147483647, %v1610
    %v1867 = vand.u32 2147483647, %v1611
    %v1868 = vand.u32 2147483647, %v1612
    %v1869 = vand.u32 2147483647, %v1613
    %v1870 = vand.u32 2147483647, %v1614
    %v1871 = vand.u32 2147483647, %v1615
    %v1872 = vand.u32 2147483647, %v1616
    %v1873 = vand.u32 2147483647, %v1617
    %v1874 = vand.u32 2147483647, %v1618
    %v1875 = vand.u32 2147483647, %v1619
    %v1876 = vand.u32 2147483647, %v1620
    %v1877 = vand.u32 2147483647, %v1621
    %v1878 = vand.u32 2147483647, %v1622
    %v1879 = vand.u32 2147483647, %v1623
    %v1880 = vand.u32 2147483647, %v1624
    %v1881 = vand.u32 2147483647, %v1625
    %v1882 = vand.u32 2147483647, %v1626
    %v1883 = vand.u32 2147483647, %v1627
    %v1884 = vand.u32 2147483647, %v1628
    %v1885 = vand.u32 2147483647, %v1629
    %v1886 = vand.u32 2147483647, %v1630
    %v1887 = vand.u32 2147483647, %v1631
    %v1888 = vand.u32 2147483647, %v1632
    %v1889 = vand.u32 2147483647, %v1633
    %v1890 = vand.u32 2147483647, %v1634
    %v1891 = vand.u32 2147483647, %v1635
    %v1892 = vand.u32 2147483647, %v1636
    %v1893 = vand.u32 2147483647, %v1637
    %v1894 = vand.u32 2147483647, %v1638
    %v1895 = vand.u32 2147483647, %v1639
    %v1896 = vand.u32 2147483647, %v1640
    %v1897 = vand.u32 2147483647, %v1641
    %v1898 = vand.u32 2147483647, %v1642
    %v1899 = vand.u32 2147483647, %v1643
    %v1900 = vand.u32 2147483647, %v1644
    %v1901 = vand.u32 2147483647, %v1645
    %v1902 = vand.u32 2147483647, %v1646
    %v1903 = vand.u32 2147483647, %v1647
    %v1904 = vand.u32 2147483647, %v1648
    %v1905 = vand.u32 2147483647, %v1649
    %v1906 = vand.u32 2147483647, %v1650
    %v1907 = vand.u32 2147483647, %v1651
    %v1908 = vand.u32 2147483647, %v1652
    %v1909 = vand.u32 2147483647, %v1653
    %v1910 = vand.u32 2147483647, %v1654
    %v1911 = vand.u32 2147483647, %v1655
    %v1912 = vand.u32 2147483647, %v1656
    %v1913 = vand.u32 2147483647, %v1657
    %v1914 = vand.u32 2147483647, %v1658
    %v1915 = vand.u32 2147483647, %v1659
    %v1916 = vand.u32 2147483647, %v1660
    %v1917 = vand.u32 2147483647, %v1661
    %v1918 = vand.u32 2147483647, %v1662
    %v1919 = vand.u32 2147483647, %v1663
    %v1920 = vand.u32 2147483647, %v1664
    %v1921 = vand.u32 2147483647, %v1665
    %v1922 = vand.u32 2147483647, %v1666
    %v1923 = vand.u32 2147483647, %v1667
    %v1924 = vand.u32 2147483647, %v1668
    %v1925 = vand.u32 2147483647, %v1669
    %v1926 = vand.u32 2147483647, %v1670
    %v1927 = vand.u32 2147483647, %v1671
    %v1928 = vand.u32 2147483647, %v1672
    %v1929 = vand.u32 2147483647, %v1673
    %v1930 = vand.u32 2147483647, %v1674
    %v1931 = vand.u32 2147483647, %v1675
    %v1932 = vand.u32 2147483647, %v1676
    %v1933 = vand.u32 2147483647, %v1677
    %v1934 = vand.u32 2147483647, %v1678
    %v1935 = vand.u32 2147483647, %v1679
    %v1936 = vand.u32 2147483647, %v1680
    %v1937 = vand.u32 2147483647, %v1681
    %v1938 = vand.u32 2147483647, %v1682
    %v1939 = vand.u32 2147483647, %v1683
    %v1940 = vand.u32 2147483647, %v1684
    %v1941 = vand.u32 2147483647, %v1685
    %v1942 = vand.u32 2147483647, %v1686
    %v1943 = vand.u32 2147483647, %v1687
    %v1944 = vand.u32 2147483647, %v1688
    %v1945 = vand.u32 2147483647, %v1689
    %v1946 = vand.u32 2147483647, %v1690
    %v1947 = vand.u32 2147483647, %v1691
    %v1948 = vand.u32 2147483647, %v1692
    %v1949 = vand.u32 2147483647, %v1693
    %v1950 = vand.u32 2147483647, %v1694
    %v1951 = vand.u32 2147483647, %v1695
    %v1952 = vand.u32 2147483647, %v1696
    %v1953 = vand.u32 2147483647, %v1697
    %v1954 = vand.u32 2147483647, %v1698
    %v1955 = vand.u32 2147483647, %v1699
    %v1956 = vand.u32 2147483647, %v1700
    %v1957 = vand.u32 2147483647, %v1701
    %v1958 = vand.u32 2147483647, %v1702
    %v1959 = vand.u32 2147483647, %v1703
    %v1960 = vand.u32 2147483647, %v1704
    %v1961 = vand.u32 2147483647, %v1705
    %v1962 = vand.u32 2147483647, %v1706
    %v1963 = vand.u32 2147483647, %v1707
    %v1964 = vand.u32 2147483647, %v1708
    %v1965 = vand.u32 2147483647, %v1709
    %v1966 = vand.u32 2147483647, %v1710
    %v1967 = vand.u32 2147483647, %v1711
    %v1968 = vand.u32 2147483647, %v1712
    %v1969 = vand.u32 2147483647, %v1713
    %v1970 = vand.u32 2147483647, %v1714
    %v1971 = vand.u32 2147483647, %v1715
    %v1972 = vand.u32 2147483647, %v1716
    %v1973 = vand.u32 2147483647, %v1717
    %v1974 = vand.u32 2147483647, %v1718
    %v1975 = vand.u32 2147483647, %v1719
    %v1976 = vand.u32 2147483647, %v1720
    %v1977 = vand.u32 2147483647, %v1721
    %v1978 = vand.u32 2147483647, %v1722
    %v1979 = vand.u32 2147483647, %v1723
    %v1980 = vand.u32 2147483647, %v1724
    %v1981 = vand.u32 2147483647, %v1725
    %v1982 = vand.u32 2147483647, %v1726
    %v1983 = vand.u32 2147483647, %v1727
    %v1984 = vand.u32 2147483647, %v1728
    %v1985 = vand.u32 2147483647, %v1729
    %v1986 = vand.u32 2147483647, %v1730
    %v1987 = vand.u32 2147483647, %v1731
    %v1988 = vand.u32 2147483647, %v1732
    %v1989 = vand.u32 2147483647, %v1733
    %v1990 = vand.u32 2147483647, %v1734
    %v1991 = vand.u32 2147483647, %v1735
    %v1992 = vand.u32 2147483647, %v1736
    %v1993 = vsub.f32 1.0, %v1737
    %v1994 = vsub.f32 1.0, %v1738
    %v1995 = vsub.f32 1.0, %v1739
    %v1996 = vsub.f32 1.0, %v1740
    %v1997 = vsub.f32 1.0, %v1741
    %v1998 = vsub.f32 1.0, %v1742
    %v1999 = vsub.f32 1.0, %v1743
    %v2000 = vsub.f32 1.0, %v1744
    %v2001 = vsub.f32 1.0, %v1745
    %v2002 = vsub.f32 1.0, %v1746
    %v2003 = vsub.f32 1.0, %v1747
    %v2004 = vsub.f32 1.0, %v1748
    %v2005 = vsub.f32 1.0, %v1749
    %v2006 = vsub.f32 1.0, %v1750
    %v2007 = vsub.f32 1.0, %v1751
    %v2008 = vsub.f32 1.0, %v1752
    %v2009 = vsub.f32 1.0, %v1753
    %v2010 = vsub.f32 1.0, %v1754
    %v2011 = vsub.f32 1.0, %v1755
    %v2012 = vsub.f32 1.0, %v1756
    %v2013 = vsub.f32 1.0, %v1757
    %v2014 = vsub.f32 1.0, %v1758
    %v2015 = vsub.f32 1.0, %v1759
    %v2016 = vsub.f32 1.0, %v1760
    %v2017 = vsub.f32 1.0, %v1761
    %v2018 = vsub.f32 1.0, %v1762
    %v2019 = vsub.f32 1.0, %v1763
    %v2020 = vsub.f32 1.0, %v1764
    %v2021 = vsub.f32 1.0, %v1765
    %v2022 = vsub.f32 1.0, %v1766
    %v2023 = vsub.f32 1.0, %v1767
    %v2024 = vsub.f32 1.0, %v1768
    %v2025 = vsub.f32 1.0, %v1769
    %v2026 = vsub.f32 1.0, %v1770
    %v2027 = vsub.f32 1.0, %v1771
    %v2028 = vsub.f32 1.0, %v1772
    %v2029 = vsub.f32 1.0, %v1773
    %v2030 = vsub.f32 1.0, %v1774
    %v2031 = vsub.f32 1.0, %v1775
    %v2032 = vsub.f32 1.0, %v1776
    %v2033 = vsub.f32 1.0, %v1777
    %v2034 = vsub.f32 1.0, %v1778
    %v2035 = vsub.f32 1.0, %v1779
    %v2036 = vsub.f32 1.0, %v1780
    %v2037 = vsub.f32 1.0, %v1781
    %v2038 = vsub.f32 1.0, %v1782
    %v2039 = vsub.f32 1.0, %v1783
    %v2040 = vsub.f32 1.0, %v1784
    %v2041 = vsub.f32 1.0, %v1785
    %v2042 = vsub.f32 1.0, %v1786
    %v2043 = vsub.f32 1.0, %v1787
    %v2044 = vsub.f32 1.0, %v1788
    %v2045 = vsub.f32 1.0, %v1789
    %v2046 = vsub.f32 1.0, %v1790
    %v2047 = vsub.f32 1.0, %v1791
    %v2048 = vsub.f32 1.0, %v1792
    %v2049 = vsub.f32 1.0, %v1793
    %v2050 = vsub.f32 1.0, %v1794
    %v2051 = vsub.f32 1.0, %v1795
    %v2052 = vsub.f32 1.0, %v1796
    %v2053 = vsub.f32 1.0, %v1797
    %v2054 = vsub.f32 1.0, %v1798
    %v2055 = vsub.f32 1.0, %v1799
    %v2056 = vsub.f32 1.0, %v1800
    %v2057 = vsub.f32 1.0, %v1801
    %v2058 = vsub.f32 1.0, %v1802
    %v2059 = vsub.f32 1.0, %v1803
    %v2060 = vsub.f32 1.0, %v1804
    %v2061 = vsub.f32 1.0, %v1805
    %v2062 = vsub.f32 1.0, %v1806
    %v2063 = vsub.f32 1.0, %v1807
    %v2064 = vsub.f32 1.0, %v1808
    %v2065 = vsub.f32 1.0, %v1809
    %v2066 = vsub.f32 1.0, %v1810
    %v2067 = vsub.f32 1.0, %v1811
    %v2068 = vsub.f32 1.0, %v1812
    %v2069 = vsub.f32 1.0, %v1813
    %v2070 = vsub.f32 1.0, %v1814
    %v2071 = vsub.f32 1.0, %v1815
    %v2072 = vsub.f32 1.0, %v1816
    %v2073 = vsub.f32 1.0, %v1817
    %v2074 = vsub.f32 1.0, %v1818
    %v2075 = vsub.f32 1.0, %v1819
    %v2076 = vsub.f32 1.0, %v1820
    %v2077 = vsub.f32 1.0, %v1821
    %v2078 = vsub.f32 1.0, %v1822
    %v2079 = vsub.f32 1.0, %v1823
    %v2080 = vsub.f32 1.0, %v1824
    %v2081 = vsub.f32 1.0, %v1825
    %v2082 = vsub.f32 1.0, %v1826
    %v2083 = vsub.f32 1.0, %v1827
    %v2084 = vsub.f32 1.0, %v1828
    %v2085 = vsub.f32 1.0, %v1829
    %v2086 = vsub.f32 1.0, %v1830
    %v2087 = vsub.f32 1.0, %v1831
    %v2088 = vsub.f32 1.0, %v1832
    %v2089 = vsub.f32 1.0, %v1833
    %v2090 = vsub.f32 1.0, %v1834
    %v2091 = vsub.f32 1.0, %v1835
    %v2092 = vsub.f32 1.0, %v1836
    %v2093 = vsub.f32 1.0, %v1837
    %v2094 = vsub.f32 1.0, %v1838
    %v2095 = vsub.f32 1.0, %v1839
    %v2096 = vsub.f32 1.0, %v1840
    %v2097 = vsub.f32 1.0, %v1841
    %v2098 = vsub.f32 1.0, %v1842
    %v2099 = vsub.f32 1.0, %v1843
    %v2100 = vsub.f32 1.0, %v1844
    %v2101 = vsub.f32 1.0, %v1845
    %v2102 = vsub.f32 1.0, %v1846
    %v2103 = vsub.f32 1.0, %v1847
    %v2104 = vsub.f32 1.0, %v1848
    %v2105 = vsub.f32 1.0, %v1849
    %v2106 = vsub.f32 1.0, %v1850
    %v2107 = vsub.f32 1.0, %v1851
    %v2108 = vsub.f32 1.0, %v1852
    %v2109 = vsub.f32 1.0, %v1853
    %v2110 = vsub.f32 1.0, %v1854
    %v2111 = vsub.f32 1.0, %v1855
    %v2112 = vsub.f32 1.0, %v1856
    %v2113 = vsub.f32 1.0, %v1857
    %v2114 = vsub.f32 1.0, %v1858
    %v2115 = vsub.f32 1.0, %v1859
    %v2116 = vsub.f32 1.0, %v1860
    %v2117 = vsub.f32 1.0, %v1861
    %v2118 = vsub.f32 1.0, %v1862
    %v2119 = vsub.f32 1.0, %v1863
    %v2120 = vsub.f32 1.0, %v1864
    %v2121 = vsub.f32 1.0, %v1865
    %v2122 = vsub.f32 1.0, %v1866
    %v2123 = vsub.f32 1.0, %v1867
    %v2124 = vsub.f32 1.0, %v1868
    %v2125 = vsub.f32 1.0, %v1869
    %v2126 = vsub.f32 1.0, %v1870
    %v2127 = vsub.f32 1.0, %v1871
    %v2128 = vsub.f32 1.0, %v1872
    %v2129 = vsub.f32 1.0, %v1873
    %v2130 = vsub.f32 1.0, %v1874
    %v2131 = vsub.f32 1.0, %v1875
    %v2132 = vsub.f32 1.0, %v1876
    %v2133 = vsub.f32 1.0, %v1877
    %v2134 = vsub.f32 1.0, %v1878
    %v2135 = vsub.f32 1.0, %v1879
    %v2136 = vsub.f32 1.0, %v1880
    %v2137 = vsub.f32 1.0, %v1881
    %v2138 = vsub.f32 1.0, %v1882
    %v2139 = vsub.f32 1.0, %v1883
    %v2140 = vsub.f32 1.0, %v1884
    %v2141 = vsub.f32 1.0, %v1885
    %v2142 = vsub.f32 1.0, %v1886
    %v2143 = vsub.f32 1.0, %v1887
    %v2144 = vsub.f32 1.0, %v1888
    %v2145 = vsub.f32 1.0, %v1889
    %v2146 = vsub.f32 1.0, %v1890
    %v2147 = vsub.f32 1.0, %v1891
    %v2148 = vsub.f32 1.0, %v1892
    %v2149 = vsub.f32 1.0, %v1893
    %v2150 = vsub.f32 1.0, %v1894
    %v2151 = vsub.f32 1.0, %v1895
    %v2152 = vsub.f32 1.0, %v1896
    %v2153 = vsub.f32 1.0, %v1897
    %v2154 = vsub.f32 1.0, %v1898
    %v2155 = vsub.f32 1.0, %v1899
    %v2156 = vsub.f32 1.0, %v1900
    %v2157 = vsub.f32 1.0, %v1901
    %v2158 = vsub.f32 1.0, %v1902
    %v2159 = vsub.f32 1.0, %v1903
    %v2160 = vsub.f32 1.0, %v1904
    %v2161 = vsub.f32 1.0, %v1905
    %v2162 = vsub.f32 1.0, %v1906
    %v2163 = vsub.f32 1.0, %v1907
    %v2164 = vsub.f32 1.0, %v1908
    %v2165 = vsub.f32 1.0, %v1909
    %v2166 = vsub.f32 1.0, %v1910
    %v2167 = vsub.f32 1.0, %v1911
    %v2168 = vsub.f32 1.0, %v1912
    %v2169 = vsub.f32 1.0, %v1913
    %v2170 = vsub.f32 1.0, %v1914
    %v2171 = vsub.f32 1.0, %v1915
    %v2172 = vsub.f32 1.0, %v1916
    %v2173 = vsub.f32 1.0, %v1917
    %v2174 = vsub.f32 1.0, %v1918
    %v2175 = vsub.f32 1.0, %v1919
    %v2176 = vsub.f32 1.0, %v1920
    %v2177 = vsub.f32 1.0, %v1921
    %v2178 = vsub.f32 1.0, %v1922
    %v2179 = vsub.f32 1.0, %v1923
    %v2180 = vsub.f32 1.0, %v1924
    %v2181 = vsub.f32 1.0, %v1925
    %v2182 = vsub.f32 1.0, %v1926
    %v2183 = vsub.f32 1.0, %v1927
    %v2184 = vsub.f32 1.0, %v1928
    %v2185 = vsub.f32 1.0, %v1929
    %v2186 = vsub.f32 1.0, %v1930
    %v2187 = vsub.f32 1.0, %v1931
    %v2188 = vsub.f32 1.0, %v1932
    %v2189 = vsub.f32 1.0, %v1933
    %v2190 = vsub.f32 1.0, %v1934
    %v2191 = vsub.f32 1.0, %v1935
    %v2192 = vsub.f32 1.0, %v1936
    %v2193 = vsub.f32 1.0, %v1937
    %v2194 = vsub.f32 1.0, %v1938
    %v2195 = vsub.f32 1.0, %v1939
    %v2196 = vsub.f32 1.0, %v1940
    %v2197 = vsub.f32 1.0, %v1941
    %v2198 = vsub.f32 1.0, %v1942
    %v2199 = vsub.f32 1.0, %v1943
    %v2200 = vsub.f32 1.0, %v1944
    %v2201 = vsub.f32 1.0, %v1945
    %v2202 = vsub.f32 1.0, %v1946
    %v2203 = vsub.f32 1.0, %v1947
    %v2204 = vsub.f32 1.0, %v1948
    %v2205 = vsub.f32 1.0, %v1949
    %v2206 = vsub.f32 1.0, %v1950
    %v2207 = vsub.f32 1.0, %v1951
    %v2208 = vsub.f32 1.0, %v1952
    %v2209 = vsub.f32 1.0, %v1953
    %v2210 = vsub.f32 1.0, %v1954
    %v2211 = vsub.f32 1.0, %v1955
    %v2212 = vsub.f32 1.0, %v1956
    %v2213 = vsub.f32 1.0, %v1957
    %v2214 = vsub.f32 1.0, %v1958
    %v2215 = vsub.f32 1.0, %v1959
    %v2216 = vsub.f32 1.0, %v1960
    %v2217 = vsub.f32 1.0, %v1961
    %v2218 = vsub.f32 1.0, %v1962
    %v2219 = vsub.f32 1.0, %v1963
    %v2220 = vsub.f32 1.0, %v1964
    %v2221 = vsub.f32 1.0, %v1965
    %v2222 = vsub.f32 1.0, %v1966
    %v2223 = vsub.f32 1.0, %v1967
    %v2224 = vsub.f32 1.0, %v1968
    %v2225 = vsub.f32 1.0, %v1969
    %v2226 = vsub.f32 1.0, %v1970
    %v2227 = vsub.f32 1.0, %v1971
    %v2228 = vsub.f32 1.0, %v1972
    %v2229 = vsub.f32 1.0, %v1973
    %v2230 = vsub.f32 1.0, %v1974
    %v2231 = vsub.f32 1.0, %v1975
    %v2232 = vsub.f32 1.0, %v1976
    %v2233 = vsub.f32 1.0, %v1977
    %v2234 = vsub.f32 1.0, %v1978
    %v2235 = vsub.f32 1.0, %v1979
    %v2236 = vsub.f32 1.0, %v1980
    %v2237 = vsub.f32 1.0, %v1981
    %v2238 = vsub.f32 1.0, %v1982
    %v2239 = vsub.f32 1.0, %v1983
    %v2240 = vsub.f32 1.0, %v1984
    %v2241 = vsub.f32 1.0, %v1985
    %v2242 = vsub.f32 1.0, %v1986
    %v2243 = vsub.f32 1.0, %v1987
    %v2244 = vsub.f32 1.0, %v1988
    %v2245 = vsub.f32 1.0, %v1989
    %v2246 = vsub.f32 1.0, %v1990
    %v2247 = vsub.f32 1.0, %v1991
    %v2248 = vsub.f32 1.0, %v1992
    %v2249 = vmax.f32 %v1993, 0.0
    %v2250 = vmax.f32 %v1994, 0.0
    %v2251 = vmax.f32 %v1995, 0.0
    %v2252 = vmax.f32 %v1996, 0.0
    %v2253 = vmax.f32 %v1997, 0.0
    %v2254 = vmax.f32 %v1998, 0.0
    %v2255 = vmax.f32 %v1999, 0.0
    %v2256 = vmax.f32 %v2000, 0.0
    %v2257 = vmax.f32 %v2001, 0.0
    %v2258 = vmax.f32 %v2002, 0.0
    %v2259 = vmax.f32 %v2003, 0.0
    %v2260 = vmax.f32 %v2004, 0.0
    %v2261 = vmax.f32 %v2005, 0.0
    %v2262 = vmax.f32 %v2006, 0.0
    %v2263 = vmax.f32 %v2007, 0.0
    %v2264 = vmax.f32 %v2008, 0.0
    %v2265 = vmax.f32 %v2009, 0.0
    %v2266 = vmax.f32 %v2010, 0.0
    %v2267 = vmax.f32 %v2011, 0.0
    %v2268 = vmax.f32 %v2012, 0.0
    %v2269 = vmax.f32 %v2013, 0.0
    %v2270 = vmax.f32 %v2014, 0.0
    %v2271 = vmax.f32 %v2015, 0.0
    %v2272 = vmax.f32 %v2016, 0.0
    %v2273 = vmax.f32 %v2017, 0.0
    %v2274 = vmax.f32 %v2018, 0.0
    %v2275 = vmax.f32 %v2019, 0.0
    %v2276 = vmax.f32 %v2020, 0.0
    %v2277 = vmax.f32 %v2021, 0.0
    %v2278 = vmax.f32 %v2022, 0.0
    %v2279 = vmax.f32 %v2023, 0.0
    %v2280 = vmax.f32 %v2024, 0.0
    %v2281 = vmax.f32 %v2025, 0.0
    %v2282 = vmax.f32 %v2026, 0.0
    %v2283 = vmax.f32 %v2027, 0.0
    %v2284 = vmax.f32 %v2028, 0.0
    %v2285 = vmax.f32 %v2029, 0.0
    %v2286 = vmax.f32 %v2030, 0.0
    %v2287 = vmax.f32 %v2031, 0.0
    %v2288 = vmax.f32 %v2032, 0.0
    %v2289 = vmax.f32 %v2033, 0.0
    %v2290 = vmax.f32 %v2034, 0.0
    %v2291 = vmax.f32 %v2035, 0.0
    %v2292 = vmax.f32 %v2036, 0.0
    %v2293 = vmax.f32 %v2037, 0.0
    %v2294 = vmax.f32 %v2038, 0.0
    %v2295 = vmax.f32 %v2039, 0.0
    %v2296 = vmax.f32 %v2040, 0.0
    %v2297 = vmax.f32 %v2041, 0.0
    %v2298 = vmax.f32 %v2042, 0.0
    %v2299 = vmax.f32 %v2043, 0.0
    %v2300 = vmax.f32 %v2044, 0.0
    %v2301 = vmax.f32 %v2045, 0.0
    %v2302 = vmax.f32 %v2046, 0.0
    %v2303 = vmax.f32 %v2047, 0.0
    %v2304 = vmax.f32 %v2048, 0.0
    %v2305 = vmax.f32 %v2049, 0.0
    %v2306 = vmax.f32 %v2050, 0.0
    %v2307 = vmax.f32 %v2051, 0.0
    %v2308 = vmax.f32 %v2052, 0.0
    %v2309 = vmax.f32 %v2053, 0.0
    %v2310 = vmax.f32 %v2054, 0.0
    %v2311 = vmax.f32 %v2055, 0.0
    %v2312 = vmax.f32 %v2056, 0.0
    %v2313 = vmax.f32 %v2057, 0.0
    %v2314 = vmax.f32 %v2058, 0.0
    %v2315 = vmax.f32 %v2059, 0.0
    %v2316 = vmax.f32 %v2060, 0.0
    %v2317 = vmax.f32 %v2061, 0.0
    %v2318 = vmax.f32 %v2062, 0.0
    %v2319 = vmax.f32 %v2063, 0.0
    %v2320 = vmax.f32 %v2064, 0.0
    %v2321 = vmax.f32 %v2065, 0.0
    %v2322 = vmax.f32 %v2066, 0.0
    %v2323 = vmax.f32 %v2067, 0.0
    %v2324 = vmax.f32 %v2068, 0.0
    %v2325 = vmax.f32 %v2069, 0.0
    %v2326 = vmax.f32 %v2070, 0.0
    %v2327 = vmax.f32 %v2071, 0.0
    %v2328 = vmax.f32 %v2072, 0.0
    %v2329 = vmax.f32 %v2073, 0.0
    %v2330 = vmax.f32 %v2074, 0.0
    %v2331 = vmax.f32 %v2075, 0.0
    %v2332 = vmax.f32 %v2076, 0.0
    %v2333 = vmax.f32 %v2077, 0.0
    %v2334 = vmax.f32 %v2078, 0.0
    %v2335 = vmax.f32 %v2079, 0.0
    %v2336 = vmax.f32 %v2080, 0.0
    %v2337 = vmax.f32 %v2081, 0.0
    %v2338 = vmax.f32 %v2082, 0.0
    %v2339 = vmax.f32 %v2083, 0.0
    %v2340 = vmax.f32 %v2084, 0.0
    %v2341 = vmax.f32 %v2085, 0.0
    %v2342 = vmax.f32 %v2086, 0.0
    %v2343 = vmax.f32 %v2087, 0.0
    %v2344 = vmax.f32 %v2088, 0.0
    %v2345 = vmax.f32 %v2089, 0.0
    %v2346 = vmax.f32 %v2090, 0.0
    %v2347 = vmax.f32 %v2091, 0.0
    %v2348 = vmax.f32 %v2092, 0.0
    %v2349 = vmax.f32 %v2093, 0.0
    %v2350 = vmax.f32 %v2094, 0.0
    %v2351 = vmax.f32 %v2095, 0.0
    %v2352 = vmax.f32 %v2096, 0.0
    %v2353 = vmax.f32 %v2097, 0.0
    %v2354 = vmax.f32 %v2098, 0.0
    %v2355 = vmax.f32 %v2099, 0.0
    %v2356 = vmax.f32 %v2100, 0.0
    %v2357 = vmax.f32 %v2101, 0.0
    %v2358 = vmax.f32 %v2102, 0.0
    %v2359 = vmax.f32 %v2103, 0.0
    %v2360 = vmax.f32 %v2104, 0.0
    %v2361 = vmax.f32 %v2105, 0.0
    %v2362 = vmax.f32 %v2106, 0.0
    %v2363 = vmax.f32 %v2107, 0.0
    %v2364 = vmax.f32 %v2108, 0.0
    %v2365 = vmax.f32 %v2109, 0.0
    %v2366 = vmax.f32 %v2110, 0.0
    %v2367 = vmax.f32 %v2111, 0.0
    %v2368 = vmax.f32 %v2112, 0.0
    %v2369 = vmax.f32 %v2113, 0.0
    %v2370 = vmax.f32 %v2114, 0.0
    %v2371 = vmax.f32 %v2115, 0.0
    %v2372 = vmax.f32 %v2116, 0.0
    %v2373 = vmax.f32 %v2117, 0.0
    %v2374 = vmax.f32 %v2118, 0.0
    %v2375 = vmax.f32 %v2119, 0.0
    %v2376 = vmax.f32 %v2120, 0.0
    %v2377 = vmax.f32 %v2121, 0.0
    %v2378 = vmax.f32 %v2122, 0.0
    %v2379 = vmax.f32 %v2123, 0.0
    %v2380 = vmax.f32 %v2124, 0.0
    %v2381 = vmax.f32 %v2125, 0.0
    %v2382 = vmax.f32 %v2126, 0.0
    %v2383 = vmax.f32 %v2127, 0.0
    %v2384 = vmax.f32 %v2128, 0.0
    %v2385 = vmax.f32 %v2129, 0.0
    %v2386 = vmax.f32 %v2130, 0.0
    %v2387 = vmax.f32 %v2131, 0.0
    %v2388 = vmax.f32 %v2132, 0.0
    %v2389 = vmax.f32 %v2133, 0.0
    %v2390 = vmax.f32 %v2134, 0.0
    %v2391 = vmax.f32 %v2135, 0.0
    %v2392 = vmax.f32 %v2136, 0.0
    %v2393 = vmax.f32 %v2137, 0.0
    %v2394 = vmax.f32 %v2138, 0.0
    %v2395 = vmax.f32 %v2139, 0.0
    %v2396 = vmax.f32 %v2140, 0.0
    %v2397 = vmax.f32 %v2141, 0.0
    %v2398 = vmax.f32 %v2142, 0.0
    %v2399 = vmax.f32 %v2143, 0.0
    %v2400 = vmax.f32 %v2144, 0.0
    %v2401 = vmax.f32 %v2145, 0.0
    %v2402 = vmax.f32 %v2146, 0.0
    %v2403 = vmax.f32 %v2147, 0.0
    %v2404 = vmax.f32 %v2148, 0.0
    %v2405 = vmax.f32 %v2149, 0.0
    %v2406 = vmax.f32 %v2150, 0.0
    %v2407 = vmax.f32 %v2151, 0.0
    %v2408 = vmax.f32 %v2152, 0.0
    %v2409 = vmax.f32 %v2153, 0.0
    %v2410 = vmax.f32 %v2154, 0.0
    %v2411 = vmax.f32 %v2155, 0.0
    %v2412 = vmax.f32 %v2156, 0.0
    %v2413 = vmax.f32 %v2157, 0.0
    %v2414 = vmax.f32 %v2158, 0.0
    %v2415 = vmax.f32 %v2159, 0.0
    %v2416 = vmax.f32 %v2160, 0.0
    %v2417 = vmax.f32 %v2161, 0.0
    %v2418 = vmax.f32 %v2162, 0.0
    %v2419 = vmax.f32 %v2163, 0.0
    %v2420 = vmax.f32 %v2164, 0.0
    %v2421 = vmax.f32 %v2165, 0.0
    %v2422 = vmax.f32 %v2166, 0.0
    %v2423 = vmax.f32 %v2167, 0.0
    %v2424 = vmax.f32 %v2168, 0.0
    %v2425 = vmax.f32 %v2169, 0.0
    %v2426 = vmax.f32 %v2170, 0.0
    %v2427 = vmax.f32 %v2171, 0.0
    %v2428 = vmax.f32 %v2172, 0.0
    %v2429 = vmax.f32 %v2173, 0.0
    %v2430 = vmax.f32 %v2174, 0.0
    %v2431 = vmax.f32 %v2175, 0.0
    %v2432 = vmax.f32 %v2176, 0.0
    %v2433 = vmax.f32 %v2177, 0.0
    %v2434 = vmax.f32 %v2178, 0.0
    %v2435 = vmax.f32 %v2179, 0.0
    %v2436 = vmax.f32 %v2180, 0.0
    %v2437 = vmax.f32 %v2181, 0.0
    %v2438 = vmax.f32 %v2182, 0.0
    %v2439 = vmax.f32 %v2183, 0.0
    %v2440 = vmax.f32 %v2184, 0.0
    %v2441 = vmax.f32 %v2185, 0.0
    %v2442 = vmax.f32 %v2186, 0.0
    %v2443 = vmax.f32 %v2187, 0.0
    %v2444 = vmax.f32 %v2188, 0.0
    %v2445 = vmax.f32 %v2189, 0.0
    %v2446 = vmax.f32 %v2190, 0.0
    %v2447 = vmax.f32 %v2191, 0.0
    %v2448 = vmax.f32 %v2192, 0.0
    %v2449 = vmax.f32 %v2193, 0.0
    %v2450 = vmax.f32 %v2194, 0.0
    %v2451 = vmax.f32 %v2195, 0.0
    %v2452 = vmax.f32 %v2196, 0.0
    %v2453 = vmax.f32 %v2197, 0.0
    %v2454 = vmax.f32 %v2198, 0.0
    %v2455 = vmax.f32 %v2199, 0.0
    %v2456 = vmax.f32 %v2200, 0.0
    %v2457 = vmax.f32 %v2201, 0.0
    %v2458 = vmax.f32 %v2202, 0.0
    %v2459 = vmax.f32 %v2203, 0.0
    %v2460 = vmax.f32 %v2204, 0.0
    %v2461 = vmax.f32 %v2205, 0.0
    %v2462 = vmax.f32 %v2206, 0.0
    %v2463 = vmax.f32 %v2207, 0.0
    %v2464 = vmax.f32 %v2208, 0.0
    %v2465 = vmax.f32 %v2209, 0.0
    %v2466 = vmax.f32 %v2210, 0.0
    %v2467 = vmax.f32 %v2211, 0.0
    %v2468 = vmax.f32 %v2212, 0.0
    %v2469 = vmax.f32 %v2213, 0.0
    %v2470 = vmax.f32 %v2214, 0.0
    %v2471 = vmax.f32 %v2215, 0.0
    %v2472 = vmax.f32 %v2216, 0.0
    %v2473 = vmax.f32 %v2217, 0.0
    %v2474 = vmax.f32 %v2218, 0.0
    %v2475 = vmax.f32 %v2219, 0.0
    %v2476 = vmax.f32 %v2220, 0.0
    %v2477 = vmax.f32 %v2221, 0.0
    %v2478 = vmax.f32 %v2222, 0.0
    %v2479 = vmax.f32 %v2223, 0.0
    %v2480 = vmax.f32 %v2224, 0.0
    %v2481 = vmax.f32 %v2225, 0.0
    %v2482 = vmax.f32 %v2226, 0.0
    %v2483 = vmax.f32 %v2227, 0.0
    %v2484 = vmax.f32 %v2228, 0.0
    %v2485 = vmax.f32 %v2229, 0.0
    %v2486 = vmax.f32 %v2230, 0.0
    %v2487 = vmax.f32 %v2231, 0.0
    %v2488 = vmax.f32 %v2232, 0.0
    %v2489 = vmax.f32 %v2233, 0.0
    %v2490 = vmax.f32 %v2234, 0.0
    %v2491 = vmax.f32 %v2235, 0.0
    %v2492 = vmax.f32 %v2236, 0.0
    %v2493 = vmax.f32 %v2237, 0.0
    %v2494 = vmax.f32 %v2238, 0.0
    %v2495 = vmax.f32 %v2239, 0.0
    %v2496 = vmax.f32 %v2240, 0.0
    %v2497 = vmax.f32 %v2241, 0.0
    %v2498 = vmax.f32 %v2242, 0.0
    %v2499 = vmax.f32 %v2243, 0.0
    %v2500 = vmax.f32 %v2244, 0.0
    %v2501 = vmax.f32 %v2245, 0.0
    %v2502 = vmax.f32 %v2246, 0.0
    %v2503 = vmax.f32 %v2247, 0.0
    %v2504 = vmax.f32 %v2248, 0.0
    %v2505 = vmul.f32 %v1021, %v2249
    %v2506 = vmul.f32 %v1022, %v2250
    %v2507 = vmul.f32 %v1023, %v2251
    %v2508 = vmul.f32 %v1024, %v2252
    %v2509 = vmul.f32 %v1025, %v2253
    %v2510 = vmul.f32 %v1026, %v2254
    %v2511 = vmul.f32 %v1027, %v2255
    %v2512 = vmul.f32 %v1028, %v2256
    %v2513 = vmul.f32 %v1029, %v2257
    %v2514 = vmul.f32 %v1030, %v2258
    %v2515 = vmul.f32 %v1031, %v2259
    %v2516 = vmul.f32 %v1032, %v2260
    %v2517 = vmul.f32 %v1033, %v2261
    %v2518 = vmul.f32 %v1034, %v2262
    %v2519 = vmul.f32 %v1035, %v2263
    %v2520 = vmul.f32 %v1036, %v2264
    %v2521 = vmul.f32 %v1037, %v2265
    %v2522 = vmul.f32 %v1038, %v2266
    %v2523 = vmul.f32 %v1039, %v2267
    %v2524 = vmul.f32 %v1040, %v2268
    %v2525 = vmul.f32 %v1041, %v2269
    %v2526 = vmul.f32 %v1042, %v2270
    %v2527 = vmul.f32 %v1043, %v2271
    %v2528 = vmul.f32 %v1044, %v2272
    %v2529 = vmul.f32 %v1045, %v2273
    %v2530 = vmul.f32 %v1046, %v2274
    %v2531 = vmul.f32 %v1047, %v2275
    %v2532 = vmul.f32 %v1048, %v2276
    %v2533 = vmul.f32 %v1049, %v2277
    %v2534 = vmul.f32 %v1050, %v2278
    %v2535 = vmul.f32 %v1051, %v2279
    %v2536 = vmul.f32 %v1052, %v2280
    %v2537 = vmul.f32 %v1053, %v2281
    %v2538 = vmul.f32 %v1054, %v2282
    %v2539 = vmul.f32 %v1055, %v2283
    %v2540 = vmul.f32 %v1056, %v2284
    %v2541 = vmul.f32 %v1057, %v2285
    %v2542 = vmul.f32 %v1058, %v2286
    %v2543 = vmul.f32 %v1059, %v2287
    %v2544 = vmul.f32 %v1060, %v2288
    %v2545 = vmul.f32 %v1061, %v2289
    %v2546 = vmul.f32 %v1062, %v2290
    %v2547 = vmul.f32 %v1063, %v2291
    %v2548 = vmul.f32 %v1064, %v2292
    %v2549 = vmul.f32 %v1065, %v2293
    %v2550 = vmul.f32 %v1066, %v2294
    %v2551 = vmul.f32 %v1067, %v2295
    %v2552 = vmul.f32 %v1068, %v2296
    %v2553 = vmul.f32 %v1069, %v2297
    %v2554 = vmul.f32 %v1070, %v2298
    %v2555 = vmul.f32 %v1071, %v2299
    %v2556 = vmul.f32 %v1072, %v2300
    %v2557 = vmul.f32 %v1073, %v2301
    %v2558 = vmul.f32 %v1074, %v2302
    %v2559 = vmul.f32 %v1075, %v2303
    %v2560 = vmul.f32 %v1076, %v2304
    %v2561 = vmul.f32 %v1077, %v2305
    %v2562 = vmul.f32 %v1078, %v2306
    %v2563 = vmul.f32 %v1079, %v2307
    %v2564 = vmul.f32 %v1080, %v2308
    %v2565 = vmul.f32 %v1081, %v2309
    %v2566 = vmul.f32 %v1082, %v2310
    %v2567 = vmul.f32 %v1083, %v2311
    %v2568 = vmul.f32 %v1084, %v2312
    %v2569 = vmul.f32 %v1085, %v2313
    %v2570 = vmul.f32 %v1086, %v2314
    %v2571 = vmul.f32 %v1087, %v2315
    %v2572 = vmul.f32 %v1088, %v2316
    %v2573 = vmul.f32 %v1089, %v2317
    %v2574 = vmul.f32 %v1090, %v2318
    %v2575 = vmul.f32 %v1091, %v2319
    %v2576 = vmul.f32 %v1092, %v2320
    %v2577 = vmul.f32 %v1093, %v2321
    %v2578 = vmul.f32 %v1094, %v2322
    %v2579 = vmul.f32 %v1095, %v2323
    %v2580 = vmul.f32 %v1096, %v2324
    %v2581 = vmul.f32 %v1097, %v2325
    %v2582 = vmul.f32 %v1098, %v2326
    %v2583 = vmul.f32 %v1099, %v2327
    %v2584 = vmul.f32 %v1100, %v2328
    %v2585 = vmul.f32 %v1101, %v2329
    %v2586 = vmul.f32 %v1102, %v2330
    %v2587 = vmul.f32 %v1103, %v2331
    %v2588 = vmul.f32 %v1104, %v2332
    %v2589 = vmul.f32 %v1105, %v2333
    %v2590 = vmul.f32 %v1106, %v2334
    %v2591 = vmul.f32 %v1107, %v2335
    %v2592 = vmul.f32 %v1108, %v2336
    %v2593 = vmul.f32 %v1109, %v2337
    %v2594 = vmul.f32 %v1110, %v2338
    %v2595 = vmul.f32 %v1111, %v2339
    %v2596 = vmul.f32 %v1112, %v2340
    %v2597 = vmul.f32 %v1113, %v2341
    %v2598 = vmul.f32 %v1114, %v2342
    %v2599 = vmul.f32 %v1115, %v2343
    %v2600 = vmul.f32 %v1116, %v2344
    %v2601 = vmul.f32 %v1117, %v2345
    %v2602 = vmul.f32 %v1118, %v2346
    %v2603 = vmul.f32 %v1119, %v2347
    %v2604 = vmul.f32 %v1120, %v2348
    %v2605 = vmul.f32 %v1121, %v2349
    %v2606 = vmul.f32 %v1122, %v2350
    %v2607 = vmul.f32 %v1123, %v2351
    %v2608 = vmul.f32 %v1124, %v2352
    %v2609 = vmul.f32 %v1125, %v2353
    %v2610 = vmul.f32 %v1126, %v2354
    %v2611 = vmul.f32 %v1127, %v2355
    %v2612 = vmul.f32 %v1128, %v2356
    %v2613 = vmul.f32 %v1129, %v2357
    %v2614 = vmul.f32 %v1130, %v2358
    %v2615 = vmul.f32 %v1131, %v2359
    %v2616 = vmul.f32 %v1132, %v2360
    %v2617 = vmul.f32 %v1133, %v2361
    %v2618 = vmul.f32 %v1134, %v2362
    %v2619 = vmul.f32 %v1135, %v2363
    %v2620 = vmul.f32 %v1136, %v2364
    %v2621 = vmul.f32 %v1137, %v2365
    %v2622 = vmul.f32 %v1138, %v2366
    %v2623 = vmul.f32 %v1139, %v2367
    %v2624 = vmul.f32 %v1140, %v2368
    %v2625 = vmul.f32 %v1141, %v2369
    %v2626 = vmul.f32 %v1142, %v2370
    %v2627 = vmul.f32 %v1143, %v2371
    %v2628 = vmul.f32 %v1144, %v2372
    %v2629 = vmul.f32 %v1145, %v2373
    %v2630 = vmul.f32 %v1146, %v2374
    %v2631 = vmul.f32 %v1147, %v2375
    %v2632 = vmul.f32 %v1148, %v2376
    %v2633 = vmul.f32 %v1149, %v2377
    %v2634 = vmul.f32 %v1150, %v2378
    %v2635 = vmul.f32 %v1151, %v2379
    %v2636 = vmul.f32 %v1152, %v2380
    %v2637 = vmul.f32 %v1153, %v2381
    %v2638 = vmul.f32 %v1154, %v2382
    %v2639 = vmul.f32 %v1155, %v2383
    %v2640 = vmul.f32 %v1156, %v2384
    %v2641 = vmul.f32 %v1157, %v2385
    %v2642 = vmul.f32 %v1158, %v2386
    %v2643 = vmul.f32 %v1159, %v2387
    %v2644 = vmul.f32 %v1160, %v2388
    %v2645 = vmul.f32 %v1161, %v2389
    %v2646 = vmul.f32 %v1162, %v2390
    %v2647 = vmul.f32 %v1163, %v2391
    %v2648 = vmul.f32 %v1164, %v2392
    %v2649 = vmul.f32 %v1165, %v2393
    %v2650 = vmul.f32 %v1166, %v2394
    %v2651 = vmul.f32 %v1167, %v2395
    %v2652 = vmul.f32 %v1168, %v2396
    %v2653 = vmul.f32 %v1169, %v2397
    %v2654 = vmul.f32 %v1170, %v2398
    %v2655 = vmul.f32 %v1171, %v2399
    %v2656 = vmul.f32 %v1172, %v2400
    %v2657 = vmul.f32 %v1173, %v2401
    %v2658 = vmul.f32 %v1174, %v2402
    %v2659 = vmul.f32 %v1175, %v2403
    %v2660 = vmul.f32 %v1176, %v2404
    %v2661 = vmul.f32 %v1177, %v2405
    %v2662 = vmul.f32 %v1178, %v2406
    %v2663 = vmul.f32 %v1179, %v2407
    %v2664 = vmul.f32 %v1180, %v2408
    %v2665 = vmul.f32 %v1181, %v2409
    %v2666 = vmul.f32 %v1182, %v2410
    %v2667 = vmul.f32 %v1183, %v2411
    %v2668 = vmul.f32 %v1184, %v2412
    %v2669 = vmul.f32 %v1185, %v2413
    %v2670 = vmul.f32 %v1186, %v2414
    %v2671 = vmul.f32 %v1187, %v2415
    %v2672 = vmul.f32 %v1188, %v2416
    %v2673 = vmul.f32 %v1189, %v2417
    %v2674 = vmul.f32 %v1190, %v2418
    %v2675 = vmul.f32 %v1191, %v2419
    %v2676 = vmul.f32 %v1192, %v2420
    %v2677 = vmul.f32 %v1193, %v2421
    %v2678 = vmul.f32 %v1194, %v2422
    %v2679 = vmul.f32 %v1195, %v2423
    %v2680 = vmul.f32 %v1196, %v2424
    %v2681 = vmul.f32 %v1197, %v2425
    %v2682 = vmul.f32 %v1198, %v2426
    %v2683 = vmul.f32 %v1199, %v2427
    %v2684 = vmul.f32 %v1200, %v2428
    %v2685 = vmul.f32 %v1201, %v2429
    %v2686 = vmul.f32 %v1202, %v2430
    %v2687 = vmul.f32 %v1203, %v2431
    %v2688 = vmul.f32 %v1204, %v2432
    %v2689 = vmul.f32 %v1205, %v2433
    %v2690 = vmul.f32 %v1206, %v2434
    %v2691 = vmul.f32 %v1207, %v2435
    %v2692 = vmul.f32 %v1208, %v2436
    %v2693 = vmul.f32 %v1209, %v2437
    %v2694 = vmul.f32 %v1210, %v2438
    %v2695 = vmul.f32 %v1211, %v2439
    %v2696 = vmul.f32 %v1212, %v2440
    %v2697 = vmul.f32 %v1213, %v2441
    %v2698 = vmul.f32 %v1214, %v2442
    %v2699 = vmul.f32 %v1215, %v2443
    %v2700 = vmul.f32 %v1216, %v2444
    %v2701 = vmul.f32 %v1217, %v2445
    %v2702 = vmul.f32 %v1218, %v2446
    %v2703 = vmul.f32 %v1219, %v2447
    %v2704 = vmul.f32 %v1220, %v2448
    %v2705 = vmul.f32 %v1221, %v2449
    %v2706 = vmul.f32 %v1222, %v2450
    %v2707 = vmul.f32 %v1223, %v2451
    %v2708 = vmul.f32 %v1224, %v2452
    %v2709 = vmul.f32 %v1225, %v2453
    %v2710 = vmul.f32 %v1226, %v2454
    %v2711 = vmul.f32 %v1227, %v2455
    %v2712 = vmul.f32 %v1228, %v2456
    %v2713 = vmul.f32 %v1229, %v2457
    %v2714 = vmul.f32 %v1230, %v2458
    %v2715 = vmul.f32 %v1231, %v2459
    %v2716 = vmul.f32 %v1232, %v2460
    %v2717 = vmul.f32 %v1233, %v2461
    %v2718 = vmul.f32 %v1234, %v2462
    %v2719 = vmul.f32 %v1235, %v2463
    %v2720 = vmul.f32 %v1236, %v2464
    %v2721 = vmul.f32 %v1237, %v2465
    %v2722 = vmul.f32 %v1238, %v2466
    %v2723 = vmul.f32 %v1239, %v2467
    %v2724 = vmul.f32 %v1240, %v2468
    %v2725 = vmul.f32 %v1241, %v2469
    %v2726 = vmul.f32 %v1242, %v2470
    %v2727 = vmul.f32 %v1243, %v2471
    %v2728 = vmul.f32 %v1244, %v2472
    %v2729 = vmul.f32 %v1245, %v2473
    %v2730 = vmul.f32 %v1246, %v2474
    %v2731 = vmul.f32 %v1247, %v2475
    %v2732 = vmul.f32 %v1248, %v2476
    %v2733 = vmul.f32 %v1249, %v2477
    %v2734 = vmul.f32 %v1250, %v2478
    %v2735 = vmul.f32 %v1251, %v2479
    %v2736 = vmul.f32 %v1252, %v2480
    %v2737 = vmul.f32 %v1253, %v2481
    %v2738 = vmul.f32 %v1254, %v2482
    %v2739 = vmul.f32 %v1255, %v2483
    %v2740 = vmul.f32 %v1256, %v2484
    %v2741 = vmul.f32 %v1257, %v2485
    %v2742 = vmul.f32 %v1258, %v2486
    %v2743 = vmul.f32 %v1259, %v2487
    %v2744 = vmul.f32 %v1260, %v2488
    %v2745 = vmul.f32 %v1261, %v2489
    %v2746 = vmul.f32 %v1262, %v2490
    %v2747 = vmul.f32 %v1263, %v2491
    %v2748 = vmul.f32 %v1264, %v2492
    %v2749 = vmul.f32 %v1265, %v2493
    %v2750 = vmul.f32 %v1266, %v2494
    %v2751 = vmul.f32 %v1267, %v2495
    %v2752 = vmul.f32 %v1268, %v2496
    %v2753 = vmul.f32 %v1269, %v2497
    %v2754 = vmul.f32 %v1270, %v2498
    %v2755 = vmul.f32 %v1271, %v2499
    %v2756 = vmul.f32 %v1272, %v2500
    %v2757 = vmul.f32 %v1273, %v2501
    %v2758 = vmul.f32 %v1274, %v2502
    %v2759 = vmul.f32 %v1275, %v2503
    %v2760 = vmul.f32 %v1276, %v2504
    %v2761 = vpack.c.bf16 %v2537, %v2505
    %v2762 = vpack.c.bf16 %v2538, %v2506
    %v2763 = vpack.c.bf16 %v2539, %v2507
    %v2764 = vpack.c.bf16 %v2540, %v2508
    %v2765 = vpack.c.bf16 %v2541, %v2509
    %v2766 = vpack.c.bf16 %v2542, %v2510
    %v2767 = vpack.c.bf16 %v2543, %v2511
    %v2768 = vpack.c.bf16 %v2544, %v2512
    %v2769 = vpack.c.bf16 %v2545, %v2513
    %v2770 = vpack.c.bf16 %v2546, %v2514
    %v2771 = vpack.c.bf16 %v2547, %v2515
    %v2772 = vpack.c.bf16 %v2548, %v2516
    %v2773 = vpack.c.bf16 %v2549, %v2517
    %v2774 = vpack.c.bf16 %v2550, %v2518
    %v2775 = vpack.c.bf16 %v2551, %v2519
    %v2776 = vpack.c.bf16 %v2552, %v2520
    %v2777 = vpack.c.bf16 %v2553, %v2521
    %v2778 = vpack.c.bf16 %v2554, %v2522
    %v2779 = vpack.c.bf16 %v2555, %v2523
    %v2780 = vpack.c.bf16 %v2556, %v2524
    %v2781 = vpack.c.bf16 %v2557, %v2525
    %v2782 = vpack.c.bf16 %v2558, %v2526
    %v2783 = vpack.c.bf16 %v2559, %v2527
    %v2784 = vpack.c.bf16 %v2560, %v2528
    %v2785 = vpack.c.bf16 %v2561, %v2529
    %v2786 = vpack.c.bf16 %v2562, %v2530
    %v2787 = vpack.c.bf16 %v2563, %v2531
    %v2788 = vpack.c.bf16 %v2564, %v2532
    %v2789 = vpack.c.bf16 %v2565, %v2533
    %v2790 = vpack.c.bf16 %v2566, %v2534
    %v2791 = vpack.c.bf16 %v2567, %v2535
    %v2792 = vpack.c.bf16 %v2568, %v2536
    %v2793 = vpack.c.bf16 %v2601, %v2569
    %v2794 = vpack.c.bf16 %v2602, %v2570
    %v2795 = vpack.c.bf16 %v2603, %v2571
    %v2796 = vpack.c.bf16 %v2604, %v2572
    %v2797 = vpack.c.bf16 %v2605, %v2573
    %v2798 = vpack.c.bf16 %v2606, %v2574
    %v2799 = vpack.c.bf16 %v2607, %v2575
    %v2800 = vpack.c.bf16 %v2608, %v2576
    %v2801 = vpack.c.bf16 %v2609, %v2577
    %v2802 = vpack.c.bf16 %v2610, %v2578
    %v2803 = vpack.c.bf16 %v2611, %v2579
    %v2804 = vpack.c.bf16 %v2612, %v2580
    %v2805 = vpack.c.bf16 %v2613, %v2581
    %v2806 = vpack.c.bf16 %v2614, %v2582
    %v2807 = vpack.c.bf16 %v2615, %v2583
    %v2808 = vpack.c.bf16 %v2616, %v2584
    %v2809 = vpack.c.bf16 %v2617, %v2585
    %v2810 = vpack.c.bf16 %v2618, %v2586
    %v2811 = vpack.c.bf16 %v2619, %v2587
    %v2812 = vpack.c.bf16 %v2620, %v2588
    %v2813 = vpack.c.bf16 %v2621, %v2589
    %v2814 = vpack.c.bf16 %v2622, %v2590
    %v2815 = vpack.c.bf16 %v2623, %v2591
    %v2816 = vpack.c.bf16 %v2624, %v2592
    %v2817 = vpack.c.bf16 %v2625, %v2593
    %v2818 = vpack.c.bf16 %v2626, %v2594
    %v2819 = vpack.c.bf16 %v2627, %v2595
    %v2820 = vpack.c.bf16 %v2628, %v2596
    %v2821 = vpack.c.bf16 %v2629, %v2597
    %v2822 = vpack.c.bf16 %v2630, %v2598
    %v2823 = vpack.c.bf16 %v2631, %v2599
    %v2824 = vpack.c.bf16 %v2632, %v2600
    %v2825 = vpack.c.bf16 %v2665, %v2633
    %v2826 = vpack.c.bf16 %v2666, %v2634
    %v2827 = vpack.c.bf16 %v2667, %v2635
    %v2828 = vpack.c.bf16 %v2668, %v2636
    %v2829 = vpack.c.bf16 %v2669, %v2637
    %v2830 = vpack.c.bf16 %v2670, %v2638
    %v2831 = vpack.c.bf16 %v2671, %v2639
    %v2832 = vpack.c.bf16 %v2672, %v2640
    %v2833 = vpack.c.bf16 %v2673, %v2641
    %v2834 = vpack.c.bf16 %v2674, %v2642
    %v2835 = vpack.c.bf16 %v2675, %v2643
    %v2836 = vpack.c.bf16 %v2676, %v2644
    %v2837 = vpack.c.bf16 %v2677, %v2645
    %v2838 = vpack.c.bf16 %v2678, %v2646
    %v2839 = vpack.c.bf16 %v2679, %v2647
    %v2840 = vpack.c.bf16 %v2680, %v2648
    %v2841 = vpack.c.bf16 %v2681, %v2649
    %v2842 = vpack.c.bf16 %v2682, %v2650
    %v2843 = vpack.c.bf16 %v2683, %v2651
    %v2844 = vpack.c.bf16 %v2684, %v2652
    %v2845 = vpack.c.bf16 %v2685, %v2653
    %v2846 = vpack.c.bf16 %v2686, %v2654
    %v2847 = vpack.c.bf16 %v2687, %v2655
    %v2848 = vpack.c.bf16 %v2688, %v2656
    %v2849 = vpack.c.bf16 %v2689, %v2657
    %v2850 = vpack.c.bf16 %v2690, %v2658
    %v2851 = vpack.c.bf16 %v2691, %v2659
    %v2852 = vpack.c.bf16 %v2692, %v2660
    %v2853 = vpack.c.bf16 %v2693, %v2661
    %v2854 = vpack.c.bf16 %v2694, %v2662
    %v2855 = vpack.c.bf16 %v2695, %v2663
    %v2856 = vpack.c.bf16 %v2696, %v2664
    %v2857 = vpack.c.bf16 %v2729, %v2697
    %v2858 = vpack.c.bf16 %v2730, %v2698
    %v2859 = vpack.c.bf16 %v2731, %v2699
    %v2860 = vpack.c.bf16 %v2732, %v2700
    %v2861 = vpack.c.bf16 %v2733, %v2701
    %v2862 = vpack.c.bf16 %v2734, %v2702
    %v2863 = vpack.c.bf16 %v2735, %v2703
    %v2864 = vpack.c.bf16 %v2736, %v2704
    %v2865 = vpack.c.bf16 %v2737, %v2705
    %v2866 = vpack.c.bf16 %v2738, %v2706
    %v2867 = vpack.c.bf16 %v2739, %v2707
    %v2868 = vpack.c.bf16 %v2740, %v2708
    %v2869 = vpack.c.bf16 %v2741, %v2709
    %v2870 = vpack.c.bf16 %v2742, %v2710
    %v2871 = vpack.c.bf16 %v2743, %v2711
    %v2872 = vpack.c.bf16 %v2744, %v2712
    %v2873 = vpack.c.bf16 %v2745, %v2713
    %v2874 = vpack.c.bf16 %v2746, %v2714
    %v2875 = vpack.c.bf16 %v2747, %v2715
    %v2876 = vpack.c.bf16 %v2748, %v2716
    %v2877 = vpack.c.bf16 %v2749, %v2717
    %v2878 = vpack.c.bf16 %v2750, %v2718
    %v2879 = vpack.c.bf16 %v2751, %v2719
    %v2880 = vpack.c.bf16 %v2752, %v2720
    %v2881 = vpack.c.bf16 %v2753, %v2721
    %v2882 = vpack.c.bf16 %v2754, %v2722
    %v2883 = vpack.c.bf16 %v2755, %v2723
    %v2884 = vpack.c.bf16 %v2756, %v2724
    %v2885 = vpack.c.bf16 %v2757, %v2725
    %v2886 = vpack.c.bf16 %v2758, %v2726
    %v2887 = vpack.c.bf16 %v2759, %v2727
    %v2888 = vpack.c.bf16 %v2760, %v2728
    %v2889 = vld [vmem:[%s3] sm:$0xf]
    %v2890 = vld [vmem:[%s3 + $0x4] sm:$0xf]
    %v2891 = vld [vmem:[%s3 + $0x8] sm:$0xf]
    %v2892 = vld [vmem:[%s3 + $0xc] sm:$0xf]
    %v2893 = vld [vmem:[%s3 + $0x10] sm:$0xf]
    %v2894 = vld [vmem:[%s3 + $0x14] sm:$0xf]
    %v2895 = vld [vmem:[%s3 + $0x18] sm:$0xf]
    %v2896 = vld [vmem:[%s3 + $0x1c] sm:$0xf]
    %v2897 = vld [vmem:[%s4] sm:$0xff]
    %v2898 = vld [vmem:[%s4 + $0x8] sm:$0xff]
    %v2899 = vld [vmem:[%s4 + $0x10] sm:$0xff]
    %v2900 = vld [vmem:[%s4 + $0x18] sm:$0xff]
    %v2901 = vld [vmem:[%s4 + $0x20] sm:$0xff]
    %v2902 = vld [vmem:[%s4 + $0x28] sm:$0xff]
    %v2903 = vld [vmem:[%s4 + $0x30] sm:$0xff]
    %v2904 = vld [vmem:[%s4 + $0x38] sm:$0xff]
    %2906 = vset.pattern.permute.xlu0 0
    %2907 = vperm.xlu0 %2906, %v2897
    %v2908 = vpop.permute.xlu0 %2907
    %2911 = vset.pattern.permute.xlu0 0
    %2912 = vperm.xlu0 %2911, %v2898
    %v2913 = vpop.permute.xlu0 %2912
    %2916 = vset.pattern.permute.xlu0 0
    %2917 = vperm.xlu0 %2916, %v2899
    %v2918 = vpop.permute.xlu0 %2917
    %2921 = vset.pattern.permute.xlu0 0
    %2922 = vperm.xlu0 %2921, %v2900
    %v2923 = vpop.permute.xlu0 %2922
    %2926 = vset.pattern.permute.xlu0 0
    %2927 = vperm.xlu0 %2926, %v2901
    %v2928 = vpop.permute.xlu0 %2927
    %2931 = vset.pattern.permute.xlu0 0
    %2932 = vperm.xlu0 %2931, %v2902
    %v2933 = vpop.permute.xlu0 %2932
    %2936 = vset.pattern.permute.xlu0 0
    %2937 = vperm.xlu0 %2936, %v2903
    %v2938 = vpop.permute.xlu0 %2937
    %2941 = vset.pattern.permute.xlu0 0
    %2942 = vperm.xlu0 %2941, %v2904
    %v2943 = vpop.permute.xlu0 %2942
    %v2953 = vunpack.c.l.b16 %v2889
    %v2954 = vunpack.c.l.b16 %v2890
    %v2955 = vunpack.c.l.b16 %v2891
    %v2956 = vunpack.c.l.b16 %v2892
    %v2957 = vunpack.c.l.b16 %v2893
    %v2958 = vunpack.c.l.b16 %v2894
    %v2959 = vunpack.c.l.b16 %v2895
    %v2960 = vunpack.c.l.b16 %v2896
    %v2961 = vpack.c.b16 %v2954, %v2953
    %v2962 = vpack.c.b16 %v2956, %v2955
    %v2963 = vpack.c.b16 %v2958, %v2957
    %v2964 = vpack.c.b16 %v2960, %v2959
    %vm2965 = vcmask 523264
    %v2967 = vsel %vm2965, %v2961, 0
    %v2970 = vsel %vm2965, %v2962, 0
    %v2973 = vsel %vm2965, %v2963, 0
    %v2976 = vsel %vm2965, %v2964, 0
    %2978 = vmatprep.subr.bf16.mxu0 %v2762
    %2979 = vmatpush1.bf16.msra.mxu0 %v2761
    %2980 = vmatprep.subr.bf16.mxu0 %v2794
    %2981 = vmatpush1.bf16.msra.mxu0 %v2793
    %2982 = vmatprep.subr.bf16.mxu0 %v2826
    %2983 = vmatpush1.bf16.msra.mxu0 %v2825
    %2984 = vmatprep.subr.bf16.mxu0 %v2858
    %2985 = vmatpush1.bf16.msra.mxu0 %v2857
    %2986 = vmatprep.subr.bf16.mxu0 0
    %2987 = vmatpush1.bf16.msra.mxu0 0
    %2988 = vmatprep.subr.bf16.mxu0 0
    %2989 = vmatpush1.bf16.msra.mxu0 0
    %2990 = vmatprep.subr.bf16.mxu0 0
    %2991 = vmatpush1.bf16.msra.mxu0 0
    %2992 = vmatprep.subr.bf16.mxu0 0
    %2993 = vmatpush1.bf16.msra.mxu0 0
    %2994 = vmatprep.subr.bf16.mxu0 0
    %2995 = vmatpush1.bf16.msra.mxu0 0
    %2996 = vmatprep.subr.bf16.mxu0 0
    %2997 = vmatpush1.bf16.msra.mxu0 0
    %2998 = vmatprep.subr.bf16.mxu0 0
    %2999 = vmatpush1.bf16.msra.mxu0 0
    %3000 = vmatprep.subr.bf16.mxu0 0
    %3001 = vmatpush1.bf16.msra.mxu0 0
    %3002 = vmatprep.subr.bf16.mxu0 0
    %3003 = vmatpush1.bf16.msra.mxu0 0
    %3004 = vmatprep.subr.bf16.mxu0 0
    %3005 = vmatpush1.bf16.msra.mxu0 0
    %3006 = vmatprep.subr.bf16.mxu0 0
    %3007 = vmatpush1.bf16.msra.mxu0 0
    %3008 = vmatprep.subr.bf16.mxu0 0
    %3009 = vmatpush1.bf16.msra.mxu0 0
    %3010 = vmatprep.mubr.bf16.mxu0 0
    %3011 = vmatmul.mubr.bf16.gmra.mrb[0].mxu0 %v2967
    %v3012 = vpop.f32.mrb[0].mxu0
    %v3013 = vadd.f32 %v2908, %v3012
    %v3014 = vpop.f32.mrb[0].mxu0
    %v3015 = vadd.f32 %v2908, %v3014
    %v3016 = vpop.f32.mrb[0].mxu0
    %v3017 = vadd.f32 %v2913, %v3016
    %v3018 = vpop.f32.mrb[0].mxu0
    %v3019 = vadd.f32 %v2913, %v3018
    %3020 = vmatprep.mubr.bf16.mxu0 0
    %3021 = vmatmul.mubr.bf16.gmra.mrb[0].mxu0 %v2970
    %v3022 = vpop.f32.mrb[0].mxu0
    %v3023 = vadd.f32 %v2918, %v3022
    %v3024 = vpop.f32.mrb[0].mxu0
    %v3025 = vadd.f32 %v2918, %v3024
    %v3026 = vpop.f32.mrb[0].mxu0
    %v3027 = vadd.f32 %v2923, %v3026
    %v3028 = vpop.f32.mrb[0].mxu0
    %v3029 = vadd.f32 %v2923, %v3028
    %3030 = vmatprep.mubr.bf16.mxu0 0
    %3031 = vmatmul.mubr.bf16.gmra.mrb[0].mxu0 %v2973
    %v3032 = vpop.f32.mrb[0].mxu0
    %v3033 = vadd.f32 %v2928, %v3032
    %v3034 = vpop.f32.mrb[0].mxu0
    %v3035 = vadd.f32 %v2928, %v3034
    %v3036 = vpop.f32.mrb[0].mxu0
    %v3037 = vadd.f32 %v2933, %v3036
    %v3038 = vpop.f32.mrb[0].mxu0
    %v3039 = vadd.f32 %v2933, %v3038
    %3040 = vmatprep.mubr.bf16.mxu0 0
    %3041 = vmatmul.mubr.bf16.gmra.mrb[0].mxu0 %v2976
    %v3042 = vpop.f32.mrb[0].mxu0
    %v3043 = vadd.f32 %v2938, %v3042
    %v3044 = vpop.f32.mrb[0].mxu0
    %v3045 = vadd.f32 %v2938, %v3044
    %v3046 = vpop.f32.mrb[0].mxu0
    %v3047 = vadd.f32 %v2943, %v3046
    %v3048 = vpop.f32.mrb[0].mxu0
    %v3049 = vadd.f32 %v2943, %v3048
    %3050 = vdwg.mxu0
    %3051 = vmatprep.subr.bf16.mxu0 %v2764
    %3052 = vmatpush1.bf16.msra.mxu0 %v2763
    %3053 = vmatprep.subr.bf16.mxu0 %v2796
    %3054 = vmatpush1.bf16.msra.mxu0 %v2795
    %3055 = vmatprep.subr.bf16.mxu0 %v2828
    %3056 = vmatpush1.bf16.msra.mxu0 %v2827
    %3057 = vmatprep.subr.bf16.mxu0 %v2860
    %3058 = vmatpush1.bf16.msra.mxu0 %v2859
    %3059 = vmatprep.subr.bf16.mxu0 0
    %3060 = vmatpush1.bf16.msra.mxu0 0
    %3061 = vmatprep.subr.bf16.mxu0 0
    %3062 = vmatpush1.bf16.msra.mxu0 0
    %3063 = vmatprep.subr.bf16.mxu0 0
    %3064 = vmatpush1.bf16.msra.mxu0 0
    %3065 = vmatprep.subr.bf16.mxu0 0
    %3066 = vmatpush1.bf16.msra.mxu0 0
    %3067 = vmatprep.subr.bf16.mxu0 0
    %3068 = vmatpush1.bf16.msra.mxu0 0
    %3069 = vmatprep.subr.bf16.mxu0 0
    %3070 = vmatpush1.bf16.msra.mxu0 0
    %3071 = vmatprep.subr.bf16.mxu0 0
    %3072 = vmatpush1.bf16.msra.mxu0 0
    %3073 = vmatprep.subr.bf16.mxu0 0
    %3074 = vmatpush1.bf16.msra.mxu0 0
    %3075 = vmatprep.subr.bf16.mxu0 0
    %3076 = vmatpush1.bf16.msra.mxu0 0
    %3077 = vmatprep.subr.bf16.mxu0 0
    %3078 = vmatpush1.bf16.msra.mxu0 0
    %3079 = vmatprep.subr.bf16.mxu0 0
    %3080 = vmatpush1.bf16.msra.mxu0 0
    %3081 = vmatprep.subr.bf16.mxu0 0
    %3082 = vmatpush1.bf16.msra.mxu0 0
    %3083 = vmatprep.mubr.bf16.mxu0 0
    %3084 = vmatmul.mubr.bf16.gmra.mrb[0].mxu0 %v2967
    %v3085 = vpop.f32.mrb[0].mxu0
    %v3086 = vadd.f32 %v2908, %v3085
    %v3087 = vpop.f32.mrb[0].mxu0
    %v3088 = vadd.f32 %v2908, %v3087
    %v3089 = vpop.f32.mrb[0].mxu0
    %v3090 = vadd.f32 %v2913, %v3089
    %v3091 = vpop.f32.mrb[0].mxu0
    %v3092 = vadd.f32 %v2913, %v3091
    %3093 = vmatprep.mubr.bf16.mxu0 0
    %3094 = vmatmul.mubr.bf16.gmra.mrb[0].mxu0 %v2970
    %v3095 = vpop.f32.mrb[0].mxu0
    %v3096 = vadd.f32 %v2918, %v3095
    %v3097 = vpop.f32.mrb[0].mxu0
    %v3098 = vadd.f32 %v2918, %v3097
    %v3099 = vpop.f32.mrb[0].mxu0
    %v3100 = vadd.f32 %v2923, %v3099
    %v3101 = vpop.f32.mrb[0].mxu0
    %v3102 = vadd.f32 %v2923, %v3101
    %3103 = vmatprep.mubr.bf16.mxu0 0
    %3104 = vmatmul.mubr.bf16.gmra.mrb[0].mxu0 %v2973
    %v3105 = vpop.f32.mrb[0].mxu0
    %v3106 = vadd.f32 %v2928, %v3105
    %v3107 = vpop.f32.mrb[0].mxu0
    %v3108 = vadd.f32 %v2928, %v3107
    %v3109 = vpop.f32.mrb[0].mxu0
    %v3110 = vadd.f32 %v2933, %v3109
    %v3111 = vpop.f32.mrb[0].mxu0
    %v3112 = vadd.f32 %v2933, %v3111
    %3113 = vmatprep.mubr.bf16.mxu0 0
    %3114 = vmatmul.mubr.bf16.gmra.mrb[0].mxu0 %v2976
    %v3115 = vpop.f32.mrb[0].mxu0
    %v3116 = vadd.f32 %v2938, %v3115
    %v3117 = vpop.f32.mrb[0].mxu0
    %v3118 = vadd.f32 %v2938, %v3117
    %v3119 = vpop.f32.mrb[0].mxu0
    %v3120 = vadd.f32 %v2943, %v3119
    %v3121 = vpop.f32.mrb[0].mxu0
    %v3122 = vadd.f32 %v2943, %v3121
    %3123 = vdwg.mxu0
    %3124 = vmatprep.subr.bf16.mxu0 %v2766
    %3125 = vmatpush1.bf16.msra.mxu0 %v2765
    %3126 = vmatprep.subr.bf16.mxu0 %v2798
    %3127 = vmatpush1.bf16.msra.mxu0 %v2797
    %3128 = vmatprep.subr.bf16.mxu0 %v2830
    %3129 = vmatpush1.bf16.msra.mxu0 %v2829
    %3130 = vmatprep.subr.bf16.mxu0 %v2862
    %3131 = vmatpush1.bf16.msra.mxu0 %v2861
    %3132 = vmatprep.subr.bf16.mxu0 0
    %3133 = vmatpush1.bf16.msra.mxu0 0
    %3134 = vmatprep.subr.bf16.mxu0 0
    %3135 = vmatpush1.bf16.msra.mxu0 0
    %3136 = vmatprep.subr.bf16.mxu0 0
    %3137 = vmatpush1.bf16.msra.mxu0 0
    %3138 = vmatprep.subr.bf16.mxu0 0
    %3139 = vmatpush1.bf16.msra.mxu0 0
    %3140 = vmatprep.subr.bf16.mxu0 0
    %3141 = vmatpush1.bf16.msra.mxu0 0
    %3142 = vmatprep.subr.bf16.mxu0 0
    %3143 = vmatpush1.bf16.msra.mxu0 0
    %3144 = vmatprep.subr.bf16.mxu0 0
    %3145 = vmatpush1.bf16.msra.mxu0 0
    %3146 = vmatprep.subr.bf16.mxu0 0
    %3147 = vmatpush1.bf16.msra.mxu0 0
    %3148 = vmatprep.subr.bf16.mxu0 0
    %3149 = vmatpush1.bf16.msra.mxu0 0
    %3150 = vmatprep.subr.bf16.mxu0 0
    %3151 = vmatpush1.bf16.msra.mxu0 0
    %3152 = vmatprep.subr.bf16.mxu0 0
    %3153 = vmatpush1.bf16.msra.mxu0 0
    %3154 = vmatprep.subr.bf16.mxu0 0
    %3155 = vmatpush1.bf16.msra.mxu0 0
    %3156 = vmatprep.mubr.bf16.mxu0 0
    %3157 = vmatmul.mubr.bf16.gmra.mrb[0].mxu0 %v2967
    %v3158 = vpop.f32.mrb[0].mxu0
    %v3159 = vadd.f32 %v2908, %v3158
    %v3160 = vpop.f32.mrb[0].mxu0
    %v3161 = vadd.f32 %v2908, %v3160
    %v3162 = vpop.f32.mrb[0].mxu0
    %v3163 = vadd.f32 %v2913, %v3162
    %v3164 = vpop.f32.mrb[0].mxu0
    %v3165 = vadd.f32 %v2913, %v3164
    %3166 = vmatprep.mubr.bf16.mxu0 0
    %3167 = vmatmul.mubr.bf16.gmra.mrb[0].mxu0 %v2970
    %v3168 = vpop.f32.mrb[0].mxu0
    %v3169 = vadd.f32 %v2918, %v3168
    %v3170 = vpop.f32.mrb[0].mxu0
    %v3171 = vadd.f32 %v2918, %v3170
    %v3172 = vpop.f32.mrb[0].mxu0
    %v3173 = vadd.f32 %v2923, %v3172
    %v3174 = vpop.f32.mrb[0].mxu0
    %v3175 = vadd.f32 %v2923, %v3174
    %3176 = vmatprep.mubr.bf16.mxu0 0
    %3177 = vmatmul.mubr.bf16.gmra.mrb[0].mxu0 %v2973
    %v3178 = vpop.f32.mrb[0].mxu0
    %v3179 = vadd.f32 %v2928, %v3178
    %v3180 = vpop.f32.mrb[0].mxu0
    %v3181 = vadd.f32 %v2928, %v3180
    %v3182 = vpop.f32.mrb[0].mxu0
    %v3183 = vadd.f32 %v2933, %v3182
    %v3184 = vpop.f32.mrb[0].mxu0
    %v3185 = vadd.f32 %v2933, %v3184
    %3186 = vmatprep.mubr.bf16.mxu0 0
    %3187 = vmatmul.mubr.bf16.gmra.mrb[0].mxu0 %v2976
    %v3188 = vpop.f32.mrb[0].mxu0
    %v3189 = vadd.f32 %v2938, %v3188
    %v3190 = vpop.f32.mrb[0].mxu0
    %v3191 = vadd.f32 %v2938, %v3190
    %v3192 = vpop.f32.mrb[0].mxu0
    %v3193 = vadd.f32 %v2943, %v3192
    %v3194 = vpop.f32.mrb[0].mxu0
    %v3195 = vadd.f32 %v2943, %v3194
    %3196 = vdwg.mxu0
    %3197 = vmatprep.subr.bf16.mxu0 %v2768
    %3198 = vmatpush1.bf16.msra.mxu0 %v2767
    %3199 = vmatprep.subr.bf16.mxu0 %v2800
    %3200 = vmatpush1.bf16.msra.mxu0 %v2799
    %3201 = vmatprep.subr.bf16.mxu0 %v2832
    %3202 = vmatpush1.bf16.msra.mxu0 %v2831
    %3203 = vmatprep.subr.bf16.mxu0 %v2864
    %3204 = vmatpush1.bf16.msra.mxu0 %v2863
    %3205 = vmatprep.subr.bf16.mxu0 0
    %3206 = vmatpush1.bf16.msra.mxu0 0
    %3207 = vmatprep.subr.bf16.mxu0 0
    %3208 = vmatpush1.bf16.msra.mxu0 0
    %3209 = vmatprep.subr.bf16.mxu0 0
    %3210 = vmatpush1.bf16.msra.mxu0 0
    %3211 = vmatprep.subr.bf16.mxu0 0
    %3212 = vmatpush1.bf16.msra.mxu0 0
    %3213 = vmatprep.subr.bf16.mxu0 0
    %3214 = vmatpush1.bf16.msra.mxu0 0
    %3215 = vmatprep.subr.bf16.mxu0 0
    %3216 = vmatpush1.bf16.msra.mxu0 0
    %3217 = vmatprep.subr.bf16.mxu0 0
    %3218 = vmatpush1.bf16.msra.mxu0 0
    %3219 = vmatprep.subr.bf16.mxu0 0
    %3220 = vmatpush1.bf16.msra.mxu0 0
    %3221 = vmatprep.subr.bf16.mxu0 0
    %3222 = vmatpush1.bf16.msra.mxu0 0
    %3223 = vmatprep.subr.bf16.mxu0 0
    %3224 = vmatpush1.bf16.msra.mxu0 0
    %3225 = vmatprep.subr.bf16.mxu0 0
    %3226 = vmatpush1.bf16.msra.mxu0 0
    %3227 = vmatprep.subr.bf16.mxu0 0
    %3228 = vmatpush1.bf16.msra.mxu0 0
    %3229 = vmatprep.mubr.bf16.mxu0 0
    %3230 = vmatmul.mubr.bf16.gmra.mrb[0].mxu0 %v2967
    %v3231 = vpop.f32.mrb[0].mxu0
    %v3232 = vadd.f32 %v2908, %v3231
    %v3233 = vpop.f32.mrb[0].mxu0
    %v3234 = vadd.f32 %v2908, %v3233
    %v3235 = vpop.f32.mrb[0].mxu0
    %v3236 = vadd.f32 %v2913, %v3235
    %v3237 = vpop.f32.mrb[0].mxu0
    %v3238 = vadd.f32 %v2913, %v3237
    %3239 = vmatprep.mubr.bf16.mxu0 0
    %3240 = vmatmul.mubr.bf16.gmra.mrb[0].mxu0 %v2970
    %v3241 = vpop.f32.mrb[0].mxu0
    %v3242 = vadd.f32 %v2918, %v3241
    %v3243 = vpop.f32.mrb[0].mxu0
    %v3244 = vadd.f32 %v2918, %v3243
    %v3245 = vpop.f32.mrb[0].mxu0
    %v3246 = vadd.f32 %v2923, %v3245
    %v3247 = vpop.f32.mrb[0].mxu0
    %v3248 = vadd.f32 %v2923, %v3247
    %3249 = vmatprep.mubr.bf16.mxu0 0
    %3250 = vmatmul.mubr.bf16.gmra.mrb[0].mxu0 %v2973
    %v3251 = vpop.f32.mrb[0].mxu0
    %v3252 = vadd.f32 %v2928, %v3251
    %v3253 = vpop.f32.mrb[0].mxu0
    %v3254 = vadd.f32 %v2928, %v3253
    %v3255 = vpop.f32.mrb[0].mxu0
    %v3256 = vadd.f32 %v2933, %v3255
    %v3257 = vpop.f32.mrb[0].mxu0
    %v3258 = vadd.f32 %v2933, %v3257
    %3259 = vmatprep.mubr.bf16.mxu0 0
    %3260 = vmatmul.mubr.bf16.gmra.mrb[0].mxu0 %v2976
    %v3261 = vpop.f32.mrb[0].mxu0
    %v3262 = vadd.f32 %v2938, %v3261
    %v3263 = vpop.f32.mrb[0].mxu0
    %v3264 = vadd.f32 %v2938, %v3263
    %v3265 = vpop.f32.mrb[0].mxu0
    %v3266 = vadd.f32 %v2943, %v3265
    %v3267 = vpop.f32.mrb[0].mxu0
    %v3268 = vadd.f32 %v2943, %v3267
    %3269 = vdwg.mxu0
    %3270 = vmatprep.subr.bf16.mxu0 %v2770
    %3271 = vmatpush1.bf16.msra.mxu0 %v2769
    %3272 = vmatprep.subr.bf16.mxu0 %v2802
    %3273 = vmatpush1.bf16.msra.mxu0 %v2801
    %3274 = vmatprep.subr.bf16.mxu0 %v2834
    %3275 = vmatpush1.bf16.msra.mxu0 %v2833
    %3276 = vmatprep.subr.bf16.mxu0 %v2866
    %3277 = vmatpush1.bf16.msra.mxu0 %v2865
    %3278 = vmatprep.subr.bf16.mxu0 0
    %3279 = vmatpush1.bf16.msra.mxu0 0
    %3280 = vmatprep.subr.bf16.mxu0 0
    %3281 = vmatpush1.bf16.msra.mxu0 0
    %3282 = vmatprep.subr.bf16.mxu0 0
    %3283 = vmatpush1.bf16.msra.mxu0 0
    %3284 = vmatprep.subr.bf16.mxu0 0
    %3285 = vmatpush1.bf16.msra.mxu0 0
    %3286 = vmatprep.subr.bf16.mxu0 0
    %3287 = vmatpush1.bf16.msra.mxu0 0
    %3288 = vmatprep.subr.bf16.mxu0 0
    %3289 = vmatpush1.bf16.msra.mxu0 0
    %3290 = vmatprep.subr.bf16.mxu0 0
    %3291 = vmatpush1.bf16.msra.mxu0 0
    %3292 = vmatprep.subr.bf16.mxu0 0
    %3293 = vmatpush1.bf16.msra.mxu0 0
    %3294 = vmatprep.subr.bf16.mxu0 0
    %3295 = vmatpush1.bf16.msra.mxu0 0
    %3296 = vmatprep.subr.bf16.mxu0 0
    %3297 = vmatpush1.bf16.msra.mxu0 0
    %3298 = vmatprep.subr.bf16.mxu0 0
    %3299 = vmatpush1.bf16.msra.mxu0 0
    %3300 = vmatprep.subr.bf16.mxu0 0
    %3301 = vmatpush1.bf16.msra.mxu0 0
    %3302 = vmatprep.mubr.bf16.mxu0 0
    %3303 = vmatmul.mubr.bf16.gmra.mrb[0].mxu0 %v2967
    %v3304 = vpop.f32.mrb[0].mxu0
    %v3305 = vadd.f32 %v2908, %v3304
    %v3306 = vpop.f32.mrb[0].mxu0
    %v3307 = vadd.f32 %v2908, %v3306
    %v3308 = vpop.f32.mrb[0].mxu0
    %v3309 = vadd.f32 %v2913, %v3308
    %v3310 = vpop.f32.mrb[0].mxu0
    %v3311 = vadd.f32 %v2913, %v3310
    %3312 = vmatprep.mubr.bf16.mxu0 0
    %3313 = vmatmul.mubr.bf16.gmra.mrb[0].mxu0 %v2970
    %v3314 = vpop.f32.mrb[0].mxu0
    %v3315 = vadd.f32 %v2918, %v3314
    %v3316 = vpop.f32.mrb[0].mxu0
    %v3317 = vadd.f32 %v2918, %v3316
    %v3318 = vpop.f32.mrb[0].mxu0
    %v3319 = vadd.f32 %v2923, %v3318
    %v3320 = vpop.f32.mrb[0].mxu0
    %v3321 = vadd.f32 %v2923, %v3320
    %3322 = vmatprep.mubr.bf16.mxu0 0
    %3323 = vmatmul.mubr.bf16.gmra.mrb[0].mxu0 %v2973
    %v3324 = vpop.f32.mrb[0].mxu0
    %v3325 = vadd.f32 %v2928, %v3324
    %v3326 = vpop.f32.mrb[0].mxu0
    %v3327 = vadd.f32 %v2928, %v3326
    %v3328 = vpop.f32.mrb[0].mxu0
    %v3329 = vadd.f32 %v2933, %v3328
    %v3330 = vpop.f32.mrb[0].mxu0
    %v3331 = vadd.f32 %v2933, %v3330
    %3332 = vmatprep.mubr.bf16.mxu0 0
    %3333 = vmatmul.mubr.bf16.gmra.mrb[0].mxu0 %v2976
    %v3334 = vpop.f32.mrb[0].mxu0
    %v3335 = vadd.f32 %v2938, %v3334
    %v3336 = vpop.f32.mrb[0].mxu0
    %v3337 = vadd.f32 %v2938, %v3336
    %v3338 = vpop.f32.mrb[0].mxu0
    %v3339 = vadd.f32 %v2943, %v3338
    %v3340 = vpop.f32.mrb[0].mxu0
    %v3341 = vadd.f32 %v2943, %v3340
    %3342 = vdwg.mxu0
    %3343 = vmatprep.subr.bf16.mxu0 %v2772
    %3344 = vmatpush1.bf16.msra.mxu0 %v2771
    %3345 = vmatprep.subr.bf16.mxu0 %v2804
    %3346 = vmatpush1.bf16.msra.mxu0 %v2803
    %3347 = vmatprep.subr.bf16.mxu0 %v2836
    %3348 = vmatpush1.bf16.msra.mxu0 %v2835
    %3349 = vmatprep.subr.bf16.mxu0 %v2868
    %3350 = vmatpush1.bf16.msra.mxu0 %v2867
    %3351 = vmatprep.subr.bf16.mxu0 0
    %3352 = vmatpush1.bf16.msra.mxu0 0
    %3353 = vmatprep.subr.bf16.mxu0 0
    %3354 = vmatpush1.bf16.msra.mxu0 0
    %3355 = vmatprep.subr.bf16.mxu0 0
    %3356 = vmatpush1.bf16.msra.mxu0 0
    %3357 = vmatprep.subr.bf16.mxu0 0
    %3358 = vmatpush1.bf16.msra.mxu0 0
    %3359 = vmatprep.subr.bf16.mxu0 0
    %3360 = vmatpush1.bf16.msra.mxu0 0
    %3361 = vmatprep.subr.bf16.mxu0 0
    %3362 = vmatpush1.bf16.msra.mxu0 0
    %3363 = vmatprep.subr.bf16.mxu0 0
    %3364 = vmatpush1.bf16.msra.mxu0 0
    %3365 = vmatprep.subr.bf16.mxu0 0
    %3366 = vmatpush1.bf16.msra.mxu0 0
    %3367 = vmatprep.subr.bf16.mxu0 0
    %3368 = vmatpush1.bf16.msra.mxu0 0
    %3369 = vmatprep.subr.bf16.mxu0 0
    %3370 = vmatpush1.bf16.msra.mxu0 0
    %3371 = vmatprep.subr.bf16.mxu0 0
    %3372 = vmatpush1.bf16.msra.mxu0 0
    %3373 = vmatprep.subr.bf16.mxu0 0
    %3374 = vmatpush1.bf16.msra.mxu0 0
    %3375 = vmatprep.mubr.bf16.mxu0 0
    %3376 = vmatmul.mubr.bf16.gmra.mrb[0].mxu0 %v2967
    %v3377 = vpop.f32.mrb[0].mxu0
    %v3378 = vadd.f32 %v2908, %v3377
    %v3379 = vpop.f32.mrb[0].mxu0
    %v3380 = vadd.f32 %v2908, %v3379
    %v3381 = vpop.f32.mrb[0].mxu0
    %v3382 = vadd.f32 %v2913, %v3381
    %v3383 = vpop.f32.mrb[0].mxu0
    %v3384 = vadd.f32 %v2913, %v3383
    %3385 = vmatprep.mubr.bf16.mxu0 0
    %3386 = vmatmul.mubr.bf16.gmra.mrb[0].mxu0 %v2970
    %v3387 = vpop.f32.mrb[0].mxu0
    %v3388 = vadd.f32 %v2918, %v3387
    %v3389 = vpop.f32.mrb[0].mxu0
    %v3390 = vadd.f32 %v2918, %v3389
    %v3391 = vpop.f32.mrb[0].mxu0
    %v3392 = vadd.f32 %v2923, %v3391
    %v3393 = vpop.f32.mrb[0].mxu0
    %v3394 = vadd.f32 %v2923, %v3393
    %3395 = vmatprep.mubr.bf16.mxu0 0
    %3396 = vmatmul.mubr.bf16.gmra.mrb[0].mxu0 %v2973
    %v3397 = vpop.f32.mrb[0].mxu0
    %v3398 = vadd.f32 %v2928, %v3397
    %v3399 = vpop.f32.mrb[0].mxu0
    %v3400 = vadd.f32 %v2928, %v3399
    %v3401 = vpop.f32.mrb[0].mxu0
    %v3402 = vadd.f32 %v2933, %v3401
    %v3403 = vpop.f32.mrb[0].mxu0
    %v3404 = vadd.f32 %v2933, %v3403
    %3405 = vmatprep.mubr.bf16.mxu0 0
    %3406 = vmatmul.mubr.bf16.gmra.mrb[0].mxu0 %v2976
    %v3407 = vpop.f32.mrb[0].mxu0
    %v3408 = vadd.f32 %v2938, %v3407
    %v3409 = vpop.f32.mrb[0].mxu0
    %v3410 = vadd.f32 %v2938, %v3409
    %v3411 = vpop.f32.mrb[0].mxu0
    %v3412 = vadd.f32 %v2943, %v3411
    %v3413 = vpop.f32.mrb[0].mxu0
    %v3414 = vadd.f32 %v2943, %v3413
    %3415 = vdwg.mxu0
    %3416 = vmatprep.subr.bf16.mxu0 %v2774
    %3417 = vmatpush1.bf16.msra.mxu0 %v2773
    %3418 = vmatprep.subr.bf16.mxu0 %v2806
    %3419 = vmatpush1.bf16.msra.mxu0 %v2805
    %3420 = vmatprep.subr.bf16.mxu0 %v2838
    %3421 = vmatpush1.bf16.msra.mxu0 %v2837
    %3422 = vmatprep.subr.bf16.mxu0 %v2870
    %3423 = vmatpush1.bf16.msra.mxu0 %v2869
    %3424 = vmatprep.subr.bf16.mxu0 0
    %3425 = vmatpush1.bf16.msra.mxu0 0
    %3426 = vmatprep.subr.bf16.mxu0 0
    %3427 = vmatpush1.bf16.msra.mxu0 0
    %3428 = vmatprep.subr.bf16.mxu0 0
    %3429 = vmatpush1.bf16.msra.mxu0 0
    %3430 = vmatprep.subr.bf16.mxu0 0
    %3431 = vmatpush1.bf16.msra.mxu0 0
    %3432 = vmatprep.subr.bf16.mxu0 0
    %3433 = vmatpush1.bf16.msra.mxu0 0
    %3434 = vmatprep.subr.bf16.mxu0 0
    %3435 = vmatpush1.bf16.msra.mxu0 0
    %3436 = vmatprep.subr.bf16.mxu0 0
    %3437 = vmatpush1.bf16.msra.mxu0 0
    %3438 = vmatprep.subr.bf16.mxu0 0
    %3439 = vmatpush1.bf16.msra.mxu0 0
    %3440 = vmatprep.subr.bf16.mxu0 0
    %3441 = vmatpush1.bf16.msra.mxu0 0
    %3442 = vmatprep.subr.bf16.mxu0 0
    %3443 = vmatpush1.bf16.msra.mxu0 0
    %3444 = vmatprep.subr.bf16.mxu0 0
    %3445 = vmatpush1.bf16.msra.mxu0 0
    %3446 = vmatprep.subr.bf16.mxu0 0
    %3447 = vmatpush1.bf16.msra.mxu0 0
    %3448 = vmatprep.mubr.bf16.mxu0 0
    %3449 = vmatmul.mubr.bf16.gmra.mrb[0].mxu0 %v2967
    %v3450 = vpop.f32.mrb[0].mxu0
    %v3451 = vadd.f32 %v2908, %v3450
    %v3452 = vpop.f32.mrb[0].mxu0
    %v3453 = vadd.f32 %v2908, %v3452
    %v3454 = vpop.f32.mrb[0].mxu0
    %v3455 = vadd.f32 %v2913, %v3454
    %v3456 = vpop.f32.mrb[0].mxu0
    %v3457 = vadd.f32 %v2913, %v3456
    %3458 = vmatprep.mubr.bf16.mxu0 0
    %3459 = vmatmul.mubr.bf16.gmra.mrb[0].mxu0 %v2970
    %v3460 = vpop.f32.mrb[0].mxu0
    %v3461 = vadd.f32 %v2918, %v3460
    %v3462 = vpop.f32.mrb[0].mxu0
    %v3463 = vadd.f32 %v2918, %v3462
    %v3464 = vpop.f32.mrb[0].mxu0
    %v3465 = vadd.f32 %v2923, %v3464
    %v3466 = vpop.f32.mrb[0].mxu0
    %v3467 = vadd.f32 %v2923, %v3466
    %3468 = vmatprep.mubr.bf16.mxu0 0
    %3469 = vmatmul.mubr.bf16.gmra.mrb[0].mxu0 %v2973
    %v3470 = vpop.f32.mrb[0].mxu0
    %v3471 = vadd.f32 %v2928, %v3470
    %v3472 = vpop.f32.mrb[0].mxu0
    %v3473 = vadd.f32 %v2928, %v3472
    %v3474 = vpop.f32.mrb[0].mxu0
    %v3475 = vadd.f32 %v2933, %v3474
    %v3476 = vpop.f32.mrb[0].mxu0
    %v3477 = vadd.f32 %v2933, %v3476
    %3478 = vmatprep.mubr.bf16.mxu0 0
    %3479 = vmatmul.mubr.bf16.gmra.mrb[0].mxu0 %v2976
    %v3480 = vpop.f32.mrb[0].mxu0
    %v3481 = vadd.f32 %v2938, %v3480
    %v3482 = vpop.f32.mrb[0].mxu0
    %v3483 = vadd.f32 %v2938, %v3482
    %v3484 = vpop.f32.mrb[0].mxu0
    %v3485 = vadd.f32 %v2943, %v3484
    %v3486 = vpop.f32.mrb[0].mxu0
    %v3487 = vadd.f32 %v2943, %v3486
    %3488 = vdwg.mxu0
    %3489 = vmatprep.subr.bf16.mxu0 %v2776
    %3490 = vmatpush1.bf16.msra.mxu0 %v2775
    %3491 = vmatprep.subr.bf16.mxu0 %v2808
    %3492 = vmatpush1.bf16.msra.mxu0 %v2807
    %3493 = vmatprep.subr.bf16.mxu0 %v2840
    %3494 = vmatpush1.bf16.msra.mxu0 %v2839
    %3495 = vmatprep.subr.bf16.mxu0 %v2872
    %3496 = vmatpush1.bf16.msra.mxu0 %v2871
    %3497 = vmatprep.subr.bf16.mxu0 0
    %3498 = vmatpush1.bf16.msra.mxu0 0
    %3499 = vmatprep.subr.bf16.mxu0 0
    %3500 = vmatpush1.bf16.msra.mxu0 0
    %3501 = vmatprep.subr.bf16.mxu0 0
    %3502 = vmatpush1.bf16.msra.mxu0 0
    %3503 = vmatprep.subr.bf16.mxu0 0
    %3504 = vmatpush1.bf16.msra.mxu0 0
    %3505 = vmatprep.subr.bf16.mxu0 0
    %3506 = vmatpush1.bf16.msra.mxu0 0
    %3507 = vmatprep.subr.bf16.mxu0 0
    %3508 = vmatpush1.bf16.msra.mxu0 0
    %3509 = vmatprep.subr.bf16.mxu0 0
    %3510 = vmatpush1.bf16.msra.mxu0 0
    %3511 = vmatprep.subr.bf16.mxu0 0
    %3512 = vmatpush1.bf16.msra.mxu0 0
    %3513 = vmatprep.subr.bf16.mxu0 0
    %3514 = vmatpush1.bf16.msra.mxu0 0
    %3515 = vmatprep.subr.bf16.mxu0 0
    %3516 = vmatpush1.bf16.msra.mxu0 0
    %3517 = vmatprep.subr.bf16.mxu0 0
    %3518 = vmatpush1.bf16.msra.mxu0 0
    %3519 = vmatprep.subr.bf16.mxu0 0
    %3520 = vmatpush1.bf16.msra.mxu0 0
    %3521 = vmatprep.mubr.bf16.mxu0 0
    %3522 = vmatmul.mubr.bf16.gmra.mrb[0].mxu0 %v2967
    %v3523 = vpop.f32.mrb[0].mxu0
    %v3524 = vadd.f32 %v2908, %v3523
    %v3525 = vpop.f32.mrb[0].mxu0
    %v3526 = vadd.f32 %v2908, %v3525
    %v3527 = vpop.f32.mrb[0].mxu0
    %v3528 = vadd.f32 %v2913, %v3527
    %v3529 = vpop.f32.mrb[0].mxu0
    %v3530 = vadd.f32 %v2913, %v3529
    %3531 = vmatprep.mubr.bf16.mxu0 0
    %3532 = vmatmul.mubr.bf16.gmra.mrb[0].mxu0 %v2970
    %v3533 = vpop.f32.mrb[0].mxu0
    %v3534 = vadd.f32 %v2918, %v3533
    %v3535 = vpop.f32.mrb[0].mxu0
    %v3536 = vadd.f32 %v2918, %v3535
    %v3537 = vpop.f32.mrb[0].mxu0
    %v3538 = vadd.f32 %v2923, %v3537
    %v3539 = vpop.f32.mrb[0].mxu0
    %v3540 = vadd.f32 %v2923, %v3539
    %3541 = vmatprep.mubr.bf16.mxu0 0
    %3542 = vmatmul.mubr.bf16.gmra.mrb[0].mxu0 %v2973
    %v3543 = vpop.f32.mrb[0].mxu0
    %v3544 = vadd.f32 %v2928, %v3543
    %v3545 = vpop.f32.mrb[0].mxu0
    %v3546 = vadd.f32 %v2928, %v3545
    %v3547 = vpop.f32.mrb[0].mxu0
    %v3548 = vadd.f32 %v2933, %v3547
    %v3549 = vpop.f32.mrb[0].mxu0
    %v3550 = vadd.f32 %v2933, %v3549
    %3551 = vmatprep.mubr.bf16.mxu0 0
    %3552 = vmatmul.mubr.bf16.gmra.mrb[0].mxu0 %v2976
    %v3553 = vpop.f32.mrb[0].mxu0
    %v3554 = vadd.f32 %v2938, %v3553
    %v3555 = vpop.f32.mrb[0].mxu0
    %v3556 = vadd.f32 %v2938, %v3555
    %v3557 = vpop.f32.mrb[0].mxu0
    %v3558 = vadd.f32 %v2943, %v3557
    %v3559 = vpop.f32.mrb[0].mxu0
    %v3560 = vadd.f32 %v2943, %v3559
    %3561 = vdwg.mxu0
    %3562 = vmatprep.subr.bf16.mxu0 %v2778
    %3563 = vmatpush1.bf16.msra.mxu0 %v2777
    %3564 = vmatprep.subr.bf16.mxu0 %v2810
    %3565 = vmatpush1.bf16.msra.mxu0 %v2809
    %3566 = vmatprep.subr.bf16.mxu0 %v2842
    %3567 = vmatpush1.bf16.msra.mxu0 %v2841
    %3568 = vmatprep.subr.bf16.mxu0 %v2874
    %3569 = vmatpush1.bf16.msra.mxu0 %v2873
    %3570 = vmatprep.subr.bf16.mxu0 0
    %3571 = vmatpush1.bf16.msra.mxu0 0
    %3572 = vmatprep.subr.bf16.mxu0 0
    %3573 = vmatpush1.bf16.msra.mxu0 0
    %3574 = vmatprep.subr.bf16.mxu0 0
    %3575 = vmatpush1.bf16.msra.mxu0 0
    %3576 = vmatprep.subr.bf16.mxu0 0
    %3577 = vmatpush1.bf16.msra.mxu0 0
    %3578 = vmatprep.subr.bf16.mxu0 0
    %3579 = vmatpush1.bf16.msra.mxu0 0
    %3580 = vmatprep.subr.bf16.mxu0 0
    %3581 = vmatpush1.bf16.msra.mxu0 0
    %3582 = vmatprep.subr.bf16.mxu0 0
    %3583 = vmatpush1.bf16.msra.mxu0 0
    %3584 = vmatprep.subr.bf16.mxu0 0
    %3585 = vmatpush1.bf16.msra.mxu0 0
    %3586 = vmatprep.subr.bf16.mxu0 0
    %3587 = vmatpush1.bf16.msra.mxu0 0
    %3588 = vmatprep.subr.bf16.mxu0 0
    %3589 = vmatpush1.bf16.msra.mxu0 0
    %3590 = vmatprep.subr.bf16.mxu0 0
    %3591 = vmatpush1.bf16.msra.mxu0 0
    %3592 = vmatprep.subr.bf16.mxu0 0
    %3593 = vmatpush1.bf16.msra.mxu0 0
    %3594 = vmatprep.mubr.bf16.mxu0 0
    %3595 = vmatmul.mubr.bf16.gmra.mrb[0].mxu0 %v2967
    %v3596 = vpop.f32.mrb[0].mxu0
    %v3597 = vadd.f32 %v2908, %v3596
    %v3598 = vpop.f32.mrb[0].mxu0
    %v3599 = vadd.f32 %v2908, %v3598
    %v3600 = vpop.f32.mrb[0].mxu0
    %v3601 = vadd.f32 %v2913, %v3600
    %v3602 = vpop.f32.mrb[0].mxu0
    %v3603 = vadd.f32 %v2913, %v3602
    %3604 = vmatprep.mubr.bf16.mxu0 0
    %3605 = vmatmul.mubr.bf16.gmra.mrb[0].mxu0 %v2970
    %v3606 = vpop.f32.mrb[0].mxu0
    %v3607 = vadd.f32 %v2918, %v3606
    %v3608 = vpop.f32.mrb[0].mxu0
    %v3609 = vadd.f32 %v2918, %v3608
    %v3610 = vpop.f32.mrb[0].mxu0
    %v3611 = vadd.f32 %v2923, %v3610
    %v3612 = vpop.f32.mrb[0].mxu0
    %v3613 = vadd.f32 %v2923, %v3612
    %3614 = vmatprep.mubr.bf16.mxu0 0
    %3615 = vmatmul.mubr.bf16.gmra.mrb[0].mxu0 %v2973
    %v3616 = vpop.f32.mrb[0].mxu0
    %v3617 = vadd.f32 %v2928, %v3616
    %v3618 = vpop.f32.mrb[0].mxu0
    %v3619 = vadd.f32 %v2928, %v3618
    %v3620 = vpop.f32.mrb[0].mxu0
    %v3621 = vadd.f32 %v2933, %v3620
    %v3622 = vpop.f32.mrb[0].mxu0
    %v3623 = vadd.f32 %v2933, %v3622
    %3624 = vmatprep.mubr.bf16.mxu0 0
    %3625 = vmatmul.mubr.bf16.gmra.mrb[0].mxu0 %v2976
    %v3626 = vpop.f32.mrb[0].mxu0
    %v3627 = vadd.f32 %v2938, %v3626
    %v3628 = vpop.f32.mrb[0].mxu0
    %v3629 = vadd.f32 %v2938, %v3628
    %v3630 = vpop.f32.mrb[0].mxu0
    %v3631 = vadd.f32 %v2943, %v3630
    %v3632 = vpop.f32.mrb[0].mxu0
    %v3633 = vadd.f32 %v2943, %v3632
    %3634 = vdwg.mxu0
    %3635 = vmatprep.subr.bf16.mxu0 %v2780
    %3636 = vmatpush1.bf16.msra.mxu0 %v2779
    %3637 = vmatprep.subr.bf16.mxu0 %v2812
    %3638 = vmatpush1.bf16.msra.mxu0 %v2811
    %3639 = vmatprep.subr.bf16.mxu0 %v2844
    %3640 = vmatpush1.bf16.msra.mxu0 %v2843
    %3641 = vmatprep.subr.bf16.mxu0 %v2876
    %3642 = vmatpush1.bf16.msra.mxu0 %v2875
    %3643 = vmatprep.subr.bf16.mxu0 0
    %3644 = vmatpush1.bf16.msra.mxu0 0
    %3645 = vmatprep.subr.bf16.mxu0 0
    %3646 = vmatpush1.bf16.msra.mxu0 0
    %3647 = vmatprep.subr.bf16.mxu0 0
    %3648 = vmatpush1.bf16.msra.mxu0 0
    %3649 = vmatprep.subr.bf16.mxu0 0
    %3650 = vmatpush1.bf16.msra.mxu0 0
    %3651 = vmatprep.subr.bf16.mxu0 0
    %3652 = vmatpush1.bf16.msra.mxu0 0
    %3653 = vmatprep.subr.bf16.mxu0 0
    %3654 = vmatpush1.bf16.msra.mxu0 0
    %3655 = vmatprep.subr.bf16.mxu0 0
    %3656 = vmatpush1.bf16.msra.mxu0 0
    %3657 = vmatprep.subr.bf16.mxu0 0
    %3658 = vmatpush1.bf16.msra.mxu0 0
    %3659 = vmatprep.subr.bf16.mxu0 0
    %3660 = vmatpush1.bf16.msra.mxu0 0
    %3661 = vmatprep.subr.bf16.mxu0 0
    %3662 = vmatpush1.bf16.msra.mxu0 0
    %3663 = vmatprep.subr.bf16.mxu0 0
    %3664 = vmatpush1.bf16.msra.mxu0 0
    %3665 = vmatprep.subr.bf16.mxu0 0
    %3666 = vmatpush1.bf16.msra.mxu0 0
    %3667 = vmatprep.mubr.bf16.mxu0 0
    %3668 = vmatmul.mubr.bf16.gmra.mrb[0].mxu0 %v2967
    %v3669 = vpop.f32.mrb[0].mxu0
    %v3670 = vadd.f32 %v2908, %v3669
    %v3671 = vpop.f32.mrb[0].mxu0
    %v3672 = vadd.f32 %v2908, %v3671
    %v3673 = vpop.f32.mrb[0].mxu0
    %v3674 = vadd.f32 %v2913, %v3673
    %v3675 = vpop.f32.mrb[0].mxu0
    %v3676 = vadd.f32 %v2913, %v3675
    %3677 = vmatprep.mubr.bf16.mxu0 0
    %3678 = vmatmul.mubr.bf16.gmra.mrb[0].mxu0 %v2970
    %v3679 = vpop.f32.mrb[0].mxu0
    %v3680 = vadd.f32 %v2918, %v3679
    %v3681 = vpop.f32.mrb[0].mxu0
    %v3682 = vadd.f32 %v2918, %v3681
    %v3683 = vpop.f32.mrb[0].mxu0
    %v3684 = vadd.f32 %v2923, %v3683
    %v3685 = vpop.f32.mrb[0].mxu0
    %v3686 = vadd.f32 %v2923, %v3685
    %3687 = vmatprep.mubr.bf16.mxu0 0
    %3688 = vmatmul.mubr.bf16.gmra.mrb[0].mxu0 %v2973
    %v3689 = vpop.f32.mrb[0].mxu0
    %v3690 = vadd.f32 %v2928, %v3689
    %v3691 = vpop.f32.mrb[0].mxu0
    %v3692 = vadd.f32 %v2928, %v3691
    %v3693 = vpop.f32.mrb[0].mxu0
    %v3694 = vadd.f32 %v2933, %v3693
    %v3695 = vpop.f32.mrb[0].mxu0
    %v3696 = vadd.f32 %v2933, %v3695
    %3697 = vmatprep.mubr.bf16.mxu0 0
    %3698 = vmatmul.mubr.bf16.gmra.mrb[0].mxu0 %v2976
    %v3699 = vpop.f32.mrb[0].mxu0
    %v3700 = vadd.f32 %v2938, %v3699
    %v3701 = vpop.f32.mrb[0].mxu0
    %v3702 = vadd.f32 %v2938, %v3701
    %v3703 = vpop.f32.mrb[0].mxu0
    %v3704 = vadd.f32 %v2943, %v3703
    %v3705 = vpop.f32.mrb[0].mxu0
    %v3706 = vadd.f32 %v2943, %v3705
    %3707 = vdwg.mxu0
    %3708 = vmatprep.subr.bf16.mxu0 %v2782
    %3709 = vmatpush1.bf16.msra.mxu0 %v2781
    %3710 = vmatprep.subr.bf16.mxu0 %v2814
    %3711 = vmatpush1.bf16.msra.mxu0 %v2813
    %3712 = vmatprep.subr.bf16.mxu0 %v2846
    %3713 = vmatpush1.bf16.msra.mxu0 %v2845
    %3714 = vmatprep.subr.bf16.mxu0 %v2878
    %3715 = vmatpush1.bf16.msra.mxu0 %v2877
    %3716 = vmatprep.subr.bf16.mxu0 0
    %3717 = vmatpush1.bf16.msra.mxu0 0
    %3718 = vmatprep.subr.bf16.mxu0 0
    %3719 = vmatpush1.bf16.msra.mxu0 0
    %3720 = vmatprep.subr.bf16.mxu0 0
    %3721 = vmatpush1.bf16.msra.mxu0 0
    %3722 = vmatprep.subr.bf16.mxu0 0
    %3723 = vmatpush1.bf16.msra.mxu0 0
    %3724 = vmatprep.subr.bf16.mxu0 0
    %3725 = vmatpush1.bf16.msra.mxu0 0
    %3726 = vmatprep.subr.bf16.mxu0 0
    %3727 = vmatpush1.bf16.msra.mxu0 0
    %3728 = vmatprep.subr.bf16.mxu0 0
    %3729 = vmatpush1.bf16.msra.mxu0 0
    %3730 = vmatprep.subr.bf16.mxu0 0
    %3731 = vmatpush1.bf16.msra.mxu0 0
    %3732 = vmatprep.subr.bf16.mxu0 0
    %3733 = vmatpush1.bf16.msra.mxu0 0
    %3734 = vmatprep.subr.bf16.mxu0 0
    %3735 = vmatpush1.bf16.msra.mxu0 0
    %3736 = vmatprep.subr.bf16.mxu0 0
    %3737 = vmatpush1.bf16.msra.mxu0 0
    %3738 = vmatprep.subr.bf16.mxu0 0
    %3739 = vmatpush1.bf16.msra.mxu0 0
    %3740 = vmatprep.mubr.bf16.mxu0 0
    %3741 = vmatmul.mubr.bf16.gmra.mrb[0].mxu0 %v2967
    %v3742 = vpop.f32.mrb[0].mxu0
    %v3743 = vadd.f32 %v2908, %v3742
    %v3744 = vpop.f32.mrb[0].mxu0
    %v3745 = vadd.f32 %v2908, %v3744
    %v3746 = vpop.f32.mrb[0].mxu0
    %v3747 = vadd.f32 %v2913, %v3746
    %v3748 = vpop.f32.mrb[0].mxu0
    %v3749 = vadd.f32 %v2913, %v3748
    %3750 = vmatprep.mubr.bf16.mxu0 0
    %3751 = vmatmul.mubr.bf16.gmra.mrb[0].mxu0 %v2970
    %v3752 = vpop.f32.mrb[0].mxu0
    %v3753 = vadd.f32 %v2918, %v3752
    %v3754 = vpop.f32.mrb[0].mxu0
    %v3755 = vadd.f32 %v2918, %v3754
    %v3756 = vpop.f32.mrb[0].mxu0
    %v3757 = vadd.f32 %v2923, %v3756
    %v3758 = vpop.f32.mrb[0].mxu0
    %v3759 = vadd.f32 %v2923, %v3758
    %3760 = vmatprep.mubr.bf16.mxu0 0
    %3761 = vmatmul.mubr.bf16.gmra.mrb[0].mxu0 %v2973
    %v3762 = vpop.f32.mrb[0].mxu0
    %v3763 = vadd.f32 %v2928, %v3762
    %v3764 = vpop.f32.mrb[0].mxu0
    %v3765 = vadd.f32 %v2928, %v3764
    %v3766 = vpop.f32.mrb[0].mxu0
    %v3767 = vadd.f32 %v2933, %v3766
    %v3768 = vpop.f32.mrb[0].mxu0
    %v3769 = vadd.f32 %v2933, %v3768
    %3770 = vmatprep.mubr.bf16.mxu0 0
    %3771 = vmatmul.mubr.bf16.gmra.mrb[0].mxu0 %v2976
    %v3772 = vpop.f32.mrb[0].mxu0
    %v3773 = vadd.f32 %v2938, %v3772
    %v3774 = vpop.f32.mrb[0].mxu0
    %v3775 = vadd.f32 %v2938, %v3774
    %v3776 = vpop.f32.mrb[0].mxu0
    %v3777 = vadd.f32 %v2943, %v3776
    %v3778 = vpop.f32.mrb[0].mxu0
    %v3779 = vadd.f32 %v2943, %v3778
    %3780 = vdwg.mxu0
    %3781 = vmatprep.subr.bf16.mxu0 %v2784
    %3782 = vmatpush1.bf16.msra.mxu0 %v2783
    %3783 = vmatprep.subr.bf16.mxu0 %v2816
    %3784 = vmatpush1.bf16.msra.mxu0 %v2815
    %3785 = vmatprep.subr.bf16.mxu0 %v2848
    %3786 = vmatpush1.bf16.msra.mxu0 %v2847
    %3787 = vmatprep.subr.bf16.mxu0 %v2880
    %3788 = vmatpush1.bf16.msra.mxu0 %v2879
    %3789 = vmatprep.subr.bf16.mxu0 0
    %3790 = vmatpush1.bf16.msra.mxu0 0
    %3791 = vmatprep.subr.bf16.mxu0 0
    %3792 = vmatpush1.bf16.msra.mxu0 0
    %3793 = vmatprep.subr.bf16.mxu0 0
    %3794 = vmatpush1.bf16.msra.mxu0 0
    %3795 = vmatprep.subr.bf16.mxu0 0
    %3796 = vmatpush1.bf16.msra.mxu0 0
    %3797 = vmatprep.subr.bf16.mxu0 0
    %3798 = vmatpush1.bf16.msra.mxu0 0
    %3799 = vmatprep.subr.bf16.mxu0 0
    %3800 = vmatpush1.bf16.msra.mxu0 0
    %3801 = vmatprep.subr.bf16.mxu0 0
    %3802 = vmatpush1.bf16.msra.mxu0 0
    %3803 = vmatprep.subr.bf16.mxu0 0
    %3804 = vmatpush1.bf16.msra.mxu0 0
    %3805 = vmatprep.subr.bf16.mxu0 0
    %3806 = vmatpush1.bf16.msra.mxu0 0
    %3807 = vmatprep.subr.bf16.mxu0 0
    %3808 = vmatpush1.bf16.msra.mxu0 0
    %3809 = vmatprep.subr.bf16.mxu0 0
    %3810 = vmatpush1.bf16.msra.mxu0 0
    %3811 = vmatprep.subr.bf16.mxu0 0
    %3812 = vmatpush1.bf16.msra.mxu0 0
    %3813 = vmatprep.mubr.bf16.mxu0 0
    %3814 = vmatmul.mubr.bf16.gmra.mrb[0].mxu0 %v2967
    %v3815 = vpop.f32.mrb[0].mxu0
    %v3816 = vadd.f32 %v2908, %v3815
    %v3817 = vpop.f32.mrb[0].mxu0
    %v3818 = vadd.f32 %v2908, %v3817
    %v3819 = vpop.f32.mrb[0].mxu0
    %v3820 = vadd.f32 %v2913, %v3819
    %v3821 = vpop.f32.mrb[0].mxu0
    %v3822 = vadd.f32 %v2913, %v3821
    %3823 = vmatprep.mubr.bf16.mxu0 0
    %3824 = vmatmul.mubr.bf16.gmra.mrb[0].mxu0 %v2970
    %v3825 = vpop.f32.mrb[0].mxu0
    %v3826 = vadd.f32 %v2918, %v3825
    %v3827 = vpop.f32.mrb[0].mxu0
    %v3828 = vadd.f32 %v2918, %v3827
    %v3829 = vpop.f32.mrb[0].mxu0
    %v3830 = vadd.f32 %v2923, %v3829
    %v3831 = vpop.f32.mrb[0].mxu0
    %v3832 = vadd.f32 %v2923, %v3831
    %3833 = vmatprep.mubr.bf16.mxu0 0
    %3834 = vmatmul.mubr.bf16.gmra.mrb[0].mxu0 %v2973
    %v3835 = vpop.f32.mrb[0].mxu0
    %v3836 = vadd.f32 %v2928, %v3835
    %v3837 = vpop.f32.mrb[0].mxu0
    %v3838 = vadd.f32 %v2928, %v3837
    %v3839 = vpop.f32.mrb[0].mxu0
    %v3840 = vadd.f32 %v2933, %v3839
    %v3841 = vpop.f32.mrb[0].mxu0
    %v3842 = vadd.f32 %v2933, %v3841
    %3843 = vmatprep.mubr.bf16.mxu0 0
    %3844 = vmatmul.mubr.bf16.gmra.mrb[0].mxu0 %v2976
    %v3845 = vpop.f32.mrb[0].mxu0
    %v3846 = vadd.f32 %v2938, %v3845
    %v3847 = vpop.f32.mrb[0].mxu0
    %v3848 = vadd.f32 %v2938, %v3847
    %v3849 = vpop.f32.mrb[0].mxu0
    %v3850 = vadd.f32 %v2943, %v3849
    %v3851 = vpop.f32.mrb[0].mxu0
    %v3852 = vadd.f32 %v2943, %v3851
    %3853 = vdwg.mxu0
    %3854 = vmatprep.subr.bf16.mxu0 %v2786
    %3855 = vmatpush1.bf16.msra.mxu0 %v2785
    %3856 = vmatprep.subr.bf16.mxu0 %v2818
    %3857 = vmatpush1.bf16.msra.mxu0 %v2817
    %3858 = vmatprep.subr.bf16.mxu0 %v2850
    %3859 = vmatpush1.bf16.msra.mxu0 %v2849
    %3860 = vmatprep.subr.bf16.mxu0 %v2882
    %3861 = vmatpush1.bf16.msra.mxu0 %v2881
    %3862 = vmatprep.subr.bf16.mxu0 0
    %3863 = vmatpush1.bf16.msra.mxu0 0
    %3864 = vmatprep.subr.bf16.mxu0 0
    %3865 = vmatpush1.bf16.msra.mxu0 0
    %3866 = vmatprep.subr.bf16.mxu0 0
    %3867 = vmatpush1.bf16.msra.mxu0 0
    %3868 = vmatprep.subr.bf16.mxu0 0
    %3869 = vmatpush1.bf16.msra.mxu0 0
    %3870 = vmatprep.subr.bf16.mxu0 0
    %3871 = vmatpush1.bf16.msra.mxu0 0
    %3872 = vmatprep.subr.bf16.mxu0 0
    %3873 = vmatpush1.bf16.msra.mxu0 0
    %3874 = vmatprep.subr.bf16.mxu0 0
    %3875 = vmatpush1.bf16.msra.mxu0 0
    %3876 = vmatprep.subr.bf16.mxu0 0
    %3877 = vmatpush1.bf16.msra.mxu0 0
    %3878 = vmatprep.subr.bf16.mxu0 0
    %3879 = vmatpush1.bf16.msra.mxu0 0
    %3880 = vmatprep.subr.bf16.mxu0 0
    %3881 = vmatpush1.bf16.msra.mxu0 0
    %3882 = vmatprep.subr.bf16.mxu0 0
    %3883 = vmatpush1.bf16.msra.mxu0 0
    %3884 = vmatprep.subr.bf16.mxu0 0
    %3885 = vmatpush1.bf16.msra.mxu0 0
    %3886 = vmatprep.mubr.bf16.mxu0 0
    %3887 = vmatmul.mubr.bf16.gmra.mrb[0].mxu0 %v2967
    %v3888 = vpop.f32.mrb[0].mxu0
    %v3889 = vadd.f32 %v2908, %v3888
    %v3890 = vpop.f32.mrb[0].mxu0
    %v3891 = vadd.f32 %v2908, %v3890
    %v3892 = vpop.f32.mrb[0].mxu0
    %v3893 = vadd.f32 %v2913, %v3892
    %v3894 = vpop.f32.mrb[0].mxu0
    %v3895 = vadd.f32 %v2913, %v3894
    %3896 = vmatprep.mubr.bf16.mxu0 0
    %3897 = vmatmul.mubr.bf16.gmra.mrb[0].mxu0 %v2970
    %v3898 = vpop.f32.mrb[0].mxu0
    %v3899 = vadd.f32 %v2918, %v3898
    %v3900 = vpop.f32.mrb[0].mxu0
    %v3901 = vadd.f32 %v2918, %v3900
    %v3902 = vpop.f32.mrb[0].mxu0
    %v3903 = vadd.f32 %v2923, %v3902
    %v3904 = vpop.f32.mrb[0].mxu0
    %v3905 = vadd.f32 %v2923, %v3904
    %3906 = vmatprep.mubr.bf16.mxu0 0
    %3907 = vmatmul.mubr.bf16.gmra.mrb[0].mxu0 %v2973
    %v3908 = vpop.f32.mrb[0].mxu0
    %v3909 = vadd.f32 %v2928, %v3908
    %v3910 = vpop.f32.mrb[0].mxu0
    %v3911 = vadd.f32 %v2928, %v3910
    %v3912 = vpop.f32.mrb[0].mxu0
    %v3913 = vadd.f32 %v2933, %v3912
    %v3914 = vpop.f32.mrb[0].mxu0
    %v3915 = vadd.f32 %v2933, %v3914
    %3916 = vmatprep.mubr.bf16.mxu0 0
    %3917 = vmatmul.mubr.bf16.gmra.mrb[0].mxu0 %v2976
    %v3918 = vpop.f32.mrb[0].mxu0
    %v3919 = vadd.f32 %v2938, %v3918
    %v3920 = vpop.f32.mrb[0].mxu0
    %v3921 = vadd.f32 %v2938, %v3920
    %v3922 = vpop.f32.mrb[0].mxu0
    %v3923 = vadd.f32 %v2943, %v3922
    %v3924 = vpop.f32.mrb[0].mxu0
    %v3925 = vadd.f32 %v2943, %v3924
    %3926 = vdwg.mxu0
    %3927 = vmatprep.subr.bf16.mxu0 %v2788
    %3928 = vmatpush1.bf16.msra.mxu0 %v2787
    %3929 = vmatprep.subr.bf16.mxu0 %v2820
    %3930 = vmatpush1.bf16.msra.mxu0 %v2819
    %3931 = vmatprep.subr.bf16.mxu0 %v2852
    %3932 = vmatpush1.bf16.msra.mxu0 %v2851
    %3933 = vmatprep.subr.bf16.mxu0 %v2884
    %3934 = vmatpush1.bf16.msra.mxu0 %v2883
    %3935 = vmatprep.subr.bf16.mxu0 0
    %3936 = vmatpush1.bf16.msra.mxu0 0
    %3937 = vmatprep.subr.bf16.mxu0 0
    %3938 = vmatpush1.bf16.msra.mxu0 0
    %3939 = vmatprep.subr.bf16.mxu0 0
    %3940 = vmatpush1.bf16.msra.mxu0 0
    %3941 = vmatprep.subr.bf16.mxu0 0
    %3942 = vmatpush1.bf16.msra.mxu0 0
    %3943 = vmatprep.subr.bf16.mxu0 0
    %3944 = vmatpush1.bf16.msra.mxu0 0
    %3945 = vmatprep.subr.bf16.mxu0 0
    %3946 = vmatpush1.bf16.msra.mxu0 0
    %3947 = vmatprep.subr.bf16.mxu0 0
    %3948 = vmatpush1.bf16.msra.mxu0 0
    %3949 = vmatprep.subr.bf16.mxu0 0
    %3950 = vmatpush1.bf16.msra.mxu0 0
    %3951 = vmatprep.subr.bf16.mxu0 0
    %3952 = vmatpush1.bf16.msra.mxu0 0
    %3953 = vmatprep.subr.bf16.mxu0 0
    %3954 = vmatpush1.bf16.msra.mxu0 0
    %3955 = vmatprep.subr.bf16.mxu0 0
    %3956 = vmatpush1.bf16.msra.mxu0 0
    %3957 = vmatprep.subr.bf16.mxu0 0
    %3958 = vmatpush1.bf16.msra.mxu0 0
    %3959 = vmatprep.mubr.bf16.mxu0 0
    %3960 = vmatmul.mubr.bf16.gmra.mrb[0].mxu0 %v2967
    %v3961 = vpop.f32.mrb[0].mxu0
    %v3962 = vadd.f32 %v2908, %v3961
    %v3963 = vpop.f32.mrb[0].mxu0
    %v3964 = vadd.f32 %v2908, %v3963
    %v3965 = vpop.f32.mrb[0].mxu0
    %v3966 = vadd.f32 %v2913, %v3965
    %v3967 = vpop.f32.mrb[0].mxu0
    %v3968 = vadd.f32 %v2913, %v3967
    %3969 = vmatprep.mubr.bf16.mxu0 0
    %3970 = vmatmul.mubr.bf16.gmra.mrb[0].mxu0 %v2970
    %v3971 = vpop.f32.mrb[0].mxu0
    %v3972 = vadd.f32 %v2918, %v3971
    %v3973 = vpop.f32.mrb[0].mxu0
    %v3974 = vadd.f32 %v2918, %v3973
    %v3975 = vpop.f32.mrb[0].mxu0
    %v3976 = vadd.f32 %v2923, %v3975
    %v3977 = vpop.f32.mrb[0].mxu0
    %v3978 = vadd.f32 %v2923, %v3977
    %3979 = vmatprep.mubr.bf16.mxu0 0
    %3980 = vmatmul.mubr.bf16.gmra.mrb[0].mxu0 %v2973
    %v3981 = vpop.f32.mrb[0].mxu0
    %v3982 = vadd.f32 %v2928, %v3981
    %v3983 = vpop.f32.mrb[0].mxu0
    %v3984 = vadd.f32 %v2928, %v3983
    %v3985 = vpop.f32.mrb[0].mxu0
    %v3986 = vadd.f32 %v2933, %v3985
    %v3987 = vpop.f32.mrb[0].mxu0
    %v3988 = vadd.f32 %v2933, %v3987
    %3989 = vmatprep.mubr.bf16.mxu0 0
    %3990 = vmatmul.mubr.bf16.gmra.mrb[0].mxu0 %v2976
    %v3991 = vpop.f32.mrb[0].mxu0
    %v3992 = vadd.f32 %v2938, %v3991
    %v3993 = vpop.f32.mrb[0].mxu0
    %v3994 = vadd.f32 %v2938, %v3993
    %v3995 = vpop.f32.mrb[0].mxu0
    %v3996 = vadd.f32 %v2943, %v3995
    %v3997 = vpop.f32.mrb[0].mxu0
    %v3998 = vadd.f32 %v2943, %v3997
    %3999 = vdwg.mxu0
    %4000 = vmatprep.subr.bf16.mxu0 %v2790
    %4001 = vmatpush1.bf16.msra.mxu0 %v2789
    %4002 = vmatprep.subr.bf16.mxu0 %v2822
    %4003 = vmatpush1.bf16.msra.mxu0 %v2821
    %4004 = vmatprep.subr.bf16.mxu0 %v2854
    %4005 = vmatpush1.bf16.msra.mxu0 %v2853
    %4006 = vmatprep.subr.bf16.mxu0 %v2886
    %4007 = vmatpush1.bf16.msra.mxu0 %v2885
    %4008 = vmatprep.subr.bf16.mxu0 0
    %4009 = vmatpush1.bf16.msra.mxu0 0
    %4010 = vmatprep.subr.bf16.mxu0 0
    %4011 = vmatpush1.bf16.msra.mxu0 0
    %4012 = vmatprep.subr.bf16.mxu0 0
    %4013 = vmatpush1.bf16.msra.mxu0 0
    %4014 = vmatprep.subr.bf16.mxu0 0
    %4015 = vmatpush1.bf16.msra.mxu0 0
    %4016 = vmatprep.subr.bf16.mxu0 0
    %4017 = vmatpush1.bf16.msra.mxu0 0
    %4018 = vmatprep.subr.bf16.mxu0 0
    %4019 = vmatpush1.bf16.msra.mxu0 0
    %4020 = vmatprep.subr.bf16.mxu0 0
    %4021 = vmatpush1.bf16.msra.mxu0 0
    %4022 = vmatprep.subr.bf16.mxu0 0
    %4023 = vmatpush1.bf16.msra.mxu0 0
    %4024 = vmatprep.subr.bf16.mxu0 0
    %4025 = vmatpush1.bf16.msra.mxu0 0
    %4026 = vmatprep.subr.bf16.mxu0 0
    %4027 = vmatpush1.bf16.msra.mxu0 0
    %4028 = vmatprep.subr.bf16.mxu0 0
    %4029 = vmatpush1.bf16.msra.mxu0 0
    %4030 = vmatprep.subr.bf16.mxu0 0
    %4031 = vmatpush1.bf16.msra.mxu0 0
    %4032 = vmatprep.mubr.bf16.mxu0 0
    %4033 = vmatmul.mubr.bf16.gmra.mrb[0].mxu0 %v2967
    %v4034 = vpop.f32.mrb[0].mxu0
    %v4035 = vadd.f32 %v2908, %v4034
    %v4036 = vpop.f32.mrb[0].mxu0
    %v4037 = vadd.f32 %v2908, %v4036
    %v4038 = vpop.f32.mrb[0].mxu0
    %v4039 = vadd.f32 %v2913, %v4038
    %v4040 = vpop.f32.mrb[0].mxu0
    %v4041 = vadd.f32 %v2913, %v4040
    %4042 = vmatprep.mubr.bf16.mxu0 0
    %4043 = vmatmul.mubr.bf16.gmra.mrb[0].mxu0 %v2970
    %v4044 = vpop.f32.mrb[0].mxu0
    %v4045 = vadd.f32 %v2918, %v4044
    %v4046 = vpop.f32.mrb[0].mxu0
    %v4047 = vadd.f32 %v2918, %v4046
    %v4048 = vpop.f32.mrb[0].mxu0
    %v4049 = vadd.f32 %v2923, %v4048
    %v4050 = vpop.f32.mrb[0].mxu0
    %v4051 = vadd.f32 %v2923, %v4050
    %4052 = vmatprep.mubr.bf16.mxu0 0
    %4053 = vmatmul.mubr.bf16.gmra.mrb[0].mxu0 %v2973
    %v4054 = vpop.f32.mrb[0].mxu0
    %v4055 = vadd.f32 %v2928, %v4054
    %v4056 = vpop.f32.mrb[0].mxu0
    %v4057 = vadd.f32 %v2928, %v4056
    %v4058 = vpop.f32.mrb[0].mxu0
    %v4059 = vadd.f32 %v2933, %v4058
    %v4060 = vpop.f32.mrb[0].mxu0
    %v4061 = vadd.f32 %v2933, %v4060
    %4062 = vmatprep.mubr.bf16.mxu0 0
    %4063 = vmatmul.mubr.bf16.gmra.mrb[0].mxu0 %v2976
    %v4064 = vpop.f32.mrb[0].mxu0
    %v4065 = vadd.f32 %v2938, %v4064
    %v4066 = vpop.f32.mrb[0].mxu0
    %v4067 = vadd.f32 %v2938, %v4066
    %v4068 = vpop.f32.mrb[0].mxu0
    %v4069 = vadd.f32 %v2943, %v4068
    %v4070 = vpop.f32.mrb[0].mxu0
    %v4071 = vadd.f32 %v2943, %v4070
    %4072 = vdwg.mxu0
    %4073 = vmatprep.subr.bf16.mxu0 %v2792
    %4074 = vmatpush1.bf16.msra.mxu0 %v2791
    %4075 = vmatprep.subr.bf16.mxu0 %v2824
    %4076 = vmatpush1.bf16.msra.mxu0 %v2823
    %4077 = vmatprep.subr.bf16.mxu0 %v2856
    %4078 = vmatpush1.bf16.msra.mxu0 %v2855
    %4079 = vmatprep.subr.bf16.mxu0 %v2888
    %4080 = vmatpush1.bf16.msra.mxu0 %v2887
    %4081 = vmatprep.subr.bf16.mxu0 0
    %4082 = vmatpush1.bf16.msra.mxu0 0
    %4083 = vmatprep.subr.bf16.mxu0 0
    %4084 = vmatpush1.bf16.msra.mxu0 0
    %4085 = vmatprep.subr.bf16.mxu0 0
    %4086 = vmatpush1.bf16.msra.mxu0 0
    %4087 = vmatprep.subr.bf16.mxu0 0
    %4088 = vmatpush1.bf16.msra.mxu0 0
    %4089 = vmatprep.subr.bf16.mxu0 0
    %4090 = vmatpush1.bf16.msra.mxu0 0
    %4091 = vmatprep.subr.bf16.mxu0 0
    %4092 = vmatpush1.bf16.msra.mxu0 0
    %4093 = vmatprep.subr.bf16.mxu0 0
    %4094 = vmatpush1.bf16.msra.mxu0 0
    %4095 = vmatprep.subr.bf16.mxu0 0
    %4096 = vmatpush1.bf16.msra.mxu0 0
    %4097 = vmatprep.subr.bf16.mxu0 0
    %4098 = vmatpush1.bf16.msra.mxu0 0
    %4099 = vmatprep.subr.bf16.mxu0 0
    %4100 = vmatpush1.bf16.msra.mxu0 0
    %4101 = vmatprep.subr.bf16.mxu0 0
    %4102 = vmatpush1.bf16.msra.mxu0 0
    %4103 = vmatprep.subr.bf16.mxu0 0
    %4104 = vmatpush1.bf16.msra.mxu0 0
    %4105 = vmatprep.mubr.bf16.mxu0 0
    %4106 = vmatmul.mubr.bf16.gmra.mrb[0].mxu0 %v2967
    %v4107 = vpop.f32.mrb[0].mxu0
    %v4108 = vadd.f32 %v2908, %v4107
    %v4109 = vpop.f32.mrb[0].mxu0
    %v4110 = vadd.f32 %v2908, %v4109
    %v4111 = vpop.f32.mrb[0].mxu0
    %v4112 = vadd.f32 %v2913, %v4111
    %v4113 = vpop.f32.mrb[0].mxu0
    %v4114 = vadd.f32 %v2913, %v4113
    %4115 = vmatprep.mubr.bf16.mxu0 0
    %4116 = vmatmul.mubr.bf16.gmra.mrb[0].mxu0 %v2970
    %v4117 = vpop.f32.mrb[0].mxu0
    %v4118 = vadd.f32 %v2918, %v4117
    %v4119 = vpop.f32.mrb[0].mxu0
    %v4120 = vadd.f32 %v2918, %v4119
    %v4121 = vpop.f32.mrb[0].mxu0
    %v4122 = vadd.f32 %v2923, %v4121
    %v4123 = vpop.f32.mrb[0].mxu0
    %v4124 = vadd.f32 %v2923, %v4123
    %4125 = vmatprep.mubr.bf16.mxu0 0
    %4126 = vmatmul.mubr.bf16.gmra.mrb[0].mxu0 %v2973
    %v4127 = vpop.f32.mrb[0].mxu0
    %v4128 = vadd.f32 %v2928, %v4127
    %v4129 = vpop.f32.mrb[0].mxu0
    %v4130 = vadd.f32 %v2928, %v4129
    %v4131 = vpop.f32.mrb[0].mxu0
    %v4132 = vadd.f32 %v2933, %v4131
    %v4133 = vpop.f32.mrb[0].mxu0
    %v4134 = vadd.f32 %v2933, %v4133
    %4135 = vmatprep.mubr.bf16.mxu0 0
    %4136 = vmatmul.mubr.bf16.gmra.mrb[0].mxu0 %v2976
    %v4137 = vpop.f32.mrb[0].mxu0
    %v4138 = vadd.f32 %v2938, %v4137
    %v4139 = vpop.f32.mrb[0].mxu0
    %v4140 = vadd.f32 %v2938, %v4139
    %v4141 = vpop.f32.mrb[0].mxu0
    %v4142 = vadd.f32 %v2943, %v4141
    %v4143 = vpop.f32.mrb[0].mxu0
    %v4144 = vadd.f32 %v2943, %v4143
    %4145 = vdwg.mxu0
    %v4146 = vmax.f32 %v3013, 0.0
    %v4147 = vmax.f32 %v3015, 0.0
    %v4148 = vmax.f32 %v3086, 0.0
    %v4149 = vmax.f32 %v3088, 0.0
    %v4150 = vmax.f32 %v3159, 0.0
    %v4151 = vmax.f32 %v3161, 0.0
    %v4152 = vmax.f32 %v3232, 0.0
    %v4153 = vmax.f32 %v3234, 0.0
    %v4154 = vmax.f32 %v3305, 0.0
    %v4155 = vmax.f32 %v3307, 0.0
    %v4156 = vmax.f32 %v3378, 0.0
    %v4157 = vmax.f32 %v3380, 0.0
    %v4158 = vmax.f32 %v3451, 0.0
    %v4159 = vmax.f32 %v3453, 0.0
    %v4160 = vmax.f32 %v3524, 0.0
    %v4161 = vmax.f32 %v3526, 0.0
    %v4162 = vmax.f32 %v3597, 0.0
    %v4163 = vmax.f32 %v3599, 0.0
    %v4164 = vmax.f32 %v3670, 0.0
    %v4165 = vmax.f32 %v3672, 0.0
    %v4166 = vmax.f32 %v3743, 0.0
    %v4167 = vmax.f32 %v3745, 0.0
    %v4168 = vmax.f32 %v3816, 0.0
    %v4169 = vmax.f32 %v3818, 0.0
    %v4170 = vmax.f32 %v3889, 0.0
    %v4171 = vmax.f32 %v3891, 0.0
    %v4172 = vmax.f32 %v3962, 0.0
    %v4173 = vmax.f32 %v3964, 0.0
    %v4174 = vmax.f32 %v4035, 0.0
    %v4175 = vmax.f32 %v4037, 0.0
    %v4176 = vmax.f32 %v4108, 0.0
    %v4177 = vmax.f32 %v4110, 0.0
    %v4178 = vmax.f32 %v3017, 0.0
    %v4179 = vmax.f32 %v3019, 0.0
    %v4180 = vmax.f32 %v3090, 0.0
    %v4181 = vmax.f32 %v3092, 0.0
    %v4182 = vmax.f32 %v3163, 0.0
    %v4183 = vmax.f32 %v3165, 0.0
    %v4184 = vmax.f32 %v3236, 0.0
    %v4185 = vmax.f32 %v3238, 0.0
    %v4186 = vmax.f32 %v3309, 0.0
    %v4187 = vmax.f32 %v3311, 0.0
    %v4188 = vmax.f32 %v3382, 0.0
    %v4189 = vmax.f32 %v3384, 0.0
    %v4190 = vmax.f32 %v3455, 0.0
    %v4191 = vmax.f32 %v3457, 0.0
    %v4192 = vmax.f32 %v3528, 0.0
    %v4193 = vmax.f32 %v3530, 0.0
    %v4194 = vmax.f32 %v3601, 0.0
    %v4195 = vmax.f32 %v3603, 0.0
    %v4196 = vmax.f32 %v3674, 0.0
    %v4197 = vmax.f32 %v3676, 0.0
    %v4198 = vmax.f32 %v3747, 0.0
    %v4199 = vmax.f32 %v3749, 0.0
    %v4200 = vmax.f32 %v3820, 0.0
    %v4201 = vmax.f32 %v3822, 0.0
    %v4202 = vmax.f32 %v3893, 0.0
    %v4203 = vmax.f32 %v3895, 0.0
    %v4204 = vmax.f32 %v3966, 0.0
    %v4205 = vmax.f32 %v3968, 0.0
    %v4206 = vmax.f32 %v4039, 0.0
    %v4207 = vmax.f32 %v4041, 0.0
    %v4208 = vmax.f32 %v4112, 0.0
    %v4209 = vmax.f32 %v4114, 0.0
    %v4210 = vmax.f32 %v3023, 0.0
    %v4211 = vmax.f32 %v3025, 0.0
    %v4212 = vmax.f32 %v3096, 0.0
    %v4213 = vmax.f32 %v3098, 0.0
    %v4214 = vmax.f32 %v3169, 0.0
    %v4215 = vmax.f32 %v3171, 0.0
    %v4216 = vmax.f32 %v3242, 0.0
    %v4217 = vmax.f32 %v3244, 0.0
    %v4218 = vmax.f32 %v3315, 0.0
    %v4219 = vmax.f32 %v3317, 0.0
    %v4220 = vmax.f32 %v3388, 0.0
    %v4221 = vmax.f32 %v3390, 0.0
    %v4222 = vmax.f32 %v3461, 0.0
    %v4223 = vmax.f32 %v3463, 0.0
    %v4224 = vmax.f32 %v3534, 0.0
    %v4225 = vmax.f32 %v3536, 0.0
    %v4226 = vmax.f32 %v3607, 0.0
    %v4227 = vmax.f32 %v3609, 0.0
    %v4228 = vmax.f32 %v3680, 0.0
    %v4229 = vmax.f32 %v3682, 0.0
    %v4230 = vmax.f32 %v3753, 0.0
    %v4231 = vmax.f32 %v3755, 0.0
    %v4232 = vmax.f32 %v3826, 0.0
    %v4233 = vmax.f32 %v3828, 0.0
    %v4234 = vmax.f32 %v3899, 0.0
    %v4235 = vmax.f32 %v3901, 0.0
    %v4236 = vmax.f32 %v3972, 0.0
    %v4237 = vmax.f32 %v3974, 0.0
    %v4238 = vmax.f32 %v4045, 0.0
    %v4239 = vmax.f32 %v4047, 0.0
    %v4240 = vmax.f32 %v4118, 0.0
    %v4241 = vmax.f32 %v4120, 0.0
    %v4242 = vmax.f32 %v3027, 0.0
    %v4243 = vmax.f32 %v3029, 0.0
    %v4244 = vmax.f32 %v3100, 0.0
    %v4245 = vmax.f32 %v3102, 0.0
    %v4246 = vmax.f32 %v3173, 0.0
    %v4247 = vmax.f32 %v3175, 0.0
    %v4248 = vmax.f32 %v3246, 0.0
    %v4249 = vmax.f32 %v3248, 0.0
    %v4250 = vmax.f32 %v3319, 0.0
    %v4251 = vmax.f32 %v3321, 0.0
    %v4252 = vmax.f32 %v3392, 0.0
    %v4253 = vmax.f32 %v3394, 0.0
    %v4254 = vmax.f32 %v3465, 0.0
    %v4255 = vmax.f32 %v3467, 0.0
    %v4256 = vmax.f32 %v3538, 0.0
    %v4257 = vmax.f32 %v3540, 0.0
    %v4258 = vmax.f32 %v3611, 0.0
    %v4259 = vmax.f32 %v3613, 0.0
    %v4260 = vmax.f32 %v3684, 0.0
    %v4261 = vmax.f32 %v3686, 0.0
    %v4262 = vmax.f32 %v3757, 0.0
    %v4263 = vmax.f32 %v3759, 0.0
    %v4264 = vmax.f32 %v3830, 0.0
    %v4265 = vmax.f32 %v3832, 0.0
    %v4266 = vmax.f32 %v3903, 0.0
    %v4267 = vmax.f32 %v3905, 0.0
    %v4268 = vmax.f32 %v3976, 0.0
    %v4269 = vmax.f32 %v3978, 0.0
    %v4270 = vmax.f32 %v4049, 0.0
    %v4271 = vmax.f32 %v4051, 0.0
    %v4272 = vmax.f32 %v4122, 0.0
    %v4273 = vmax.f32 %v4124, 0.0
    %v4274 = vmax.f32 %v3033, 0.0
    %v4275 = vmax.f32 %v3035, 0.0
    %v4276 = vmax.f32 %v3106, 0.0
    %v4277 = vmax.f32 %v3108, 0.0
    %v4278 = vmax.f32 %v3179, 0.0
    %v4279 = vmax.f32 %v3181, 0.0
    %v4280 = vmax.f32 %v3252, 0.0
    %v4281 = vmax.f32 %v3254, 0.0
    %v4282 = vmax.f32 %v3325, 0.0
    %v4283 = vmax.f32 %v3327, 0.0
    %v4284 = vmax.f32 %v3398, 0.0
    %v4285 = vmax.f32 %v3400, 0.0
    %v4286 = vmax.f32 %v3471, 0.0
    %v4287 = vmax.f32 %v3473, 0.0
    %v4288 = vmax.f32 %v3544, 0.0
    %v4289 = vmax.f32 %v3546, 0.0
    %v4290 = vmax.f32 %v3617, 0.0
    %v4291 = vmax.f32 %v3619, 0.0
    %v4292 = vmax.f32 %v3690, 0.0
    %v4293 = vmax.f32 %v3692, 0.0
    %v4294 = vmax.f32 %v3763, 0.0
    %v4295 = vmax.f32 %v3765, 0.0
    %v4296 = vmax.f32 %v3836, 0.0
    %v4297 = vmax.f32 %v3838, 0.0
    %v4298 = vmax.f32 %v3909, 0.0
    %v4299 = vmax.f32 %v3911, 0.0
    %v4300 = vmax.f32 %v3982, 0.0
    %v4301 = vmax.f32 %v3984, 0.0
    %v4302 = vmax.f32 %v4055, 0.0
    %v4303 = vmax.f32 %v4057, 0.0
    %v4304 = vmax.f32 %v4128, 0.0
    %v4305 = vmax.f32 %v4130, 0.0
    %v4306 = vmax.f32 %v3037, 0.0
    %v4307 = vmax.f32 %v3039, 0.0
    %v4308 = vmax.f32 %v3110, 0.0
    %v4309 = vmax.f32 %v3112, 0.0
    %v4310 = vmax.f32 %v3183, 0.0
    %v4311 = vmax.f32 %v3185, 0.0
    %v4312 = vmax.f32 %v3256, 0.0
    %v4313 = vmax.f32 %v3258, 0.0
    %v4314 = vmax.f32 %v3329, 0.0
    %v4315 = vmax.f32 %v3331, 0.0
    %v4316 = vmax.f32 %v3402, 0.0
    %v4317 = vmax.f32 %v3404, 0.0
    %v4318 = vmax.f32 %v3475, 0.0
    %v4319 = vmax.f32 %v3477, 0.0
    %v4320 = vmax.f32 %v3548, 0.0
    %v4321 = vmax.f32 %v3550, 0.0
    %v4322 = vmax.f32 %v3621, 0.0
    %v4323 = vmax.f32 %v3623, 0.0
    %v4324 = vmax.f32 %v3694, 0.0
    %v4325 = vmax.f32 %v3696, 0.0
    %v4326 = vmax.f32 %v3767, 0.0
    %v4327 = vmax.f32 %v3769, 0.0
    %v4328 = vmax.f32 %v3840, 0.0
    %v4329 = vmax.f32 %v3842, 0.0
    %v4330 = vmax.f32 %v3913, 0.0
    %v4331 = vmax.f32 %v3915, 0.0
    %v4332 = vmax.f32 %v3986, 0.0
    %v4333 = vmax.f32 %v3988, 0.0
    %v4334 = vmax.f32 %v4059, 0.0
    %v4335 = vmax.f32 %v4061, 0.0
    %v4336 = vmax.f32 %v4132, 0.0
    %v4337 = vmax.f32 %v4134, 0.0
    %v4338 = vmax.f32 %v3043, 0.0
    %v4339 = vmax.f32 %v3045, 0.0
    %v4340 = vmax.f32 %v3116, 0.0
    %v4341 = vmax.f32 %v3118, 0.0
    %v4342 = vmax.f32 %v3189, 0.0
    %v4343 = vmax.f32 %v3191, 0.0
    %v4344 = vmax.f32 %v3262, 0.0
    %v4345 = vmax.f32 %v3264, 0.0
    %v4346 = vmax.f32 %v3335, 0.0
    %v4347 = vmax.f32 %v3337, 0.0
    %v4348 = vmax.f32 %v3408, 0.0
    %v4349 = vmax.f32 %v3410, 0.0
    %v4350 = vmax.f32 %v3481, 0.0
    %v4351 = vmax.f32 %v3483, 0.0
    %v4352 = vmax.f32 %v3554, 0.0
    %v4353 = vmax.f32 %v3556, 0.0
    %v4354 = vmax.f32 %v3627, 0.0
    %v4355 = vmax.f32 %v3629, 0.0
    %v4356 = vmax.f32 %v3700, 0.0
    %v4357 = vmax.f32 %v3702, 0.0
    %v4358 = vmax.f32 %v3773, 0.0
    %v4359 = vmax.f32 %v3775, 0.0
    %v4360 = vmax.f32 %v3846, 0.0
    %v4361 = vmax.f32 %v3848, 0.0
    %v4362 = vmax.f32 %v3919, 0.0
    %v4363 = vmax.f32 %v3921, 0.0
    %v4364 = vmax.f32 %v3992, 0.0
    %v4365 = vmax.f32 %v3994, 0.0
    %v4366 = vmax.f32 %v4065, 0.0
    %v4367 = vmax.f32 %v4067, 0.0
    %v4368 = vmax.f32 %v4138, 0.0
    %v4369 = vmax.f32 %v4140, 0.0
    %v4370 = vmax.f32 %v3047, 0.0
    %v4371 = vmax.f32 %v3049, 0.0
    %v4372 = vmax.f32 %v3120, 0.0
    %v4373 = vmax.f32 %v3122, 0.0
    %v4374 = vmax.f32 %v3193, 0.0
    %v4375 = vmax.f32 %v3195, 0.0
    %v4376 = vmax.f32 %v3266, 0.0
    %v4377 = vmax.f32 %v3268, 0.0
    %v4378 = vmax.f32 %v3339, 0.0
    %v4379 = vmax.f32 %v3341, 0.0
    %v4380 = vmax.f32 %v3412, 0.0
    %v4381 = vmax.f32 %v3414, 0.0
    %v4382 = vmax.f32 %v3485, 0.0
    %v4383 = vmax.f32 %v3487, 0.0
    %v4384 = vmax.f32 %v3558, 0.0
    %v4385 = vmax.f32 %v3560, 0.0
    %v4386 = vmax.f32 %v3631, 0.0
    %v4387 = vmax.f32 %v3633, 0.0
    %v4388 = vmax.f32 %v3704, 0.0
    %v4389 = vmax.f32 %v3706, 0.0
    %v4390 = vmax.f32 %v3777, 0.0
    %v4391 = vmax.f32 %v3779, 0.0
    %v4392 = vmax.f32 %v3850, 0.0
    %v4393 = vmax.f32 %v3852, 0.0
    %v4394 = vmax.f32 %v3923, 0.0
    %v4395 = vmax.f32 %v3925, 0.0
    %v4396 = vmax.f32 %v3996, 0.0
    %v4397 = vmax.f32 %v3998, 0.0
    %v4398 = vmax.f32 %v4069, 0.0
    %v4399 = vmax.f32 %v4071, 0.0
    %v4400 = vmax.f32 %v4142, 0.0
    %v4401 = vmax.f32 %v4144, 0.0
    %v4402 = vpack.c.bf16 %v4178, %v4146
    %v4403 = vpack.c.bf16 %v4179, %v4147
    %v4404 = vpack.c.bf16 %v4180, %v4148
    %v4405 = vpack.c.bf16 %v4181, %v4149
    %v4406 = vpack.c.bf16 %v4182, %v4150
    %v4407 = vpack.c.bf16 %v4183, %v4151
    %v4408 = vpack.c.bf16 %v4184, %v4152
    %v4409 = vpack.c.bf16 %v4185, %v4153
    %v4410 = vpack.c.bf16 %v4186, %v4154
    %v4411 = vpack.c.bf16 %v4187, %v4155
    %v4412 = vpack.c.bf16 %v4188, %v4156
    %v4413 = vpack.c.bf16 %v4189, %v4157
    %v4414 = vpack.c.bf16 %v4190, %v4158
    %v4415 = vpack.c.bf16 %v4191, %v4159
    %v4416 = vpack.c.bf16 %v4192, %v4160
    %v4417 = vpack.c.bf16 %v4193, %v4161
    %v4418 = vpack.c.bf16 %v4194, %v4162
    %v4419 = vpack.c.bf16 %v4195, %v4163
    %v4420 = vpack.c.bf16 %v4196, %v4164
    %v4421 = vpack.c.bf16 %v4197, %v4165
    %v4422 = vpack.c.bf16 %v4198, %v4166
    %v4423 = vpack.c.bf16 %v4199, %v4167
    %v4424 = vpack.c.bf16 %v4200, %v4168
    %v4425 = vpack.c.bf16 %v4201, %v4169
    %v4426 = vpack.c.bf16 %v4202, %v4170
    %v4427 = vpack.c.bf16 %v4203, %v4171
    %v4428 = vpack.c.bf16 %v4204, %v4172
    %v4429 = vpack.c.bf16 %v4205, %v4173
    %v4430 = vpack.c.bf16 %v4206, %v4174
    %v4431 = vpack.c.bf16 %v4207, %v4175
    %v4432 = vpack.c.bf16 %v4208, %v4176
    %v4433 = vpack.c.bf16 %v4209, %v4177
    %v4434 = vpack.c.bf16 %v4242, %v4210
    %v4435 = vpack.c.bf16 %v4243, %v4211
    %v4436 = vpack.c.bf16 %v4244, %v4212
    %v4437 = vpack.c.bf16 %v4245, %v4213
    %v4438 = vpack.c.bf16 %v4246, %v4214
    %v4439 = vpack.c.bf16 %v4247, %v4215
    %v4440 = vpack.c.bf16 %v4248, %v4216
    %v4441 = vpack.c.bf16 %v4249, %v4217
    %v4442 = vpack.c.bf16 %v4250, %v4218
    %v4443 = vpack.c.bf16 %v4251, %v4219
    %v4444 = vpack.c.bf16 %v4252, %v4220
    %v4445 = vpack.c.bf16 %v4253, %v4221
    %v4446 = vpack.c.bf16 %v4254, %v4222
    %v4447 = vpack.c.bf16 %v4255, %v4223
    %v4448 = vpack.c.bf16 %v4256, %v4224
    %v4449 = vpack.c.bf16 %v4257, %v4225
    %v4450 = vpack.c.bf16 %v4258, %v4226
    %v4451 = vpack.c.bf16 %v4259, %v4227
    %v4452 = vpack.c.bf16 %v4260, %v4228
    %v4453 = vpack.c.bf16 %v4261, %v4229
    %v4454 = vpack.c.bf16 %v4262, %v4230
    %v4455 = vpack.c.bf16 %v4263, %v4231
    %v4456 = vpack.c.bf16 %v4264, %v4232
    %v4457 = vpack.c.bf16 %v4265, %v4233
    %v4458 = vpack.c.bf16 %v4266, %v4234
    %v4459 = vpack.c.bf16 %v4267, %v4235
    %v4460 = vpack.c.bf16 %v4268, %v4236
    %v4461 = vpack.c.bf16 %v4269, %v4237
    %v4462 = vpack.c.bf16 %v4270, %v4238
    %v4463 = vpack.c.bf16 %v4271, %v4239
    %v4464 = vpack.c.bf16 %v4272, %v4240
    %v4465 = vpack.c.bf16 %v4273, %v4241
    %v4466 = vpack.c.bf16 %v4306, %v4274
    %v4467 = vpack.c.bf16 %v4307, %v4275
    %v4468 = vpack.c.bf16 %v4308, %v4276
    %v4469 = vpack.c.bf16 %v4309, %v4277
    %v4470 = vpack.c.bf16 %v4310, %v4278
    %v4471 = vpack.c.bf16 %v4311, %v4279
    %v4472 = vpack.c.bf16 %v4312, %v4280
    %v4473 = vpack.c.bf16 %v4313, %v4281
    %v4474 = vpack.c.bf16 %v4314, %v4282
    %v4475 = vpack.c.bf16 %v4315, %v4283
    %v4476 = vpack.c.bf16 %v4316, %v4284
    %v4477 = vpack.c.bf16 %v4317, %v4285
    %v4478 = vpack.c.bf16 %v4318, %v4286
    %v4479 = vpack.c.bf16 %v4319, %v4287
    %v4480 = vpack.c.bf16 %v4320, %v4288
    %v4481 = vpack.c.bf16 %v4321, %v4289
    %v4482 = vpack.c.bf16 %v4322, %v4290
    %v4483 = vpack.c.bf16 %v4323, %v4291
    %v4484 = vpack.c.bf16 %v4324, %v4292
    %v4485 = vpack.c.bf16 %v4325, %v4293
    %v4486 = vpack.c.bf16 %v4326, %v4294
    %v4487 = vpack.c.bf16 %v4327, %v4295
    %v4488 = vpack.c.bf16 %v4328, %v4296
    %v4489 = vpack.c.bf16 %v4329, %v4297
    %v4490 = vpack.c.bf16 %v4330, %v4298
    %v4491 = vpack.c.bf16 %v4331, %v4299
    %v4492 = vpack.c.bf16 %v4332, %v4300
    %v4493 = vpack.c.bf16 %v4333, %v4301
    %v4494 = vpack.c.bf16 %v4334, %v4302
    %v4495 = vpack.c.bf16 %v4335, %v4303
    %v4496 = vpack.c.bf16 %v4336, %v4304
    %v4497 = vpack.c.bf16 %v4337, %v4305
    %v4498 = vpack.c.bf16 %v4370, %v4338
    %v4499 = vpack.c.bf16 %v4371, %v4339
    %v4500 = vpack.c.bf16 %v4372, %v4340
    %v4501 = vpack.c.bf16 %v4373, %v4341
    %v4502 = vpack.c.bf16 %v4374, %v4342
    %v4503 = vpack.c.bf16 %v4375, %v4343
    %v4504 = vpack.c.bf16 %v4376, %v4344
    %v4505 = vpack.c.bf16 %v4377, %v4345
    %v4506 = vpack.c.bf16 %v4378, %v4346
    %v4507 = vpack.c.bf16 %v4379, %v4347
    %v4508 = vpack.c.bf16 %v4380, %v4348
    %v4509 = vpack.c.bf16 %v4381, %v4349
    %v4510 = vpack.c.bf16 %v4382, %v4350
    %v4511 = vpack.c.bf16 %v4383, %v4351
    %v4512 = vpack.c.bf16 %v4384, %v4352
    %v4513 = vpack.c.bf16 %v4385, %v4353
    %v4514 = vpack.c.bf16 %v4386, %v4354
    %v4515 = vpack.c.bf16 %v4387, %v4355
    %v4516 = vpack.c.bf16 %v4388, %v4356
    %v4517 = vpack.c.bf16 %v4389, %v4357
    %v4518 = vpack.c.bf16 %v4390, %v4358
    %v4519 = vpack.c.bf16 %v4391, %v4359
    %v4520 = vpack.c.bf16 %v4392, %v4360
    %v4521 = vpack.c.bf16 %v4393, %v4361
    %v4522 = vpack.c.bf16 %v4394, %v4362
    %v4523 = vpack.c.bf16 %v4395, %v4363
    %v4524 = vpack.c.bf16 %v4396, %v4364
    %v4525 = vpack.c.bf16 %v4397, %v4365
    %v4526 = vpack.c.bf16 %v4398, %v4366
    %v4527 = vpack.c.bf16 %v4399, %v4367
    %v4528 = vpack.c.bf16 %v4400, %v4368
    %v4529 = vpack.c.bf16 %v4401, %v4369
    %v4530 = vld [vmem:[%s5] sm:$0xf]
    %v4531 = vld [vmem:[%s5 + $0x4] sm:$0xf]
    %v4532 = vld [vmem:[%s5 + $0x8] sm:$0xf]
    %v4533 = vld [vmem:[%s5 + $0xc] sm:$0xf]
    %v4534 = vld [vmem:[%s5 + $0x10] sm:$0xf]
    %v4535 = vld [vmem:[%s5 + $0x14] sm:$0xf]
    %v4536 = vld [vmem:[%s5 + $0x18] sm:$0xf]
    %v4537 = vld [vmem:[%s5 + $0x1c] sm:$0xf]
    %v4538 = vld [vmem:[%s6] sm:$0xff]
    %v4539 = vld [vmem:[%s6 + $0x8] sm:$0xff]
    %v4540 = vld [vmem:[%s6 + $0x10] sm:$0xff]
    %v4541 = vld [vmem:[%s6 + $0x18] sm:$0xff]
    %v4542 = vld [vmem:[%s6 + $0x20] sm:$0xff]
    %v4543 = vld [vmem:[%s6 + $0x28] sm:$0xff]
    %v4544 = vld [vmem:[%s6 + $0x30] sm:$0xff]
    %v4545 = vld [vmem:[%s6 + $0x38] sm:$0xff]
    %4547 = vset.pattern.permute.xlu0 0
    %4548 = vperm.xlu0 %4547, %v4538
    %v4549 = vpop.permute.xlu0 %4548
    %4552 = vset.pattern.permute.xlu0 0
    %4553 = vperm.xlu0 %4552, %v4539
    %v4554 = vpop.permute.xlu0 %4553
    %4557 = vset.pattern.permute.xlu0 0
    %4558 = vperm.xlu0 %4557, %v4540
    %v4559 = vpop.permute.xlu0 %4558
    %4562 = vset.pattern.permute.xlu0 0
    %4563 = vperm.xlu0 %4562, %v4541
    %v4564 = vpop.permute.xlu0 %4563
    %4567 = vset.pattern.permute.xlu0 0
    %4568 = vperm.xlu0 %4567, %v4542
    %v4569 = vpop.permute.xlu0 %4568
    %4572 = vset.pattern.permute.xlu0 0
    %4573 = vperm.xlu0 %4572, %v4543
    %v4574 = vpop.permute.xlu0 %4573
    %4577 = vset.pattern.permute.xlu0 0
    %4578 = vperm.xlu0 %4577, %v4544
    %v4579 = vpop.permute.xlu0 %4578
    %4582 = vset.pattern.permute.xlu0 0
    %4583 = vperm.xlu0 %4582, %v4545
    %v4584 = vpop.permute.xlu0 %4583
    %v4594 = vunpack.c.l.b16 %v4530
    %v4595 = vunpack.c.l.b16 %v4531
    %v4596 = vunpack.c.l.b16 %v4532
    %v4597 = vunpack.c.l.b16 %v4533
    %v4598 = vunpack.c.l.b16 %v4534
    %v4599 = vunpack.c.l.b16 %v4535
    %v4600 = vunpack.c.l.b16 %v4536
    %v4601 = vunpack.c.l.b16 %v4537
    %v4602 = vpack.c.b16 %v4595, %v4594
    %v4603 = vpack.c.b16 %v4597, %v4596
    %v4604 = vpack.c.b16 %v4599, %v4598
    %v4605 = vpack.c.b16 %v4601, %v4600
    %v4607 = vsel %vm2965, %v4602, 0
    %v4610 = vsel %vm2965, %v4603, 0
    %v4613 = vsel %vm2965, %v4604, 0
    %v4616 = vsel %vm2965, %v4605, 0
    %4618 = vmatprep.subr.bf16.mxu0 %v4403
    %4619 = vmatpush1.bf16.msra.mxu0 %v4402
    %4620 = vmatprep.subr.bf16.mxu0 %v4435
    %4621 = vmatpush1.bf16.msra.mxu0 %v4434
    %4622 = vmatprep.subr.bf16.mxu0 %v4467
    %4623 = vmatpush1.bf16.msra.mxu0 %v4466
    %4624 = vmatprep.subr.bf16.mxu0 %v4499
    %4625 = vmatpush1.bf16.msra.mxu0 %v4498
    %4626 = vmatprep.subr.bf16.mxu0 0
    %4627 = vmatpush1.bf16.msra.mxu0 0
    %4628 = vmatprep.subr.bf16.mxu0 0
    %4629 = vmatpush1.bf16.msra.mxu0 0
    %4630 = vmatprep.subr.bf16.mxu0 0
    %4631 = vmatpush1.bf16.msra.mxu0 0
    %4632 = vmatprep.subr.bf16.mxu0 0
    %4633 = vmatpush1.bf16.msra.mxu0 0
    %4634 = vmatprep.subr.bf16.mxu0 0
    %4635 = vmatpush1.bf16.msra.mxu0 0
    %4636 = vmatprep.subr.bf16.mxu0 0
    %4637 = vmatpush1.bf16.msra.mxu0 0
    %4638 = vmatprep.subr.bf16.mxu0 0
    %4639 = vmatpush1.bf16.msra.mxu0 0
    %4640 = vmatprep.subr.bf16.mxu0 0
    %4641 = vmatpush1.bf16.msra.mxu0 0
    %4642 = vmatprep.subr.bf16.mxu0 0
    %4643 = vmatpush1.bf16.msra.mxu0 0
    %4644 = vmatprep.subr.bf16.mxu0 0
    %4645 = vmatpush1.bf16.msra.mxu0 0
    %4646 = vmatprep.subr.bf16.mxu0 0
    %4647 = vmatpush1.bf16.msra.mxu0 0
    %4648 = vmatprep.subr.bf16.mxu0 0
    %4649 = vmatpush1.bf16.msra.mxu0 0
    %4650 = vmatprep.mubr.bf16.mxu0 0
    %4651 = vmatmul.mubr.bf16.gmra.mrb[0].mxu0 %v4607
    %v4652 = vpop.f32.mrb[0].mxu0
    %v4653 = vadd.f32 %v4549, %v4652
    %v4654 = vpop.f32.mrb[0].mxu0
    %v4655 = vadd.f32 %v4549, %v4654
    %v4656 = vpop.f32.mrb[0].mxu0
    %v4657 = vadd.f32 %v4554, %v4656
    %v4658 = vpop.f32.mrb[0].mxu0
    %v4659 = vadd.f32 %v4554, %v4658
    %4660 = vmatprep.mubr.bf16.mxu0 0
    %4661 = vmatmul.mubr.bf16.gmra.mrb[0].mxu0 %v4610
    %v4662 = vpop.f32.mrb[0].mxu0
    %v4663 = vadd.f32 %v4559, %v4662
    %v4664 = vpop.f32.mrb[0].mxu0
    %v4665 = vadd.f32 %v4559, %v4664
    %v4666 = vpop.f32.mrb[0].mxu0
    %v4667 = vadd.f32 %v4564, %v4666
    %v4668 = vpop.f32.mrb[0].mxu0
    %v4669 = vadd.f32 %v4564, %v4668
    %4670 = vmatprep.mubr.bf16.mxu0 0
    %4671 = vmatmul.mubr.bf16.gmra.mrb[0].mxu0 %v4613
    %v4672 = vpop.f32.mrb[0].mxu0
    %v4673 = vadd.f32 %v4569, %v4672
    %v4674 = vpop.f32.mrb[0].mxu0
    %v4675 = vadd.f32 %v4569, %v4674
    %v4676 = vpop.f32.mrb[0].mxu0
    %v4677 = vadd.f32 %v4574, %v4676
    %v4678 = vpop.f32.mrb[0].mxu0
    %v4679 = vadd.f32 %v4574, %v4678
    %4680 = vmatprep.mubr.bf16.mxu0 0
    %4681 = vmatmul.mubr.bf16.gmra.mrb[0].mxu0 %v4616
    %v4682 = vpop.f32.mrb[0].mxu0
    %v4683 = vadd.f32 %v4579, %v4682
    %v4684 = vpop.f32.mrb[0].mxu0
    %v4685 = vadd.f32 %v4579, %v4684
    %v4686 = vpop.f32.mrb[0].mxu0
    %v4687 = vadd.f32 %v4584, %v4686
    %v4688 = vpop.f32.mrb[0].mxu0
    %v4689 = vadd.f32 %v4584, %v4688
    %4690 = vdwg.mxu0
    %4691 = vmatprep.subr.bf16.mxu0 %v4405
    %4692 = vmatpush1.bf16.msra.mxu0 %v4404
    %4693 = vmatprep.subr.bf16.mxu0 %v4437
    %4694 = vmatpush1.bf16.msra.mxu0 %v4436
    %4695 = vmatprep.subr.bf16.mxu0 %v4469
    %4696 = vmatpush1.bf16.msra.mxu0 %v4468
    %4697 = vmatprep.subr.bf16.mxu0 %v4501
    %4698 = vmatpush1.bf16.msra.mxu0 %v4500
    %4699 = vmatprep.subr.bf16.mxu0 0
    %4700 = vmatpush1.bf16.msra.mxu0 0
    %4701 = vmatprep.subr.bf16.mxu0 0
    %4702 = vmatpush1.bf16.msra.mxu0 0
    %4703 = vmatprep.subr.bf16.mxu0 0
    %4704 = vmatpush1.bf16.msra.mxu0 0
    %4705 = vmatprep.subr.bf16.mxu0 0
    %4706 = vmatpush1.bf16.msra.mxu0 0
    %4707 = vmatprep.subr.bf16.mxu0 0
    %4708 = vmatpush1.bf16.msra.mxu0 0
    %4709 = vmatprep.subr.bf16.mxu0 0
    %4710 = vmatpush1.bf16.msra.mxu0 0
    %4711 = vmatprep.subr.bf16.mxu0 0
    %4712 = vmatpush1.bf16.msra.mxu0 0
    %4713 = vmatprep.subr.bf16.mxu0 0
    %4714 = vmatpush1.bf16.msra.mxu0 0
    %4715 = vmatprep.subr.bf16.mxu0 0
    %4716 = vmatpush1.bf16.msra.mxu0 0
    %4717 = vmatprep.subr.bf16.mxu0 0
    %4718 = vmatpush1.bf16.msra.mxu0 0
    %4719 = vmatprep.subr.bf16.mxu0 0
    %4720 = vmatpush1.bf16.msra.mxu0 0
    %4721 = vmatprep.subr.bf16.mxu0 0
    %4722 = vmatpush1.bf16.msra.mxu0 0
    %4723 = vmatprep.mubr.bf16.mxu0 0
    %4724 = vmatmul.mubr.bf16.gmra.mrb[0].mxu0 %v4607
    %v4725 = vpop.f32.mrb[0].mxu0
    %v4726 = vadd.f32 %v4549, %v4725
    %v4727 = vpop.f32.mrb[0].mxu0
    %v4728 = vadd.f32 %v4549, %v4727
    %v4729 = vpop.f32.mrb[0].mxu0
    %v4730 = vadd.f32 %v4554, %v4729
    %v4731 = vpop.f32.mrb[0].mxu0
    %v4732 = vadd.f32 %v4554, %v4731
    %4733 = vmatprep.mubr.bf16.mxu0 0
    %4734 = vmatmul.mubr.bf16.gmra.mrb[0].mxu0 %v4610
    %v4735 = vpop.f32.mrb[0].mxu0
    %v4736 = vadd.f32 %v4559, %v4735
    %v4737 = vpop.f32.mrb[0].mxu0
    %v4738 = vadd.f32 %v4559, %v4737
    %v4739 = vpop.f32.mrb[0].mxu0
    %v4740 = vadd.f32 %v4564, %v4739
    %v4741 = vpop.f32.mrb[0].mxu0
    %v4742 = vadd.f32 %v4564, %v4741
    %4743 = vmatprep.mubr.bf16.mxu0 0
    %4744 = vmatmul.mubr.bf16.gmra.mrb[0].mxu0 %v4613
    %v4745 = vpop.f32.mrb[0].mxu0
    %v4746 = vadd.f32 %v4569, %v4745
    %v4747 = vpop.f32.mrb[0].mxu0
    %v4748 = vadd.f32 %v4569, %v4747
    %v4749 = vpop.f32.mrb[0].mxu0
    %v4750 = vadd.f32 %v4574, %v4749
    %v4751 = vpop.f32.mrb[0].mxu0
    %v4752 = vadd.f32 %v4574, %v4751
    %4753 = vmatprep.mubr.bf16.mxu0 0
    %4754 = vmatmul.mubr.bf16.gmra.mrb[0].mxu0 %v4616
    %v4755 = vpop.f32.mrb[0].mxu0
    %v4756 = vadd.f32 %v4579, %v4755
    %v4757 = vpop.f32.mrb[0].mxu0
    %v4758 = vadd.f32 %v4579, %v4757
    %v4759 = vpop.f32.mrb[0].mxu0
    %v4760 = vadd.f32 %v4584, %v4759
    %v4761 = vpop.f32.mrb[0].mxu0
    %v4762 = vadd.f32 %v4584, %v4761
    %4763 = vdwg.mxu0
    %4764 = vmatprep.subr.bf16.mxu0 %v4407
    %4765 = vmatpush1.bf16.msra.mxu0 %v4406
    %4766 = vmatprep.subr.bf16.mxu0 %v4439
    %4767 = vmatpush1.bf16.msra.mxu0 %v4438
    %4768 = vmatprep.subr.bf16.mxu0 %v4471
    %4769 = vmatpush1.bf16.msra.mxu0 %v4470
    %4770 = vmatprep.subr.bf16.mxu0 %v4503
    %4771 = vmatpush1.bf16.msra.mxu0 %v4502
    %4772 = vmatprep.subr.bf16.mxu0 0
    %4773 = vmatpush1.bf16.msra.mxu0 0
    %4774 = vmatprep.subr.bf16.mxu0 0
    %4775 = vmatpush1.bf16.msra.mxu0 0
    %4776 = vmatprep.subr.bf16.mxu0 0
    %4777 = vmatpush1.bf16.msra.mxu0 0
    %4778 = vmatprep.subr.bf16.mxu0 0
    %4779 = vmatpush1.bf16.msra.mxu0 0
    %4780 = vmatprep.subr.bf16.mxu0 0
    %4781 = vmatpush1.bf16.msra.mxu0 0
    %4782 = vmatprep.subr.bf16.mxu0 0
    %4783 = vmatpush1.bf16.msra.mxu0 0
    %4784 = vmatprep.subr.bf16.mxu0 0
    %4785 = vmatpush1.bf16.msra.mxu0 0
    %4786 = vmatprep.subr.bf16.mxu0 0
    %4787 = vmatpush1.bf16.msra.mxu0 0
    %4788 = vmatprep.subr.bf16.mxu0 0
    %4789 = vmatpush1.bf16.msra.mxu0 0
    %4790 = vmatprep.subr.bf16.mxu0 0
    %4791 = vmatpush1.bf16.msra.mxu0 0
    %4792 = vmatprep.subr.bf16.mxu0 0
    %4793 = vmatpush1.bf16.msra.mxu0 0
    %4794 = vmatprep.subr.bf16.mxu0 0
    %4795 = vmatpush1.bf16.msra.mxu0 0
    %4796 = vmatprep.mubr.bf16.mxu0 0
    %4797 = vmatmul.mubr.bf16.gmra.mrb[0].mxu0 %v4607
    %v4798 = vpop.f32.mrb[0].mxu0
    %v4799 = vadd.f32 %v4549, %v4798
    %v4800 = vpop.f32.mrb[0].mxu0
    %v4801 = vadd.f32 %v4549, %v4800
    %v4802 = vpop.f32.mrb[0].mxu0
    %v4803 = vadd.f32 %v4554, %v4802
    %v4804 = vpop.f32.mrb[0].mxu0
    %v4805 = vadd.f32 %v4554, %v4804
    %4806 = vmatprep.mubr.bf16.mxu0 0
    %4807 = vmatmul.mubr.bf16.gmra.mrb[0].mxu0 %v4610
    %v4808 = vpop.f32.mrb[0].mxu0
    %v4809 = vadd.f32 %v4559, %v4808
    %v4810 = vpop.f32.mrb[0].mxu0
    %v4811 = vadd.f32 %v4559, %v4810
    %v4812 = vpop.f32.mrb[0].mxu0
    %v4813 = vadd.f32 %v4564, %v4812
    %v4814 = vpop.f32.mrb[0].mxu0
    %v4815 = vadd.f32 %v4564, %v4814
    %4816 = vmatprep.mubr.bf16.mxu0 0
    %4817 = vmatmul.mubr.bf16.gmra.mrb[0].mxu0 %v4613
    %v4818 = vpop.f32.mrb[0].mxu0
    %v4819 = vadd.f32 %v4569, %v4818
    %v4820 = vpop.f32.mrb[0].mxu0
    %v4821 = vadd.f32 %v4569, %v4820
    %v4822 = vpop.f32.mrb[0].mxu0
    %v4823 = vadd.f32 %v4574, %v4822
    %v4824 = vpop.f32.mrb[0].mxu0
    %v4825 = vadd.f32 %v4574, %v4824
    %4826 = vmatprep.mubr.bf16.mxu0 0
    %4827 = vmatmul.mubr.bf16.gmra.mrb[0].mxu0 %v4616
    %v4828 = vpop.f32.mrb[0].mxu0
    %v4829 = vadd.f32 %v4579, %v4828
    %v4830 = vpop.f32.mrb[0].mxu0
    %v4831 = vadd.f32 %v4579, %v4830
    %v4832 = vpop.f32.mrb[0].mxu0
    %v4833 = vadd.f32 %v4584, %v4832
    %v4834 = vpop.f32.mrb[0].mxu0
    %v4835 = vadd.f32 %v4584, %v4834
    %4836 = vdwg.mxu0
    %4837 = vmatprep.subr.bf16.mxu0 %v4409
    %4838 = vmatpush1.bf16.msra.mxu0 %v4408
    %4839 = vmatprep.subr.bf16.mxu0 %v4441
    %4840 = vmatpush1.bf16.msra.mxu0 %v4440
    %4841 = vmatprep.subr.bf16.mxu0 %v4473
    %4842 = vmatpush1.bf16.msra.mxu0 %v4472
    %4843 = vmatprep.subr.bf16.mxu0 %v4505
    %4844 = vmatpush1.bf16.msra.mxu0 %v4504
    %4845 = vmatprep.subr.bf16.mxu0 0
    %4846 = vmatpush1.bf16.msra.mxu0 0
    %4847 = vmatprep.subr.bf16.mxu0 0
    %4848 = vmatpush1.bf16.msra.mxu0 0
    %4849 = vmatprep.subr.bf16.mxu0 0
    %4850 = vmatpush1.bf16.msra.mxu0 0
    %4851 = vmatprep.subr.bf16.mxu0 0
    %4852 = vmatpush1.bf16.msra.mxu0 0
    %4853 = vmatprep.subr.bf16.mxu0 0
    %4854 = vmatpush1.bf16.msra.mxu0 0
    %4855 = vmatprep.subr.bf16.mxu0 0
    %4856 = vmatpush1.bf16.msra.mxu0 0
    %4857 = vmatprep.subr.bf16.mxu0 0
    %4858 = vmatpush1.bf16.msra.mxu0 0
    %4859 = vmatprep.subr.bf16.mxu0 0
    %4860 = vmatpush1.bf16.msra.mxu0 0
    %4861 = vmatprep.subr.bf16.mxu0 0
    %4862 = vmatpush1.bf16.msra.mxu0 0
    %4863 = vmatprep.subr.bf16.mxu0 0
    %4864 = vmatpush1.bf16.msra.mxu0 0
    %4865 = vmatprep.subr.bf16.mxu0 0
    %4866 = vmatpush1.bf16.msra.mxu0 0
    %4867 = vmatprep.subr.bf16.mxu0 0
    %4868 = vmatpush1.bf16.msra.mxu0 0
    %4869 = vmatprep.mubr.bf16.mxu0 0
    %4870 = vmatmul.mubr.bf16.gmra.mrb[0].mxu0 %v4607
    %v4871 = vpop.f32.mrb[0].mxu0
    %v4872 = vadd.f32 %v4549, %v4871
    %v4873 = vpop.f32.mrb[0].mxu0
    %v4874 = vadd.f32 %v4549, %v4873
    %v4875 = vpop.f32.mrb[0].mxu0
    %v4876 = vadd.f32 %v4554, %v4875
    %v4877 = vpop.f32.mrb[0].mxu0
    %v4878 = vadd.f32 %v4554, %v4877
    %4879 = vmatprep.mubr.bf16.mxu0 0
    %4880 = vmatmul.mubr.bf16.gmra.mrb[0].mxu0 %v4610
    %v4881 = vpop.f32.mrb[0].mxu0
    %v4882 = vadd.f32 %v4559, %v4881
    %v4883 = vpop.f32.mrb[0].mxu0
    %v4884 = vadd.f32 %v4559, %v4883
    %v4885 = vpop.f32.mrb[0].mxu0
    %v4886 = vadd.f32 %v4564, %v4885
    %v4887 = vpop.f32.mrb[0].mxu0
    %v4888 = vadd.f32 %v4564, %v4887
    %4889 = vmatprep.mubr.bf16.mxu0 0
    %4890 = vmatmul.mubr.bf16.gmra.mrb[0].mxu0 %v4613
    %v4891 = vpop.f32.mrb[0].mxu0
    %v4892 = vadd.f32 %v4569, %v4891
    %v4893 = vpop.f32.mrb[0].mxu0
    %v4894 = vadd.f32 %v4569, %v4893
    %v4895 = vpop.f32.mrb[0].mxu0
    %v4896 = vadd.f32 %v4574, %v4895
    %v4897 = vpop.f32.mrb[0].mxu0
    %v4898 = vadd.f32 %v4574, %v4897
    %4899 = vmatprep.mubr.bf16.mxu0 0
    %4900 = vmatmul.mubr.bf16.gmra.mrb[0].mxu0 %v4616
    %v4901 = vpop.f32.mrb[0].mxu0
    %v4902 = vadd.f32 %v4579, %v4901
    %v4903 = vpop.f32.mrb[0].mxu0
    %v4904 = vadd.f32 %v4579, %v4903
    %v4905 = vpop.f32.mrb[0].mxu0
    %v4906 = vadd.f32 %v4584, %v4905
    %v4907 = vpop.f32.mrb[0].mxu0
    %v4908 = vadd.f32 %v4584, %v4907
    %4909 = vdwg.mxu0
    %4910 = vmatprep.subr.bf16.mxu0 %v4411
    %4911 = vmatpush1.bf16.msra.mxu0 %v4410
    %4912 = vmatprep.subr.bf16.mxu0 %v4443
    %4913 = vmatpush1.bf16.msra.mxu0 %v4442
    %4914 = vmatprep.subr.bf16.mxu0 %v4475
    %4915 = vmatpush1.bf16.msra.mxu0 %v4474
    %4916 = vmatprep.subr.bf16.mxu0 %v4507
    %4917 = vmatpush1.bf16.msra.mxu0 %v4506
    %4918 = vmatprep.subr.bf16.mxu0 0
    %4919 = vmatpush1.bf16.msra.mxu0 0
    %4920 = vmatprep.subr.bf16.mxu0 0
    %4921 = vmatpush1.bf16.msra.mxu0 0
    %4922 = vmatprep.subr.bf16.mxu0 0
    %4923 = vmatpush1.bf16.msra.mxu0 0
    %4924 = vmatprep.subr.bf16.mxu0 0
    %4925 = vmatpush1.bf16.msra.mxu0 0
    %4926 = vmatprep.subr.bf16.mxu0 0
    %4927 = vmatpush1.bf16.msra.mxu0 0
    %4928 = vmatprep.subr.bf16.mxu0 0
    %4929 = vmatpush1.bf16.msra.mxu0 0
    %4930 = vmatprep.subr.bf16.mxu0 0
    %4931 = vmatpush1.bf16.msra.mxu0 0
    %4932 = vmatprep.subr.bf16.mxu0 0
    %4933 = vmatpush1.bf16.msra.mxu0 0
    %4934 = vmatprep.subr.bf16.mxu0 0
    %4935 = vmatpush1.bf16.msra.mxu0 0
    %4936 = vmatprep.subr.bf16.mxu0 0
    %4937 = vmatpush1.bf16.msra.mxu0 0
    %4938 = vmatprep.subr.bf16.mxu0 0
    %4939 = vmatpush1.bf16.msra.mxu0 0
    %4940 = vmatprep.subr.bf16.mxu0 0
    %4941 = vmatpush1.bf16.msra.mxu0 0
    %4942 = vmatprep.mubr.bf16.mxu0 0
    %4943 = vmatmul.mubr.bf16.gmra.mrb[0].mxu0 %v4607
    %v4944 = vpop.f32.mrb[0].mxu0
    %v4945 = vadd.f32 %v4549, %v4944
    %v4946 = vpop.f32.mrb[0].mxu0
    %v4947 = vadd.f32 %v4549, %v4946
    %v4948 = vpop.f32.mrb[0].mxu0
    %v4949 = vadd.f32 %v4554, %v4948
    %v4950 = vpop.f32.mrb[0].mxu0
    %v4951 = vadd.f32 %v4554, %v4950
    %4952 = vmatprep.mubr.bf16.mxu0 0
    %4953 = vmatmul.mubr.bf16.gmra.mrb[0].mxu0 %v4610
    %v4954 = vpop.f32.mrb[0].mxu0
    %v4955 = vadd.f32 %v4559, %v4954
    %v4956 = vpop.f32.mrb[0].mxu0
    %v4957 = vadd.f32 %v4559, %v4956
    %v4958 = vpop.f32.mrb[0].mxu0
    %v4959 = vadd.f32 %v4564, %v4958
    %v4960 = vpop.f32.mrb[0].mxu0
    %v4961 = vadd.f32 %v4564, %v4960
    %4962 = vmatprep.mubr.bf16.mxu0 0
    %4963 = vmatmul.mubr.bf16.gmra.mrb[0].mxu0 %v4613
    %v4964 = vpop.f32.mrb[0].mxu0
    %v4965 = vadd.f32 %v4569, %v4964
    %v4966 = vpop.f32.mrb[0].mxu0
    %v4967 = vadd.f32 %v4569, %v4966
    %v4968 = vpop.f32.mrb[0].mxu0
    %v4969 = vadd.f32 %v4574, %v4968
    %v4970 = vpop.f32.mrb[0].mxu0
    %v4971 = vadd.f32 %v4574, %v4970
    %4972 = vmatprep.mubr.bf16.mxu0 0
    %4973 = vmatmul.mubr.bf16.gmra.mrb[0].mxu0 %v4616
    %v4974 = vpop.f32.mrb[0].mxu0
    %v4975 = vadd.f32 %v4579, %v4974
    %v4976 = vpop.f32.mrb[0].mxu0
    %v4977 = vadd.f32 %v4579, %v4976
    %v4978 = vpop.f32.mrb[0].mxu0
    %v4979 = vadd.f32 %v4584, %v4978
    %v4980 = vpop.f32.mrb[0].mxu0
    %v4981 = vadd.f32 %v4584, %v4980
    %4982 = vdwg.mxu0
    %4983 = vmatprep.subr.bf16.mxu0 %v4413
    %4984 = vmatpush1.bf16.msra.mxu0 %v4412
    %4985 = vmatprep.subr.bf16.mxu0 %v4445
    %4986 = vmatpush1.bf16.msra.mxu0 %v4444
    %4987 = vmatprep.subr.bf16.mxu0 %v4477
    %4988 = vmatpush1.bf16.msra.mxu0 %v4476
    %4989 = vmatprep.subr.bf16.mxu0 %v4509
    %4990 = vmatpush1.bf16.msra.mxu0 %v4508
    %4991 = vmatprep.subr.bf16.mxu0 0
    %4992 = vmatpush1.bf16.msra.mxu0 0
    %4993 = vmatprep.subr.bf16.mxu0 0
    %4994 = vmatpush1.bf16.msra.mxu0 0
    %4995 = vmatprep.subr.bf16.mxu0 0
    %4996 = vmatpush1.bf16.msra.mxu0 0
    %4997 = vmatprep.subr.bf16.mxu0 0
    %4998 = vmatpush1.bf16.msra.mxu0 0
    %4999 = vmatprep.subr.bf16.mxu0 0
    %5000 = vmatpush1.bf16.msra.mxu0 0
    %5001 = vmatprep.subr.bf16.mxu0 0
    %5002 = vmatpush1.bf16.msra.mxu0 0
    %5003 = vmatprep.subr.bf16.mxu0 0
    %5004 = vmatpush1.bf16.msra.mxu0 0
    %5005 = vmatprep.subr.bf16.mxu0 0
    %5006 = vmatpush1.bf16.msra.mxu0 0
    %5007 = vmatprep.subr.bf16.mxu0 0
    %5008 = vmatpush1.bf16.msra.mxu0 0
    %5009 = vmatprep.subr.bf16.mxu0 0
    %5010 = vmatpush1.bf16.msra.mxu0 0
    %5011 = vmatprep.subr.bf16.mxu0 0
    %5012 = vmatpush1.bf16.msra.mxu0 0
    %5013 = vmatprep.subr.bf16.mxu0 0
    %5014 = vmatpush1.bf16.msra.mxu0 0
    %5015 = vmatprep.mubr.bf16.mxu0 0
    %5016 = vmatmul.mubr.bf16.gmra.mrb[0].mxu0 %v4607
    %v5017 = vpop.f32.mrb[0].mxu0
    %v5018 = vadd.f32 %v4549, %v5017
    %v5019 = vpop.f32.mrb[0].mxu0
    %v5020 = vadd.f32 %v4549, %v5019
    %v5021 = vpop.f32.mrb[0].mxu0
    %v5022 = vadd.f32 %v4554, %v5021
    %v5023 = vpop.f32.mrb[0].mxu0
    %v5024 = vadd.f32 %v4554, %v5023
    %5025 = vmatprep.mubr.bf16.mxu0 0
    %5026 = vmatmul.mubr.bf16.gmra.mrb[0].mxu0 %v4610
    %v5027 = vpop.f32.mrb[0].mxu0
    %v5028 = vadd.f32 %v4559, %v5027
    %v5029 = vpop.f32.mrb[0].mxu0
    %v5030 = vadd.f32 %v4559, %v5029
    %v5031 = vpop.f32.mrb[0].mxu0
    %v5032 = vadd.f32 %v4564, %v5031
    %v5033 = vpop.f32.mrb[0].mxu0
    %v5034 = vadd.f32 %v4564, %v5033
    %5035 = vmatprep.mubr.bf16.mxu0 0
    %5036 = vmatmul.mubr.bf16.gmra.mrb[0].mxu0 %v4613
    %v5037 = vpop.f32.mrb[0].mxu0
    %v5038 = vadd.f32 %v4569, %v5037
    %v5039 = vpop.f32.mrb[0].mxu0
    %v5040 = vadd.f32 %v4569, %v5039
    %v5041 = vpop.f32.mrb[0].mxu0
    %v5042 = vadd.f32 %v4574, %v5041
    %v5043 = vpop.f32.mrb[0].mxu0
    %v5044 = vadd.f32 %v4574, %v5043
    %5045 = vmatprep.mubr.bf16.mxu0 0
    %5046 = vmatmul.mubr.bf16.gmra.mrb[0].mxu0 %v4616
    %v5047 = vpop.f32.mrb[0].mxu0
    %v5048 = vadd.f32 %v4579, %v5047
    %v5049 = vpop.f32.mrb[0].mxu0
    %v5050 = vadd.f32 %v4579, %v5049
    %v5051 = vpop.f32.mrb[0].mxu0
    %v5052 = vadd.f32 %v4584, %v5051
    %v5053 = vpop.f32.mrb[0].mxu0
    %v5054 = vadd.f32 %v4584, %v5053
    %5055 = vdwg.mxu0
    %5056 = vmatprep.subr.bf16.mxu0 %v4415
    %5057 = vmatpush1.bf16.msra.mxu0 %v4414
    %5058 = vmatprep.subr.bf16.mxu0 %v4447
    %5059 = vmatpush1.bf16.msra.mxu0 %v4446
    %5060 = vmatprep.subr.bf16.mxu0 %v4479
    %5061 = vmatpush1.bf16.msra.mxu0 %v4478
    %5062 = vmatprep.subr.bf16.mxu0 %v4511
    %5063 = vmatpush1.bf16.msra.mxu0 %v4510
    %5064 = vmatprep.subr.bf16.mxu0 0
    %5065 = vmatpush1.bf16.msra.mxu0 0
    %5066 = vmatprep.subr.bf16.mxu0 0
    %5067 = vmatpush1.bf16.msra.mxu0 0
    %5068 = vmatprep.subr.bf16.mxu0 0
    %5069 = vmatpush1.bf16.msra.mxu0 0
    %5070 = vmatprep.subr.bf16.mxu0 0
    %5071 = vmatpush1.bf16.msra.mxu0 0
    %5072 = vmatprep.subr.bf16.mxu0 0
    %5073 = vmatpush1.bf16.msra.mxu0 0
    %5074 = vmatprep.subr.bf16.mxu0 0
    %5075 = vmatpush1.bf16.msra.mxu0 0
    %5076 = vmatprep.subr.bf16.mxu0 0
    %5077 = vmatpush1.bf16.msra.mxu0 0
    %5078 = vmatprep.subr.bf16.mxu0 0
    %5079 = vmatpush1.bf16.msra.mxu0 0
    %5080 = vmatprep.subr.bf16.mxu0 0
    %5081 = vmatpush1.bf16.msra.mxu0 0
    %5082 = vmatprep.subr.bf16.mxu0 0
    %5083 = vmatpush1.bf16.msra.mxu0 0
    %5084 = vmatprep.subr.bf16.mxu0 0
    %5085 = vmatpush1.bf16.msra.mxu0 0
    %5086 = vmatprep.subr.bf16.mxu0 0
    %5087 = vmatpush1.bf16.msra.mxu0 0
    %5088 = vmatprep.mubr.bf16.mxu0 0
    %5089 = vmatmul.mubr.bf16.gmra.mrb[0].mxu0 %v4607
    %v5090 = vpop.f32.mrb[0].mxu0
    %v5091 = vadd.f32 %v4549, %v5090
    %v5092 = vpop.f32.mrb[0].mxu0
    %v5093 = vadd.f32 %v4549, %v5092
    %v5094 = vpop.f32.mrb[0].mxu0
    %v5095 = vadd.f32 %v4554, %v5094
    %v5096 = vpop.f32.mrb[0].mxu0
    %v5097 = vadd.f32 %v4554, %v5096
    %5098 = vmatprep.mubr.bf16.mxu0 0
    %5099 = vmatmul.mubr.bf16.gmra.mrb[0].mxu0 %v4610
    %v5100 = vpop.f32.mrb[0].mxu0
    %v5101 = vadd.f32 %v4559, %v5100
    %v5102 = vpop.f32.mrb[0].mxu0
    %v5103 = vadd.f32 %v4559, %v5102
    %v5104 = vpop.f32.mrb[0].mxu0
    %v5105 = vadd.f32 %v4564, %v5104
    %v5106 = vpop.f32.mrb[0].mxu0
    %v5107 = vadd.f32 %v4564, %v5106
    %5108 = vmatprep.mubr.bf16.mxu0 0
    %5109 = vmatmul.mubr.bf16.gmra.mrb[0].mxu0 %v4613
    %v5110 = vpop.f32.mrb[0].mxu0
    %v5111 = vadd.f32 %v4569, %v5110
    %v5112 = vpop.f32.mrb[0].mxu0
    %v5113 = vadd.f32 %v4569, %v5112
    %v5114 = vpop.f32.mrb[0].mxu0
    %v5115 = vadd.f32 %v4574, %v5114
    %v5116 = vpop.f32.mrb[0].mxu0
    %v5117 = vadd.f32 %v4574, %v5116
    %5118 = vmatprep.mubr.bf16.mxu0 0
    %5119 = vmatmul.mubr.bf16.gmra.mrb[0].mxu0 %v4616
    %v5120 = vpop.f32.mrb[0].mxu0
    %v5121 = vadd.f32 %v4579, %v5120
    %v5122 = vpop.f32.mrb[0].mxu0
    %v5123 = vadd.f32 %v4579, %v5122
    %v5124 = vpop.f32.mrb[0].mxu0
    %v5125 = vadd.f32 %v4584, %v5124
    %v5126 = vpop.f32.mrb[0].mxu0
    %v5127 = vadd.f32 %v4584, %v5126
    %5128 = vdwg.mxu0
    %5129 = vmatprep.subr.bf16.mxu0 %v4417
    %5130 = vmatpush1.bf16.msra.mxu0 %v4416
    %5131 = vmatprep.subr.bf16.mxu0 %v4449
    %5132 = vmatpush1.bf16.msra.mxu0 %v4448
    %5133 = vmatprep.subr.bf16.mxu0 %v4481
    %5134 = vmatpush1.bf16.msra.mxu0 %v4480
    %5135 = vmatprep.subr.bf16.mxu0 %v4513
    %5136 = vmatpush1.bf16.msra.mxu0 %v4512
    %5137 = vmatprep.subr.bf16.mxu0 0
    %5138 = vmatpush1.bf16.msra.mxu0 0
    %5139 = vmatprep.subr.bf16.mxu0 0
    %5140 = vmatpush1.bf16.msra.mxu0 0
    %5141 = vmatprep.subr.bf16.mxu0 0
    %5142 = vmatpush1.bf16.msra.mxu0 0
    %5143 = vmatprep.subr.bf16.mxu0 0
    %5144 = vmatpush1.bf16.msra.mxu0 0
    %5145 = vmatprep.subr.bf16.mxu0 0
    %5146 = vmatpush1.bf16.msra.mxu0 0
    %5147 = vmatprep.subr.bf16.mxu0 0
    %5148 = vmatpush1.bf16.msra.mxu0 0
    %5149 = vmatprep.subr.bf16.mxu0 0
    %5150 = vmatpush1.bf16.msra.mxu0 0
    %5151 = vmatprep.subr.bf16.mxu0 0
    %5152 = vmatpush1.bf16.msra.mxu0 0
    %5153 = vmatprep.subr.bf16.mxu0 0
    %5154 = vmatpush1.bf16.msra.mxu0 0
    %5155 = vmatprep.subr.bf16.mxu0 0
    %5156 = vmatpush1.bf16.msra.mxu0 0
    %5157 = vmatprep.subr.bf16.mxu0 0
    %5158 = vmatpush1.bf16.msra.mxu0 0
    %5159 = vmatprep.subr.bf16.mxu0 0
    %5160 = vmatpush1.bf16.msra.mxu0 0
    %5161 = vmatprep.mubr.bf16.mxu0 0
    %5162 = vmatmul.mubr.bf16.gmra.mrb[0].mxu0 %v4607
    %v5163 = vpop.f32.mrb[0].mxu0
    %v5164 = vadd.f32 %v4549, %v5163
    %v5165 = vpop.f32.mrb[0].mxu0
    %v5166 = vadd.f32 %v4549, %v5165
    %v5167 = vpop.f32.mrb[0].mxu0
    %v5168 = vadd.f32 %v4554, %v5167
    %v5169 = vpop.f32.mrb[0].mxu0
    %v5170 = vadd.f32 %v4554, %v5169
    %5171 = vmatprep.mubr.bf16.mxu0 0
    %5172 = vmatmul.mubr.bf16.gmra.mrb[0].mxu0 %v4610
    %v5173 = vpop.f32.mrb[0].mxu0
    %v5174 = vadd.f32 %v4559, %v5173
    %v5175 = vpop.f32.mrb[0].mxu0
    %v5176 = vadd.f32 %v4559, %v5175
    %v5177 = vpop.f32.mrb[0].mxu0
    %v5178 = vadd.f32 %v4564, %v5177
    %v5179 = vpop.f32.mrb[0].mxu0
    %v5180 = vadd.f32 %v4564, %v5179
    %5181 = vmatprep.mubr.bf16.mxu0 0
    %5182 = vmatmul.mubr.bf16.gmra.mrb[0].mxu0 %v4613
    %v5183 = vpop.f32.mrb[0].mxu0
    %v5184 = vadd.f32 %v4569, %v5183
    %v5185 = vpop.f32.mrb[0].mxu0
    %v5186 = vadd.f32 %v4569, %v5185
    %v5187 = vpop.f32.mrb[0].mxu0
    %v5188 = vadd.f32 %v4574, %v5187
    %v5189 = vpop.f32.mrb[0].mxu0
    %v5190 = vadd.f32 %v4574, %v5189
    %5191 = vmatprep.mubr.bf16.mxu0 0
    %5192 = vmatmul.mubr.bf16.gmra.mrb[0].mxu0 %v4616
    %v5193 = vpop.f32.mrb[0].mxu0
    %v5194 = vadd.f32 %v4579, %v5193
    %v5195 = vpop.f32.mrb[0].mxu0
    %v5196 = vadd.f32 %v4579, %v5195
    %v5197 = vpop.f32.mrb[0].mxu0
    %v5198 = vadd.f32 %v4584, %v5197
    %v5199 = vpop.f32.mrb[0].mxu0
    %v5200 = vadd.f32 %v4584, %v5199
    %5201 = vdwg.mxu0
    %5202 = vmatprep.subr.bf16.mxu0 %v4419
    %5203 = vmatpush1.bf16.msra.mxu0 %v4418
    %5204 = vmatprep.subr.bf16.mxu0 %v4451
    %5205 = vmatpush1.bf16.msra.mxu0 %v4450
    %5206 = vmatprep.subr.bf16.mxu0 %v4483
    %5207 = vmatpush1.bf16.msra.mxu0 %v4482
    %5208 = vmatprep.subr.bf16.mxu0 %v4515
    %5209 = vmatpush1.bf16.msra.mxu0 %v4514
    %5210 = vmatprep.subr.bf16.mxu0 0
    %5211 = vmatpush1.bf16.msra.mxu0 0
    %5212 = vmatprep.subr.bf16.mxu0 0
    %5213 = vmatpush1.bf16.msra.mxu0 0
    %5214 = vmatprep.subr.bf16.mxu0 0
    %5215 = vmatpush1.bf16.msra.mxu0 0
    %5216 = vmatprep.subr.bf16.mxu0 0
    %5217 = vmatpush1.bf16.msra.mxu0 0
    %5218 = vmatprep.subr.bf16.mxu0 0
    %5219 = vmatpush1.bf16.msra.mxu0 0
    %5220 = vmatprep.subr.bf16.mxu0 0
    %5221 = vmatpush1.bf16.msra.mxu0 0
    %5222 = vmatprep.subr.bf16.mxu0 0
    %5223 = vmatpush1.bf16.msra.mxu0 0
    %5224 = vmatprep.subr.bf16.mxu0 0
    %5225 = vmatpush1.bf16.msra.mxu0 0
    %5226 = vmatprep.subr.bf16.mxu0 0
    %5227 = vmatpush1.bf16.msra.mxu0 0
    %5228 = vmatprep.subr.bf16.mxu0 0
    %5229 = vmatpush1.bf16.msra.mxu0 0
    %5230 = vmatprep.subr.bf16.mxu0 0
    %5231 = vmatpush1.bf16.msra.mxu0 0
    %5232 = vmatprep.subr.bf16.mxu0 0
    %5233 = vmatpush1.bf16.msra.mxu0 0
    %5234 = vmatprep.mubr.bf16.mxu0 0
    %5235 = vmatmul.mubr.bf16.gmra.mrb[0].mxu0 %v4607
    %v5236 = vpop.f32.mrb[0].mxu0
    %v5237 = vadd.f32 %v4549, %v5236
    %v5238 = vpop.f32.mrb[0].mxu0
    %v5239 = vadd.f32 %v4549, %v5238
    %v5240 = vpop.f32.mrb[0].mxu0
    %v5241 = vadd.f32 %v4554, %v5240
    %v5242 = vpop.f32.mrb[0].mxu0
    %v5243 = vadd.f32 %v4554, %v5242
    %5244 = vmatprep.mubr.bf16.mxu0 0
    %5245 = vmatmul.mubr.bf16.gmra.mrb[0].mxu0 %v4610
    %v5246 = vpop.f32.mrb[0].mxu0
    %v5247 = vadd.f32 %v4559, %v5246
    %v5248 = vpop.f32.mrb[0].mxu0
    %v5249 = vadd.f32 %v4559, %v5248
    %v5250 = vpop.f32.mrb[0].mxu0
    %v5251 = vadd.f32 %v4564, %v5250
    %v5252 = vpop.f32.mrb[0].mxu0
    %v5253 = vadd.f32 %v4564, %v5252
    %5254 = vmatprep.mubr.bf16.mxu0 0
    %5255 = vmatmul.mubr.bf16.gmra.mrb[0].mxu0 %v4613
    %v5256 = vpop.f32.mrb[0].mxu0
    %v5257 = vadd.f32 %v4569, %v5256
    %v5258 = vpop.f32.mrb[0].mxu0
    %v5259 = vadd.f32 %v4569, %v5258
    %v5260 = vpop.f32.mrb[0].mxu0
    %v5261 = vadd.f32 %v4574, %v5260
    %v5262 = vpop.f32.mrb[0].mxu0
    %v5263 = vadd.f32 %v4574, %v5262
    %5264 = vmatprep.mubr.bf16.mxu0 0
    %5265 = vmatmul.mubr.bf16.gmra.mrb[0].mxu0 %v4616
    %v5266 = vpop.f32.mrb[0].mxu0
    %v5267 = vadd.f32 %v4579, %v5266
    %v5268 = vpop.f32.mrb[0].mxu0
    %v5269 = vadd.f32 %v4579, %v5268
    %v5270 = vpop.f32.mrb[0].mxu0
    %v5271 = vadd.f32 %v4584, %v5270
    %v5272 = vpop.f32.mrb[0].mxu0
    %v5273 = vadd.f32 %v4584, %v5272
    %5274 = vdwg.mxu0
    %5275 = vmatprep.subr.bf16.mxu0 %v4421
    %5276 = vmatpush1.bf16.msra.mxu0 %v4420
    %5277 = vmatprep.subr.bf16.mxu0 %v4453
    %5278 = vmatpush1.bf16.msra.mxu0 %v4452
    %5279 = vmatprep.subr.bf16.mxu0 %v4485
    %5280 = vmatpush1.bf16.msra.mxu0 %v4484
    %5281 = vmatprep.subr.bf16.mxu0 %v4517
    %5282 = vmatpush1.bf16.msra.mxu0 %v4516
    %5283 = vmatprep.subr.bf16.mxu0 0
    %5284 = vmatpush1.bf16.msra.mxu0 0
    %5285 = vmatprep.subr.bf16.mxu0 0
    %5286 = vmatpush1.bf16.msra.mxu0 0
    %5287 = vmatprep.subr.bf16.mxu0 0
    %5288 = vmatpush1.bf16.msra.mxu0 0
    %5289 = vmatprep.subr.bf16.mxu0 0
    %5290 = vmatpush1.bf16.msra.mxu0 0
    %5291 = vmatprep.subr.bf16.mxu0 0
    %5292 = vmatpush1.bf16.msra.mxu0 0
    %5293 = vmatprep.subr.bf16.mxu0 0
    %5294 = vmatpush1.bf16.msra.mxu0 0
    %5295 = vmatprep.subr.bf16.mxu0 0
    %5296 = vmatpush1.bf16.msra.mxu0 0
    %5297 = vmatprep.subr.bf16.mxu0 0
    %5298 = vmatpush1.bf16.msra.mxu0 0
    %5299 = vmatprep.subr.bf16.mxu0 0
    %5300 = vmatpush1.bf16.msra.mxu0 0
    %5301 = vmatprep.subr.bf16.mxu0 0
    %5302 = vmatpush1.bf16.msra.mxu0 0
    %5303 = vmatprep.subr.bf16.mxu0 0
    %5304 = vmatpush1.bf16.msra.mxu0 0
    %5305 = vmatprep.subr.bf16.mxu0 0
    %5306 = vmatpush1.bf16.msra.mxu0 0
    %5307 = vmatprep.mubr.bf16.mxu0 0
    %5308 = vmatmul.mubr.bf16.gmra.mrb[0].mxu0 %v4607
    %v5309 = vpop.f32.mrb[0].mxu0
    %v5310 = vadd.f32 %v4549, %v5309
    %v5311 = vpop.f32.mrb[0].mxu0
    %v5312 = vadd.f32 %v4549, %v5311
    %v5313 = vpop.f32.mrb[0].mxu0
    %v5314 = vadd.f32 %v4554, %v5313
    %v5315 = vpop.f32.mrb[0].mxu0
    %v5316 = vadd.f32 %v4554, %v5315
    %5317 = vmatprep.mubr.bf16.mxu0 0
    %5318 = vmatmul.mubr.bf16.gmra.mrb[0].mxu0 %v4610
    %v5319 = vpop.f32.mrb[0].mxu0
    %v5320 = vadd.f32 %v4559, %v5319
    %v5321 = vpop.f32.mrb[0].mxu0
    %v5322 = vadd.f32 %v4559, %v5321
    %v5323 = vpop.f32.mrb[0].mxu0
    %v5324 = vadd.f32 %v4564, %v5323
    %v5325 = vpop.f32.mrb[0].mxu0
    %v5326 = vadd.f32 %v4564, %v5325
    %5327 = vmatprep.mubr.bf16.mxu0 0
    %5328 = vmatmul.mubr.bf16.gmra.mrb[0].mxu0 %v4613
    %v5329 = vpop.f32.mrb[0].mxu0
    %v5330 = vadd.f32 %v4569, %v5329
    %v5331 = vpop.f32.mrb[0].mxu0
    %v5332 = vadd.f32 %v4569, %v5331
    %v5333 = vpop.f32.mrb[0].mxu0
    %v5334 = vadd.f32 %v4574, %v5333
    %v5335 = vpop.f32.mrb[0].mxu0
    %v5336 = vadd.f32 %v4574, %v5335
    %5337 = vmatprep.mubr.bf16.mxu0 0
    %5338 = vmatmul.mubr.bf16.gmra.mrb[0].mxu0 %v4616
    %v5339 = vpop.f32.mrb[0].mxu0
    %v5340 = vadd.f32 %v4579, %v5339
    %v5341 = vpop.f32.mrb[0].mxu0
    %v5342 = vadd.f32 %v4579, %v5341
    %v5343 = vpop.f32.mrb[0].mxu0
    %v5344 = vadd.f32 %v4584, %v5343
    %v5345 = vpop.f32.mrb[0].mxu0
    %v5346 = vadd.f32 %v4584, %v5345
    %5347 = vdwg.mxu0
    %5348 = vmatprep.subr.bf16.mxu0 %v4423
    %5349 = vmatpush1.bf16.msra.mxu0 %v4422
    %5350 = vmatprep.subr.bf16.mxu0 %v4455
    %5351 = vmatpush1.bf16.msra.mxu0 %v4454
    %5352 = vmatprep.subr.bf16.mxu0 %v4487
    %5353 = vmatpush1.bf16.msra.mxu0 %v4486
    %5354 = vmatprep.subr.bf16.mxu0 %v4519
    %5355 = vmatpush1.bf16.msra.mxu0 %v4518
    %5356 = vmatprep.subr.bf16.mxu0 0
    %5357 = vmatpush1.bf16.msra.mxu0 0
    %5358 = vmatprep.subr.bf16.mxu0 0
    %5359 = vmatpush1.bf16.msra.mxu0 0
    %5360 = vmatprep.subr.bf16.mxu0 0
    %5361 = vmatpush1.bf16.msra.mxu0 0
    %5362 = vmatprep.subr.bf16.mxu0 0
    %5363 = vmatpush1.bf16.msra.mxu0 0
    %5364 = vmatprep.subr.bf16.mxu0 0
    %5365 = vmatpush1.bf16.msra.mxu0 0
    %5366 = vmatprep.subr.bf16.mxu0 0
    %5367 = vmatpush1.bf16.msra.mxu0 0
    %5368 = vmatprep.subr.bf16.mxu0 0
    %5369 = vmatpush1.bf16.msra.mxu0 0
    %5370 = vmatprep.subr.bf16.mxu0 0
    %5371 = vmatpush1.bf16.msra.mxu0 0
    %5372 = vmatprep.subr.bf16.mxu0 0
    %5373 = vmatpush1.bf16.msra.mxu0 0
    %5374 = vmatprep.subr.bf16.mxu0 0
    %5375 = vmatpush1.bf16.msra.mxu0 0
    %5376 = vmatprep.subr.bf16.mxu0 0
    %5377 = vmatpush1.bf16.msra.mxu0 0
    %5378 = vmatprep.subr.bf16.mxu0 0
    %5379 = vmatpush1.bf16.msra.mxu0 0
    %5380 = vmatprep.mubr.bf16.mxu0 0
    %5381 = vmatmul.mubr.bf16.gmra.mrb[0].mxu0 %v4607
    %v5382 = vpop.f32.mrb[0].mxu0
    %v5383 = vadd.f32 %v4549, %v5382
    %v5384 = vpop.f32.mrb[0].mxu0
    %v5385 = vadd.f32 %v4549, %v5384
    %v5386 = vpop.f32.mrb[0].mxu0
    %v5387 = vadd.f32 %v4554, %v5386
    %v5388 = vpop.f32.mrb[0].mxu0
    %v5389 = vadd.f32 %v4554, %v5388
    %5390 = vmatprep.mubr.bf16.mxu0 0
    %5391 = vmatmul.mubr.bf16.gmra.mrb[0].mxu0 %v4610
    %v5392 = vpop.f32.mrb[0].mxu0
    %v5393 = vadd.f32 %v4559, %v5392
    %v5394 = vpop.f32.mrb[0].mxu0
    %v5395 = vadd.f32 %v4559, %v5394
    %v5396 = vpop.f32.mrb[0].mxu0
    %v5397 = vadd.f32 %v4564, %v5396
    %v5398 = vpop.f32.mrb[0].mxu0
    %v5399 = vadd.f32 %v4564, %v5398
    %5400 = vmatprep.mubr.bf16.mxu0 0
    %5401 = vmatmul.mubr.bf16.gmra.mrb[0].mxu0 %v4613
    %v5402 = vpop.f32.mrb[0].mxu0
    %v5403 = vadd.f32 %v4569, %v5402
    %v5404 = vpop.f32.mrb[0].mxu0
    %v5405 = vadd.f32 %v4569, %v5404
    %v5406 = vpop.f32.mrb[0].mxu0
    %v5407 = vadd.f32 %v4574, %v5406
    %v5408 = vpop.f32.mrb[0].mxu0
    %v5409 = vadd.f32 %v4574, %v5408
    %5410 = vmatprep.mubr.bf16.mxu0 0
    %5411 = vmatmul.mubr.bf16.gmra.mrb[0].mxu0 %v4616
    %v5412 = vpop.f32.mrb[0].mxu0
    %v5413 = vadd.f32 %v4579, %v5412
    %v5414 = vpop.f32.mrb[0].mxu0
    %v5415 = vadd.f32 %v4579, %v5414
    %v5416 = vpop.f32.mrb[0].mxu0
    %v5417 = vadd.f32 %v4584, %v5416
    %v5418 = vpop.f32.mrb[0].mxu0
    %v5419 = vadd.f32 %v4584, %v5418
    %5420 = vdwg.mxu0
    %5421 = vmatprep.subr.bf16.mxu0 %v4425
    %5422 = vmatpush1.bf16.msra.mxu0 %v4424
    %5423 = vmatprep.subr.bf16.mxu0 %v4457
    %5424 = vmatpush1.bf16.msra.mxu0 %v4456
    %5425 = vmatprep.subr.bf16.mxu0 %v4489
    %5426 = vmatpush1.bf16.msra.mxu0 %v4488
    %5427 = vmatprep.subr.bf16.mxu0 %v4521
    %5428 = vmatpush1.bf16.msra.mxu0 %v4520
    %5429 = vmatprep.subr.bf16.mxu0 0
    %5430 = vmatpush1.bf16.msra.mxu0 0
    %5431 = vmatprep.subr.bf16.mxu0 0
    %5432 = vmatpush1.bf16.msra.mxu0 0
    %5433 = vmatprep.subr.bf16.mxu0 0
    %5434 = vmatpush1.bf16.msra.mxu0 0
    %5435 = vmatprep.subr.bf16.mxu0 0
    %5436 = vmatpush1.bf16.msra.mxu0 0
    %5437 = vmatprep.subr.bf16.mxu0 0
    %5438 = vmatpush1.bf16.msra.mxu0 0
    %5439 = vmatprep.subr.bf16.mxu0 0
    %5440 = vmatpush1.bf16.msra.mxu0 0
    %5441 = vmatprep.subr.bf16.mxu0 0
    %5442 = vmatpush1.bf16.msra.mxu0 0
    %5443 = vmatprep.subr.bf16.mxu0 0
    %5444 = vmatpush1.bf16.msra.mxu0 0
    %5445 = vmatprep.subr.bf16.mxu0 0
    %5446 = vmatpush1.bf16.msra.mxu0 0
    %5447 = vmatprep.subr.bf16.mxu0 0
    %5448 = vmatpush1.bf16.msra.mxu0 0
    %5449 = vmatprep.subr.bf16.mxu0 0
    %5450 = vmatpush1.bf16.msra.mxu0 0
    %5451 = vmatprep.subr.bf16.mxu0 0
    %5452 = vmatpush1.bf16.msra.mxu0 0
    %5453 = vmatprep.mubr.bf16.mxu0 0
    %5454 = vmatmul.mubr.bf16.gmra.mrb[0].mxu0 %v4607
    %v5455 = vpop.f32.mrb[0].mxu0
    %v5456 = vadd.f32 %v4549, %v5455
    %v5457 = vpop.f32.mrb[0].mxu0
    %v5458 = vadd.f32 %v4549, %v5457
    %v5459 = vpop.f32.mrb[0].mxu0
    %v5460 = vadd.f32 %v4554, %v5459
    %v5461 = vpop.f32.mrb[0].mxu0
    %v5462 = vadd.f32 %v4554, %v5461
    %5463 = vmatprep.mubr.bf16.mxu0 0
    %5464 = vmatmul.mubr.bf16.gmra.mrb[0].mxu0 %v4610
    %v5465 = vpop.f32.mrb[0].mxu0
    %v5466 = vadd.f32 %v4559, %v5465
    %v5467 = vpop.f32.mrb[0].mxu0
    %v5468 = vadd.f32 %v4559, %v5467
    %v5469 = vpop.f32.mrb[0].mxu0
    %v5470 = vadd.f32 %v4564, %v5469
    %v5471 = vpop.f32.mrb[0].mxu0
    %v5472 = vadd.f32 %v4564, %v5471
    %5473 = vmatprep.mubr.bf16.mxu0 0
    %5474 = vmatmul.mubr.bf16.gmra.mrb[0].mxu0 %v4613
    %v5475 = vpop.f32.mrb[0].mxu0
    %v5476 = vadd.f32 %v4569, %v5475
    %v5477 = vpop.f32.mrb[0].mxu0
    %v5478 = vadd.f32 %v4569, %v5477
    %v5479 = vpop.f32.mrb[0].mxu0
    %v5480 = vadd.f32 %v4574, %v5479
    %v5481 = vpop.f32.mrb[0].mxu0
    %v5482 = vadd.f32 %v4574, %v5481
    %5483 = vmatprep.mubr.bf16.mxu0 0
    %5484 = vmatmul.mubr.bf16.gmra.mrb[0].mxu0 %v4616
    %v5485 = vpop.f32.mrb[0].mxu0
    %v5486 = vadd.f32 %v4579, %v5485
    %v5487 = vpop.f32.mrb[0].mxu0
    %v5488 = vadd.f32 %v4579, %v5487
    %v5489 = vpop.f32.mrb[0].mxu0
    %v5490 = vadd.f32 %v4584, %v5489
    %v5491 = vpop.f32.mrb[0].mxu0
    %v5492 = vadd.f32 %v4584, %v5491
    %5493 = vdwg.mxu0
    %5494 = vmatprep.subr.bf16.mxu0 %v4427
    %5495 = vmatpush1.bf16.msra.mxu0 %v4426
    %5496 = vmatprep.subr.bf16.mxu0 %v4459
    %5497 = vmatpush1.bf16.msra.mxu0 %v4458
    %5498 = vmatprep.subr.bf16.mxu0 %v4491
    %5499 = vmatpush1.bf16.msra.mxu0 %v4490
    %5500 = vmatprep.subr.bf16.mxu0 %v4523
    %5501 = vmatpush1.bf16.msra.mxu0 %v4522
    %5502 = vmatprep.subr.bf16.mxu0 0
    %5503 = vmatpush1.bf16.msra.mxu0 0
    %5504 = vmatprep.subr.bf16.mxu0 0
    %5505 = vmatpush1.bf16.msra.mxu0 0
    %5506 = vmatprep.subr.bf16.mxu0 0
    %5507 = vmatpush1.bf16.msra.mxu0 0
    %5508 = vmatprep.subr.bf16.mxu0 0
    %5509 = vmatpush1.bf16.msra.mxu0 0
    %5510 = vmatprep.subr.bf16.mxu0 0
    %5511 = vmatpush1.bf16.msra.mxu0 0
    %5512 = vmatprep.subr.bf16.mxu0 0
    %5513 = vmatpush1.bf16.msra.mxu0 0
    %5514 = vmatprep.subr.bf16.mxu0 0
    %5515 = vmatpush1.bf16.msra.mxu0 0
    %5516 = vmatprep.subr.bf16.mxu0 0
    %5517 = vmatpush1.bf16.msra.mxu0 0
    %5518 = vmatprep.subr.bf16.mxu0 0
    %5519 = vmatpush1.bf16.msra.mxu0 0
    %5520 = vmatprep.subr.bf16.mxu0 0
    %5521 = vmatpush1.bf16.msra.mxu0 0
    %5522 = vmatprep.subr.bf16.mxu0 0
    %5523 = vmatpush1.bf16.msra.mxu0 0
    %5524 = vmatprep.subr.bf16.mxu0 0
    %5525 = vmatpush1.bf16.msra.mxu0 0
    %5526 = vmatprep.mubr.bf16.mxu0 0
    %5527 = vmatmul.mubr.bf16.gmra.mrb[0].mxu0 %v4607
    %v5528 = vpop.f32.mrb[0].mxu0
    %v5529 = vadd.f32 %v4549, %v5528
    %v5530 = vpop.f32.mrb[0].mxu0
    %v5531 = vadd.f32 %v4549, %v5530
    %v5532 = vpop.f32.mrb[0].mxu0
    %v5533 = vadd.f32 %v4554, %v5532
    %v5534 = vpop.f32.mrb[0].mxu0
    %v5535 = vadd.f32 %v4554, %v5534
    %5536 = vmatprep.mubr.bf16.mxu0 0
    %5537 = vmatmul.mubr.bf16.gmra.mrb[0].mxu0 %v4610
    %v5538 = vpop.f32.mrb[0].mxu0
    %v5539 = vadd.f32 %v4559, %v5538
    %v5540 = vpop.f32.mrb[0].mxu0
    %v5541 = vadd.f32 %v4559, %v5540
    %v5542 = vpop.f32.mrb[0].mxu0
    %v5543 = vadd.f32 %v4564, %v5542
    %v5544 = vpop.f32.mrb[0].mxu0
    %v5545 = vadd.f32 %v4564, %v5544
    %5546 = vmatprep.mubr.bf16.mxu0 0
    %5547 = vmatmul.mubr.bf16.gmra.mrb[0].mxu0 %v4613
    %v5548 = vpop.f32.mrb[0].mxu0
    %v5549 = vadd.f32 %v4569, %v5548
    %v5550 = vpop.f32.mrb[0].mxu0
    %v5551 = vadd.f32 %v4569, %v5550
    %v5552 = vpop.f32.mrb[0].mxu0
    %v5553 = vadd.f32 %v4574, %v5552
    %v5554 = vpop.f32.mrb[0].mxu0
    %v5555 = vadd.f32 %v4574, %v5554
    %5556 = vmatprep.mubr.bf16.mxu0 0
    %5557 = vmatmul.mubr.bf16.gmra.mrb[0].mxu0 %v4616
    %v5558 = vpop.f32.mrb[0].mxu0
    %v5559 = vadd.f32 %v4579, %v5558
    %v5560 = vpop.f32.mrb[0].mxu0
    %v5561 = vadd.f32 %v4579, %v5560
    %v5562 = vpop.f32.mrb[0].mxu0
    %v5563 = vadd.f32 %v4584, %v5562
    %v5564 = vpop.f32.mrb[0].mxu0
    %v5565 = vadd.f32 %v4584, %v5564
    %5566 = vdwg.mxu0
    %5567 = vmatprep.subr.bf16.mxu0 %v4429
    %5568 = vmatpush1.bf16.msra.mxu0 %v4428
    %5569 = vmatprep.subr.bf16.mxu0 %v4461
    %5570 = vmatpush1.bf16.msra.mxu0 %v4460
    %5571 = vmatprep.subr.bf16.mxu0 %v4493
    %5572 = vmatpush1.bf16.msra.mxu0 %v4492
    %5573 = vmatprep.subr.bf16.mxu0 %v4525
    %5574 = vmatpush1.bf16.msra.mxu0 %v4524
    %5575 = vmatprep.subr.bf16.mxu0 0
    %5576 = vmatpush1.bf16.msra.mxu0 0
    %5577 = vmatprep.subr.bf16.mxu0 0
    %5578 = vmatpush1.bf16.msra.mxu0 0
    %5579 = vmatprep.subr.bf16.mxu0 0
    %5580 = vmatpush1.bf16.msra.mxu0 0
    %5581 = vmatprep.subr.bf16.mxu0 0
    %5582 = vmatpush1.bf16.msra.mxu0 0
    %5583 = vmatprep.subr.bf16.mxu0 0
    %5584 = vmatpush1.bf16.msra.mxu0 0
    %5585 = vmatprep.subr.bf16.mxu0 0
    %5586 = vmatpush1.bf16.msra.mxu0 0
    %5587 = vmatprep.subr.bf16.mxu0 0
    %5588 = vmatpush1.bf16.msra.mxu0 0
    %5589 = vmatprep.subr.bf16.mxu0 0
    %5590 = vmatpush1.bf16.msra.mxu0 0
    %5591 = vmatprep.subr.bf16.mxu0 0
    %5592 = vmatpush1.bf16.msra.mxu0 0
    %5593 = vmatprep.subr.bf16.mxu0 0
    %5594 = vmatpush1.bf16.msra.mxu0 0
    %5595 = vmatprep.subr.bf16.mxu0 0
    %5596 = vmatpush1.bf16.msra.mxu0 0
    %5597 = vmatprep.subr.bf16.mxu0 0
    %5598 = vmatpush1.bf16.msra.mxu0 0
    %5599 = vmatprep.mubr.bf16.mxu0 0
    %5600 = vmatmul.mubr.bf16.gmra.mrb[0].mxu0 %v4607
    %v5601 = vpop.f32.mrb[0].mxu0
    %v5602 = vadd.f32 %v4549, %v5601
    %v5603 = vpop.f32.mrb[0].mxu0
    %v5604 = vadd.f32 %v4549, %v5603
    %v5605 = vpop.f32.mrb[0].mxu0
    %v5606 = vadd.f32 %v4554, %v5605
    %v5607 = vpop.f32.mrb[0].mxu0
    %v5608 = vadd.f32 %v4554, %v5607
    %5609 = vmatprep.mubr.bf16.mxu0 0
    %5610 = vmatmul.mubr.bf16.gmra.mrb[0].mxu0 %v4610
    %v5611 = vpop.f32.mrb[0].mxu0
    %v5612 = vadd.f32 %v4559, %v5611
    %v5613 = vpop.f32.mrb[0].mxu0
    %v5614 = vadd.f32 %v4559, %v5613
    %v5615 = vpop.f32.mrb[0].mxu0
    %v5616 = vadd.f32 %v4564, %v5615
    %v5617 = vpop.f32.mrb[0].mxu0
    %v5618 = vadd.f32 %v4564, %v5617
    %5619 = vmatprep.mubr.bf16.mxu0 0
    %5620 = vmatmul.mubr.bf16.gmra.mrb[0].mxu0 %v4613
    %v5621 = vpop.f32.mrb[0].mxu0
    %v5622 = vadd.f32 %v4569, %v5621
    %v5623 = vpop.f32.mrb[0].mxu0
    %v5624 = vadd.f32 %v4569, %v5623
    %v5625 = vpop.f32.mrb[0].mxu0
    %v5626 = vadd.f32 %v4574, %v5625
    %v5627 = vpop.f32.mrb[0].mxu0
    %v5628 = vadd.f32 %v4574, %v5627
    %5629 = vmatprep.mubr.bf16.mxu0 0
    %5630 = vmatmul.mubr.bf16.gmra.mrb[0].mxu0 %v4616
    %v5631 = vpop.f32.mrb[0].mxu0
    %v5632 = vadd.f32 %v4579, %v5631
    %v5633 = vpop.f32.mrb[0].mxu0
    %v5634 = vadd.f32 %v4579, %v5633
    %v5635 = vpop.f32.mrb[0].mxu0
    %v5636 = vadd.f32 %v4584, %v5635
    %v5637 = vpop.f32.mrb[0].mxu0
    %v5638 = vadd.f32 %v4584, %v5637
    %5639 = vdwg.mxu0
    %5640 = vmatprep.subr.bf16.mxu0 %v4431
    %5641 = vmatpush1.bf16.msra.mxu0 %v4430
    %5642 = vmatprep.subr.bf16.mxu0 %v4463
    %5643 = vmatpush1.bf16.msra.mxu0 %v4462
    %5644 = vmatprep.subr.bf16.mxu0 %v4495
    %5645 = vmatpush1.bf16.msra.mxu0 %v4494
    %5646 = vmatprep.subr.bf16.mxu0 %v4527
    %5647 = vmatpush1.bf16.msra.mxu0 %v4526
    %5648 = vmatprep.subr.bf16.mxu0 0
    %5649 = vmatpush1.bf16.msra.mxu0 0
    %5650 = vmatprep.subr.bf16.mxu0 0
    %5651 = vmatpush1.bf16.msra.mxu0 0
    %5652 = vmatprep.subr.bf16.mxu0 0
    %5653 = vmatpush1.bf16.msra.mxu0 0
    %5654 = vmatprep.subr.bf16.mxu0 0
    %5655 = vmatpush1.bf16.msra.mxu0 0
    %5656 = vmatprep.subr.bf16.mxu0 0
    %5657 = vmatpush1.bf16.msra.mxu0 0
    %5658 = vmatprep.subr.bf16.mxu0 0
    %5659 = vmatpush1.bf16.msra.mxu0 0
    %5660 = vmatprep.subr.bf16.mxu0 0
    %5661 = vmatpush1.bf16.msra.mxu0 0
    %5662 = vmatprep.subr.bf16.mxu0 0
    %5663 = vmatpush1.bf16.msra.mxu0 0
    %5664 = vmatprep.subr.bf16.mxu0 0
    %5665 = vmatpush1.bf16.msra.mxu0 0
    %5666 = vmatprep.subr.bf16.mxu0 0
    %5667 = vmatpush1.bf16.msra.mxu0 0
    %5668 = vmatprep.subr.bf16.mxu0 0
    %5669 = vmatpush1.bf16.msra.mxu0 0
    %5670 = vmatprep.subr.bf16.mxu0 0
    %5671 = vmatpush1.bf16.msra.mxu0 0
    %5672 = vmatprep.mubr.bf16.mxu0 0
    %5673 = vmatmul.mubr.bf16.gmra.mrb[0].mxu0 %v4607
    %v5674 = vpop.f32.mrb[0].mxu0
    %v5675 = vadd.f32 %v4549, %v5674
    %v5676 = vpop.f32.mrb[0].mxu0
    %v5677 = vadd.f32 %v4549, %v5676
    %v5678 = vpop.f32.mrb[0].mxu0
    %v5679 = vadd.f32 %v4554, %v5678
    %v5680 = vpop.f32.mrb[0].mxu0
    %v5681 = vadd.f32 %v4554, %v5680
    %5682 = vmatprep.mubr.bf16.mxu0 0
    %5683 = vmatmul.mubr.bf16.gmra.mrb[0].mxu0 %v4610
    %v5684 = vpop.f32.mrb[0].mxu0
    %v5685 = vadd.f32 %v4559, %v5684
    %v5686 = vpop.f32.mrb[0].mxu0
    %v5687 = vadd.f32 %v4559, %v5686
    %v5688 = vpop.f32.mrb[0].mxu0
    %v5689 = vadd.f32 %v4564, %v5688
    %v5690 = vpop.f32.mrb[0].mxu0
    %v5691 = vadd.f32 %v4564, %v5690
    %5692 = vmatprep.mubr.bf16.mxu0 0
    %5693 = vmatmul.mubr.bf16.gmra.mrb[0].mxu0 %v4613
    %v5694 = vpop.f32.mrb[0].mxu0
    %v5695 = vadd.f32 %v4569, %v5694
    %v5696 = vpop.f32.mrb[0].mxu0
    %v5697 = vadd.f32 %v4569, %v5696
    %v5698 = vpop.f32.mrb[0].mxu0
    %v5699 = vadd.f32 %v4574, %v5698
    %v5700 = vpop.f32.mrb[0].mxu0
    %v5701 = vadd.f32 %v4574, %v5700
    %5702 = vmatprep.mubr.bf16.mxu0 0
    %5703 = vmatmul.mubr.bf16.gmra.mrb[0].mxu0 %v4616
    %v5704 = vpop.f32.mrb[0].mxu0
    %v5705 = vadd.f32 %v4579, %v5704
    %v5706 = vpop.f32.mrb[0].mxu0
    %v5707 = vadd.f32 %v4579, %v5706
    %v5708 = vpop.f32.mrb[0].mxu0
    %v5709 = vadd.f32 %v4584, %v5708
    %v5710 = vpop.f32.mrb[0].mxu0
    %v5711 = vadd.f32 %v4584, %v5710
    %5712 = vdwg.mxu0
    %5713 = vmatprep.subr.bf16.mxu0 %v4433
    %5714 = vmatpush1.bf16.msra.mxu0 %v4432
    %5715 = vmatprep.subr.bf16.mxu0 %v4465
    %5716 = vmatpush1.bf16.msra.mxu0 %v4464
    %5717 = vmatprep.subr.bf16.mxu0 %v4497
    %5718 = vmatpush1.bf16.msra.mxu0 %v4496
    %5719 = vmatprep.subr.bf16.mxu0 %v4529
    %5720 = vmatpush1.bf16.msra.mxu0 %v4528
    %5721 = vmatprep.subr.bf16.mxu0 0
    %5722 = vmatpush1.bf16.msra.mxu0 0
    %5723 = vmatprep.subr.bf16.mxu0 0
    %5724 = vmatpush1.bf16.msra.mxu0 0
    %5725 = vmatprep.subr.bf16.mxu0 0
    %5726 = vmatpush1.bf16.msra.mxu0 0
    %5727 = vmatprep.subr.bf16.mxu0 0
    %5728 = vmatpush1.bf16.msra.mxu0 0
    %5729 = vmatprep.subr.bf16.mxu0 0
    %5730 = vmatpush1.bf16.msra.mxu0 0
    %5731 = vmatprep.subr.bf16.mxu0 0
    %5732 = vmatpush1.bf16.msra.mxu0 0
    %5733 = vmatprep.subr.bf16.mxu0 0
    %5734 = vmatpush1.bf16.msra.mxu0 0
    %5735 = vmatprep.subr.bf16.mxu0 0
    %5736 = vmatpush1.bf16.msra.mxu0 0
    %5737 = vmatprep.subr.bf16.mxu0 0
    %5738 = vmatpush1.bf16.msra.mxu0 0
    %5739 = vmatprep.subr.bf16.mxu0 0
    %5740 = vmatpush1.bf16.msra.mxu0 0
    %5741 = vmatprep.subr.bf16.mxu0 0
    %5742 = vmatpush1.bf16.msra.mxu0 0
    %5743 = vmatprep.subr.bf16.mxu0 0
    %5744 = vmatpush1.bf16.msra.mxu0 0
    %5745 = vmatprep.mubr.bf16.mxu0 0
    %5746 = vmatmul.mubr.bf16.gmra.mrb[0].mxu0 %v4607
    %v5747 = vpop.f32.mrb[0].mxu0
    %v5748 = vadd.f32 %v4549, %v5747
    %v5749 = vpop.f32.mrb[0].mxu0
    %v5750 = vadd.f32 %v4549, %v5749
    %v5751 = vpop.f32.mrb[0].mxu0
    %v5752 = vadd.f32 %v4554, %v5751
    %v5753 = vpop.f32.mrb[0].mxu0
    %v5754 = vadd.f32 %v4554, %v5753
    %5755 = vmatprep.mubr.bf16.mxu0 0
    %5756 = vmatmul.mubr.bf16.gmra.mrb[0].mxu0 %v4610
    %v5757 = vpop.f32.mrb[0].mxu0
    %v5758 = vadd.f32 %v4559, %v5757
    %v5759 = vpop.f32.mrb[0].mxu0
    %v5760 = vadd.f32 %v4559, %v5759
    %v5761 = vpop.f32.mrb[0].mxu0
    %v5762 = vadd.f32 %v4564, %v5761
    %v5763 = vpop.f32.mrb[0].mxu0
    %v5764 = vadd.f32 %v4564, %v5763
    %5765 = vmatprep.mubr.bf16.mxu0 0
    %5766 = vmatmul.mubr.bf16.gmra.mrb[0].mxu0 %v4613
    %v5767 = vpop.f32.mrb[0].mxu0
    %v5768 = vadd.f32 %v4569, %v5767
    %v5769 = vpop.f32.mrb[0].mxu0
    %v5770 = vadd.f32 %v4569, %v5769
    %v5771 = vpop.f32.mrb[0].mxu0
    %v5772 = vadd.f32 %v4574, %v5771
    %v5773 = vpop.f32.mrb[0].mxu0
    %v5774 = vadd.f32 %v4574, %v5773
    %5775 = vmatprep.mubr.bf16.mxu0 0
    %5776 = vmatmul.mubr.bf16.gmra.mrb[0].mxu0 %v4616
    %v5777 = vpop.f32.mrb[0].mxu0
    %v5778 = vadd.f32 %v4579, %v5777
    %v5779 = vpop.f32.mrb[0].mxu0
    %v5780 = vadd.f32 %v4579, %v5779
    %v5781 = vpop.f32.mrb[0].mxu0
    %v5782 = vadd.f32 %v4584, %v5781
    %v5783 = vpop.f32.mrb[0].mxu0
    %v5784 = vadd.f32 %v4584, %v5783
    %5785 = vdwg.mxu0
    %v5786 = vmax.f32 %v4653, 0.0
    %v5787 = vmax.f32 %v4655, 0.0
    %v5788 = vmax.f32 %v4726, 0.0
    %v5789 = vmax.f32 %v4728, 0.0
    %v5790 = vmax.f32 %v4799, 0.0
    %v5791 = vmax.f32 %v4801, 0.0
    %v5792 = vmax.f32 %v4872, 0.0
    %v5793 = vmax.f32 %v4874, 0.0
    %v5794 = vmax.f32 %v4945, 0.0
    %v5795 = vmax.f32 %v4947, 0.0
    %v5796 = vmax.f32 %v5018, 0.0
    %v5797 = vmax.f32 %v5020, 0.0
    %v5798 = vmax.f32 %v5091, 0.0
    %v5799 = vmax.f32 %v5093, 0.0
    %v5800 = vmax.f32 %v5164, 0.0
    %v5801 = vmax.f32 %v5166, 0.0
    %v5802 = vmax.f32 %v5237, 0.0
    %v5803 = vmax.f32 %v5239, 0.0
    %v5804 = vmax.f32 %v5310, 0.0
    %v5805 = vmax.f32 %v5312, 0.0
    %v5806 = vmax.f32 %v5383, 0.0
    %v5807 = vmax.f32 %v5385, 0.0
    %v5808 = vmax.f32 %v5456, 0.0
    %v5809 = vmax.f32 %v5458, 0.0
    %v5810 = vmax.f32 %v5529, 0.0
    %v5811 = vmax.f32 %v5531, 0.0
    %v5812 = vmax.f32 %v5602, 0.0
    %v5813 = vmax.f32 %v5604, 0.0
    %v5814 = vmax.f32 %v5675, 0.0
    %v5815 = vmax.f32 %v5677, 0.0
    %v5816 = vmax.f32 %v5748, 0.0
    %v5817 = vmax.f32 %v5750, 0.0
    %v5818 = vmax.f32 %v4657, 0.0
    %v5819 = vmax.f32 %v4659, 0.0
    %v5820 = vmax.f32 %v4730, 0.0
    %v5821 = vmax.f32 %v4732, 0.0
    %v5822 = vmax.f32 %v4803, 0.0
    %v5823 = vmax.f32 %v4805, 0.0
    %v5824 = vmax.f32 %v4876, 0.0
    %v5825 = vmax.f32 %v4878, 0.0
    %v5826 = vmax.f32 %v4949, 0.0
    %v5827 = vmax.f32 %v4951, 0.0
    %v5828 = vmax.f32 %v5022, 0.0
    %v5829 = vmax.f32 %v5024, 0.0
    %v5830 = vmax.f32 %v5095, 0.0
    %v5831 = vmax.f32 %v5097, 0.0
    %v5832 = vmax.f32 %v5168, 0.0
    %v5833 = vmax.f32 %v5170, 0.0
    %v5834 = vmax.f32 %v5241, 0.0
    %v5835 = vmax.f32 %v5243, 0.0
    %v5836 = vmax.f32 %v5314, 0.0
    %v5837 = vmax.f32 %v5316, 0.0
    %v5838 = vmax.f32 %v5387, 0.0
    %v5839 = vmax.f32 %v5389, 0.0
    %v5840 = vmax.f32 %v5460, 0.0
    %v5841 = vmax.f32 %v5462, 0.0
    %v5842 = vmax.f32 %v5533, 0.0
    %v5843 = vmax.f32 %v5535, 0.0
    %v5844 = vmax.f32 %v5606, 0.0
    %v5845 = vmax.f32 %v5608, 0.0
    %v5846 = vmax.f32 %v5679, 0.0
    %v5847 = vmax.f32 %v5681, 0.0
    %v5848 = vmax.f32 %v5752, 0.0
    %v5849 = vmax.f32 %v5754, 0.0
    %v5850 = vmax.f32 %v4663, 0.0
    %v5851 = vmax.f32 %v4665, 0.0
    %v5852 = vmax.f32 %v4736, 0.0
    %v5853 = vmax.f32 %v4738, 0.0
    %v5854 = vmax.f32 %v4809, 0.0
    %v5855 = vmax.f32 %v4811, 0.0
    %v5856 = vmax.f32 %v4882, 0.0
    %v5857 = vmax.f32 %v4884, 0.0
    %v5858 = vmax.f32 %v4955, 0.0
    %v5859 = vmax.f32 %v4957, 0.0
    %v5860 = vmax.f32 %v5028, 0.0
    %v5861 = vmax.f32 %v5030, 0.0
    %v5862 = vmax.f32 %v5101, 0.0
    %v5863 = vmax.f32 %v5103, 0.0
    %v5864 = vmax.f32 %v5174, 0.0
    %v5865 = vmax.f32 %v5176, 0.0
    %v5866 = vmax.f32 %v5247, 0.0
    %v5867 = vmax.f32 %v5249, 0.0
    %v5868 = vmax.f32 %v5320, 0.0
    %v5869 = vmax.f32 %v5322, 0.0
    %v5870 = vmax.f32 %v5393, 0.0
    %v5871 = vmax.f32 %v5395, 0.0
    %v5872 = vmax.f32 %v5466, 0.0
    %v5873 = vmax.f32 %v5468, 0.0
    %v5874 = vmax.f32 %v5539, 0.0
    %v5875 = vmax.f32 %v5541, 0.0
    %v5876 = vmax.f32 %v5612, 0.0
    %v5877 = vmax.f32 %v5614, 0.0
    %v5878 = vmax.f32 %v5685, 0.0
    %v5879 = vmax.f32 %v5687, 0.0
    %v5880 = vmax.f32 %v5758, 0.0
    %v5881 = vmax.f32 %v5760, 0.0
    %v5882 = vmax.f32 %v4667, 0.0
    %v5883 = vmax.f32 %v4669, 0.0
    %v5884 = vmax.f32 %v4740, 0.0
    %v5885 = vmax.f32 %v4742, 0.0
    %v5886 = vmax.f32 %v4813, 0.0
    %v5887 = vmax.f32 %v4815, 0.0
    %v5888 = vmax.f32 %v4886, 0.0
    %v5889 = vmax.f32 %v4888, 0.0
    %v5890 = vmax.f32 %v4959, 0.0
    %v5891 = vmax.f32 %v4961, 0.0
    %v5892 = vmax.f32 %v5032, 0.0
    %v5893 = vmax.f32 %v5034, 0.0
    %v5894 = vmax.f32 %v5105, 0.0
    %v5895 = vmax.f32 %v5107, 0.0
    %v5896 = vmax.f32 %v5178, 0.0
    %v5897 = vmax.f32 %v5180, 0.0
    %v5898 = vmax.f32 %v5251, 0.0
    %v5899 = vmax.f32 %v5253, 0.0
    %v5900 = vmax.f32 %v5324, 0.0
    %v5901 = vmax.f32 %v5326, 0.0
    %v5902 = vmax.f32 %v5397, 0.0
    %v5903 = vmax.f32 %v5399, 0.0
    %v5904 = vmax.f32 %v5470, 0.0
    %v5905 = vmax.f32 %v5472, 0.0
    %v5906 = vmax.f32 %v5543, 0.0
    %v5907 = vmax.f32 %v5545, 0.0
    %v5908 = vmax.f32 %v5616, 0.0
    %v5909 = vmax.f32 %v5618, 0.0
    %v5910 = vmax.f32 %v5689, 0.0
    %v5911 = vmax.f32 %v5691, 0.0
    %v5912 = vmax.f32 %v5762, 0.0
    %v5913 = vmax.f32 %v5764, 0.0
    %v5914 = vmax.f32 %v4673, 0.0
    %v5915 = vmax.f32 %v4675, 0.0
    %v5916 = vmax.f32 %v4746, 0.0
    %v5917 = vmax.f32 %v4748, 0.0
    %v5918 = vmax.f32 %v4819, 0.0
    %v5919 = vmax.f32 %v4821, 0.0
    %v5920 = vmax.f32 %v4892, 0.0
    %v5921 = vmax.f32 %v4894, 0.0
    %v5922 = vmax.f32 %v4965, 0.0
    %v5923 = vmax.f32 %v4967, 0.0
    %v5924 = vmax.f32 %v5038, 0.0
    %v5925 = vmax.f32 %v5040, 0.0
    %v5926 = vmax.f32 %v5111, 0.0
    %v5927 = vmax.f32 %v5113, 0.0
    %v5928 = vmax.f32 %v5184, 0.0
    %v5929 = vmax.f32 %v5186, 0.0
    %v5930 = vmax.f32 %v5257, 0.0
    %v5931 = vmax.f32 %v5259, 0.0
    %v5932 = vmax.f32 %v5330, 0.0
    %v5933 = vmax.f32 %v5332, 0.0
    %v5934 = vmax.f32 %v5403, 0.0
    %v5935 = vmax.f32 %v5405, 0.0
    %v5936 = vmax.f32 %v5476, 0.0
    %v5937 = vmax.f32 %v5478, 0.0
    %v5938 = vmax.f32 %v5549, 0.0
    %v5939 = vmax.f32 %v5551, 0.0
    %v5940 = vmax.f32 %v5622, 0.0
    %v5941 = vmax.f32 %v5624, 0.0
    %v5942 = vmax.f32 %v5695, 0.0
    %v5943 = vmax.f32 %v5697, 0.0
    %v5944 = vmax.f32 %v5768, 0.0
    %v5945 = vmax.f32 %v5770, 0.0
    %v5946 = vmax.f32 %v4677, 0.0
    %v5947 = vmax.f32 %v4679, 0.0
    %v5948 = vmax.f32 %v4750, 0.0
    %v5949 = vmax.f32 %v4752, 0.0
    %v5950 = vmax.f32 %v4823, 0.0
    %v5951 = vmax.f32 %v4825, 0.0
    %v5952 = vmax.f32 %v4896, 0.0
    %v5953 = vmax.f32 %v4898, 0.0
    %v5954 = vmax.f32 %v4969, 0.0
    %v5955 = vmax.f32 %v4971, 0.0
    %v5956 = vmax.f32 %v5042, 0.0
    %v5957 = vmax.f32 %v5044, 0.0
    %v5958 = vmax.f32 %v5115, 0.0
    %v5959 = vmax.f32 %v5117, 0.0
    %v5960 = vmax.f32 %v5188, 0.0
    %v5961 = vmax.f32 %v5190, 0.0
    %v5962 = vmax.f32 %v5261, 0.0
    %v5963 = vmax.f32 %v5263, 0.0
    %v5964 = vmax.f32 %v5334, 0.0
    %v5965 = vmax.f32 %v5336, 0.0
    %v5966 = vmax.f32 %v5407, 0.0
    %v5967 = vmax.f32 %v5409, 0.0
    %v5968 = vmax.f32 %v5480, 0.0
    %v5969 = vmax.f32 %v5482, 0.0
    %v5970 = vmax.f32 %v5553, 0.0
    %v5971 = vmax.f32 %v5555, 0.0
    %v5972 = vmax.f32 %v5626, 0.0
    %v5973 = vmax.f32 %v5628, 0.0
    %v5974 = vmax.f32 %v5699, 0.0
    %v5975 = vmax.f32 %v5701, 0.0
    %v5976 = vmax.f32 %v5772, 0.0
    %v5977 = vmax.f32 %v5774, 0.0
    %v5978 = vmax.f32 %v4683, 0.0
    %v5979 = vmax.f32 %v4685, 0.0
    %v5980 = vmax.f32 %v4756, 0.0
    %v5981 = vmax.f32 %v4758, 0.0
    %v5982 = vmax.f32 %v4829, 0.0
    %v5983 = vmax.f32 %v4831, 0.0
    %v5984 = vmax.f32 %v4902, 0.0
    %v5985 = vmax.f32 %v4904, 0.0
    %v5986 = vmax.f32 %v4975, 0.0
    %v5987 = vmax.f32 %v4977, 0.0
    %v5988 = vmax.f32 %v5048, 0.0
    %v5989 = vmax.f32 %v5050, 0.0
    %v5990 = vmax.f32 %v5121, 0.0
    %v5991 = vmax.f32 %v5123, 0.0
    %v5992 = vmax.f32 %v5194, 0.0
    %v5993 = vmax.f32 %v5196, 0.0
    %v5994 = vmax.f32 %v5267, 0.0
    %v5995 = vmax.f32 %v5269, 0.0
    %v5996 = vmax.f32 %v5340, 0.0
    %v5997 = vmax.f32 %v5342, 0.0
    %v5998 = vmax.f32 %v5413, 0.0
    %v5999 = vmax.f32 %v5415, 0.0
    %v6000 = vmax.f32 %v5486, 0.0
    %v6001 = vmax.f32 %v5488, 0.0
    %v6002 = vmax.f32 %v5559, 0.0
    %v6003 = vmax.f32 %v5561, 0.0
    %v6004 = vmax.f32 %v5632, 0.0
    %v6005 = vmax.f32 %v5634, 0.0
    %v6006 = vmax.f32 %v5705, 0.0
    %v6007 = vmax.f32 %v5707, 0.0
    %v6008 = vmax.f32 %v5778, 0.0
    %v6009 = vmax.f32 %v5780, 0.0
    %v6010 = vmax.f32 %v4687, 0.0
    %v6011 = vmax.f32 %v4689, 0.0
    %v6012 = vmax.f32 %v4760, 0.0
    %v6013 = vmax.f32 %v4762, 0.0
    %v6014 = vmax.f32 %v4833, 0.0
    %v6015 = vmax.f32 %v4835, 0.0
    %v6016 = vmax.f32 %v4906, 0.0
    %v6017 = vmax.f32 %v4908, 0.0
    %v6018 = vmax.f32 %v4979, 0.0
    %v6019 = vmax.f32 %v4981, 0.0
    %v6020 = vmax.f32 %v5052, 0.0
    %v6021 = vmax.f32 %v5054, 0.0
    %v6022 = vmax.f32 %v5125, 0.0
    %v6023 = vmax.f32 %v5127, 0.0
    %v6024 = vmax.f32 %v5198, 0.0
    %v6025 = vmax.f32 %v5200, 0.0
    %v6026 = vmax.f32 %v5271, 0.0
    %v6027 = vmax.f32 %v5273, 0.0
    %v6028 = vmax.f32 %v5344, 0.0
    %v6029 = vmax.f32 %v5346, 0.0
    %v6030 = vmax.f32 %v5417, 0.0
    %v6031 = vmax.f32 %v5419, 0.0
    %v6032 = vmax.f32 %v5490, 0.0
    %v6033 = vmax.f32 %v5492, 0.0
    %v6034 = vmax.f32 %v5563, 0.0
    %v6035 = vmax.f32 %v5565, 0.0
    %v6036 = vmax.f32 %v5636, 0.0
    %v6037 = vmax.f32 %v5638, 0.0
    %v6038 = vmax.f32 %v5709, 0.0
    %v6039 = vmax.f32 %v5711, 0.0
    %v6040 = vmax.f32 %v5782, 0.0
    %v6041 = vmax.f32 %v5784, 0.0
    %v6042 = vpack.c.bf16 %v5818, %v5786
    %v6043 = vpack.c.bf16 %v5819, %v5787
    %v6044 = vpack.c.bf16 %v5820, %v5788
    %v6045 = vpack.c.bf16 %v5821, %v5789
    %v6046 = vpack.c.bf16 %v5822, %v5790
    %v6047 = vpack.c.bf16 %v5823, %v5791
    %v6048 = vpack.c.bf16 %v5824, %v5792
    %v6049 = vpack.c.bf16 %v5825, %v5793
    %v6050 = vpack.c.bf16 %v5826, %v5794
    %v6051 = vpack.c.bf16 %v5827, %v5795
    %v6052 = vpack.c.bf16 %v5828, %v5796
    %v6053 = vpack.c.bf16 %v5829, %v5797
    %v6054 = vpack.c.bf16 %v5830, %v5798
    %v6055 = vpack.c.bf16 %v5831, %v5799
    %v6056 = vpack.c.bf16 %v5832, %v5800
    %v6057 = vpack.c.bf16 %v5833, %v5801
    %v6058 = vpack.c.bf16 %v5834, %v5802
    %v6059 = vpack.c.bf16 %v5835, %v5803
    %v6060 = vpack.c.bf16 %v5836, %v5804
    %v6061 = vpack.c.bf16 %v5837, %v5805
    %v6062 = vpack.c.bf16 %v5838, %v5806
    %v6063 = vpack.c.bf16 %v5839, %v5807
    %v6064 = vpack.c.bf16 %v5840, %v5808
    %v6065 = vpack.c.bf16 %v5841, %v5809
    %v6066 = vpack.c.bf16 %v5842, %v5810
    %v6067 = vpack.c.bf16 %v5843, %v5811
    %v6068 = vpack.c.bf16 %v5844, %v5812
    %v6069 = vpack.c.bf16 %v5845, %v5813
    %v6070 = vpack.c.bf16 %v5846, %v5814
    %v6071 = vpack.c.bf16 %v5847, %v5815
    %v6072 = vpack.c.bf16 %v5848, %v5816
    %v6073 = vpack.c.bf16 %v5849, %v5817
    %v6074 = vpack.c.bf16 %v5882, %v5850
    %v6075 = vpack.c.bf16 %v5883, %v5851
    %v6076 = vpack.c.bf16 %v5884, %v5852
    %v6077 = vpack.c.bf16 %v5885, %v5853
    %v6078 = vpack.c.bf16 %v5886, %v5854
    %v6079 = vpack.c.bf16 %v5887, %v5855
    %v6080 = vpack.c.bf16 %v5888, %v5856
    %v6081 = vpack.c.bf16 %v5889, %v5857
    %v6082 = vpack.c.bf16 %v5890, %v5858
    %v6083 = vpack.c.bf16 %v5891, %v5859
    %v6084 = vpack.c.bf16 %v5892, %v5860
    %v6085 = vpack.c.bf16 %v5893, %v5861
    %v6086 = vpack.c.bf16 %v5894, %v5862
    %v6087 = vpack.c.bf16 %v5895, %v5863
    %v6088 = vpack.c.bf16 %v5896, %v5864
    %v6089 = vpack.c.bf16 %v5897, %v5865
    %v6090 = vpack.c.bf16 %v5898, %v5866
    %v6091 = vpack.c.bf16 %v5899, %v5867
    %v6092 = vpack.c.bf16 %v5900, %v5868
    %v6093 = vpack.c.bf16 %v5901, %v5869
    %v6094 = vpack.c.bf16 %v5902, %v5870
    %v6095 = vpack.c.bf16 %v5903, %v5871
    %v6096 = vpack.c.bf16 %v5904, %v5872
    %v6097 = vpack.c.bf16 %v5905, %v5873
    %v6098 = vpack.c.bf16 %v5906, %v5874
    %v6099 = vpack.c.bf16 %v5907, %v5875
    %v6100 = vpack.c.bf16 %v5908, %v5876
    %v6101 = vpack.c.bf16 %v5909, %v5877
    %v6102 = vpack.c.bf16 %v5910, %v5878
    %v6103 = vpack.c.bf16 %v5911, %v5879
    %v6104 = vpack.c.bf16 %v5912, %v5880
    %v6105 = vpack.c.bf16 %v5913, %v5881
    %v6106 = vpack.c.bf16 %v5946, %v5914
    %v6107 = vpack.c.bf16 %v5947, %v5915
    %v6108 = vpack.c.bf16 %v5948, %v5916
    %v6109 = vpack.c.bf16 %v5949, %v5917
    %v6110 = vpack.c.bf16 %v5950, %v5918
    %v6111 = vpack.c.bf16 %v5951, %v5919
    %v6112 = vpack.c.bf16 %v5952, %v5920
    %v6113 = vpack.c.bf16 %v5953, %v5921
    %v6114 = vpack.c.bf16 %v5954, %v5922
    %v6115 = vpack.c.bf16 %v5955, %v5923
    %v6116 = vpack.c.bf16 %v5956, %v5924
    %v6117 = vpack.c.bf16 %v5957, %v5925
    %v6118 = vpack.c.bf16 %v5958, %v5926
    %v6119 = vpack.c.bf16 %v5959, %v5927
    %v6120 = vpack.c.bf16 %v5960, %v5928
    %v6121 = vpack.c.bf16 %v5961, %v5929
    %v6122 = vpack.c.bf16 %v5962, %v5930
    %v6123 = vpack.c.bf16 %v5963, %v5931
    %v6124 = vpack.c.bf16 %v5964, %v5932
    %v6125 = vpack.c.bf16 %v5965, %v5933
    %v6126 = vpack.c.bf16 %v5966, %v5934
    %v6127 = vpack.c.bf16 %v5967, %v5935
    %v6128 = vpack.c.bf16 %v5968, %v5936
    %v6129 = vpack.c.bf16 %v5969, %v5937
    %v6130 = vpack.c.bf16 %v5970, %v5938
    %v6131 = vpack.c.bf16 %v5971, %v5939
    %v6132 = vpack.c.bf16 %v5972, %v5940
    %v6133 = vpack.c.bf16 %v5973, %v5941
    %v6134 = vpack.c.bf16 %v5974, %v5942
    %v6135 = vpack.c.bf16 %v5975, %v5943
    %v6136 = vpack.c.bf16 %v5976, %v5944
    %v6137 = vpack.c.bf16 %v5977, %v5945
    %v6138 = vpack.c.bf16 %v6010, %v5978
    %v6139 = vpack.c.bf16 %v6011, %v5979
    %v6140 = vpack.c.bf16 %v6012, %v5980
    %v6141 = vpack.c.bf16 %v6013, %v5981
    %v6142 = vpack.c.bf16 %v6014, %v5982
    %v6143 = vpack.c.bf16 %v6015, %v5983
    %v6144 = vpack.c.bf16 %v6016, %v5984
    %v6145 = vpack.c.bf16 %v6017, %v5985
    %v6146 = vpack.c.bf16 %v6018, %v5986
    %v6147 = vpack.c.bf16 %v6019, %v5987
    %v6148 = vpack.c.bf16 %v6020, %v5988
    %v6149 = vpack.c.bf16 %v6021, %v5989
    %v6150 = vpack.c.bf16 %v6022, %v5990
    %v6151 = vpack.c.bf16 %v6023, %v5991
    %v6152 = vpack.c.bf16 %v6024, %v5992
    %v6153 = vpack.c.bf16 %v6025, %v5993
    %v6154 = vpack.c.bf16 %v6026, %v5994
    %v6155 = vpack.c.bf16 %v6027, %v5995
    %v6156 = vpack.c.bf16 %v6028, %v5996
    %v6157 = vpack.c.bf16 %v6029, %v5997
    %v6158 = vpack.c.bf16 %v6030, %v5998
    %v6159 = vpack.c.bf16 %v6031, %v5999
    %v6160 = vpack.c.bf16 %v6032, %v6000
    %v6161 = vpack.c.bf16 %v6033, %v6001
    %v6162 = vpack.c.bf16 %v6034, %v6002
    %v6163 = vpack.c.bf16 %v6035, %v6003
    %v6164 = vpack.c.bf16 %v6036, %v6004
    %v6165 = vpack.c.bf16 %v6037, %v6005
    %v6166 = vpack.c.bf16 %v6038, %v6006
    %v6167 = vpack.c.bf16 %v6039, %v6007
    %v6168 = vpack.c.bf16 %v6040, %v6008
    %v6169 = vpack.c.bf16 %v6041, %v6009
    %v6170 = vld [vmem:[%s7] sm:$0xf]
    %v6171 = vld [vmem:[%s8] sm:$0xff]
    %6173 = vset.pattern.permute.xlu0 0
    %6174 = vperm.xlu0 %6173, %v6171
    %v6175 = vpop.permute.xlu0 %6174
    %v6178 = vsel %vm2965, %v6170, 0
    %6180 = vmatprep.subr.bf16.mxu0 %v6043
    %6181 = vmatpush1.bf16.msra.mxu0 %v6042
    %6182 = vmatprep.subr.bf16.mxu0 %v6075
    %6183 = vmatpush1.bf16.msra.mxu0 %v6074
    %6184 = vmatprep.subr.bf16.mxu0 %v6107
    %6185 = vmatpush1.bf16.msra.mxu0 %v6106
    %6186 = vmatprep.subr.bf16.mxu0 %v6139
    %6187 = vmatpush1.bf16.msra.mxu0 %v6138
    %6188 = vmatprep.subr.bf16.mxu0 0
    %6189 = vmatpush1.bf16.msra.mxu0 0
    %6190 = vmatprep.subr.bf16.mxu0 0
    %6191 = vmatpush1.bf16.msra.mxu0 0
    %6192 = vmatprep.subr.bf16.mxu0 0
    %6193 = vmatpush1.bf16.msra.mxu0 0
    %6194 = vmatprep.subr.bf16.mxu0 0
    %6195 = vmatpush1.bf16.msra.mxu0 0
    %6196 = vmatprep.subr.bf16.mxu0 0
    %6197 = vmatpush1.bf16.msra.mxu0 0
    %6198 = vmatprep.subr.bf16.mxu0 0
    %6199 = vmatpush1.bf16.msra.mxu0 0
    %6200 = vmatprep.subr.bf16.mxu0 0
    %6201 = vmatpush1.bf16.msra.mxu0 0
    %6202 = vmatprep.subr.bf16.mxu0 0
    %6203 = vmatpush1.bf16.msra.mxu0 0
    %6204 = vmatprep.subr.bf16.mxu0 0
    %6205 = vmatpush1.bf16.msra.mxu0 0
    %6206 = vmatprep.subr.bf16.mxu0 0
    %6207 = vmatpush1.bf16.msra.mxu0 0
    %6208 = vmatprep.subr.bf16.mxu0 0
    %6209 = vmatpush1.bf16.msra.mxu0 0
    %6210 = vmatprep.subr.bf16.mxu0 0
    %6211 = vmatpush1.bf16.msra.mxu0 0
    %6212 = vmatprep.mubr.bf16.mxu0 0
    %6213 = vmatmul.mubr.bf16.gmra.mrb[0].mxu0 %v6178
    %v6214 = vpop.f32.mrb[0].mxu0
    %v6215 = vadd.f32 %v6175, %v6214
    %v6216 = vpop.f32.mrb[0].mxu0
    %v6217 = vadd.f32 %v6175, %v6216
    %v6218 = vpop.f32.mrb[0].mxu0
    %v6219 = vpop.f32.mrb[0].mxu0
    %6220 = vdwg.mxu0
    %6221 = vmatprep.subr.bf16.mxu0 %v6045
    %6222 = vmatpush1.bf16.msra.mxu0 %v6044
    %6223 = vmatprep.subr.bf16.mxu0 %v6077
    %6224 = vmatpush1.bf16.msra.mxu0 %v6076
    %6225 = vmatprep.subr.bf16.mxu0 %v6109
    %6226 = vmatpush1.bf16.msra.mxu0 %v6108
    %6227 = vmatprep.subr.bf16.mxu0 %v6141
    %6228 = vmatpush1.bf16.msra.mxu0 %v6140
    %6229 = vmatprep.subr.bf16.mxu0 0
    %6230 = vmatpush1.bf16.msra.mxu0 0
    %6231 = vmatprep.subr.bf16.mxu0 0
    %6232 = vmatpush1.bf16.msra.mxu0 0
    %6233 = vmatprep.subr.bf16.mxu0 0
    %6234 = vmatpush1.bf16.msra.mxu0 0
    %6235 = vmatprep.subr.bf16.mxu0 0
    %6236 = vmatpush1.bf16.msra.mxu0 0
    %6237 = vmatprep.subr.bf16.mxu0 0
    %6238 = vmatpush1.bf16.msra.mxu0 0
    %6239 = vmatprep.subr.bf16.mxu0 0
    %6240 = vmatpush1.bf16.msra.mxu0 0
    %6241 = vmatprep.subr.bf16.mxu0 0
    %6242 = vmatpush1.bf16.msra.mxu0 0
    %6243 = vmatprep.subr.bf16.mxu0 0
    %6244 = vmatpush1.bf16.msra.mxu0 0
    %6245 = vmatprep.subr.bf16.mxu0 0
    %6246 = vmatpush1.bf16.msra.mxu0 0
    %6247 = vmatprep.subr.bf16.mxu0 0
    %6248 = vmatpush1.bf16.msra.mxu0 0
    %6249 = vmatprep.subr.bf16.mxu0 0
    %6250 = vmatpush1.bf16.msra.mxu0 0
    %6251 = vmatprep.subr.bf16.mxu0 0
    %6252 = vmatpush1.bf16.msra.mxu0 0
    %6253 = vmatprep.mubr.bf16.mxu0 0
    %6254 = vmatmul.mubr.bf16.gmra.mrb[0].mxu0 %v6178
    %v6255 = vpop.f32.mrb[0].mxu0
    %v6256 = vadd.f32 %v6175, %v6255
    %v6257 = vpop.f32.mrb[0].mxu0
    %v6258 = vadd.f32 %v6175, %v6257
    %v6259 = vpop.f32.mrb[0].mxu0
    %v6260 = vpop.f32.mrb[0].mxu0
    %6261 = vdwg.mxu0
    %6262 = vmatprep.subr.bf16.mxu0 %v6047
    %6263 = vmatpush1.bf16.msra.mxu0 %v6046
    %6264 = vmatprep.subr.bf16.mxu0 %v6079
    %6265 = vmatpush1.bf16.msra.mxu0 %v6078
    %6266 = vmatprep.subr.bf16.mxu0 %v6111
    %6267 = vmatpush1.bf16.msra.mxu0 %v6110
    %6268 = vmatprep.subr.bf16.mxu0 %v6143
    %6269 = vmatpush1.bf16.msra.mxu0 %v6142
    %6270 = vmatprep.subr.bf16.mxu0 0
    %6271 = vmatpush1.bf16.msra.mxu0 0
    %6272 = vmatprep.subr.bf16.mxu0 0
    %6273 = vmatpush1.bf16.msra.mxu0 0
    %6274 = vmatprep.subr.bf16.mxu0 0
    %6275 = vmatpush1.bf16.msra.mxu0 0
    %6276 = vmatprep.subr.bf16.mxu0 0
    %6277 = vmatpush1.bf16.msra.mxu0 0
    %6278 = vmatprep.subr.bf16.mxu0 0
    %6279 = vmatpush1.bf16.msra.mxu0 0
    %6280 = vmatprep.subr.bf16.mxu0 0
    %6281 = vmatpush1.bf16.msra.mxu0 0
    %6282 = vmatprep.subr.bf16.mxu0 0
    %6283 = vmatpush1.bf16.msra.mxu0 0
    %6284 = vmatprep.subr.bf16.mxu0 0
    %6285 = vmatpush1.bf16.msra.mxu0 0
    %6286 = vmatprep.subr.bf16.mxu0 0
    %6287 = vmatpush1.bf16.msra.mxu0 0
    %6288 = vmatprep.subr.bf16.mxu0 0
    %6289 = vmatpush1.bf16.msra.mxu0 0
    %6290 = vmatprep.subr.bf16.mxu0 0
    %6291 = vmatpush1.bf16.msra.mxu0 0
    %6292 = vmatprep.subr.bf16.mxu0 0
    %6293 = vmatpush1.bf16.msra.mxu0 0
    %6294 = vmatprep.mubr.bf16.mxu0 0
    %6295 = vmatmul.mubr.bf16.gmra.mrb[0].mxu0 %v6178
    %v6296 = vpop.f32.mrb[0].mxu0
    %v6297 = vadd.f32 %v6175, %v6296
    %v6298 = vpop.f32.mrb[0].mxu0
    %v6299 = vadd.f32 %v6175, %v6298
    %v6300 = vpop.f32.mrb[0].mxu0
    %v6301 = vpop.f32.mrb[0].mxu0
    %6302 = vdwg.mxu0
    %6303 = vmatprep.subr.bf16.mxu0 %v6049
    %6304 = vmatpush1.bf16.msra.mxu0 %v6048
    %6305 = vmatprep.subr.bf16.mxu0 %v6081
    %6306 = vmatpush1.bf16.msra.mxu0 %v6080
    %6307 = vmatprep.subr.bf16.mxu0 %v6113
    %6308 = vmatpush1.bf16.msra.mxu0 %v6112
    %6309 = vmatprep.subr.bf16.mxu0 %v6145
    %6310 = vmatpush1.bf16.msra.mxu0 %v6144
    %6311 = vmatprep.subr.bf16.mxu0 0
    %6312 = vmatpush1.bf16.msra.mxu0 0
    %6313 = vmatprep.subr.bf16.mxu0 0
    %6314 = vmatpush1.bf16.msra.mxu0 0
    %6315 = vmatprep.subr.bf16.mxu0 0
    %6316 = vmatpush1.bf16.msra.mxu0 0
    %6317 = vmatprep.subr.bf16.mxu0 0
    %6318 = vmatpush1.bf16.msra.mxu0 0
    %6319 = vmatprep.subr.bf16.mxu0 0
    %6320 = vmatpush1.bf16.msra.mxu0 0
    %6321 = vmatprep.subr.bf16.mxu0 0
    %6322 = vmatpush1.bf16.msra.mxu0 0
    %6323 = vmatprep.subr.bf16.mxu0 0
    %6324 = vmatpush1.bf16.msra.mxu0 0
    %6325 = vmatprep.subr.bf16.mxu0 0
    %6326 = vmatpush1.bf16.msra.mxu0 0
    %6327 = vmatprep.subr.bf16.mxu0 0
    %6328 = vmatpush1.bf16.msra.mxu0 0
    %6329 = vmatprep.subr.bf16.mxu0 0
    %6330 = vmatpush1.bf16.msra.mxu0 0
    %6331 = vmatprep.subr.bf16.mxu0 0
    %6332 = vmatpush1.bf16.msra.mxu0 0
    %6333 = vmatprep.subr.bf16.mxu0 0
    %6334 = vmatpush1.bf16.msra.mxu0 0
    %6335 = vmatprep.mubr.bf16.mxu0 0
    %6336 = vmatmul.mubr.bf16.gmra.mrb[0].mxu0 %v6178
    %v6337 = vpop.f32.mrb[0].mxu0
    %v6338 = vadd.f32 %v6175, %v6337
    %v6339 = vpop.f32.mrb[0].mxu0
    %v6340 = vadd.f32 %v6175, %v6339
    %v6341 = vpop.f32.mrb[0].mxu0
    %v6342 = vpop.f32.mrb[0].mxu0
    %6343 = vdwg.mxu0
    %6344 = vmatprep.subr.bf16.mxu0 %v6051
    %6345 = vmatpush1.bf16.msra.mxu0 %v6050
    %6346 = vmatprep.subr.bf16.mxu0 %v6083
    %6347 = vmatpush1.bf16.msra.mxu0 %v6082
    %6348 = vmatprep.subr.bf16.mxu0 %v6115
    %6349 = vmatpush1.bf16.msra.mxu0 %v6114
    %6350 = vmatprep.subr.bf16.mxu0 %v6147
    %6351 = vmatpush1.bf16.msra.mxu0 %v6146
    %6352 = vmatprep.subr.bf16.mxu0 0
    %6353 = vmatpush1.bf16.msra.mxu0 0
    %6354 = vmatprep.subr.bf16.mxu0 0
    %6355 = vmatpush1.bf16.msra.mxu0 0
    %6356 = vmatprep.subr.bf16.mxu0 0
    %6357 = vmatpush1.bf16.msra.mxu0 0
    %6358 = vmatprep.subr.bf16.mxu0 0
    %6359 = vmatpush1.bf16.msra.mxu0 0
    %6360 = vmatprep.subr.bf16.mxu0 0
    %6361 = vmatpush1.bf16.msra.mxu0 0
    %6362 = vmatprep.subr.bf16.mxu0 0
    %6363 = vmatpush1.bf16.msra.mxu0 0
    %6364 = vmatprep.subr.bf16.mxu0 0
    %6365 = vmatpush1.bf16.msra.mxu0 0
    %6366 = vmatprep.subr.bf16.mxu0 0
    %6367 = vmatpush1.bf16.msra.mxu0 0
    %6368 = vmatprep.subr.bf16.mxu0 0
    %6369 = vmatpush1.bf16.msra.mxu0 0
    %6370 = vmatprep.subr.bf16.mxu0 0
    %6371 = vmatpush1.bf16.msra.mxu0 0
    %6372 = vmatprep.subr.bf16.mxu0 0
    %6373 = vmatpush1.bf16.msra.mxu0 0
    %6374 = vmatprep.subr.bf16.mxu0 0
    %6375 = vmatpush1.bf16.msra.mxu0 0
    %6376 = vmatprep.mubr.bf16.mxu0 0
    %6377 = vmatmul.mubr.bf16.gmra.mrb[0].mxu0 %v6178
    %v6378 = vpop.f32.mrb[0].mxu0
    %v6379 = vadd.f32 %v6175, %v6378
    %v6380 = vpop.f32.mrb[0].mxu0
    %v6381 = vadd.f32 %v6175, %v6380
    %v6382 = vpop.f32.mrb[0].mxu0
    %v6383 = vpop.f32.mrb[0].mxu0
    %6384 = vdwg.mxu0
    %6385 = vmatprep.subr.bf16.mxu0 %v6053
    %6386 = vmatpush1.bf16.msra.mxu0 %v6052
    %6387 = vmatprep.subr.bf16.mxu0 %v6085
    %6388 = vmatpush1.bf16.msra.mxu0 %v6084
    %6389 = vmatprep.subr.bf16.mxu0 %v6117
    %6390 = vmatpush1.bf16.msra.mxu0 %v6116
    %6391 = vmatprep.subr.bf16.mxu0 %v6149
    %6392 = vmatpush1.bf16.msra.mxu0 %v6148
    %6393 = vmatprep.subr.bf16.mxu0 0
    %6394 = vmatpush1.bf16.msra.mxu0 0
    %6395 = vmatprep.subr.bf16.mxu0 0
    %6396 = vmatpush1.bf16.msra.mxu0 0
    %6397 = vmatprep.subr.bf16.mxu0 0
    %6398 = vmatpush1.bf16.msra.mxu0 0
    %6399 = vmatprep.subr.bf16.mxu0 0
    %6400 = vmatpush1.bf16.msra.mxu0 0
    %6401 = vmatprep.subr.bf16.mxu0 0
    %6402 = vmatpush1.bf16.msra.mxu0 0
    %6403 = vmatprep.subr.bf16.mxu0 0
    %6404 = vmatpush1.bf16.msra.mxu0 0
    %6405 = vmatprep.subr.bf16.mxu0 0
    %6406 = vmatpush1.bf16.msra.mxu0 0
    %6407 = vmatprep.subr.bf16.mxu0 0
    %6408 = vmatpush1.bf16.msra.mxu0 0
    %6409 = vmatprep.subr.bf16.mxu0 0
    %6410 = vmatpush1.bf16.msra.mxu0 0
    %6411 = vmatprep.subr.bf16.mxu0 0
    %6412 = vmatpush1.bf16.msra.mxu0 0
    %6413 = vmatprep.subr.bf16.mxu0 0
    %6414 = vmatpush1.bf16.msra.mxu0 0
    %6415 = vmatprep.subr.bf16.mxu0 0
    %6416 = vmatpush1.bf16.msra.mxu0 0
    %6417 = vmatprep.mubr.bf16.mxu0 0
    %6418 = vmatmul.mubr.bf16.gmra.mrb[0].mxu0 %v6178
    %v6419 = vpop.f32.mrb[0].mxu0
    %v6420 = vadd.f32 %v6175, %v6419
    %v6421 = vpop.f32.mrb[0].mxu0
    %v6422 = vadd.f32 %v6175, %v6421
    %v6423 = vpop.f32.mrb[0].mxu0
    %v6424 = vpop.f32.mrb[0].mxu0
    %6425 = vdwg.mxu0
    %6426 = vmatprep.subr.bf16.mxu0 %v6055
    %6427 = vmatpush1.bf16.msra.mxu0 %v6054
    %6428 = vmatprep.subr.bf16.mxu0 %v6087
    %6429 = vmatpush1.bf16.msra.mxu0 %v6086
    %6430 = vmatprep.subr.bf16.mxu0 %v6119
    %6431 = vmatpush1.bf16.msra.mxu0 %v6118
    %6432 = vmatprep.subr.bf16.mxu0 %v6151
    %6433 = vmatpush1.bf16.msra.mxu0 %v6150
    %6434 = vmatprep.subr.bf16.mxu0 0
    %6435 = vmatpush1.bf16.msra.mxu0 0
    %6436 = vmatprep.subr.bf16.mxu0 0
    %6437 = vmatpush1.bf16.msra.mxu0 0
    %6438 = vmatprep.subr.bf16.mxu0 0
    %6439 = vmatpush1.bf16.msra.mxu0 0
    %6440 = vmatprep.subr.bf16.mxu0 0
    %6441 = vmatpush1.bf16.msra.mxu0 0
    %6442 = vmatprep.subr.bf16.mxu0 0
    %6443 = vmatpush1.bf16.msra.mxu0 0
    %6444 = vmatprep.subr.bf16.mxu0 0
    %6445 = vmatpush1.bf16.msra.mxu0 0
    %6446 = vmatprep.subr.bf16.mxu0 0
    %6447 = vmatpush1.bf16.msra.mxu0 0
    %6448 = vmatprep.subr.bf16.mxu0 0
    %6449 = vmatpush1.bf16.msra.mxu0 0
    %6450 = vmatprep.subr.bf16.mxu0 0
    %6451 = vmatpush1.bf16.msra.mxu0 0
    %6452 = vmatprep.subr.bf16.mxu0 0
    %6453 = vmatpush1.bf16.msra.mxu0 0
    %6454 = vmatprep.subr.bf16.mxu0 0
    %6455 = vmatpush1.bf16.msra.mxu0 0
    %6456 = vmatprep.subr.bf16.mxu0 0
    %6457 = vmatpush1.bf16.msra.mxu0 0
    %6458 = vmatprep.mubr.bf16.mxu0 0
    %6459 = vmatmul.mubr.bf16.gmra.mrb[0].mxu0 %v6178
    %v6460 = vpop.f32.mrb[0].mxu0
    %v6461 = vadd.f32 %v6175, %v6460
    %v6462 = vpop.f32.mrb[0].mxu0
    %v6463 = vadd.f32 %v6175, %v6462
    %v6464 = vpop.f32.mrb[0].mxu0
    %v6465 = vpop.f32.mrb[0].mxu0
    %6466 = vdwg.mxu0
    %6467 = vmatprep.subr.bf16.mxu0 %v6057
    %6468 = vmatpush1.bf16.msra.mxu0 %v6056
    %6469 = vmatprep.subr.bf16.mxu0 %v6089
    %6470 = vmatpush1.bf16.msra.mxu0 %v6088
    %6471 = vmatprep.subr.bf16.mxu0 %v6121
    %6472 = vmatpush1.bf16.msra.mxu0 %v6120
    %6473 = vmatprep.subr.bf16.mxu0 %v6153
    %6474 = vmatpush1.bf16.msra.mxu0 %v6152
    %6475 = vmatprep.subr.bf16.mxu0 0
    %6476 = vmatpush1.bf16.msra.mxu0 0
    %6477 = vmatprep.subr.bf16.mxu0 0
    %6478 = vmatpush1.bf16.msra.mxu0 0
    %6479 = vmatprep.subr.bf16.mxu0 0
    %6480 = vmatpush1.bf16.msra.mxu0 0
    %6481 = vmatprep.subr.bf16.mxu0 0
    %6482 = vmatpush1.bf16.msra.mxu0 0
    %6483 = vmatprep.subr.bf16.mxu0 0
    %6484 = vmatpush1.bf16.msra.mxu0 0
    %6485 = vmatprep.subr.bf16.mxu0 0
    %6486 = vmatpush1.bf16.msra.mxu0 0
    %6487 = vmatprep.subr.bf16.mxu0 0
    %6488 = vmatpush1.bf16.msra.mxu0 0
    %6489 = vmatprep.subr.bf16.mxu0 0
    %6490 = vmatpush1.bf16.msra.mxu0 0
    %6491 = vmatprep.subr.bf16.mxu0 0
    %6492 = vmatpush1.bf16.msra.mxu0 0
    %6493 = vmatprep.subr.bf16.mxu0 0
    %6494 = vmatpush1.bf16.msra.mxu0 0
    %6495 = vmatprep.subr.bf16.mxu0 0
    %6496 = vmatpush1.bf16.msra.mxu0 0
    %6497 = vmatprep.subr.bf16.mxu0 0
    %6498 = vmatpush1.bf16.msra.mxu0 0
    %6499 = vmatprep.mubr.bf16.mxu0 0
    %6500 = vmatmul.mubr.bf16.gmra.mrb[0].mxu0 %v6178
    %v6501 = vpop.f32.mrb[0].mxu0
    %v6502 = vadd.f32 %v6175, %v6501
    %v6503 = vpop.f32.mrb[0].mxu0
    %v6504 = vadd.f32 %v6175, %v6503
    %v6505 = vpop.f32.mrb[0].mxu0
    %v6506 = vpop.f32.mrb[0].mxu0
    %6507 = vdwg.mxu0
    %6508 = vmatprep.subr.bf16.mxu0 %v6059
    %6509 = vmatpush1.bf16.msra.mxu0 %v6058
    %6510 = vmatprep.subr.bf16.mxu0 %v6091
    %6511 = vmatpush1.bf16.msra.mxu0 %v6090
    %6512 = vmatprep.subr.bf16.mxu0 %v6123
    %6513 = vmatpush1.bf16.msra.mxu0 %v6122
    %6514 = vmatprep.subr.bf16.mxu0 %v6155
    %6515 = vmatpush1.bf16.msra.mxu0 %v6154
    %6516 = vmatprep.subr.bf16.mxu0 0
    %6517 = vmatpush1.bf16.msra.mxu0 0
    %6518 = vmatprep.subr.bf16.mxu0 0
    %6519 = vmatpush1.bf16.msra.mxu0 0
    %6520 = vmatprep.subr.bf16.mxu0 0
    %6521 = vmatpush1.bf16.msra.mxu0 0
    %6522 = vmatprep.subr.bf16.mxu0 0
    %6523 = vmatpush1.bf16.msra.mxu0 0
    %6524 = vmatprep.subr.bf16.mxu0 0
    %6525 = vmatpush1.bf16.msra.mxu0 0
    %6526 = vmatprep.subr.bf16.mxu0 0
    %6527 = vmatpush1.bf16.msra.mxu0 0
    %6528 = vmatprep.subr.bf16.mxu0 0
    %6529 = vmatpush1.bf16.msra.mxu0 0
    %6530 = vmatprep.subr.bf16.mxu0 0
    %6531 = vmatpush1.bf16.msra.mxu0 0
    %6532 = vmatprep.subr.bf16.mxu0 0
    %6533 = vmatpush1.bf16.msra.mxu0 0
    %6534 = vmatprep.subr.bf16.mxu0 0
    %6535 = vmatpush1.bf16.msra.mxu0 0
    %6536 = vmatprep.subr.bf16.mxu0 0
    %6537 = vmatpush1.bf16.msra.mxu0 0
    %6538 = vmatprep.subr.bf16.mxu0 0
    %6539 = vmatpush1.bf16.msra.mxu0 0
    %6540 = vmatprep.mubr.bf16.mxu0 0
    %6541 = vmatmul.mubr.bf16.gmra.mrb[0].mxu0 %v6178
    %v6542 = vpop.f32.mrb[0].mxu0
    %v6543 = vadd.f32 %v6175, %v6542
    %v6544 = vpop.f32.mrb[0].mxu0
    %v6545 = vadd.f32 %v6175, %v6544
    %v6546 = vpop.f32.mrb[0].mxu0
    %v6547 = vpop.f32.mrb[0].mxu0
    %6548 = vdwg.mxu0
    %6549 = vmatprep.subr.bf16.mxu0 %v6061
    %6550 = vmatpush1.bf16.msra.mxu0 %v6060
    %6551 = vmatprep.subr.bf16.mxu0 %v6093
    %6552 = vmatpush1.bf16.msra.mxu0 %v6092
    %6553 = vmatprep.subr.bf16.mxu0 %v6125
    %6554 = vmatpush1.bf16.msra.mxu0 %v6124
    %6555 = vmatprep.subr.bf16.mxu0 %v6157
    %6556 = vmatpush1.bf16.msra.mxu0 %v6156
    %6557 = vmatprep.subr.bf16.mxu0 0
    %6558 = vmatpush1.bf16.msra.mxu0 0
    %6559 = vmatprep.subr.bf16.mxu0 0
    %6560 = vmatpush1.bf16.msra.mxu0 0
    %6561 = vmatprep.subr.bf16.mxu0 0
    %6562 = vmatpush1.bf16.msra.mxu0 0
    %6563 = vmatprep.subr.bf16.mxu0 0
    %6564 = vmatpush1.bf16.msra.mxu0 0
    %6565 = vmatprep.subr.bf16.mxu0 0
    %6566 = vmatpush1.bf16.msra.mxu0 0
    %6567 = vmatprep.subr.bf16.mxu0 0
    %6568 = vmatpush1.bf16.msra.mxu0 0
    %6569 = vmatprep.subr.bf16.mxu0 0
    %6570 = vmatpush1.bf16.msra.mxu0 0
    %6571 = vmatprep.subr.bf16.mxu0 0
    %6572 = vmatpush1.bf16.msra.mxu0 0
    %6573 = vmatprep.subr.bf16.mxu0 0
    %6574 = vmatpush1.bf16.msra.mxu0 0
    %6575 = vmatprep.subr.bf16.mxu0 0
    %6576 = vmatpush1.bf16.msra.mxu0 0
    %6577 = vmatprep.subr.bf16.mxu0 0
    %6578 = vmatpush1.bf16.msra.mxu0 0
    %6579 = vmatprep.subr.bf16.mxu0 0
    %6580 = vmatpush1.bf16.msra.mxu0 0
    %6581 = vmatprep.mubr.bf16.mxu0 0
    %6582 = vmatmul.mubr.bf16.gmra.mrb[0].mxu0 %v6178
    %v6583 = vpop.f32.mrb[0].mxu0
    %v6584 = vadd.f32 %v6175, %v6583
    %v6585 = vpop.f32.mrb[0].mxu0
    %v6586 = vadd.f32 %v6175, %v6585
    %v6587 = vpop.f32.mrb[0].mxu0
    %v6588 = vpop.f32.mrb[0].mxu0
    %6589 = vdwg.mxu0
    %6590 = vmatprep.subr.bf16.mxu0 %v6063
    %6591 = vmatpush1.bf16.msra.mxu0 %v6062
    %6592 = vmatprep.subr.bf16.mxu0 %v6095
    %6593 = vmatpush1.bf16.msra.mxu0 %v6094
    %6594 = vmatprep.subr.bf16.mxu0 %v6127
    %6595 = vmatpush1.bf16.msra.mxu0 %v6126
    %6596 = vmatprep.subr.bf16.mxu0 %v6159
    %6597 = vmatpush1.bf16.msra.mxu0 %v6158
    %6598 = vmatprep.subr.bf16.mxu0 0
    %6599 = vmatpush1.bf16.msra.mxu0 0
    %6600 = vmatprep.subr.bf16.mxu0 0
    %6601 = vmatpush1.bf16.msra.mxu0 0
    %6602 = vmatprep.subr.bf16.mxu0 0
    %6603 = vmatpush1.bf16.msra.mxu0 0
    %6604 = vmatprep.subr.bf16.mxu0 0
    %6605 = vmatpush1.bf16.msra.mxu0 0
    %6606 = vmatprep.subr.bf16.mxu0 0
    %6607 = vmatpush1.bf16.msra.mxu0 0
    %6608 = vmatprep.subr.bf16.mxu0 0
    %6609 = vmatpush1.bf16.msra.mxu0 0
    %6610 = vmatprep.subr.bf16.mxu0 0
    %6611 = vmatpush1.bf16.msra.mxu0 0
    %6612 = vmatprep.subr.bf16.mxu0 0
    %6613 = vmatpush1.bf16.msra.mxu0 0
    %6614 = vmatprep.subr.bf16.mxu0 0
    %6615 = vmatpush1.bf16.msra.mxu0 0
    %6616 = vmatprep.subr.bf16.mxu0 0
    %6617 = vmatpush1.bf16.msra.mxu0 0
    %6618 = vmatprep.subr.bf16.mxu0 0
    %6619 = vmatpush1.bf16.msra.mxu0 0
    %6620 = vmatprep.subr.bf16.mxu0 0
    %6621 = vmatpush1.bf16.msra.mxu0 0
    %6622 = vmatprep.mubr.bf16.mxu0 0
    %6623 = vmatmul.mubr.bf16.gmra.mrb[0].mxu0 %v6178
    %v6624 = vpop.f32.mrb[0].mxu0
    %v6625 = vadd.f32 %v6175, %v6624
    %v6626 = vpop.f32.mrb[0].mxu0
    %v6627 = vadd.f32 %v6175, %v6626
    %v6628 = vpop.f32.mrb[0].mxu0
    %v6629 = vpop.f32.mrb[0].mxu0
    %6630 = vdwg.mxu0
    %6631 = vmatprep.subr.bf16.mxu0 %v6065
    %6632 = vmatpush1.bf16.msra.mxu0 %v6064
    %6633 = vmatprep.subr.bf16.mxu0 %v6097
    %6634 = vmatpush1.bf16.msra.mxu0 %v6096
    %6635 = vmatprep.subr.bf16.mxu0 %v6129
    %6636 = vmatpush1.bf16.msra.mxu0 %v6128
    %6637 = vmatprep.subr.bf16.mxu0 %v6161
    %6638 = vmatpush1.bf16.msra.mxu0 %v6160
    %6639 = vmatprep.subr.bf16.mxu0 0
    %6640 = vmatpush1.bf16.msra.mxu0 0
    %6641 = vmatprep.subr.bf16.mxu0 0
    %6642 = vmatpush1.bf16.msra.mxu0 0
    %6643 = vmatprep.subr.bf16.mxu0 0
    %6644 = vmatpush1.bf16.msra.mxu0 0
    %6645 = vmatprep.subr.bf16.mxu0 0
    %6646 = vmatpush1.bf16.msra.mxu0 0
    %6647 = vmatprep.subr.bf16.mxu0 0
    %6648 = vmatpush1.bf16.msra.mxu0 0
    %6649 = vmatprep.subr.bf16.mxu0 0
    %6650 = vmatpush1.bf16.msra.mxu0 0
    %6651 = vmatprep.subr.bf16.mxu0 0
    %6652 = vmatpush1.bf16.msra.mxu0 0
    %6653 = vmatprep.subr.bf16.mxu0 0
    %6654 = vmatpush1.bf16.msra.mxu0 0
    %6655 = vmatprep.subr.bf16.mxu0 0
    %6656 = vmatpush1.bf16.msra.mxu0 0
    %6657 = vmatprep.subr.bf16.mxu0 0
    %6658 = vmatpush1.bf16.msra.mxu0 0
    %6659 = vmatprep.subr.bf16.mxu0 0
    %6660 = vmatpush1.bf16.msra.mxu0 0
    %6661 = vmatprep.subr.bf16.mxu0 0
    %6662 = vmatpush1.bf16.msra.mxu0 0
    %6663 = vmatprep.mubr.bf16.mxu0 0
    %6664 = vmatmul.mubr.bf16.gmra.mrb[0].mxu0 %v6178
    %v6665 = vpop.f32.mrb[0].mxu0
    %v6666 = vadd.f32 %v6175, %v6665
    %v6667 = vpop.f32.mrb[0].mxu0
    %v6668 = vadd.f32 %v6175, %v6667
    %v6669 = vpop.f32.mrb[0].mxu0
    %v6670 = vpop.f32.mrb[0].mxu0
    %6671 = vdwg.mxu0
    %6672 = vmatprep.subr.bf16.mxu0 %v6067
    %6673 = vmatpush1.bf16.msra.mxu0 %v6066
    %6674 = vmatprep.subr.bf16.mxu0 %v6099
    %6675 = vmatpush1.bf16.msra.mxu0 %v6098
    %6676 = vmatprep.subr.bf16.mxu0 %v6131
    %6677 = vmatpush1.bf16.msra.mxu0 %v6130
    %6678 = vmatprep.subr.bf16.mxu0 %v6163
    %6679 = vmatpush1.bf16.msra.mxu0 %v6162
    %6680 = vmatprep.subr.bf16.mxu0 0
    %6681 = vmatpush1.bf16.msra.mxu0 0
    %6682 = vmatprep.subr.bf16.mxu0 0
    %6683 = vmatpush1.bf16.msra.mxu0 0
    %6684 = vmatprep.subr.bf16.mxu0 0
    %6685 = vmatpush1.bf16.msra.mxu0 0
    %6686 = vmatprep.subr.bf16.mxu0 0
    %6687 = vmatpush1.bf16.msra.mxu0 0
    %6688 = vmatprep.subr.bf16.mxu0 0
    %6689 = vmatpush1.bf16.msra.mxu0 0
    %6690 = vmatprep.subr.bf16.mxu0 0
    %6691 = vmatpush1.bf16.msra.mxu0 0
    %6692 = vmatprep.subr.bf16.mxu0 0
    %6693 = vmatpush1.bf16.msra.mxu0 0
    %6694 = vmatprep.subr.bf16.mxu0 0
    %6695 = vmatpush1.bf16.msra.mxu0 0
    %6696 = vmatprep.subr.bf16.mxu0 0
    %6697 = vmatpush1.bf16.msra.mxu0 0
    %6698 = vmatprep.subr.bf16.mxu0 0
    %6699 = vmatpush1.bf16.msra.mxu0 0
    %6700 = vmatprep.subr.bf16.mxu0 0
    %6701 = vmatpush1.bf16.msra.mxu0 0
    %6702 = vmatprep.subr.bf16.mxu0 0
    %6703 = vmatpush1.bf16.msra.mxu0 0
    %6704 = vmatprep.mubr.bf16.mxu0 0
    %6705 = vmatmul.mubr.bf16.gmra.mrb[0].mxu0 %v6178
    %v6706 = vpop.f32.mrb[0].mxu0
    %v6707 = vadd.f32 %v6175, %v6706
    %v6708 = vpop.f32.mrb[0].mxu0
    %v6709 = vadd.f32 %v6175, %v6708
    %v6710 = vpop.f32.mrb[0].mxu0
    %v6711 = vpop.f32.mrb[0].mxu0
    %6712 = vdwg.mxu0
    %6713 = vmatprep.subr.bf16.mxu0 %v6069
    %6714 = vmatpush1.bf16.msra.mxu0 %v6068
    %6715 = vmatprep.subr.bf16.mxu0 %v6101
    %6716 = vmatpush1.bf16.msra.mxu0 %v6100
    %6717 = vmatprep.subr.bf16.mxu0 %v6133
    %6718 = vmatpush1.bf16.msra.mxu0 %v6132
    %6719 = vmatprep.subr.bf16.mxu0 %v6165
    %6720 = vmatpush1.bf16.msra.mxu0 %v6164
    %6721 = vmatprep.subr.bf16.mxu0 0
    %6722 = vmatpush1.bf16.msra.mxu0 0
    %6723 = vmatprep.subr.bf16.mxu0 0
    %6724 = vmatpush1.bf16.msra.mxu0 0
    %6725 = vmatprep.subr.bf16.mxu0 0
    %6726 = vmatpush1.bf16.msra.mxu0 0
    %6727 = vmatprep.subr.bf16.mxu0 0
    %6728 = vmatpush1.bf16.msra.mxu0 0
    %6729 = vmatprep.subr.bf16.mxu0 0
    %6730 = vmatpush1.bf16.msra.mxu0 0
    %6731 = vmatprep.subr.bf16.mxu0 0
    %6732 = vmatpush1.bf16.msra.mxu0 0
    %6733 = vmatprep.subr.bf16.mxu0 0
    %6734 = vmatpush1.bf16.msra.mxu0 0
    %6735 = vmatprep.subr.bf16.mxu0 0
    %6736 = vmatpush1.bf16.msra.mxu0 0
    %6737 = vmatprep.subr.bf16.mxu0 0
    %6738 = vmatpush1.bf16.msra.mxu0 0
    %6739 = vmatprep.subr.bf16.mxu0 0
    %6740 = vmatpush1.bf16.msra.mxu0 0
    %6741 = vmatprep.subr.bf16.mxu0 0
    %6742 = vmatpush1.bf16.msra.mxu0 0
    %6743 = vmatprep.subr.bf16.mxu0 0
    %6744 = vmatpush1.bf16.msra.mxu0 0
    %6745 = vmatprep.mubr.bf16.mxu0 0
    %6746 = vmatmul.mubr.bf16.gmra.mrb[0].mxu0 %v6178
    %v6747 = vpop.f32.mrb[0].mxu0
    %v6748 = vadd.f32 %v6175, %v6747
    %v6749 = vpop.f32.mrb[0].mxu0
    %v6750 = vadd.f32 %v6175, %v6749
    %v6751 = vpop.f32.mrb[0].mxu0
    %v6752 = vpop.f32.mrb[0].mxu0
    %6753 = vdwg.mxu0
    %6754 = vmatprep.subr.bf16.mxu0 %v6071
    %6755 = vmatpush1.bf16.msra.mxu0 %v6070
    %6756 = vmatprep.subr.bf16.mxu0 %v6103
    %6757 = vmatpush1.bf16.msra.mxu0 %v6102
    %6758 = vmatprep.subr.bf16.mxu0 %v6135
    %6759 = vmatpush1.bf16.msra.mxu0 %v6134
    %6760 = vmatprep.subr.bf16.mxu0 %v6167
    %6761 = vmatpush1.bf16.msra.mxu0 %v6166
    %6762 = vmatprep.subr.bf16.mxu0 0
    %6763 = vmatpush1.bf16.msra.mxu0 0
    %6764 = vmatprep.subr.bf16.mxu0 0
    %6765 = vmatpush1.bf16.msra.mxu0 0
    %6766 = vmatprep.subr.bf16.mxu0 0
    %6767 = vmatpush1.bf16.msra.mxu0 0
    %6768 = vmatprep.subr.bf16.mxu0 0
    %6769 = vmatpush1.bf16.msra.mxu0 0
    %6770 = vmatprep.subr.bf16.mxu0 0
    %6771 = vmatpush1.bf16.msra.mxu0 0
    %6772 = vmatprep.subr.bf16.mxu0 0
    %6773 = vmatpush1.bf16.msra.mxu0 0
    %6774 = vmatprep.subr.bf16.mxu0 0
    %6775 = vmatpush1.bf16.msra.mxu0 0
    %6776 = vmatprep.subr.bf16.mxu0 0
    %6777 = vmatpush1.bf16.msra.mxu0 0
    %6778 = vmatprep.subr.bf16.mxu0 0
    %6779 = vmatpush1.bf16.msra.mxu0 0
    %6780 = vmatprep.subr.bf16.mxu0 0
    %6781 = vmatpush1.bf16.msra.mxu0 0
    %6782 = vmatprep.subr.bf16.mxu0 0
    %6783 = vmatpush1.bf16.msra.mxu0 0
    %6784 = vmatprep.subr.bf16.mxu0 0
    %6785 = vmatpush1.bf16.msra.mxu0 0
    %6786 = vmatprep.mubr.bf16.mxu0 0
    %6787 = vmatmul.mubr.bf16.gmra.mrb[0].mxu0 %v6178
    %v6788 = vpop.f32.mrb[0].mxu0
    %v6789 = vadd.f32 %v6175, %v6788
    %v6790 = vpop.f32.mrb[0].mxu0
    %v6791 = vadd.f32 %v6175, %v6790
    %v6792 = vpop.f32.mrb[0].mxu0
    %v6793 = vpop.f32.mrb[0].mxu0
    %6794 = vdwg.mxu0
    %6795 = vmatprep.subr.bf16.mxu0 %v6073
    %6796 = vmatpush1.bf16.msra.mxu0 %v6072
    %6797 = vmatprep.subr.bf16.mxu0 %v6105
    %6798 = vmatpush1.bf16.msra.mxu0 %v6104
    %6799 = vmatprep.subr.bf16.mxu0 %v6137
    %6800 = vmatpush1.bf16.msra.mxu0 %v6136
    %6801 = vmatprep.subr.bf16.mxu0 %v6169
    %6802 = vmatpush1.bf16.msra.mxu0 %v6168
    %6803 = vmatprep.subr.bf16.mxu0 0
    %6804 = vmatpush1.bf16.msra.mxu0 0
    %6805 = vmatprep.subr.bf16.mxu0 0
    %6806 = vmatpush1.bf16.msra.mxu0 0
    %6807 = vmatprep.subr.bf16.mxu0 0
    %6808 = vmatpush1.bf16.msra.mxu0 0
    %6809 = vmatprep.subr.bf16.mxu0 0
    %6810 = vmatpush1.bf16.msra.mxu0 0
    %6811 = vmatprep.subr.bf16.mxu0 0
    %6812 = vmatpush1.bf16.msra.mxu0 0
    %6813 = vmatprep.subr.bf16.mxu0 0
    %6814 = vmatpush1.bf16.msra.mxu0 0
    %6815 = vmatprep.subr.bf16.mxu0 0
    %6816 = vmatpush1.bf16.msra.mxu0 0
    %6817 = vmatprep.subr.bf16.mxu0 0
    %6818 = vmatpush1.bf16.msra.mxu0 0
    %6819 = vmatprep.subr.bf16.mxu0 0
    %6820 = vmatpush1.bf16.msra.mxu0 0
    %6821 = vmatprep.subr.bf16.mxu0 0
    %6822 = vmatpush1.bf16.msra.mxu0 0
    %6823 = vmatprep.subr.bf16.mxu0 0
    %6824 = vmatpush1.bf16.msra.mxu0 0
    %6825 = vmatprep.subr.bf16.mxu0 0
    %6826 = vmatpush1.bf16.msra.mxu0 0
    %6827 = vmatprep.mubr.bf16.mxu0 0
    %6828 = vmatmul.mubr.bf16.gmra.mrb[0].mxu0 %v6178
    %v6829 = vpop.f32.mrb[0].mxu0
    %v6830 = vadd.f32 %v6175, %v6829
    %v6831 = vpop.f32.mrb[0].mxu0
    %v6832 = vadd.f32 %v6175, %v6831
    %v6833 = vpop.f32.mrb[0].mxu0
    %v6834 = vpop.f32.mrb[0].mxu0
    %6835 = vdwg.mxu0
    %6836 = vst [vmem:[#allocation2] sm:$0xff] %v6215
    %6837 = vst [vmem:[#allocation2 + $0x8] sm:$0xff] %v6217
    %6838 = vst [vmem:[#allocation2 + $0x10] sm:$0xff] %v6256
    %6839 = vst [vmem:[#allocation2 + $0x18] sm:$0xff] %v6258
    %6840 = vst [vmem:[#allocation2 + $0x20] sm:$0xff] %v6297
    %6841 = vst [vmem:[#allocation2 + $0x28] sm:$0xff] %v6299
    %6842 = vst [vmem:[#allocation2 + $0x30] sm:$0xff] %v6338
    %6843 = vst [vmem:[#allocation2 + $0x38] sm:$0xff] %v6340
    %6844 = vst [vmem:[#allocation2 + $0x40] sm:$0xff] %v6379
    %6845 = vst [vmem:[#allocation2 + $0x48] sm:$0xff] %v6381
    %6846 = vst [vmem:[#allocation2 + $0x50] sm:$0xff] %v6420
    %6847 = vst [vmem:[#allocation2 + $0x58] sm:$0xff] %v6422
    %6848 = vst [vmem:[#allocation2 + $0x60] sm:$0xff] %v6461
    %6849 = vst [vmem:[#allocation2 + $0x68] sm:$0xff] %v6463
    %6850 = vst [vmem:[#allocation2 + $0x70] sm:$0xff] %v6502
    %6851 = vst [vmem:[#allocation2 + $0x78] sm:$0xff] %v6504
    %6852 = vst [vmem:[#allocation2 + $0x80] sm:$0xff] %v6543
    %6853 = vst [vmem:[#allocation2 + $0x88] sm:$0xff] %v6545
    %6854 = vst [vmem:[#allocation2 + $0x90] sm:$0xff] %v6584
    %6855 = vst [vmem:[#allocation2 + $0x98] sm:$0xff] %v6586
    %6856 = vst [vmem:[#allocation2 + $0xa0] sm:$0xff] %v6625
    %6857 = vst [vmem:[#allocation2 + $0xa8] sm:$0xff] %v6627
    %6858 = vst [vmem:[#allocation2 + $0xb0] sm:$0xff] %v6666
    %6859 = vst [vmem:[#allocation2 + $0xb8] sm:$0xff] %v6668
    %6860 = vst [vmem:[#allocation2 + $0xc0] sm:$0xff] %v6707
    %6861 = vst [vmem:[#allocation2 + $0xc8] sm:$0xff] %v6709
    %6862 = vst [vmem:[#allocation2 + $0xd0] sm:$0xff] %v6748
    %6863 = vst [vmem:[#allocation2 + $0xd8] sm:$0xff] %v6750
    %6864 = vst [vmem:[#allocation2 + $0xe0] sm:$0xff] %v6789
    %6865 = vst [vmem:[#allocation2 + $0xe8] sm:$0xff] %v6791
    %6866 = vst [vmem:[#allocation2 + $0xf0] sm:$0xff] %v6830
    %6867 = vst [vmem:[#allocation2 + $0xf8] sm:$0xff] %v6832
    // Predicated region
    $region38: #{tpu_custom_call.1} parent=1 // pred_check
      _
    $region39: #{tpu_custom_call.1} parent=1 // pred_check_branch
      %6869 = sbr.rel (0) target = $region41
    $region40: #{tpu_custom_call.1} parent=1 // pred_region
      %s6871 = ssub.s32 4096, 4096
      %6872 = vsyncadd [#allocation3], %s6871
      %s6874 = sshll.u32 [#allocation2], 4
      %s6875 = int_to_ptr.vmem [resolvable:$true] %s6874
      %6877 = dma.vmem_to_hbm [thread:$0]  %s6875, 4096, %s9, [#allocation3]
    $region41: #{tpu_custom_call.1} parent=1 // pred_fallthru
      _
    // Predicated region
    $region42: #{tpu_custom_call.1} parent=1 // pred_check
      _
    $region43: #{tpu_custom_call.1} parent=1 // pred_check_branch
      %6879 = sbr.rel (0) target = $region45
    $region44: #{tpu_custom_call.1} parent=1 // pred_region
      %6880 = dma.done [#allocation3], 4096
    $region45: #{tpu_custom_call.1} parent=1 // pred_fallthru
      _
    %6881 = vsyncpa [#allocation3], 1

</llo_original>
